<compile_context>
chip_gen: v6e
topology: v6e:2x2x1
jax: 0.10.0
libtpu: 0.0.40
codegen_flags: <defaults>
</compile_context>

<pallas_src>
import numpy as np
import jax
import jax.numpy as jnp
from jax.experimental import pallas as pl
from jax.experimental.pallas import tpu as pltpu


# ----------------------------------------------------------------------------
# Host-side (static) geometry helpers — plain numpy, no traced values.
# ----------------------------------------------------------------------------

def _tap_selectors(hi, wi, ho, wo, k, stride, pad):
    """0/1 matrices G[t] of shape (Hi*Wi, Ho*Wo), t = kh*k + kw.

    Column q=(ho,wo) of G[t] has a single 1 at the input position read by conv
    tap (kh,kw); columns whose tap falls in the padding region are all-zero.
    """
    g = np.zeros((k * k, hi * wi, ho * wo), dtype=np.float32)
    for kh in range(k):
        for kw in range(k):
            t = kh * k + kw
            for oh in range(ho):
                ih = stride * oh - pad + kh
                if ih < 0 or ih >= hi:
                    continue
                for ow in range(wo):
                    iw = stride * ow - pad + kw
                    if iw < 0 or iw >= wi:
                        continue
                    g[t, ih * wi + iw, oh * wo + ow] = 1.0
    return g


def build_plan(image_size, conv_dim):
    """Per-layer geometry + constant tap-selector matrices for the fused kernel."""
    repeat_num = int(np.log2(image_size)) - 3
    layers = []
    cin, size, cout = 3, image_size, conv_dim
    for _ in range(repeat_num + 1):        # self.main: Conv2d(.,.,4,2,1)+LeakyReLU
        hout = size // 2
        layers.append(dict(cin=cin, cout=cout, hin=size, hout=hout,
                           g=_tap_selectors(size, size, hout, hout, 4, 2, 1)))
        cin, cout, size = cout, cout * 2, hout
    assert size == 4                       # self.last is a 4x4 conv on a 4x4 map
    return dict(image_size=image_size, layers=layers,
                last_cin=cin, final_size=size)


# ----------------------------------------------------------------------------
# Fused Pallas kernel.
# ----------------------------------------------------------------------------

def _make_disc_kernel(n_main, compute_dtype):
    """Fused forward pass.

    Per batch element (activation A kept as (channels, positions), lane-dense):
      for each main layer:
        acc = 0
        for each of the k*k taps t:
          z    = A @ G[t]        # spatial gather via 0/1 selector   (MXU)
          acc += W[t] @ z        # per-tap channel mixing            (MXU, f32 acc)
        A = LeakyReLU(acc + bias, 0.2)
      out  = sum(A * W_last) + b_last   # final 4x4 conv == VPU mul + full reduce
    """
    def kernel(x_ref, *refs):
        out_ref = refs[-1]
        w_last_ref = refs[-3]
        b_last_ref = refs[-2]
        out_rows, out_lanes = out_ref.shape[1], out_ref.shape[2]

        for tb in range(x_ref.shape[0]):                  # static batch-tile loop
            a = x_ref[tb]                                 # (Cin, H*W)
            for l in range(n_main):
                g_ref, wt_ref, b_ref = refs[3 * l:3 * l + 3]
                taps, cout, _ = wt_ref.shape
                p_out = g_ref.shape[2]
                acc = jnp.zeros((cout, p_out), jnp.float32)
                for t in range(taps):                     # unrolled k*k taps
                    z = jnp.dot(a.astype(compute_dtype), g_ref[t],
                                preferred_element_type=jnp.float32)
                    acc = acc + jnp.dot(wt_ref[t], z.astype(compute_dtype),
                                        preferred_element_type=jnp.float32)
                acc = acc + b_ref[...]                    # (Cout, 1) broadcast
                a = jnp.where(acc >= 0.0, acc, 0.2 * acc)  # LeakyReLU(0.2)

            # Last conv: 4x4 kernel exactly covers the 4x4 map -> scalar.
            val = jnp.sum(a * w_last_ref[...].astype(jnp.float32))
            # Broadcast across a full (8,128) tile -> unmasked, lane-dense store.
            out_ref[tb] = (jnp.broadcast_to(val, (out_rows, out_lanes))
                           + b_last_ref[...])
    return kernel


# ----------------------------------------------------------------------------
# Wrapper.
# ----------------------------------------------------------------------------

def discriminator_forward(x_nchw, params, last_params, plan, *,
                          batch_tile=1, compute_dtype=jnp.float32):
    """Forward pass of the Discriminator as a single fused pallas_call."""
    layers = plan["layers"]
    n_main = len(layers)
    assert len(params) == n_main
    bsz, cin0, h0, w0 = x_nchw.shape
    assert cin0 == 3 and h0 == w0 == plan["image_size"]
    batch_tile = min(batch_tile, bsz)
    assert bsz % batch_tile == 0
    p0 = h0 * w0

    # NCHW -> (B, C, H*W): channels on sublanes, positions on lanes.
    # No padding / im2col materialisation in HBM.
    x2 = x_nchw.reshape(bsz, cin0, p0).astype(compute_dtype)

    def const_spec(arr):
        # full-array block, re-used across every grid step (fetched once)
        return pl.BlockSpec(arr.shape, lambda i, n=arr.ndim: (0,) * n)

    operands = [x2]
    in_specs = [pl.BlockSpec((batch_tile, cin0, p0), lambda i: (i, 0, 0))]

    for (w, b), meta in zip(params, layers):
        cout, cin, k, _ = w.shape
        assert (cin, cout) == (meta["cin"], meta["cout"])
        # per-tap weights, t = kh*k + kw  ->  (k*k, Cout, Cin)
        wt = jnp.transpose(w, (2, 3, 0, 1)).reshape(k * k, cout, cin)
        for arr in (jnp.asarray(meta["g"], dtype=compute_dtype),
                    wt.astype(compute_dtype),
                    b.reshape(cout, 1).astype(jnp.float32)):
            operands.append(arr)
            in_specs.append(const_spec(arr))

    w_last, b_last = last_params
    fs = plan["final_size"]
    w_last_mat = w_last[0].reshape(w_last.shape[1], fs * fs)      # (Cin_last, 16)
    for arr in (w_last_mat.astype(compute_dtype),
                b_last.reshape(1, 1).astype(jnp.float32)):
        operands.append(arr)
        in_specs.append(const_spec(arr))

    out_padded = pl.pallas_call(
        _make_disc_kernel(n_main, compute_dtype),
        grid=(bsz // batch_tile,),
        in_specs=in_specs,
        out_specs=pl.BlockSpec((batch_tile, 8, 128), lambda i: (i, 0, 0)),
        out_shape=jax.ShapeDtypeStruct((bsz, 8, 128), jnp.float32),
        compiler_params=pltpu.CompilerParams(
            dimension_semantics=("parallel",)),   # megacore on v7x; harmless elsewhere
    )(*operands)

    # (B, 8, 128) broadcast-filled tile -> per-batch scalar; mirrors torch .squeeze()
    return jnp.squeeze(out_padded[:, 0, 0])


# ----------------------------------------------------------------------------
# Parameters + pure-XLA reference (for a numerical sanity check).
# ----------------------------------------------------------------------------

def init_params(key, image_size=16, conv_dim=8):
    repeat_num = int(np.log2(image_size)) - 3
    dims = [(3, conv_dim)]
    curr = conv_dim
    for _ in range(repeat_num):
        dims.append((curr, curr * 2))
        curr *= 2
    params = []
    for cin, cout in dims:
        key, kw_, kb_ = jax.random.split(key, 3)
        w = 0.05 * jax.random.normal(kw_, (cout, cin, 4, 4), jnp.float32)
        b = 0.05 * jax.random.normal(kb_, (cout,), jnp.float32)
        params.append((w, b))
    key, kw_, kb_ = jax.random.split(key, 3)
    w_last = 0.05 * jax.random.normal(kw_, (1, curr, 4, 4), jnp.float32)
    b_last = 0.05 * jax.random.normal(kb_, (1,), jnp.float32)
    return params, (w_last, b_last)


def _reference_forward(x, params, last_params):
    y = x
    for w, b in params:
        y = jax.lax.conv_general_dilated(
            y, w, window_strides=(2, 2), padding=[(1, 1), (1, 1)],
            dimension_numbers=("NCHW", "OIHW", "NCHW"))
        y = y + b.reshape(1, -1, 1, 1)
        y = jnp.where(y >= 0.0, y, 0.2 * y)
    w_last, b_last = last_params
    y = jax.lax.conv_general_dilated(
        y, w_last, window_strides=(1, 1), padding=[(0, 0), (0, 0)],
        dimension_numbers=("NCHW", "OIHW", "NCHW"))
    y = y + b_last.reshape(1, -1, 1, 1)
    return jnp.squeeze(y)


if __name__ == "__main__":
    key = jax.random.PRNGKey(0)
    kx, kp = jax.random.split(key)
    B, image_size, conv_dim = 2, 16, 8            # spatial 16 -> 8 -> 4 -> 1
    x = jax.random.normal(kx, (B, 3, image_size, image_size), jnp.float32)
    params, last = init_params(kp, image_size=image_size, conv_dim=conv_dim)
    plan = build_plan(image_size, conv_dim)

    out = discriminator_forward(x, params, last, plan, batch_tile=1)
    out = jax.block_until_ready(out)
    assert out.shape == (B,), out.shape
    assert out.dtype == jnp.float32

    ref = jax.block_until_ready(_reference_forward(x, params, last))
    np.testing.assert_allclose(np.asarray(out), np.asarray(ref),
                               rtol=1e-4, atol=1e-5)
    print("KERNEL_OK")
</pallas_src>

<mosaic_0001>
module attributes {stable_mosaic.version = 11 : i64} {
  func.func @kernel(%arg0: i32, %arg1: memref<1x3x256xf32, #tpu.memory_space<vmem>>, %arg2: memref<16x256x64xf32, #tpu.memory_space<vmem>>, %arg3: memref<16x8x3xf32, #tpu.memory_space<vmem>>, %arg4: memref<8x1xf32, #tpu.memory_space<vmem>>, %arg5: memref<16x64x16xf32, #tpu.memory_space<vmem>>, %arg6: memref<16x16x8xf32, #tpu.memory_space<vmem>>, %arg7: memref<16x1xf32, #tpu.memory_space<vmem>>, %arg8: memref<16x16xf32, #tpu.memory_space<vmem>>, %arg9: memref<1x1xf32, #tpu.memory_space<vmem>>, %arg10: memref<1x8x128xf32, #tpu.memory_space<vmem>>) attributes {dimension_semantics = [#tpu.dimension_semantics<parallel>], iteration_bounds = array<i64: 2>, scalar_prefetch = 0 : i64, scratch_operands = 0 : i64, tpu.core_type = #tpu.core_type<tc>, window_params = [{transform_indices = @transform_0, window_bounds = array<i64: 1, 3, 256>}, {pipeline_mode = #tpu.pipeline_mode<synchronous>, transform_indices = @transform_1, window_bounds = array<i64: 16, 256, 64>}, {pipeline_mode = #tpu.pipeline_mode<synchronous>, transform_indices = @transform_2, window_bounds = array<i64: 16, 8, 3>}, {pipeline_mode = #tpu.pipeline_mode<synchronous>, transform_indices = @transform_3, window_bounds = array<i64: 8, 1>}, {pipeline_mode = #tpu.pipeline_mode<synchronous>, transform_indices = @transform_4, window_bounds = array<i64: 16, 64, 16>}, {pipeline_mode = #tpu.pipeline_mode<synchronous>, transform_indices = @transform_5, window_bounds = array<i64: 16, 16, 8>}, {pipeline_mode = #tpu.pipeline_mode<synchronous>, transform_indices = @transform_6, window_bounds = array<i64: 16, 1>}, {pipeline_mode = #tpu.pipeline_mode<synchronous>, transform_indices = @transform_7, window_bounds = array<i64: 16, 16>}, {pipeline_mode = #tpu.pipeline_mode<synchronous>, transform_indices = @transform_8, window_bounds = array<i64: 1, 1>}, {transform_indices = @transform_9, window_bounds = array<i64: 1, 8, 128>}]} {
    %c0 = arith.constant 0 : index
    %c0_0 = arith.constant 0 : index
    %c0_1 = arith.constant 0 : index
    %0 = vector.load %arg1[%c0, %c0_0, %c0_1] : memref<1x3x256xf32, #tpu.memory_space<vmem>>, vector<1x3x256xf32>
    %1 = vector.shape_cast %0 : vector<1x3x256xf32> to vector<3x256xf32>
    %cst = arith.constant 0.000000e+00 : f32
    %2 = vector.broadcast %cst : f32 to vector<8x64xf32>
    %c0_2 = arith.constant 0 : index
    %c0_3 = arith.constant 0 : index
    %c0_4 = arith.constant 0 : index
    %3 = vector.load %arg2[%c0_2, %c0_3, %c0_4] : memref<16x256x64xf32, #tpu.memory_space<vmem>>, vector<1x256x64xf32>
    %4 = vector.shape_cast %3 : vector<1x256x64xf32> to vector<256x64xf32>
    %cst_5 = arith.constant dense<0.000000e+00> : vector<3x64xf32>
    %5 = tpu.matmul %1, %4, %cst_5 {dimension_numbers = #tpu.dot_dimension_numbers<[1], [0], [0], [1], [0, 0, 1, 1], [], []>} : vector<3x256xf32>, vector<256x64xf32>, vector<3x64xf32> -> vector<3x64xf32>
    %c0_6 = arith.constant 0 : index
    %c0_7 = arith.constant 0 : index
    %c0_8 = arith.constant 0 : index
    %6 = vector.load %arg3[%c0_6, %c0_7, %c0_8] : memref<16x8x3xf32, #tpu.memory_space<vmem>>, vector<1x8x3xf32>
    %7 = vector.shape_cast %6 : vector<1x8x3xf32> to vector<8x3xf32>
    %cst_9 = arith.constant dense<0.000000e+00> : vector<8x64xf32>
    %8 = tpu.matmul %7, %5, %cst_9 {dimension_numbers = #tpu.dot_dimension_numbers<[1], [0], [0], [1], [0, 0, 1, 1], [], []>} : vector<8x3xf32>, vector<3x64xf32>, vector<8x64xf32> -> vector<8x64xf32>
    %9 = arith.addf %2, %8 : vector<8x64xf32>
    %c1 = arith.constant 1 : index
    %c0_10 = arith.constant 0 : index
    %c0_11 = arith.constant 0 : index
    %10 = vector.load %arg2[%c1, %c0_10, %c0_11] : memref<16x256x64xf32, #tpu.memory_space<vmem>>, vector<1x256x64xf32>
    %11 = vector.shape_cast %10 : vector<1x256x64xf32> to vector<256x64xf32>
    %cst_12 = arith.constant dense<0.000000e+00> : vector<3x64xf32>
    %12 = tpu.matmul %1, %11, %cst_12 {dimension_numbers = #tpu.dot_dimension_numbers<[1], [0], [0], [1], [0, 0, 1, 1], [], []>} : vector<3x256xf32>, vector<256x64xf32>, vector<3x64xf32> -> vector<3x64xf32>
    %c1_13 = arith.constant 1 : index
    %c0_14 = arith.constant 0 : index
    %c0_15 = arith.constant 0 : index
    %13 = vector.load %arg3[%c1_13, %c0_14, %c0_15] : memref<16x8x3xf32, #tpu.memory_space<vmem>>, vector<1x8x3xf32>
    %14 = vector.shape_cast %13 : vector<1x8x3xf32> to vector<8x3xf32>
    %cst_16 = arith.constant dense<0.000000e+00> : vector<8x64xf32>
    %15 = tpu.matmul %14, %12, %cst_16 {dimension_numbers = #tpu.dot_dimension_numbers<[1], [0], [0], [1], [0, 0, 1, 1], [], []>} : vector<8x3xf32>, vector<3x64xf32>, vector<8x64xf32> -> vector<8x64xf32>
    %16 = arith.addf %9, %15 : vector<8x64xf32>
    %c2 = arith.constant 2 : index
    %c0_17 = arith.constant 0 : index
    %c0_18 = arith.constant 0 : index
    %17 = vector.load %arg2[%c2, %c0_17, %c0_18] : memref<16x256x64xf32, #tpu.memory_space<vmem>>, vector<1x256x64xf32>
    %18 = vector.shape_cast %17 : vector<1x256x64xf32> to vector<256x64xf32>
    %cst_19 = arith.constant dense<0.000000e+00> : vector<3x64xf32>
    %19 = tpu.matmul %1, %18, %cst_19 {dimension_numbers = #tpu.dot_dimension_numbers<[1], [0], [0], [1], [0, 0, 1, 1], [], []>} : vector<3x256xf32>, vector<256x64xf32>, vector<3x64xf32> -> vector<3x64xf32>
    %c2_20 = arith.constant 2 : index
    %c0_21 = arith.constant 0 : index
    %c0_22 = arith.constant 0 : index
    %20 = vector.load %arg3[%c2_20, %c0_21, %c0_22] : memref<16x8x3xf32, #tpu.memory_space<vmem>>, vector<1x8x3xf32>
    %21 = vector.shape_cast %20 : vector<1x8x3xf32> to vector<8x3xf32>
    %cst_23 = arith.constant dense<0.000000e+00> : vector<8x64xf32>
    %22 = tpu.matmul %21, %19, %cst_23 {dimension_numbers = #tpu.dot_dimension_numbers<[1], [0], [0], [1], [0, 0, 1, 1], [], []>} : vector<8x3xf32>, vector<3x64xf32>, vector<8x64xf32> -> vector<8x64xf32>
    %23 = arith.addf %16, %22 : vector<8x64xf32>
    %c3 = arith.constant 3 : index
    %c0_24 = arith.constant 0 : index
    %c0_25 = arith.constant 0 : index
    %24 = vector.load %arg2[%c3, %c0_24, %c0_25] : memref<16x256x64xf32, #tpu.memory_space<vmem>>, vector<1x256x64xf32>
    %25 = vector.shape_cast %24 : vector<1x256x64xf32> to vector<256x64xf32>
    %cst_26 = arith.constant dense<0.000000e+00> : vector<3x64xf32>
    %26 = tpu.matmul %1, %25, %cst_26 {dimension_numbers = #tpu.dot_dimension_numbers<[1], [0], [0], [1], [0, 0, 1, 1], [], []>} : vector<3x256xf32>, vector<256x64xf32>, vector<3x64xf32> -> vector<3x64xf32>
    %c3_27 = arith.constant 3 : index
    %c0_28 = arith.constant 0 : index
    %c0_29 = arith.constant 0 : index
    %27 = vector.load %arg3[%c3_27, %c0_28, %c0_29] : memref<16x8x3xf32, #tpu.memory_space<vmem>>, vector<1x8x3xf32>
    %28 = vector.shape_cast %27 : vector<1x8x3xf32> to vector<8x3xf32>
    %cst_30 = arith.constant dense<0.000000e+00> : vector<8x64xf32>
    %29 = tpu.matmul %28, %26, %cst_30 {dimension_numbers = #tpu.dot_dimension_numbers<[1], [0], [0], [1], [0, 0, 1, 1], [], []>} : vector<8x3xf32>, vector<3x64xf32>, vector<8x64xf32> -> vector<8x64xf32>
    %30 = arith.addf %23, %29 : vector<8x64xf32>
    %c4 = arith.constant 4 : index
    %c0_31 = arith.constant 0 : index
    %c0_32 = arith.constant 0 : index
    %31 = vector.load %arg2[%c4, %c0_31, %c0_32] : memref<16x256x64xf32, #tpu.memory_space<vmem>>, vector<1x256x64xf32>
    %32 = vector.shape_cast %31 : vector<1x256x64xf32> to vector<256x64xf32>
    %cst_33 = arith.constant dense<0.000000e+00> : vector<3x64xf32>
    %33 = tpu.matmul %1, %32, %cst_33 {dimension_numbers = #tpu.dot_dimension_numbers<[1], [0], [0], [1], [0, 0, 1, 1], [], []>} : vector<3x256xf32>, vector<256x64xf32>, vector<3x64xf32> -> vector<3x64xf32>
    %c4_34 = arith.constant 4 : index
    %c0_35 = arith.constant 0 : index
    %c0_36 = arith.constant 0 : index
    %34 = vector.load %arg3[%c4_34, %c0_35, %c0_36] : memref<16x8x3xf32, #tpu.memory_space<vmem>>, vector<1x8x3xf32>
    %35 = vector.shape_cast %34 : vector<1x8x3xf32> to vector<8x3xf32>
    %cst_37 = arith.constant dense<0.000000e+00> : vector<8x64xf32>
    %36 = tpu.matmul %35, %33, %cst_37 {dimension_numbers = #tpu.dot_dimension_numbers<[1], [0], [0], [1], [0, 0, 1, 1], [], []>} : vector<8x3xf32>, vector<3x64xf32>, vector<8x64xf32> -> vector<8x64xf32>
    %37 = arith.addf %30, %36 : vector<8x64xf32>
    %c5 = arith.constant 5 : index
    %c0_38 = arith.constant 0 : index
    %c0_39 = arith.constant 0 : index
    %38 = vector.load %arg2[%c5, %c0_38, %c0_39] : memref<16x256x64xf32, #tpu.memory_space<vmem>>, vector<1x256x64xf32>
    %39 = vector.shape_cast %38 : vector<1x256x64xf32> to vector<256x64xf32>
    %cst_40 = arith.constant dense<0.000000e+00> : vector<3x64xf32>
    %40 = tpu.matmul %1, %39, %cst_40 {dimension_numbers = #tpu.dot_dimension_numbers<[1], [0], [0], [1], [0, 0, 1, 1], [], []>} : vector<3x256xf32>, vector<256x64xf32>, vector<3x64xf32> -> vector<3x64xf32>
    %c5_41 = arith.constant 5 : index
    %c0_42 = arith.constant 0 : index
    %c0_43 = arith.constant 0 : index
    %41 = vector.load %arg3[%c5_41, %c0_42, %c0_43] : memref<16x8x3xf32, #tpu.memory_space<vmem>>, vector<1x8x3xf32>
    %42 = vector.shape_cast %41 : vector<1x8x3xf32> to vector<8x3xf32>
    %cst_44 = arith.constant dense<0.000000e+00> : vector<8x64xf32>
    %43 = tpu.matmul %42, %40, %cst_44 {dimension_numbers = #tpu.dot_dimension_numbers<[1], [0], [0], [1], [0, 0, 1, 1], [], []>} : vector<8x3xf32>, vector<3x64xf32>, vector<8x64xf32> -> vector<8x64xf32>
    %44 = arith.addf %37, %43 : vector<8x64xf32>
    %c6 = arith.constant 6 : index
    %c0_45 = arith.constant 0 : index
    %c0_46 = arith.constant 0 : index
    %45 = vector.load %arg2[%c6, %c0_45, %c0_46] : memref<16x256x64xf32, #tpu.memory_space<vmem>>, vector<1x256x64xf32>
    %46 = vector.shape_cast %45 : vector<1x256x64xf32> to vector<256x64xf32>
    %cst_47 = arith.constant dense<0.000000e+00> : vector<3x64xf32>
    %47 = tpu.matmul %1, %46, %cst_47 {dimension_numbers = #tpu.dot_dimension_numbers<[1], [0], [0], [1], [0, 0, 1, 1], [], []>} : vector<3x256xf32>, vector<256x64xf32>, vector<3x64xf32> -> vector<3x64xf32>
    %c6_48 = arith.constant 6 : index
    %c0_49 = arith.constant 0 : index
    %c0_50 = arith.constant 0 : index
    %48 = vector.load %arg3[%c6_48, %c0_49, %c0_50] : memref<16x8x3xf32, #tpu.memory_space<vmem>>, vector<1x8x3xf32>
    %49 = vector.shape_cast %48 : vector<1x8x3xf32> to vector<8x3xf32>
    %cst_51 = arith.constant dense<0.000000e+00> : vector<8x64xf32>
    %50 = tpu.matmul %49, %47, %cst_51 {dimension_numbers = #tpu.dot_dimension_numbers<[1], [0], [0], [1], [0, 0, 1, 1], [], []>} : vector<8x3xf32>, vector<3x64xf32>, vector<8x64xf32> -> vector<8x64xf32>
    %51 = arith.addf %44, %50 : vector<8x64xf32>
    %c7 = arith.constant 7 : index
    %c0_52 = arith.constant 0 : index
    %c0_53 = arith.constant 0 : index
    %52 = vector.load %arg2[%c7, %c0_52, %c0_53] : memref<16x256x64xf32, #tpu.memory_space<vmem>>, vector<1x256x64xf32>
    %53 = vector.shape_cast %52 : vector<1x256x64xf32> to vector<256x64xf32>
    %cst_54 = arith.constant dense<0.000000e+00> : vector<3x64xf32>
    %54 = tpu.matmul %1, %53, %cst_54 {dimension_numbers = #tpu.dot_dimension_numbers<[1], [0], [0], [1], [0, 0, 1, 1], [], []>} : vector<3x256xf32>, vector<256x64xf32>, vector<3x64xf32> -> vector<3x64xf32>
    %c7_55 = arith.constant 7 : index
    %c0_56 = arith.constant 0 : index
    %c0_57 = arith.constant 0 : index
    %55 = vector.load %arg3[%c7_55, %c0_56, %c0_57] : memref<16x8x3xf32, #tpu.memory_space<vmem>>, vector<1x8x3xf32>
    %56 = vector.shape_cast %55 : vector<1x8x3xf32> to vector<8x3xf32>
    %cst_58 = arith.constant dense<0.000000e+00> : vector<8x64xf32>
    %57 = tpu.matmul %56, %54, %cst_58 {dimension_numbers = #tpu.dot_dimension_numbers<[1], [0], [0], [1], [0, 0, 1, 1], [], []>} : vector<8x3xf32>, vector<3x64xf32>, vector<8x64xf32> -> vector<8x64xf32>
    %58 = arith.addf %51, %57 : vector<8x64xf32>
    %c8 = arith.constant 8 : index
    %c0_59 = arith.constant 0 : index
    %c0_60 = arith.constant 0 : index
    %59 = vector.load %arg2[%c8, %c0_59, %c0_60] : memref<16x256x64xf32, #tpu.memory_space<vmem>>, vector<1x256x64xf32>
    %60 = vector.shape_cast %59 : vector<1x256x64xf32> to vector<256x64xf32>
    %cst_61 = arith.constant dense<0.000000e+00> : vector<3x64xf32>
    %61 = tpu.matmul %1, %60, %cst_61 {dimension_numbers = #tpu.dot_dimension_numbers<[1], [0], [0], [1], [0, 0, 1, 1], [], []>} : vector<3x256xf32>, vector<256x64xf32>, vector<3x64xf32> -> vector<3x64xf32>
    %c8_62 = arith.constant 8 : index
    %c0_63 = arith.constant 0 : index
    %c0_64 = arith.constant 0 : index
    %62 = vector.load %arg3[%c8_62, %c0_63, %c0_64] : memref<16x8x3xf32, #tpu.memory_space<vmem>>, vector<1x8x3xf32>
    %63 = vector.shape_cast %62 : vector<1x8x3xf32> to vector<8x3xf32>
    %cst_65 = arith.constant dense<0.000000e+00> : vector<8x64xf32>
    %64 = tpu.matmul %63, %61, %cst_65 {dimension_numbers = #tpu.dot_dimension_numbers<[1], [0], [0], [1], [0, 0, 1, 1], [], []>} : vector<8x3xf32>, vector<3x64xf32>, vector<8x64xf32> -> vector<8x64xf32>
    %65 = arith.addf %58, %64 : vector<8x64xf32>
    %c9 = arith.constant 9 : index
    %c0_66 = arith.constant 0 : index
    %c0_67 = arith.constant 0 : index
    %66 = vector.load %arg2[%c9, %c0_66, %c0_67] : memref<16x256x64xf32, #tpu.memory_space<vmem>>, vector<1x256x64xf32>
    %67 = vector.shape_cast %66 : vector<1x256x64xf32> to vector<256x64xf32>
    %cst_68 = arith.constant dense<0.000000e+00> : vector<3x64xf32>
    %68 = tpu.matmul %1, %67, %cst_68 {dimension_numbers = #tpu.dot_dimension_numbers<[1], [0], [0], [1], [0, 0, 1, 1], [], []>} : vector<3x256xf32>, vector<256x64xf32>, vector<3x64xf32> -> vector<3x64xf32>
    %c9_69 = arith.constant 9 : index
    %c0_70 = arith.constant 0 : index
    %c0_71 = arith.constant 0 : index
    %69 = vector.load %arg3[%c9_69, %c0_70, %c0_71] : memref<16x8x3xf32, #tpu.memory_space<vmem>>, vector<1x8x3xf32>
    %70 = vector.shape_cast %69 : vector<1x8x3xf32> to vector<8x3xf32>
    %cst_72 = arith.constant dense<0.000000e+00> : vector<8x64xf32>
    %71 = tpu.matmul %70, %68, %cst_72 {dimension_numbers = #tpu.dot_dimension_numbers<[1], [0], [0], [1], [0, 0, 1, 1], [], []>} : vector<8x3xf32>, vector<3x64xf32>, vector<8x64xf32> -> vector<8x64xf32>
    %72 = arith.addf %65, %71 : vector<8x64xf32>
    %c10 = arith.constant 10 : index
    %c0_73 = arith.constant 0 : index
    %c0_74 = arith.constant 0 : index
    %73 = vector.load %arg2[%c10, %c0_73, %c0_74] : memref<16x256x64xf32, #tpu.memory_space<vmem>>, vector<1x256x64xf32>
    %74 = vector.shape_cast %73 : vector<1x256x64xf32> to vector<256x64xf32>
    %cst_75 = arith.constant dense<0.000000e+00> : vector<3x64xf32>
    %75 = tpu.matmul %1, %74, %cst_75 {dimension_numbers = #tpu.dot_dimension_numbers<[1], [0], [0], [1], [0, 0, 1, 1], [], []>} : vector<3x256xf32>, vector<256x64xf32>, vector<3x64xf32> -> vector<3x64xf32>
    %c10_76 = arith.constant 10 : index
    %c0_77 = arith.constant 0 : index
    %c0_78 = arith.constant 0 : index
    %76 = vector.load %arg3[%c10_76, %c0_77, %c0_78] : memref<16x8x3xf32, #tpu.memory_space<vmem>>, vector<1x8x3xf32>
    %77 = vector.shape_cast %76 : vector<1x8x3xf32> to vector<8x3xf32>
    %cst_79 = arith.constant dense<0.000000e+00> : vector<8x64xf32>
    %78 = tpu.matmul %77, %75, %cst_79 {dimension_numbers = #tpu.dot_dimension_numbers<[1], [0], [0], [1], [0, 0, 1, 1], [], []>} : vector<8x3xf32>, vector<3x64xf32>, vector<8x64xf32> -> vector<8x64xf32>
    %79 = arith.addf %72, %78 : vector<8x64xf32>
    %c11 = arith.constant 11 : index
    %c0_80 = arith.constant 0 : index
    %c0_81 = arith.constant 0 : index
    %80 = vector.load %arg2[%c11, %c0_80, %c0_81] : memref<16x256x64xf32, #tpu.memory_space<vmem>>, vector<1x256x64xf32>
    %81 = vector.shape_cast %80 : vector<1x256x64xf32> to vector<256x64xf32>
    %cst_82 = arith.constant dense<0.000000e+00> : vector<3x64xf32>
    %82 = tpu.matmul %1, %81, %cst_82 {dimension_numbers = #tpu.dot_dimension_numbers<[1], [0], [0], [1], [0, 0, 1, 1], [], []>} : vector<3x256xf32>, vector<256x64xf32>, vector<3x64xf32> -> vector<3x64xf32>
    %c11_83 = arith.constant 11 : index
    %c0_84 = arith.constant 0 : index
    %c0_85 = arith.constant 0 : index
    %83 = vector.load %arg3[%c11_83, %c0_84, %c0_85] : memref<16x8x3xf32, #tpu.memory_space<vmem>>, vector<1x8x3xf32>
    %84 = vector.shape_cast %83 : vector<1x8x3xf32> to vector<8x3xf32>
    %cst_86 = arith.constant dense<0.000000e+00> : vector<8x64xf32>
    %85 = tpu.matmul %84, %82, %cst_86 {dimension_numbers = #tpu.dot_dimension_numbers<[1], [0], [0], [1], [0, 0, 1, 1], [], []>} : vector<8x3xf32>, vector<3x64xf32>, vector<8x64xf32> -> vector<8x64xf32>
    %86 = arith.addf %79, %85 : vector<8x64xf32>
    %c12 = arith.constant 12 : index
    %c0_87 = arith.constant 0 : index
    %c0_88 = arith.constant 0 : index
    %87 = vector.load %arg2[%c12, %c0_87, %c0_88] : memref<16x256x64xf32, #tpu.memory_space<vmem>>, vector<1x256x64xf32>
    %88 = vector.shape_cast %87 : vector<1x256x64xf32> to vector<256x64xf32>
    %cst_89 = arith.constant dense<0.000000e+00> : vector<3x64xf32>
    %89 = tpu.matmul %1, %88, %cst_89 {dimension_numbers = #tpu.dot_dimension_numbers<[1], [0], [0], [1], [0, 0, 1, 1], [], []>} : vector<3x256xf32>, vector<256x64xf32>, vector<3x64xf32> -> vector<3x64xf32>
    %c12_90 = arith.constant 12 : index
    %c0_91 = arith.constant 0 : index
    %c0_92 = arith.constant 0 : index
    %90 = vector.load %arg3[%c12_90, %c0_91, %c0_92] : memref<16x8x3xf32, #tpu.memory_space<vmem>>, vector<1x8x3xf32>
    %91 = vector.shape_cast %90 : vector<1x8x3xf32> to vector<8x3xf32>
    %cst_93 = arith.constant dense<0.000000e+00> : vector<8x64xf32>
    %92 = tpu.matmul %91, %89, %cst_93 {dimension_numbers = #tpu.dot_dimension_numbers<[1], [0], [0], [1], [0, 0, 1, 1], [], []>} : vector<8x3xf32>, vector<3x64xf32>, vector<8x64xf32> -> vector<8x64xf32>
    %93 = arith.addf %86, %92 : vector<8x64xf32>
    %c13 = arith.constant 13 : index
    %c0_94 = arith.constant 0 : index
    %c0_95 = arith.constant 0 : index
    %94 = vector.load %arg2[%c13, %c0_94, %c0_95] : memref<16x256x64xf32, #tpu.memory_space<vmem>>, vector<1x256x64xf32>
    %95 = vector.shape_cast %94 : vector<1x256x64xf32> to vector<256x64xf32>
    %cst_96 = arith.constant dense<0.000000e+00> : vector<3x64xf32>
    %96 = tpu.matmul %1, %95, %cst_96 {dimension_numbers = #tpu.dot_dimension_numbers<[1], [0], [0], [1], [0, 0, 1, 1], [], []>} : vector<3x256xf32>, vector<256x64xf32>, vector<3x64xf32> -> vector<3x64xf32>
    %c13_97 = arith.constant 13 : index
    %c0_98 = arith.constant 0 : index
    %c0_99 = arith.constant 0 : index
    %97 = vector.load %arg3[%c13_97, %c0_98, %c0_99] : memref<16x8x3xf32, #tpu.memory_space<vmem>>, vector<1x8x3xf32>
    %98 = vector.shape_cast %97 : vector<1x8x3xf32> to vector<8x3xf32>
    %cst_100 = arith.constant dense<0.000000e+00> : vector<8x64xf32>
    %99 = tpu.matmul %98, %96, %cst_100 {dimension_numbers = #tpu.dot_dimension_numbers<[1], [0], [0], [1], [0, 0, 1, 1], [], []>} : vector<8x3xf32>, vector<3x64xf32>, vector<8x64xf32> -> vector<8x64xf32>
    %100 = arith.addf %93, %99 : vector<8x64xf32>
    %c14 = arith.constant 14 : index
    %c0_101 = arith.constant 0 : index
    %c0_102 = arith.constant 0 : index
    %101 = vector.load %arg2[%c14, %c0_101, %c0_102] : memref<16x256x64xf32, #tpu.memory_space<vmem>>, vector<1x256x64xf32>
    %102 = vector.shape_cast %101 : vector<1x256x64xf32> to vector<256x64xf32>
    %cst_103 = arith.constant dense<0.000000e+00> : vector<3x64xf32>
    %103 = tpu.matmul %1, %102, %cst_103 {dimension_numbers = #tpu.dot_dimension_numbers<[1], [0], [0], [1], [0, 0, 1, 1], [], []>} : vector<3x256xf32>, vector<256x64xf32>, vector<3x64xf32> -> vector<3x64xf32>
    %c14_104 = arith.constant 14 : index
    %c0_105 = arith.constant 0 : index
    %c0_106 = arith.constant 0 : index
    %104 = vector.load %arg3[%c14_104, %c0_105, %c0_106] : memref<16x8x3xf32, #tpu.memory_space<vmem>>, vector<1x8x3xf32>
    %105 = vector.shape_cast %104 : vector<1x8x3xf32> to vector<8x3xf32>
    %cst_107 = arith.constant dense<0.000000e+00> : vector<8x64xf32>
    %106 = tpu.matmul %105, %103, %cst_107 {dimension_numbers = #tpu.dot_dimension_numbers<[1], [0], [0], [1], [0, 0, 1, 1], [], []>} : vector<8x3xf32>, vector<3x64xf32>, vector<8x64xf32> -> vector<8x64xf32>
    %107 = arith.addf %100, %106 : vector<8x64xf32>
    %c15 = arith.constant 15 : index
    %c0_108 = arith.constant 0 : index
    %c0_109 = arith.constant 0 : index
    %108 = vector.load %arg2[%c15, %c0_108, %c0_109] : memref<16x256x64xf32, #tpu.memory_space<vmem>>, vector<1x256x64xf32>
    %109 = vector.shape_cast %108 : vector<1x256x64xf32> to vector<256x64xf32>
    %cst_110 = arith.constant dense<0.000000e+00> : vector<3x64xf32>
    %110 = tpu.matmul %1, %109, %cst_110 {dimension_numbers = #tpu.dot_dimension_numbers<[1], [0], [0], [1], [0, 0, 1, 1], [], []>} : vector<3x256xf32>, vector<256x64xf32>, vector<3x64xf32> -> vector<3x64xf32>
    %c15_111 = arith.constant 15 : index
    %c0_112 = arith.constant 0 : index
    %c0_113 = arith.constant 0 : index
    %111 = vector.load %arg3[%c15_111, %c0_112, %c0_113] : memref<16x8x3xf32, #tpu.memory_space<vmem>>, vector<1x8x3xf32>
    %112 = vector.shape_cast %111 : vector<1x8x3xf32> to vector<8x3xf32>
    %cst_114 = arith.constant dense<0.000000e+00> : vector<8x64xf32>
    %113 = tpu.matmul %112, %110, %cst_114 {dimension_numbers = #tpu.dot_dimension_numbers<[1], [0], [0], [1], [0, 0, 1, 1], [], []>} : vector<8x3xf32>, vector<3x64xf32>, vector<8x64xf32> -> vector<8x64xf32>
    %114 = arith.addf %107, %113 : vector<8x64xf32>
    %c0_115 = arith.constant 0 : index
    %c0_116 = arith.constant 0 : index
    %115 = vector.load %arg4[%c0_115, %c0_116] : memref<8x1xf32, #tpu.memory_space<vmem>>, vector<8x1xf32>
    %116 = vector.broadcast %115 : vector<8x1xf32> to vector<8x64xf32>
    %117 = arith.addf %114, %116 : vector<8x64xf32>
    %cst_117 = arith.constant 0.000000e+00 : f32
    %118 = vector.broadcast %cst_117 : f32 to vector<8x64xf32>
    %119 = arith.cmpf oge, %117, %118 : vector<8x64xf32>
    %cst_118 = arith.constant 2.000000e-01 : f32
    %120 = vector.broadcast %cst_118 : f32 to vector<8x64xf32>
    %121 = arith.mulf %120, %117 : vector<8x64xf32>
    %122 = arith.select %119, %117, %121 : vector<8x64xi1>, vector<8x64xf32>
    %cst_119 = arith.constant 0.000000e+00 : f32
    %123 = vector.broadcast %cst_119 : f32 to vector<16x16xf32>
    %c0_120 = arith.constant 0 : index
    %c0_121 = arith.constant 0 : index
    %c0_122 = arith.constant 0 : index
    %124 = vector.load %arg5[%c0_120, %c0_121, %c0_122] : memref<16x64x16xf32, #tpu.memory_space<vmem>>, vector<1x64x16xf32>
    %125 = vector.shape_cast %124 : vector<1x64x16xf32> to vector<64x16xf32>
    %cst_123 = arith.constant dense<0.000000e+00> : vector<8x16xf32>
    %126 = tpu.matmul %122, %125, %cst_123 {dimension_numbers = #tpu.dot_dimension_numbers<[1], [0], [0], [1], [0, 0, 1, 1], [], []>} : vector<8x64xf32>, vector<64x16xf32>, vector<8x16xf32> -> vector<8x16xf32>
    %c0_124 = arith.constant 0 : index
    %c0_125 = arith.constant 0 : index
    %c0_126 = arith.constant 0 : index
    %127 = vector.load %arg6[%c0_124, %c0_125, %c0_126] : memref<16x16x8xf32, #tpu.memory_space<vmem>>, vector<1x16x8xf32>
    %128 = vector.shape_cast %127 : vector<1x16x8xf32> to vector<16x8xf32>
    %cst_127 = arith.constant dense<0.000000e+00> : vector<16x16xf32>
    %129 = tpu.matmul %128, %126, %cst_127 {dimension_numbers = #tpu.dot_dimension_numbers<[1], [0], [0], [1], [0, 0, 1, 1], [], []>} : vector<16x8xf32>, vector<8x16xf32>, vector<16x16xf32> -> vector<16x16xf32>
    %130 = arith.addf %123, %129 : vector<16x16xf32>
    %c1_128 = arith.constant 1 : index
    %c0_129 = arith.constant 0 : index
    %c0_130 = arith.constant 0 : index
    %131 = vector.load %arg5[%c1_128, %c0_129, %c0_130] : memref<16x64x16xf32, #tpu.memory_space<vmem>>, vector<1x64x16xf32>
    %132 = vector.shape_cast %131 : vector<1x64x16xf32> to vector<64x16xf32>
    %cst_131 = arith.constant dense<0.000000e+00> : vector<8x16xf32>
    %133 = tpu.matmul %122, %132, %cst_131 {dimension_numbers = #tpu.dot_dimension_numbers<[1], [0], [0], [1], [0, 0, 1, 1], [], []>} : vector<8x64xf32>, vector<64x16xf32>, vector<8x16xf32> -> vector<8x16xf32>
    %c1_132 = arith.constant 1 : index
    %c0_133 = arith.constant 0 : index
    %c0_134 = arith.constant 0 : index
    %134 = vector.load %arg6[%c1_132, %c0_133, %c0_134] : memref<16x16x8xf32, #tpu.memory_space<vmem>>, vector<1x16x8xf32>
    %135 = vector.shape_cast %134 : vector<1x16x8xf32> to vector<16x8xf32>
    %cst_135 = arith.constant dense<0.000000e+00> : vector<16x16xf32>
    %136 = tpu.matmul %135, %133, %cst_135 {dimension_numbers = #tpu.dot_dimension_numbers<[1], [0], [0], [1], [0, 0, 1, 1], [], []>} : vector<16x8xf32>, vector<8x16xf32>, vector<16x16xf32> -> vector<16x16xf32>
    %137 = arith.addf %130, %136 : vector<16x16xf32>
    %c2_136 = arith.constant 2 : index
    %c0_137 = arith.constant 0 : index
    %c0_138 = arith.constant 0 : index
    %138 = vector.load %arg5[%c2_136, %c0_137, %c0_138] : memref<16x64x16xf32, #tpu.memory_space<vmem>>, vector<1x64x16xf32>
    %139 = vector.shape_cast %138 : vector<1x64x16xf32> to vector<64x16xf32>
    %cst_139 = arith.constant dense<0.000000e+00> : vector<8x16xf32>
    %140 = tpu.matmul %122, %139, %cst_139 {dimension_numbers = #tpu.dot_dimension_numbers<[1], [0], [0], [1], [0, 0, 1, 1], [], []>} : vector<8x64xf32>, vector<64x16xf32>, vector<8x16xf32> -> vector<8x16xf32>
    %c2_140 = arith.constant 2 : index
    %c0_141 = arith.constant 0 : index
    %c0_142 = arith.constant 0 : index
    %141 = vector.load %arg6[%c2_140, %c0_141, %c0_142] : memref<16x16x8xf32, #tpu.memory_space<vmem>>, vector<1x16x8xf32>
    %142 = vector.shape_cast %141 : vector<1x16x8xf32> to vector<16x8xf32>
    %cst_143 = arith.constant dense<0.000000e+00> : vector<16x16xf32>
    %143 = tpu.matmul %142, %140, %cst_143 {dimension_numbers = #tpu.dot_dimension_numbers<[1], [0], [0], [1], [0, 0, 1, 1], [], []>} : vector<16x8xf32>, vector<8x16xf32>, vector<16x16xf32> -> vector<16x16xf32>
    %144 = arith.addf %137, %143 : vector<16x16xf32>
    %c3_144 = arith.constant 3 : index
    %c0_145 = arith.constant 0 : index
    %c0_146 = arith.constant 0 : index
    %145 = vector.load %arg5[%c3_144, %c0_145, %c0_146] : memref<16x64x16xf32, #tpu.memory_space<vmem>>, vector<1x64x16xf32>
    %146 = vector.shape_cast %145 : vector<1x64x16xf32> to vector<64x16xf32>
    %cst_147 = arith.constant dense<0.000000e+00> : vector<8x16xf32>
    %147 = tpu.matmul %122, %146, %cst_147 {dimension_numbers = #tpu.dot_dimension_numbers<[1], [0], [0], [1], [0, 0, 1, 1], [], []>} : vector<8x64xf32>, vector<64x16xf32>, vector<8x16xf32> -> vector<8x16xf32>
    %c3_148 = arith.constant 3 : index
    %c0_149 = arith.constant 0 : index
    %c0_150 = arith.constant 0 : index
    %148 = vector.load %arg6[%c3_148, %c0_149, %c0_150] : memref<16x16x8xf32, #tpu.memory_space<vmem>>, vector<1x16x8xf32>
    %149 = vector.shape_cast %148 : vector<1x16x8xf32> to vector<16x8xf32>
    %cst_151 = arith.constant dense<0.000000e+00> : vector<16x16xf32>
    %150 = tpu.matmul %149, %147, %cst_151 {dimension_numbers = #tpu.dot_dimension_numbers<[1], [0], [0], [1], [0, 0, 1, 1], [], []>} : vector<16x8xf32>, vector<8x16xf32>, vector<16x16xf32> -> vector<16x16xf32>
    %151 = arith.addf %144, %150 : vector<16x16xf32>
    %c4_152 = arith.constant 4 : index
    %c0_153 = arith.constant 0 : index
    %c0_154 = arith.constant 0 : index
    %152 = vector.load %arg5[%c4_152, %c0_153, %c0_154] : memref<16x64x16xf32, #tpu.memory_space<vmem>>, vector<1x64x16xf32>
    %153 = vector.shape_cast %152 : vector<1x64x16xf32> to vector<64x16xf32>
    %cst_155 = arith.constant dense<0.000000e+00> : vector<8x16xf32>
    %154 = tpu.matmul %122, %153, %cst_155 {dimension_numbers = #tpu.dot_dimension_numbers<[1], [0], [0], [1], [0, 0, 1, 1], [], []>} : vector<8x64xf32>, vector<64x16xf32>, vector<8x16xf32> -> vector<8x16xf32>
    %c4_156 = arith.constant 4 : index
    %c0_157 = arith.constant 0 : index
    %c0_158 = arith.constant 0 : index
    %155 = vector.load %arg6[%c4_156, %c0_157, %c0_158] : memref<16x16x8xf32, #tpu.memory_space<vmem>>, vector<1x16x8xf32>
    %156 = vector.shape_cast %155 : vector<1x16x8xf32> to vector<16x8xf32>
    %cst_159 = arith.constant dense<0.000000e+00> : vector<16x16xf32>
    %157 = tpu.matmul %156, %154, %cst_159 {dimension_numbers = #tpu.dot_dimension_numbers<[1], [0], [0], [1], [0, 0, 1, 1], [], []>} : vector<16x8xf32>, vector<8x16xf32>, vector<16x16xf32> -> vector<16x16xf32>
    %158 = arith.addf %151, %157 : vector<16x16xf32>
    %c5_160 = arith.constant 5 : index
    %c0_161 = arith.constant 0 : index
    %c0_162 = arith.constant 0 : index
    %159 = vector.load %arg5[%c5_160, %c0_161, %c0_162] : memref<16x64x16xf32, #tpu.memory_space<vmem>>, vector<1x64x16xf32>
    %160 = vector.shape_cast %159 : vector<1x64x16xf32> to vector<64x16xf32>
    %cst_163 = arith.constant dense<0.000000e+00> : vector<8x16xf32>
    %161 = tpu.matmul %122, %160, %cst_163 {dimension_numbers = #tpu.dot_dimension_numbers<[1], [0], [0], [1], [0, 0, 1, 1], [], []>} : vector<8x64xf32>, vector<64x16xf32>, vector<8x16xf32> -> vector<8x16xf32>
    %c5_164 = arith.constant 5 : index
    %c0_165 = arith.constant 0 : index
    %c0_166 = arith.constant 0 : index
    %162 = vector.load %arg6[%c5_164, %c0_165, %c0_166] : memref<16x16x8xf32, #tpu.memory_space<vmem>>, vector<1x16x8xf32>
    %163 = vector.shape_cast %162 : vector<1x16x8xf32> to vector<16x8xf32>
    %cst_167 = arith.constant dense<0.000000e+00> : vector<16x16xf32>
    %164 = tpu.matmul %163, %161, %cst_167 {dimension_numbers = #tpu.dot_dimension_numbers<[1], [0], [0], [1], [0, 0, 1, 1], [], []>} : vector<16x8xf32>, vector<8x16xf32>, vector<16x16xf32> -> vector<16x16xf32>
    %165 = arith.addf %158, %164 : vector<16x16xf32>
    %c6_168 = arith.constant 6 : index
    %c0_169 = arith.constant 0 : index
    %c0_170 = arith.constant 0 : index
    %166 = vector.load %arg5[%c6_168, %c0_169, %c0_170] : memref<16x64x16xf32, #tpu.memory_space<vmem>>, vector<1x64x16xf32>
    %167 = vector.shape_cast %166 : vector<1x64x16xf32> to vector<64x16xf32>
    %cst_171 = arith.constant dense<0.000000e+00> : vector<8x16xf32>
    %168 = tpu.matmul %122, %167, %cst_171 {dimension_numbers = #tpu.dot_dimension_numbers<[1], [0], [0], [1], [0, 0, 1, 1], [], []>} : vector<8x64xf32>, vector<64x16xf32>, vector<8x16xf32> -> vector<8x16xf32>
    %c6_172 = arith.constant 6 : index
    %c0_173 = arith.constant 0 : index
    %c0_174 = arith.constant 0 : index
    %169 = vector.load %arg6[%c6_172, %c0_173, %c0_174] : memref<16x16x8xf32, #tpu.memory_space<vmem>>, vector<1x16x8xf32>
    %170 = vector.shape_cast %169 : vector<1x16x8xf32> to vector<16x8xf32>
    %cst_175 = arith.constant dense<0.000000e+00> : vector<16x16xf32>
    %171 = tpu.matmul %170, %168, %cst_175 {dimension_numbers = #tpu.dot_dimension_numbers<[1], [0], [0], [1], [0, 0, 1, 1], [], []>} : vector<16x8xf32>, vector<8x16xf32>, vector<16x16xf32> -> vector<16x16xf32>
    %172 = arith.addf %165, %171 : vector<16x16xf32>
    %c7_176 = arith.constant 7 : index
    %c0_177 = arith.constant 0 : index
    %c0_178 = arith.constant 0 : index
    %173 = vector.load %arg5[%c7_176, %c0_177, %c0_178] : memref<16x64x16xf32, #tpu.memory_space<vmem>>, vector<1x64x16xf32>
    %174 = vector.shape_cast %173 : vector<1x64x16xf32> to vector<64x16xf32>
    %cst_179 = arith.constant dense<0.000000e+00> : vector<8x16xf32>
    %175 = tpu.matmul %122, %174, %cst_179 {dimension_numbers = #tpu.dot_dimension_numbers<[1], [0], [0], [1], [0, 0, 1, 1], [], []>} : vector<8x64xf32>, vector<64x16xf32>, vector<8x16xf32> -> vector<8x16xf32>
    %c7_180 = arith.constant 7 : index
    %c0_181 = arith.constant 0 : index
    %c0_182 = arith.constant 0 : index
    %176 = vector.load %arg6[%c7_180, %c0_181, %c0_182] : memref<16x16x8xf32, #tpu.memory_space<vmem>>, vector<1x16x8xf32>
    %177 = vector.shape_cast %176 : vector<1x16x8xf32> to vector<16x8xf32>
    %cst_183 = arith.constant dense<0.000000e+00> : vector<16x16xf32>
    %178 = tpu.matmul %177, %175, %cst_183 {dimension_numbers = #tpu.dot_dimension_numbers<[1], [0], [0], [1], [0, 0, 1, 1], [], []>} : vector<16x8xf32>, vector<8x16xf32>, vector<16x16xf32> -> vector<16x16xf32>
    %179 = arith.addf %172, %178 : vector<16x16xf32>
    %c8_184 = arith.constant 8 : index
    %c0_185 = arith.constant 0 : index
    %c0_186 = arith.constant 0 : index
    %180 = vector.load %arg5[%c8_184, %c0_185, %c0_186] : memref<16x64x16xf32, #tpu.memory_space<vmem>>, vector<1x64x16xf32>
    %181 = vector.shape_cast %180 : vector<1x64x16xf32> to vector<64x16xf32>
    %cst_187 = arith.constant dense<0.000000e+00> : vector<8x16xf32>
    %182 = tpu.matmul %122, %181, %cst_187 {dimension_numbers = #tpu.dot_dimension_numbers<[1], [0], [0], [1], [0, 0, 1, 1], [], []>} : vector<8x64xf32>, vector<64x16xf32>, vector<8x16xf32> -> vector<8x16xf32>
    %c8_188 = arith.constant 8 : index
    %c0_189 = arith.constant 0 : index
    %c0_190 = arith.constant 0 : index
    %183 = vector.load %arg6[%c8_188, %c0_189, %c0_190] : memref<16x16x8xf32, #tpu.memory_space<vmem>>, vector<1x16x8xf32>
    %184 = vector.shape_cast %183 : vector<1x16x8xf32> to vector<16x8xf32>
    %cst_191 = arith.constant dense<0.000000e+00> : vector<16x16xf32>
    %185 = tpu.matmul %184, %182, %cst_191 {dimension_numbers = #tpu.dot_dimension_numbers<[1], [0], [0], [1], [0, 0, 1, 1], [], []>} : vector<16x8xf32>, vector<8x16xf32>, vector<16x16xf32> -> vector<16x16xf32>
    %186 = arith.addf %179, %185 : vector<16x16xf32>
    %c9_192 = arith.constant 9 : index
    %c0_193 = arith.constant 0 : index
    %c0_194 = arith.constant 0 : index
    %187 = vector.load %arg5[%c9_192, %c0_193, %c0_194] : memref<16x64x16xf32, #tpu.memory_space<vmem>>, vector<1x64x16xf32>
    %188 = vector.shape_cast %187 : vector<1x64x16xf32> to vector<64x16xf32>
    %cst_195 = arith.constant dense<0.000000e+00> : vector<8x16xf32>
    %189 = tpu.matmul %122, %188, %cst_195 {dimension_numbers = #tpu.dot_dimension_numbers<[1], [0], [0], [1], [0, 0, 1, 1], [], []>} : vector<8x64xf32>, vector<64x16xf32>, vector<8x16xf32> -> vector<8x16xf32>
    %c9_196 = arith.constant 9 : index
    %c0_197 = arith.constant 0 : index
    %c0_198 = arith.constant 0 : index
    %190 = vector.load %arg6[%c9_196, %c0_197, %c0_198] : memref<16x16x8xf32, #tpu.memory_space<vmem>>, vector<1x16x8xf32>
    %191 = vector.shape_cast %190 : vector<1x16x8xf32> to vector<16x8xf32>
    %cst_199 = arith.constant dense<0.000000e+00> : vector<16x16xf32>
    %192 = tpu.matmul %191, %189, %cst_199 {dimension_numbers = #tpu.dot_dimension_numbers<[1], [0], [0], [1], [0, 0, 1, 1], [], []>} : vector<16x8xf32>, vector<8x16xf32>, vector<16x16xf32> -> vector<16x16xf32>
    %193 = arith.addf %186, %192 : vector<16x16xf32>
    %c10_200 = arith.constant 10 : index
    %c0_201 = arith.constant 0 : index
    %c0_202 = arith.constant 0 : index
    %194 = vector.load %arg5[%c10_200, %c0_201, %c0_202] : memref<16x64x16xf32, #tpu.memory_space<vmem>>, vector<1x64x16xf32>
    %195 = vector.shape_cast %194 : vector<1x64x16xf32> to vector<64x16xf32>
    %cst_203 = arith.constant dense<0.000000e+00> : vector<8x16xf32>
    %196 = tpu.matmul %122, %195, %cst_203 {dimension_numbers = #tpu.dot_dimension_numbers<[1], [0], [0], [1], [0, 0, 1, 1], [], []>} : vector<8x64xf32>, vector<64x16xf32>, vector<8x16xf32> -> vector<8x16xf32>
    %c10_204 = arith.constant 10 : index
    %c0_205 = arith.constant 0 : index
    %c0_206 = arith.constant 0 : index
    %197 = vector.load %arg6[%c10_204, %c0_205, %c0_206] : memref<16x16x8xf32, #tpu.memory_space<vmem>>, vector<1x16x8xf32>
    %198 = vector.shape_cast %197 : vector<1x16x8xf32> to vector<16x8xf32>
    %cst_207 = arith.constant dense<0.000000e+00> : vector<16x16xf32>
    %199 = tpu.matmul %198, %196, %cst_207 {dimension_numbers = #tpu.dot_dimension_numbers<[1], [0], [0], [1], [0, 0, 1, 1], [], []>} : vector<16x8xf32>, vector<8x16xf32>, vector<16x16xf32> -> vector<16x16xf32>
    %200 = arith.addf %193, %199 : vector<16x16xf32>
    %c11_208 = arith.constant 11 : index
    %c0_209 = arith.constant 0 : index
    %c0_210 = arith.constant 0 : index
    %201 = vector.load %arg5[%c11_208, %c0_209, %c0_210] : memref<16x64x16xf32, #tpu.memory_space<vmem>>, vector<1x64x16xf32>
    %202 = vector.shape_cast %201 : vector<1x64x16xf32> to vector<64x16xf32>
    %cst_211 = arith.constant dense<0.000000e+00> : vector<8x16xf32>
    %203 = tpu.matmul %122, %202, %cst_211 {dimension_numbers = #tpu.dot_dimension_numbers<[1], [0], [0], [1], [0, 0, 1, 1], [], []>} : vector<8x64xf32>, vector<64x16xf32>, vector<8x16xf32> -> vector<8x16xf32>
    %c11_212 = arith.constant 11 : index
    %c0_213 = arith.constant 0 : index
    %c0_214 = arith.constant 0 : index
    %204 = vector.load %arg6[%c11_212, %c0_213, %c0_214] : memref<16x16x8xf32, #tpu.memory_space<vmem>>, vector<1x16x8xf32>
    %205 = vector.shape_cast %204 : vector<1x16x8xf32> to vector<16x8xf32>
    %cst_215 = arith.constant dense<0.000000e+00> : vector<16x16xf32>
    %206 = tpu.matmul %205, %203, %cst_215 {dimension_numbers = #tpu.dot_dimension_numbers<[1], [0], [0], [1], [0, 0, 1, 1], [], []>} : vector<16x8xf32>, vector<8x16xf32>, vector<16x16xf32> -> vector<16x16xf32>
    %207 = arith.addf %200, %206 : vector<16x16xf32>
    %c12_216 = arith.constant 12 : index
    %c0_217 = arith.constant 0 : index
    %c0_218 = arith.constant 0 : index
    %208 = vector.load %arg5[%c12_216, %c0_217, %c0_218] : memref<16x64x16xf32, #tpu.memory_space<vmem>>, vector<1x64x16xf32>
    %209 = vector.shape_cast %208 : vector<1x64x16xf32> to vector<64x16xf32>
    %cst_219 = arith.constant dense<0.000000e+00> : vector<8x16xf32>
    %210 = tpu.matmul %122, %209, %cst_219 {dimension_numbers = #tpu.dot_dimension_numbers<[1], [0], [0], [1], [0, 0, 1, 1], [], []>} : vector<8x64xf32>, vector<64x16xf32>, vector<8x16xf32> -> vector<8x16xf32>
    %c12_220 = arith.constant 12 : index
    %c0_221 = arith.constant 0 : index
    %c0_222 = arith.constant 0 : index
    %211 = vector.load %arg6[%c12_220, %c0_221, %c0_222] : memref<16x16x8xf32, #tpu.memory_space<vmem>>, vector<1x16x8xf32>
    %212 = vector.shape_cast %211 : vector<1x16x8xf32> to vector<16x8xf32>
    %cst_223 = arith.constant dense<0.000000e+00> : vector<16x16xf32>
    %213 = tpu.matmul %212, %210, %cst_223 {dimension_numbers = #tpu.dot_dimension_numbers<[1], [0], [0], [1], [0, 0, 1, 1], [], []>} : vector<16x8xf32>, vector<8x16xf32>, vector<16x16xf32> -> vector<16x16xf32>
    %214 = arith.addf %207, %213 : vector<16x16xf32>
    %c13_224 = arith.constant 13 : index
    %c0_225 = arith.constant 0 : index
    %c0_226 = arith.constant 0 : index
    %215 = vector.load %arg5[%c13_224, %c0_225, %c0_226] : memref<16x64x16xf32, #tpu.memory_space<vmem>>, vector<1x64x16xf32>
    %216 = vector.shape_cast %215 : vector<1x64x16xf32> to vector<64x16xf32>
    %cst_227 = arith.constant dense<0.000000e+00> : vector<8x16xf32>
    %217 = tpu.matmul %122, %216, %cst_227 {dimension_numbers = #tpu.dot_dimension_numbers<[1], [0], [0], [1], [0, 0, 1, 1], [], []>} : vector<8x64xf32>, vector<64x16xf32>, vector<8x16xf32> -> vector<8x16xf32>
    %c13_228 = arith.constant 13 : index
    %c0_229 = arith.constant 0 : index
    %c0_230 = arith.constant 0 : index
    %218 = vector.load %arg6[%c13_228, %c0_229, %c0_230] : memref<16x16x8xf32, #tpu.memory_space<vmem>>, vector<1x16x8xf32>
    %219 = vector.shape_cast %218 : vector<1x16x8xf32> to vector<16x8xf32>
    %cst_231 = arith.constant dense<0.000000e+00> : vector<16x16xf32>
    %220 = tpu.matmul %219, %217, %cst_231 {dimension_numbers = #tpu.dot_dimension_numbers<[1], [0], [0], [1], [0, 0, 1, 1], [], []>} : vector<16x8xf32>, vector<8x16xf32>, vector<16x16xf32> -> vector<16x16xf32>
    %221 = arith.addf %214, %220 : vector<16x16xf32>
    %c14_232 = arith.constant 14 : index
    %c0_233 = arith.constant 0 : index
    %c0_234 = arith.constant 0 : index
    %222 = vector.load %arg5[%c14_232, %c0_233, %c0_234] : memref<16x64x16xf32, #tpu.memory_space<vmem>>, vector<1x64x16xf32>
    %223 = vector.shape_cast %222 : vector<1x64x16xf32> to vector<64x16xf32>
    %cst_235 = arith.constant dense<0.000000e+00> : vector<8x16xf32>
    %224 = tpu.matmul %122, %223, %cst_235 {dimension_numbers = #tpu.dot_dimension_numbers<[1], [0], [0], [1], [0, 0, 1, 1], [], []>} : vector<8x64xf32>, vector<64x16xf32>, vector<8x16xf32> -> vector<8x16xf32>
    %c14_236 = arith.constant 14 : index
    %c0_237 = arith.constant 0 : index
    %c0_238 = arith.constant 0 : index
    %225 = vector.load %arg6[%c14_236, %c0_237, %c0_238] : memref<16x16x8xf32, #tpu.memory_space<vmem>>, vector<1x16x8xf32>
    %226 = vector.shape_cast %225 : vector<1x16x8xf32> to vector<16x8xf32>
    %cst_239 = arith.constant dense<0.000000e+00> : vector<16x16xf32>
    %227 = tpu.matmul %226, %224, %cst_239 {dimension_numbers = #tpu.dot_dimension_numbers<[1], [0], [0], [1], [0, 0, 1, 1], [], []>} : vector<16x8xf32>, vector<8x16xf32>, vector<16x16xf32> -> vector<16x16xf32>
    %228 = arith.addf %221, %227 : vector<16x16xf32>
    %c15_240 = arith.constant 15 : index
    %c0_241 = arith.constant 0 : index
    %c0_242 = arith.constant 0 : index
    %229 = vector.load %arg5[%c15_240, %c0_241, %c0_242] : memref<16x64x16xf32, #tpu.memory_space<vmem>>, vector<1x64x16xf32>
    %230 = vector.shape_cast %229 : vector<1x64x16xf32> to vector<64x16xf32>
    %cst_243 = arith.constant dense<0.000000e+00> : vector<8x16xf32>
    %231 = tpu.matmul %122, %230, %cst_243 {dimension_numbers = #tpu.dot_dimension_numbers<[1], [0], [0], [1], [0, 0, 1, 1], [], []>} : vector<8x64xf32>, vector<64x16xf32>, vector<8x16xf32> -> vector<8x16xf32>
    %c15_244 = arith.constant 15 : index
    %c0_245 = arith.constant 0 : index
    %c0_246 = arith.constant 0 : index
    %232 = vector.load %arg6[%c15_244, %c0_245, %c0_246] : memref<16x16x8xf32, #tpu.memory_space<vmem>>, vector<1x16x8xf32>
    %233 = vector.shape_cast %232 : vector<1x16x8xf32> to vector<16x8xf32>
    %cst_247 = arith.constant dense<0.000000e+00> : vector<16x16xf32>
    %234 = tpu.matmul %233, %231, %cst_247 {dimension_numbers = #tpu.dot_dimension_numbers<[1], [0], [0], [1], [0, 0, 1, 1], [], []>} : vector<16x8xf32>, vector<8x16xf32>, vector<16x16xf32> -> vector<16x16xf32>
    %235 = arith.addf %228, %234 : vector<16x16xf32>
    %c0_248 = arith.constant 0 : index
    %c0_249 = arith.constant 0 : index
    %236 = vector.load %arg7[%c0_248, %c0_249] : memref<16x1xf32, #tpu.memory_space<vmem>>, vector<16x1xf32>
    %237 = vector.broadcast %236 : vector<16x1xf32> to vector<16x16xf32>
    %238 = arith.addf %235, %237 : vector<16x16xf32>
    %cst_250 = arith.constant 0.000000e+00 : f32
    %239 = vector.broadcast %cst_250 : f32 to vector<16x16xf32>
    %240 = arith.cmpf oge, %238, %239 : vector<16x16xf32>
    %cst_251 = arith.constant 2.000000e-01 : f32
    %241 = vector.broadcast %cst_251 : f32 to vector<16x16xf32>
    %242 = arith.mulf %241, %238 : vector<16x16xf32>
    %243 = arith.select %240, %238, %242 : vector<16x16xi1>, vector<16x16xf32>
    %c0_252 = arith.constant 0 : index
    %c0_253 = arith.constant 0 : index
    %244 = vector.load %arg8[%c0_252, %c0_253] : memref<16x16xf32, #tpu.memory_space<vmem>>, vector<16x16xf32>
    %245 = arith.mulf %243, %244 : vector<16x16xf32>
    %246 = vector.shape_cast %245 : vector<16x16xf32> to vector<1x16x16xf32>
    %cst_254 = arith.constant dense<0.000000e+00> : vector<1xf32>
    %247 = vector.multi_reduction <add>, %246, %cst_254 [1, 2] : vector<1x16x16xf32> to vector<1xf32>
    %248 = vector.shape_cast %247 : vector<1xf32> to vector<1x1x1xf32>
    %249 = vector.extract %248[0, 0, 0] : f32 from vector<1x1x1xf32>
    %250 = vector.broadcast %249 : f32 to vector<8x128xf32>
    %c0_255 = arith.constant 0 : index
    %c0_256 = arith.constant 0 : index
    %251 = vector.load %arg9[%c0_255, %c0_256] : memref<1x1xf32, #tpu.memory_space<vmem>>, vector<1x1xf32>
    %252 = vector.broadcast %251 : vector<1x1xf32> to vector<8x128xf32>
    %253 = arith.addf %250, %252 : vector<8x128xf32>
    %c0_257 = arith.constant 0 : index
    %c0_258 = arith.constant 0 : index
    %c0_259 = arith.constant 0 : index
    %254 = vector.load %arg10[%c0_257, %c0_258, %c0_259] : memref<1x8x128xf32, #tpu.memory_space<vmem>>, vector<1x8x128xf32>
    %255 = vector.shape_cast %254 : vector<1x8x128xf32> to vector<8x128xf32>
    %256 = vector.shape_cast %253 : vector<8x128xf32> to vector<1x8x128xf32>
    tpu.vector_store %arg10[%c0_257, %c0_258, %c0_259], %256 {strides = array<i32>} : memref<1x8x128xf32, #tpu.memory_space<vmem>>, vector<1x8x128xf32>,
    return
  }
  func.func @transform_0(%arg0: i32) -> (i32, i32, i32) {
    %c0_i32 = arith.constant 0 : i32
    %c0_i32_0 = arith.constant 0 : i32
    %c0_i32_1 = arith.constant 0 : i32
    return %arg0, %c0_i32, %c0_i32_0 : i32, i32, i32
  }
  func.func @transform_1(%arg0: i32) -> (i32, i32, i32) {
    %c0_i32 = arith.constant 0 : i32
    %c0_i32_0 = arith.constant 0 : i32
    %c0_i32_1 = arith.constant 0 : i32
    %c0_i32_2 = arith.constant 0 : i32
    return %c0_i32, %c0_i32_0, %c0_i32_1 : i32, i32, i32
  }
  func.func @transform_2(%arg0: i32) -> (i32, i32, i32) {
    %c0_i32 = arith.constant 0 : i32
    %c0_i32_0 = arith.constant 0 : i32
    %c0_i32_1 = arith.constant 0 : i32
    %c0_i32_2 = arith.constant 0 : i32
    return %c0_i32, %c0_i32_0, %c0_i32_1 : i32, i32, i32
  }
  func.func @transform_3(%arg0: i32) -> (i32, i32) {
    %c0_i32 = arith.constant 0 : i32
    %c0_i32_0 = arith.constant 0 : i32
    %c0_i32_1 = arith.constant 0 : i32
    return %c0_i32, %c0_i32_0 : i32, i32
  }
  func.func @transform_4(%arg0: i32) -> (i32, i32, i32) {
    %c0_i32 = arith.constant 0 : i32
    %c0_i32_0 = arith.constant 0 : i32
    %c0_i32_1 = arith.constant 0 : i32
    %c0_i32_2 = arith.constant 0 : i32
    return %c0_i32, %c0_i32_0, %c0_i32_1 : i32, i32, i32
  }
  func.func @transform_5(%arg0: i32) -> (i32, i32, i32) {
    %c0_i32 = arith.constant 0 : i32
    %c0_i32_0 = arith.constant 0 : i32
    %c0_i32_1 = arith.constant 0 : i32
    %c0_i32_2 = arith.constant 0 : i32
    return %c0_i32, %c0_i32_0, %c0_i32_1 : i32, i32, i32
  }
  func.func @transform_6(%arg0: i32) -> (i32, i32) {
    %c0_i32 = arith.constant 0 : i32
    %c0_i32_0 = arith.constant 0 : i32
    %c0_i32_1 = arith.constant 0 : i32
    return %c0_i32, %c0_i32_0 : i32, i32
  }
  func.func @transform_7(%arg0: i32) -> (i32, i32) {
    %c0_i32 = arith.constant 0 : i32
    %c0_i32_0 = arith.constant 0 : i32
    %c0_i32_1 = arith.constant 0 : i32
    return %c0_i32, %c0_i32_0 : i32, i32
  }
  func.func @transform_8(%arg0: i32) -> (i32, i32) {
    %c0_i32 = arith.constant 0 : i32
    %c0_i32_0 = arith.constant 0 : i32
    %c0_i32_1 = arith.constant 0 : i32
    return %c0_i32, %c0_i32_0 : i32, i32
  }
  func.func @transform_9(%arg0: i32) -> (i32, i32, i32) {
    %c0_i32 = arith.constant 0 : i32
    %c0_i32_0 = arith.constant 0 : i32
    %c0_i32_1 = arith.constant 0 : i32
    return %arg0, %c0_i32, %c0_i32_0 : i32, i32, i32
  }
}

</mosaic_0001>

<llo_original>
// kernel: tpu_custom_call.1
$region0: #{tpu_custom_call.1}
  #allocation0 [shape = 'u32[]', space=smem, size = 0x4, offset = 0x4, fixed_abs, tag = 'smem constant byte address 0x4 - core index']
  #allocation1 [shape = 'u32[144,128]{1,0:T(1,128)}', space=vmem, size = 0x12000, scoped, tag = 'internal scratch']
  #allocation2 [shape = 'f32[1,1]{1,0:T(1,128)S(1)}', space=vmem, size = 0x200, scoped, tag = 'scoped memory for tpu_custom_call.1']
  %s0 = inlined_call_operand.vmem [shape: f32[2,3,256], index: 0, kind: input, shape index: {}]
  %s1 = inlined_call_operand.vmem [shape: f32[16,256,64], index: 1, kind: input, shape index: {}]
  %s2 = inlined_call_operand.vmem [shape: f32[16,8,3], index: 2, kind: input, shape index: {}]
  %s3 = inlined_call_operand.vmem [shape: f32[8,1], index: 3, kind: input, shape index: {}]
  %s4 = inlined_call_operand.vmem [shape: f32[16,64,16], index: 4, kind: input, shape index: {}]
  %s5 = inlined_call_operand.vmem [shape: f32[16,16,8], index: 5, kind: input, shape index: {}]
  %s6 = inlined_call_operand.vmem [shape: f32[16,1], index: 6, kind: input, shape index: {}]
  %s7 = inlined_call_operand.vmem [shape: f32[16,16], index: 7, kind: input, shape index: {}]
  %s8 = inlined_call_operand.<no memory space> [shape: f32[1,1], index: 8, kind: input, shape index: {}]
  %s9 = inlined_call_operand.hbm [shape: f32[2,8,128], index: 9, kind: output, shape index: {}]
  %s10 = sld [smem:[#allocation0]]
  $region69: #{tpu_custom_call.1} parent=0
    _
  %s12 = ssub.s32 1, %s10
  %s13 = scalar_select 0, %s12, %s10
  %v14 = vstv %s8
  %15 = vst [vmem:[#allocation2] sm:$0x1] %v14
  $region1: #{tpu_custom_call.1} parent=0
    #allocation3 [shape = 'u8[8192]{0}', space=vmem, size = 0x2000, scoped, tag = 'output window, operand 0']
    #allocation4 [shape = 's32[2]{0}', space=sflag, size = 0x8, scoped, tag = 'scoped memory for tpu_custom_call.1']
    %16 = vsyncpa [#allocation4], 0
    %s17 = scalar_lea.sflag [#allocation4], 1
    %18 = vsyncpa %s17, 0
    loop: start=0, step=1, limit=4
    $region2: #{tpu_custom_call.1} parent=1 // loop_pre_header
      _
    $region3: #{tpu_custom_call.1} parent=1 // loop_header
      %s20 = sphi 0, %s24
      %p21 = scmp.ge.s32.totalorder %s20, 4
      %s30 = sphi 0, %s32
      %s33 = sphi 0, %s30
      %s34 = sphi 0, %s33
      %s50 = sphi 0, %s34
      %s54 = sphi 0, %s54
      %s56 = sphi 0, %s54
      %s57 = sphi 0, %s56
      %s71 = sphi 0, %s57
      %s75 = sphi 0, %s75
      %s77 = sphi 0, %s75
      %s78 = sphi 0, %s77
      %s92 = sphi 0, %s78
      %s96 = sphi 0, %s96
      %s98 = sphi 0, %s96
      %s99 = sphi 0, %s98
      %s113 = sphi 0, %s99
      %s117 = sphi 0, %s117
      %s119 = sphi 0, %s117
      %s120 = sphi 0, %s119
      %s134 = sphi 0, %s120
      %s138 = sphi 0, %s138
      %s140 = sphi 0, %s138
      %s141 = sphi 0, %s140
      %s155 = sphi 0, %s141
      %s159 = sphi 0, %s159
      %s161 = sphi 0, %s159
      %s162 = sphi 0, %s161
      %s176 = sphi 0, %s162
      %s180 = sphi 0, %s180
      %s182 = sphi 0, %s180
      %s183 = sphi 0, %s182
      %s197 = sphi 0, %s183
      %s201 = sphi 0, %s201
      %s203 = sphi 0, %s201
      %s204 = sphi 0, %s203
      %s218 = sphi 0, %s204
      %s224 = sphi 0, %s226
      %s227 = sphi 0, %s224
      %s228 = sphi 0, %s227
      %s244 = sphi 0, %s228
    $region4: #{tpu_custom_call.1} parent=1 // loop_header_branch
      %23 = sbr.rel (%p21) target = $region8
    $region5: #{tpu_custom_call.1} parent=1 // loop_body
      %s25 = ssub.s32 %s20, 1
      %s26 = ssub.s32 %s20, 2
      %s27 = sadd.s32 %s20, 1
      %s28 = ssub.s32 %s20, %s27
      %p29 = scmp.eq.s32.totalorder %s28, 0
      %s31 = sadd.s32 %s30, 1
      %s32 = scalar_select %p29, %s30, %s31
      %p35 = pneg %p29
      %p36 = scmp.eq.s32.totalorder %s20, 1
      %p37 = por %p35, %p36
      %p38 = scmp.ne.s32.totalorder %s30, %s33
      %p39 = scmp.eq.s32.totalorder %s20, 0
      %p40 = por %p38, %p39
      %p41 = scmp.ne.s32.totalorder %s30, %s33
      %p42 = scmp.eq.s32.totalorder %s25, 1
      %p43 = por %p41, %p42
      %p44 = scmp.ne.s32.totalorder %s33, %s34
      %p45 = scmp.eq.s32.totalorder %s25, 0
      %p46 = por %p44, %p45
      %p47 = scmp.ne.s32.totalorder %s33, %s34
      %p48 = scmp.eq.s32.totalorder %s26, 1
      %p49 = por %p47, %p48
      %p51 = scmp.ne.s32.totalorder %s34, %s50
      %p52 = scmp.eq.s32.totalorder %s26, 0
      %p53 = por %p51, %p52
      %s55 = sadd.s32 %s54, 1
      %p58 = scmp.eq.s32.totalorder %s20, 1
      %p59 = scmp.ne.s32.totalorder %s54, %s56
      %p60 = scmp.eq.s32.totalorder %s20, 0
      %p61 = por %p59, %p60
      %p62 = scmp.ne.s32.totalorder %s54, %s56
      %p63 = scmp.eq.s32.totalorder %s25, 1
      %p64 = por %p62, %p63
      %p65 = scmp.ne.s32.totalorder %s56, %s57
      %p66 = scmp.eq.s32.totalorder %s25, 0
      %p67 = por %p65, %p66
      %p68 = scmp.ne.s32.totalorder %s56, %s57
      %p69 = scmp.eq.s32.totalorder %s26, 1
      %p70 = por %p68, %p69
      %p72 = scmp.ne.s32.totalorder %s57, %s71
      %p73 = scmp.eq.s32.totalorder %s26, 0
      %p74 = por %p72, %p73
      %s76 = sadd.s32 %s75, 1
      %p79 = scmp.eq.s32.totalorder %s20, 1
      %p80 = scmp.ne.s32.totalorder %s75, %s77
      %p81 = scmp.eq.s32.totalorder %s20, 0
      %p82 = por %p80, %p81
      %p83 = scmp.ne.s32.totalorder %s75, %s77
      %p84 = scmp.eq.s32.totalorder %s25, 1
      %p85 = por %p83, %p84
      %p86 = scmp.ne.s32.totalorder %s77, %s78
      %p87 = scmp.eq.s32.totalorder %s25, 0
      %p88 = por %p86, %p87
      %p89 = scmp.ne.s32.totalorder %s77, %s78
      %p90 = scmp.eq.s32.totalorder %s26, 1
      %p91 = por %p89, %p90
      %p93 = scmp.ne.s32.totalorder %s78, %s92
      %p94 = scmp.eq.s32.totalorder %s26, 0
      %p95 = por %p93, %p94
      %s97 = sadd.s32 %s96, 1
      %p100 = scmp.eq.s32.totalorder %s20, 1
      %p101 = scmp.ne.s32.totalorder %s96, %s98
      %p102 = scmp.eq.s32.totalorder %s20, 0
      %p103 = por %p101, %p102
      %p104 = scmp.ne.s32.totalorder %s96, %s98
      %p105 = scmp.eq.s32.totalorder %s25, 1
      %p106 = por %p104, %p105
      %p107 = scmp.ne.s32.totalorder %s98, %s99
      %p108 = scmp.eq.s32.totalorder %s25, 0
      %p109 = por %p107, %p108
      %p110 = scmp.ne.s32.totalorder %s98, %s99
      %p111 = scmp.eq.s32.totalorder %s26, 1
      %p112 = por %p110, %p111
      %p114 = scmp.ne.s32.totalorder %s99, %s113
      %p115 = scmp.eq.s32.totalorder %s26, 0
      %p116 = por %p114, %p115
      %s118 = sadd.s32 %s117, 1
      %p121 = scmp.eq.s32.totalorder %s20, 1
      %p122 = scmp.ne.s32.totalorder %s117, %s119
      %p123 = scmp.eq.s32.totalorder %s20, 0
      %p124 = por %p122, %p123
      %p125 = scmp.ne.s32.totalorder %s117, %s119
      %p126 = scmp.eq.s32.totalorder %s25, 1
      %p127 = por %p125, %p126
      %p128 = scmp.ne.s32.totalorder %s119, %s120
      %p129 = scmp.eq.s32.totalorder %s25, 0
      %p130 = por %p128, %p129
      %p131 = scmp.ne.s32.totalorder %s119, %s120
      %p132 = scmp.eq.s32.totalorder %s26, 1
      %p133 = por %p131, %p132
      %p135 = scmp.ne.s32.totalorder %s120, %s134
      %p136 = scmp.eq.s32.totalorder %s26, 0
      %p137 = por %p135, %p136
      %s139 = sadd.s32 %s138, 1
      %p142 = scmp.eq.s32.totalorder %s20, 1
      %p143 = scmp.ne.s32.totalorder %s138, %s140
      %p144 = scmp.eq.s32.totalorder %s20, 0
      %p145 = por %p143, %p144
      %p146 = scmp.ne.s32.totalorder %s138, %s140
      %p147 = scmp.eq.s32.totalorder %s25, 1
      %p148 = por %p146, %p147
      %p149 = scmp.ne.s32.totalorder %s140, %s141
      %p150 = scmp.eq.s32.totalorder %s25, 0
      %p151 = por %p149, %p150
      %p152 = scmp.ne.s32.totalorder %s140, %s141
      %p153 = scmp.eq.s32.totalorder %s26, 1
      %p154 = por %p152, %p153
      %p156 = scmp.ne.s32.totalorder %s141, %s155
      %p157 = scmp.eq.s32.totalorder %s26, 0
      %p158 = por %p156, %p157
      %s160 = sadd.s32 %s159, 1
      %p163 = scmp.eq.s32.totalorder %s20, 1
      %p164 = scmp.ne.s32.totalorder %s159, %s161
      %p165 = scmp.eq.s32.totalorder %s20, 0
      %p166 = por %p164, %p165
      %p167 = scmp.ne.s32.totalorder %s159, %s161
      %p168 = scmp.eq.s32.totalorder %s25, 1
      %p169 = por %p167, %p168
      %p170 = scmp.ne.s32.totalorder %s161, %s162
      %p171 = scmp.eq.s32.totalorder %s25, 0
      %p172 = por %p170, %p171
      %p173 = scmp.ne.s32.totalorder %s161, %s162
      %p174 = scmp.eq.s32.totalorder %s26, 1
      %p175 = por %p173, %p174
      %p177 = scmp.ne.s32.totalorder %s162, %s176
      %p178 = scmp.eq.s32.totalorder %s26, 0
      %p179 = por %p177, %p178
      %s181 = sadd.s32 %s180, 1
      %p184 = scmp.eq.s32.totalorder %s20, 1
      %p185 = scmp.ne.s32.totalorder %s180, %s182
      %p186 = scmp.eq.s32.totalorder %s20, 0
      %p187 = por %p185, %p186
      %p188 = scmp.ne.s32.totalorder %s180, %s182
      %p189 = scmp.eq.s32.totalorder %s25, 1
      %p190 = por %p188, %p189
      %p191 = scmp.ne.s32.totalorder %s182, %s183
      %p192 = scmp.eq.s32.totalorder %s25, 0
      %p193 = por %p191, %p192
      %p194 = scmp.ne.s32.totalorder %s182, %s183
      %p195 = scmp.eq.s32.totalorder %s26, 1
      %p196 = por %p194, %p195
      %p198 = scmp.ne.s32.totalorder %s183, %s197
      %p199 = scmp.eq.s32.totalorder %s26, 0
      %p200 = por %p198, %p199
      %s202 = sadd.s32 %s201, 1
      %p205 = scmp.eq.s32.totalorder %s20, 1
      %p206 = scmp.ne.s32.totalorder %s201, %s203
      %p207 = scmp.eq.s32.totalorder %s20, 0
      %p208 = por %p206, %p207
      %p209 = scmp.ne.s32.totalorder %s201, %s203
      %p210 = scmp.eq.s32.totalorder %s25, 1
      %p211 = por %p209, %p210
      %p212 = scmp.ne.s32.totalorder %s203, %s204
      %p213 = scmp.eq.s32.totalorder %s25, 0
      %p214 = por %p212, %p213
      %p215 = scmp.ne.s32.totalorder %s203, %s204
      %p216 = scmp.eq.s32.totalorder %s26, 1
      %p217 = por %p215, %p216
      %p219 = scmp.ne.s32.totalorder %s204, %s218
      %p220 = scmp.eq.s32.totalorder %s26, 0
      %p221 = por %p219, %p220
      %s222 = ssub.s32 %s20, %s27
      %p223 = scmp.eq.s32.totalorder %s222, 0
      %s225 = sadd.s32 %s224, 1
      %s226 = scalar_select %p223, %s224, %s225
      %p229 = pneg %p223
      %p230 = scmp.eq.s32.totalorder %s20, 1
      %p231 = por %p229, %p230
      %p232 = scmp.ne.s32.totalorder %s224, %s227
      %p233 = scmp.eq.s32.totalorder %s20, 0
      %p234 = por %p232, %p233
      %p235 = scmp.ne.s32.totalorder %s224, %s227
      %p236 = scmp.eq.s32.totalorder %s25, 1
      %p237 = por %p235, %p236
      %p238 = scmp.ne.s32.totalorder %s227, %s228
      %p239 = scmp.eq.s32.totalorder %s25, 0
      %p240 = por %p238, %p239
      %p241 = scmp.ne.s32.totalorder %s227, %s228
      %p242 = scmp.eq.s32.totalorder %s26, 1
      %p243 = por %p241, %p242
      %p245 = scmp.ne.s32.totalorder %s228, %s244
      %p246 = scmp.eq.s32.totalorder %s26, 0
      %p247 = por %p245, %p246
      %p248 = scmp.le.s32.totalorder 1, %s20
      %p249 = scmp.lt.s32.totalorder %s20, 3
      %p250 = pnand %p248, %p249
      %p251 = pneg %p250
      // Predicated region
      $region9: #{tpu_custom_call.1} parent=5 // pred_check
        _
      $region10: #{tpu_custom_call.1} parent=5 // pred_check_branch
        %253 = sbr.rel (%p250) target = $region12
      $region11: #{tpu_custom_call.1} parent=5 // pred_region
        %s254 = ssub.s32 %s20, 1
        // Predicated region
        $region13: #{tpu_custom_call.1} parent=11 // pred_check
          %p255 = pneg %p67
        $region14: #{tpu_custom_call.1} parent=11 // pred_check_branch
          %257 = sbr.rel (%p255) target = $region16
        $region15: #{tpu_custom_call.1} parent=11 // pred_region
          _
        $region16: #{tpu_custom_call.1} parent=11 // pred_fallthru
          _
        // Predicated region
        $region17: #{tpu_custom_call.1} parent=11 // pred_check
          %p258 = pneg %p88
        $region18: #{tpu_custom_call.1} parent=11 // pred_check_branch
          %260 = sbr.rel (%p258) target = $region20
        $region19: #{tpu_custom_call.1} parent=11 // pred_region
          _
        $region20: #{tpu_custom_call.1} parent=11 // pred_fallthru
          _
        // Predicated region
        $region21: #{tpu_custom_call.1} parent=11 // pred_check
          %p261 = pneg %p109
        $region22: #{tpu_custom_call.1} parent=11 // pred_check_branch
          %263 = sbr.rel (%p261) target = $region24
        $region23: #{tpu_custom_call.1} parent=11 // pred_region
          _
        $region24: #{tpu_custom_call.1} parent=11 // pred_fallthru
          _
        // Predicated region
        $region25: #{tpu_custom_call.1} parent=11 // pred_check
          %p264 = pneg %p130
        $region26: #{tpu_custom_call.1} parent=11 // pred_check_branch
          %266 = sbr.rel (%p264) target = $region28
        $region27: #{tpu_custom_call.1} parent=11 // pred_region
          _
        $region28: #{tpu_custom_call.1} parent=11 // pred_fallthru
          _
        // Predicated region
        $region29: #{tpu_custom_call.1} parent=11 // pred_check
          %p267 = pneg %p151
        $region30: #{tpu_custom_call.1} parent=11 // pred_check_branch
          %269 = sbr.rel (%p267) target = $region32
        $region31: #{tpu_custom_call.1} parent=11 // pred_region
          _
        $region32: #{tpu_custom_call.1} parent=11 // pred_fallthru
          _
        // Predicated region
        $region33: #{tpu_custom_call.1} parent=11 // pred_check
          %p270 = pneg %p172
        $region34: #{tpu_custom_call.1} parent=11 // pred_check_branch
          %272 = sbr.rel (%p270) target = $region36
        $region35: #{tpu_custom_call.1} parent=11 // pred_region
          _
        $region36: #{tpu_custom_call.1} parent=11 // pred_fallthru
          _
        // Predicated region
        $region37: #{tpu_custom_call.1} parent=11 // pred_check
          %p273 = pneg %p193
        $region38: #{tpu_custom_call.1} parent=11 // pred_check_branch
          %275 = sbr.rel (%p273) target = $region40
        $region39: #{tpu_custom_call.1} parent=11 // pred_region
          _
        $region40: #{tpu_custom_call.1} parent=11 // pred_fallthru
          _
        // Predicated region
        $region41: #{tpu_custom_call.1} parent=11 // pred_check
          %p276 = pneg %p214
        $region42: #{tpu_custom_call.1} parent=11 // pred_check_branch
          %278 = sbr.rel (%p276) target = $region44
        $region43: #{tpu_custom_call.1} parent=11 // pred_region
          _
        $region44: #{tpu_custom_call.1} parent=11 // pred_fallthru
          _
      $region12: #{tpu_custom_call.1} parent=5 // pred_fallthru
        _
      %p279 = scmp.lt.s32.totalorder %s20, 2
      // Predicated region
      $region45: #{tpu_custom_call.1} parent=5 // pred_check
        %p280 = pneg %p279
      $region46: #{tpu_custom_call.1} parent=5 // pred_check_branch
        %282 = sbr.rel (%p280) target = $region48
      $region47: #{tpu_custom_call.1} parent=5 // pred_region
        // Predicated region
        $region49: #{tpu_custom_call.1} parent=47 // pred_check
          %p283 = pneg %p40
        $region50: #{tpu_custom_call.1} parent=47 // pred_check_branch
          %285 = sbr.rel (%p283) target = $region52
        $region51: #{tpu_custom_call.1} parent=47 // pred_region
          %p286 = scmp.lt.s32.totalorder %s20, 1
          %s287 = scalar_select %p286, %s20, 1
          %s288 = smul.addr %s287, 2
          %s289 = smul.addr %s288, 4
          %s290 = scalar_lea.vmem %s0, %s289
        $region52: #{tpu_custom_call.1} parent=47 // pred_fallthru
          _
      $region48: #{tpu_custom_call.1} parent=5 // pred_fallthru
        _
      %p291 = scmp.le.s32.totalorder 1, %s20
      %p292 = scmp.lt.s32.totalorder %s20, 3
      %p293 = pnand %p291, %p292
      %p294 = pneg %p293
      // Predicated region
      $region53: #{tpu_custom_call.1} parent=5 // pred_check
        _
      $region54: #{tpu_custom_call.1} parent=5 // pred_check_branch
        %296 = sbr.rel (%p293) target = $region56
      $region55: #{tpu_custom_call.1} parent=5 // pred_region
        %s297 = ssub.s32 %s20, 1
        %p298 = scmp.lt.s32.totalorder %s25, 1
        %s299 = scalar_select %p298, %s25, 1
        %s300 = smul.addr %s299, 2
        %s301 = smul.addr %s300, 4
        %s302 = scalar_lea.vmem %s0, %s301
        %p303 = pneg %p46
        %p304 = pneg %p43
        %p305 = pneg %p67
        %p306 = pneg %p64
        %p307 = pneg %p88
        %p308 = pneg %p85
        %p309 = pneg %p109
        %p310 = pneg %p106
        %p311 = pneg %p130
        %p312 = pneg %p127
        %p313 = pneg %p151
        %p314 = pneg %p148
        %p315 = pneg %p172
        %p316 = pneg %p169
        %p317 = pneg %p193
        %p318 = pneg %p190
        %p319 = pneg %p214
        %p320 = pneg %p211
        %p321 = pneg %p240
        %p322 = pneg %p237
        %s323 = sand.u32 %s227, 1
        %s324 = scalar_lea.sflag [#allocation4], %s323
        %s325 = sand.u32 %s227, 1
        %s326 = smul.addr %s325, 8
        %s327 = scalar_lea.vmem [#allocation3], %s326
        %p328 = scmp.lt.s32.totalorder %s25, 1
        %s329 = scalar_select %p328, %s25, 1
        %s330 = smul.addr %s329, 2
        %s331 = smul.addr %s330, 4
        %s332 = scalar_lea.vmem %s0, %s331
        %v333 = vld [vmem:[%s332] sm:$0x77]
        %v334 = vld [vmem:[%s1] sm:$0xff]
        %v335 = vld [vmem:[%s1 + $0x8] sm:$0xff]
        %v336 = vld [vmem:[%s1 + $0x10] sm:$0xff]
        %v337 = vld [vmem:[%s1 + $0x18] sm:$0xff]
        %v338 = vld [vmem:[%s1 + $0x20] sm:$0xff]
        %v339 = vld [vmem:[%s1 + $0x28] sm:$0xff]
        %v340 = vld [vmem:[%s1 + $0x30] sm:$0xff]
        %v341 = vld [vmem:[%s1 + $0x38] sm:$0xff]
        %v342 = vld [vmem:[%s1 + $0x40] sm:$0xff]
        %v343 = vld [vmem:[%s1 + $0x48] sm:$0xff]
        %v344 = vld [vmem:[%s1 + $0x50] sm:$0xff]
        %v345 = vld [vmem:[%s1 + $0x58] sm:$0xff]
        %v346 = vld [vmem:[%s1 + $0x60] sm:$0xff]
        %v347 = vld [vmem:[%s1 + $0x68] sm:$0xff]
        %v348 = vld [vmem:[%s1 + $0x70] sm:$0xff]
        %v349 = vld [vmem:[%s1 + $0x78] sm:$0xff]
        %v350 = vld [vmem:[%s1 + $0x80] sm:$0xff]
        %v351 = vld [vmem:[%s1 + $0x88] sm:$0xff]
        %v352 = vld [vmem:[%s1 + $0x90] sm:$0xff]
        %v353 = vld [vmem:[%s1 + $0x98] sm:$0xff]
        %v354 = vld [vmem:[%s1 + $0xa0] sm:$0xff]
        %v355 = vld [vmem:[%s1 + $0xa8] sm:$0xff]
        %v356 = vld [vmem:[%s1 + $0xb0] sm:$0xff]
        %v357 = vld [vmem:[%s1 + $0xb8] sm:$0xff]
        %v358 = vld [vmem:[%s1 + $0xc0] sm:$0xff]
        %v359 = vld [vmem:[%s1 + $0xc8] sm:$0xff]
        %v360 = vld [vmem:[%s1 + $0xd0] sm:$0xff]
        %v361 = vld [vmem:[%s1 + $0xd8] sm:$0xff]
        %v362 = vld [vmem:[%s1 + $0xe0] sm:$0xff]
        %v363 = vld [vmem:[%s1 + $0xe8] sm:$0xff]
        %v364 = vld [vmem:[%s1 + $0xf0] sm:$0xff]
        %v365 = vld [vmem:[%s1 + $0xf8] sm:$0xff]
        %v367 = vcombine.high %v333, %v333
        %369 = vmatprep.subr.mxu0 0.0
        %370 = vmatpush1.msra.mxu0 %v349
        %371 = vmatprep.subr.mxu0 0.0
        %372 = vmatpush1.msra.mxu0 %v348
        %373 = vmatprep.subr.mxu0 0.0
        %374 = vmatpush1.msra.mxu0 %v347
        %375 = vmatprep.subr.mxu0 0.0
        %376 = vmatpush1.msra.mxu0 %v346
        %377 = vmatprep.subr.mxu0 0.0
        %378 = vmatpush1.msra.mxu0 %v345
        %379 = vmatprep.subr.mxu0 0.0
        %380 = vmatpush1.msra.mxu0 %v344
        %381 = vmatprep.subr.mxu0 0.0
        %382 = vmatpush1.msra.mxu0 %v343
        %383 = vmatprep.subr.mxu0 0.0
        %384 = vmatpush1.msra.mxu0 %v342
        %385 = vmatprep.subr.mxu0 0.0
        %386 = vmatpush1.msra.mxu0 %v341
        %387 = vmatprep.subr.mxu0 0.0
        %388 = vmatpush1.msra.mxu0 %v340
        %389 = vmatprep.subr.mxu0 0.0
        %390 = vmatpush1.msra.mxu0 %v339
        %391 = vmatprep.subr.mxu0 0.0
        %392 = vmatpush1.msra.mxu0 %v338
        %393 = vmatprep.subr.mxu0 0.0
        %394 = vmatpush1.msra.mxu0 %v337
        %395 = vmatprep.subr.mxu0 0.0
        %396 = vmatpush1.msra.mxu0 %v336
        %397 = vmatprep.subr.mxu0 0.0
        %398 = vmatpush1.msra.mxu0 %v335
        %399 = vmatprep.subr.mxu0 0.0
        %400 = vmatpush1.msra.mxu0 %v334
        %401 = vmatprep.subr.mxu0 0.0
        %402 = vmatpush2.msra.mxu0 %v365
        %403 = vmatprep.subr.mxu0 0.0
        %404 = vmatpush2.msra.mxu0 %v364
        %405 = vmatprep.subr.mxu0 0.0
        %406 = vmatpush2.msra.mxu0 %v363
        %407 = vmatprep.subr.mxu0 0.0
        %408 = vmatpush2.msra.mxu0 %v362
        %409 = vmatprep.subr.mxu0 0.0
        %410 = vmatpush2.msra.mxu0 %v361
        %411 = vmatprep.subr.mxu0 0.0
        %412 = vmatpush2.msra.mxu0 %v360
        %413 = vmatprep.subr.mxu0 0.0
        %414 = vmatpush2.msra.mxu0 %v359
        %415 = vmatprep.subr.mxu0 0.0
        %416 = vmatpush2.msra.mxu0 %v358
        %417 = vmatprep.subr.mxu0 0.0
        %418 = vmatpush2.msra.mxu0 %v357
        %419 = vmatprep.subr.mxu0 0.0
        %420 = vmatpush2.msra.mxu0 %v356
        %421 = vmatprep.subr.mxu0 0.0
        %422 = vmatpush2.msra.mxu0 %v355
        %423 = vmatprep.subr.mxu0 0.0
        %424 = vmatpush2.msra.mxu0 %v354
        %425 = vmatprep.subr.mxu0 0.0
        %426 = vmatpush2.msra.mxu0 %v353
        %427 = vmatprep.subr.mxu0 0.0
        %428 = vmatpush2.msra.mxu0 %v352
        %429 = vmatprep.subr.mxu0 0.0
        %430 = vmatpush2.msra.mxu0 %v351
        %431 = vmatprep.subr.mxu0 0.0
        %432 = vmatpush2.msra.mxu0 %v350
        %433 = vmatprep.mubr.f32.mxu0 %v367
        %434 = vmatmul.mubr.f32.gmra.mxu0 %v333
        %v435 = vpop.f32.mrf.mxu0
        %v436 = vadd.f32 0.0, %v435
        %v437 = vpop.f32.mrf.mxu0
        %438 = vdwg.mxu0
        %v439 = vld [vmem:[%s2] sm:$0xff]
        %s440 = scalar_lea.vmem %s1, 256
        %v441 = vld [vmem:[%s440] sm:$0xff]
        %v442 = vld [vmem:[%s440 + $0x8] sm:$0xff]
        %v443 = vld [vmem:[%s440 + $0x10] sm:$0xff]
        %v444 = vld [vmem:[%s440 + $0x18] sm:$0xff]
        %v445 = vld [vmem:[%s440 + $0x20] sm:$0xff]
        %v446 = vld [vmem:[%s440 + $0x28] sm:$0xff]
        %v447 = vld [vmem:[%s440 + $0x30] sm:$0xff]
        %v448 = vld [vmem:[%s440 + $0x38] sm:$0xff]
        %v449 = vld [vmem:[%s440 + $0x40] sm:$0xff]
        %v450 = vld [vmem:[%s440 + $0x48] sm:$0xff]
        %v451 = vld [vmem:[%s440 + $0x50] sm:$0xff]
        %v452 = vld [vmem:[%s440 + $0x58] sm:$0xff]
        %v453 = vld [vmem:[%s440 + $0x60] sm:$0xff]
        %v454 = vld [vmem:[%s440 + $0x68] sm:$0xff]
        %v455 = vld [vmem:[%s440 + $0x70] sm:$0xff]
        %v456 = vld [vmem:[%s440 + $0x78] sm:$0xff]
        %v457 = vld [vmem:[%s440 + $0x80] sm:$0xff]
        %v458 = vld [vmem:[%s440 + $0x88] sm:$0xff]
        %v459 = vld [vmem:[%s440 + $0x90] sm:$0xff]
        %v460 = vld [vmem:[%s440 + $0x98] sm:$0xff]
        %v461 = vld [vmem:[%s440 + $0xa0] sm:$0xff]
        %v462 = vld [vmem:[%s440 + $0xa8] sm:$0xff]
        %v463 = vld [vmem:[%s440 + $0xb0] sm:$0xff]
        %v464 = vld [vmem:[%s440 + $0xb8] sm:$0xff]
        %v465 = vld [vmem:[%s440 + $0xc0] sm:$0xff]
        %v466 = vld [vmem:[%s440 + $0xc8] sm:$0xff]
        %v467 = vld [vmem:[%s440 + $0xd0] sm:$0xff]
        %v468 = vld [vmem:[%s440 + $0xd8] sm:$0xff]
        %v469 = vld [vmem:[%s440 + $0xe0] sm:$0xff]
        %v470 = vld [vmem:[%s440 + $0xe8] sm:$0xff]
        %v471 = vld [vmem:[%s440 + $0xf0] sm:$0xff]
        %v472 = vld [vmem:[%s440 + $0xf8] sm:$0xff]
        %473 = vmatprep.subr.mxu0 0.0
        %474 = vmatpush1.msra.mxu0 %v456
        %475 = vmatprep.subr.mxu0 0.0
        %476 = vmatpush1.msra.mxu0 %v455
        %477 = vmatprep.subr.mxu0 0.0
        %478 = vmatpush1.msra.mxu0 %v454
        %479 = vmatprep.subr.mxu0 0.0
        %480 = vmatpush1.msra.mxu0 %v453
        %481 = vmatprep.subr.mxu0 0.0
        %482 = vmatpush1.msra.mxu0 %v452
        %483 = vmatprep.subr.mxu0 0.0
        %484 = vmatpush1.msra.mxu0 %v451
        %485 = vmatprep.subr.mxu0 0.0
        %486 = vmatpush1.msra.mxu0 %v450
        %487 = vmatprep.subr.mxu0 0.0
        %488 = vmatpush1.msra.mxu0 %v449
        %489 = vmatprep.subr.mxu0 0.0
        %490 = vmatpush1.msra.mxu0 %v448
        %491 = vmatprep.subr.mxu0 0.0
        %492 = vmatpush1.msra.mxu0 %v447
        %493 = vmatprep.subr.mxu0 0.0
        %494 = vmatpush1.msra.mxu0 %v446
        %495 = vmatprep.subr.mxu0 0.0
        %496 = vmatpush1.msra.mxu0 %v445
        %497 = vmatprep.subr.mxu0 0.0
        %498 = vmatpush1.msra.mxu0 %v444
        %499 = vmatprep.subr.mxu0 0.0
        %500 = vmatpush1.msra.mxu0 %v443
        %501 = vmatprep.subr.mxu0 0.0
        %502 = vmatpush1.msra.mxu0 %v442
        %503 = vmatprep.subr.mxu0 0.0
        %504 = vmatpush1.msra.mxu0 %v441
        %505 = vmatprep.subr.mxu0 0.0
        %506 = vmatpush2.msra.mxu0 %v472
        %507 = vmatprep.subr.mxu0 0.0
        %508 = vmatpush2.msra.mxu0 %v471
        %509 = vmatprep.subr.mxu0 0.0
        %510 = vmatpush2.msra.mxu0 %v470
        %511 = vmatprep.subr.mxu0 0.0
        %512 = vmatpush2.msra.mxu0 %v469
        %513 = vmatprep.subr.mxu0 0.0
        %514 = vmatpush2.msra.mxu0 %v468
        %515 = vmatprep.subr.mxu0 0.0
        %516 = vmatpush2.msra.mxu0 %v467
        %517 = vmatprep.subr.mxu0 0.0
        %518 = vmatpush2.msra.mxu0 %v466
        %519 = vmatprep.subr.mxu0 0.0
        %520 = vmatpush2.msra.mxu0 %v465
        %521 = vmatprep.subr.mxu0 0.0
        %522 = vmatpush2.msra.mxu0 %v464
        %523 = vmatprep.subr.mxu0 0.0
        %524 = vmatpush2.msra.mxu0 %v463
        %525 = vmatprep.subr.mxu0 0.0
        %526 = vmatpush2.msra.mxu0 %v462
        %527 = vmatprep.subr.mxu0 0.0
        %528 = vmatpush2.msra.mxu0 %v461
        %529 = vmatprep.subr.mxu0 0.0
        %530 = vmatpush2.msra.mxu0 %v460
        %531 = vmatprep.subr.mxu0 0.0
        %532 = vmatpush2.msra.mxu0 %v459
        %533 = vmatprep.subr.mxu0 0.0
        %534 = vmatpush2.msra.mxu0 %v458
        %535 = vmatprep.subr.mxu0 0.0
        %536 = vmatpush2.msra.mxu0 %v457
        %537 = vmatprep.mubr.f32.mxu0 %v367
        %538 = vmatmul.mubr.f32.gmra.mxu0 %v333
        %v539 = vpop.f32.mrf.mxu0
        %v540 = vadd.f32 0.0, %v539
        %v541 = vpop.f32.mrf.mxu0
        %542 = vdwg.mxu0
        %s543 = scalar_lea.vmem %s2, 8
        %v544 = vld [vmem:[%s543] sm:$0xff]
        %vm545 = vcmask 23552
        %v547 = vsel %vm545, %v544, 0
        %vm549 = vcmask 1042432
        %v551 = vsel %vm549, %v540, 0
        %553 = vmatprep.subr.mxu0 0.0
        %554 = vmatpush1.msra.mxu0 0.0
        %555 = vmatprep.subr.mxu0 0.0
        %556 = vmatpush1.msra.mxu0 0.0
        %557 = vmatprep.subr.mxu0 0.0
        %558 = vmatpush1.msra.mxu0 0.0
        %559 = vmatprep.subr.mxu0 0.0
        %560 = vmatpush1.msra.mxu0 0.0
        %561 = vmatprep.subr.mxu0 0.0
        %562 = vmatpush1.msra.mxu0 0.0
        %563 = vmatprep.subr.mxu0 0.0
        %564 = vmatpush1.msra.mxu0 0.0
        %565 = vmatprep.subr.mxu0 0.0
        %566 = vmatpush1.msra.mxu0 0.0
        %567 = vmatprep.subr.mxu0 0.0
        %568 = vmatpush1.msra.mxu0 0.0
        %569 = vmatprep.subr.mxu0 0.0
        %570 = vmatpush1.msra.mxu0 0.0
        %571 = vmatprep.subr.mxu0 0.0
        %572 = vmatpush1.msra.mxu0 0.0
        %573 = vmatprep.subr.mxu0 0.0
        %574 = vmatpush1.msra.mxu0 0.0
        %575 = vmatprep.subr.mxu0 0.0
        %576 = vmatpush1.msra.mxu0 0.0
        %577 = vmatprep.subr.mxu0 0.0
        %578 = vmatpush1.msra.mxu0 0.0
        %579 = vmatprep.subr.mxu0 0.0
        %580 = vmatpush1.msra.mxu0 0.0
        %581 = vmatprep.subr.mxu0 0.0
        %582 = vmatpush1.msra.mxu0 0.0
        %583 = vmatprep.subr.mxu0 0.0
        %584 = vmatpush1.msra.mxu0 %v551
        %585 = vmatprep.subr.mxu0 0.0
        %586 = vmatpush2.msra.mxu0 0.0
        %587 = vmatprep.subr.mxu0 0.0
        %588 = vmatpush2.msra.mxu0 0.0
        %589 = vmatprep.subr.mxu0 0.0
        %590 = vmatpush2.msra.mxu0 0.0
        %591 = vmatprep.subr.mxu0 0.0
        %592 = vmatpush2.msra.mxu0 0.0
        %593 = vmatprep.subr.mxu0 0.0
        %594 = vmatpush2.msra.mxu0 0.0
        %595 = vmatprep.subr.mxu0 0.0
        %596 = vmatpush2.msra.mxu0 0.0
        %597 = vmatprep.subr.mxu0 0.0
        %598 = vmatpush2.msra.mxu0 0.0
        %599 = vmatprep.subr.mxu0 0.0
        %600 = vmatpush2.msra.mxu0 0.0
        %601 = vmatprep.subr.mxu0 0.0
        %602 = vmatpush2.msra.mxu0 0.0
        %603 = vmatprep.subr.mxu0 0.0
        %604 = vmatpush2.msra.mxu0 0.0
        %605 = vmatprep.subr.mxu0 0.0
        %606 = vmatpush2.msra.mxu0 0.0
        %607 = vmatprep.subr.mxu0 0.0
        %608 = vmatpush2.msra.mxu0 0.0
        %609 = vmatprep.subr.mxu0 0.0
        %610 = vmatpush2.msra.mxu0 0.0
        %611 = vmatprep.subr.mxu0 0.0
        %612 = vmatpush2.msra.mxu0 0.0
        %613 = vmatprep.subr.mxu0 0.0
        %614 = vmatpush2.msra.mxu0 0.0
        %615 = vmatprep.subr.mxu0 0.0
        %616 = vmatpush2.msra.mxu0 0.0
        %617 = vmatprep.mubr.f32.mxu0 0.0
        %618 = vmatmul.mubr.f32.gmra.mxu0 %v547
        %v619 = vpop.f32.mrf.mxu0
        %v620 = vadd.f32 0.0, %v619
        %v621 = vpop.f32.mrf.mxu0
        %622 = vdwg.mxu0
        %v624 = vsel %vm545, %v439, 0
        %v627 = vsel %vm549, %v436, 0
        %629 = vmatprep.subr.mxu0 0.0
        %630 = vmatpush1.msra.mxu0 0.0
        %631 = vmatprep.subr.mxu0 0.0
        %632 = vmatpush1.msra.mxu0 0.0
        %633 = vmatprep.subr.mxu0 0.0
        %634 = vmatpush1.msra.mxu0 0.0
        %635 = vmatprep.subr.mxu0 0.0
        %636 = vmatpush1.msra.mxu0 0.0
        %637 = vmatprep.subr.mxu0 0.0
        %638 = vmatpush1.msra.mxu0 0.0
        %639 = vmatprep.subr.mxu0 0.0
        %640 = vmatpush1.msra.mxu0 0.0
        %641 = vmatprep.subr.mxu0 0.0
        %642 = vmatpush1.msra.mxu0 0.0
        %643 = vmatprep.subr.mxu0 0.0
        %644 = vmatpush1.msra.mxu0 0.0
        %645 = vmatprep.subr.mxu0 0.0
        %646 = vmatpush1.msra.mxu0 0.0
        %647 = vmatprep.subr.mxu0 0.0
        %648 = vmatpush1.msra.mxu0 0.0
        %649 = vmatprep.subr.mxu0 0.0
        %650 = vmatpush1.msra.mxu0 0.0
        %651 = vmatprep.subr.mxu0 0.0
        %652 = vmatpush1.msra.mxu0 0.0
        %653 = vmatprep.subr.mxu0 0.0
        %654 = vmatpush1.msra.mxu0 0.0
        %655 = vmatprep.subr.mxu0 0.0
        %656 = vmatpush1.msra.mxu0 0.0
        %657 = vmatprep.subr.mxu0 0.0
        %658 = vmatpush1.msra.mxu0 0.0
        %659 = vmatprep.subr.mxu0 0.0
        %660 = vmatpush1.msra.mxu0 %v627
        %661 = vmatprep.subr.mxu0 0.0
        %662 = vmatpush2.msra.mxu0 0.0
        %663 = vmatprep.subr.mxu0 0.0
        %664 = vmatpush2.msra.mxu0 0.0
        %665 = vmatprep.subr.mxu0 0.0
        %666 = vmatpush2.msra.mxu0 0.0
        %667 = vmatprep.subr.mxu0 0.0
        %668 = vmatpush2.msra.mxu0 0.0
        %669 = vmatprep.subr.mxu0 0.0
        %670 = vmatpush2.msra.mxu0 0.0
        %671 = vmatprep.subr.mxu0 0.0
        %672 = vmatpush2.msra.mxu0 0.0
        %673 = vmatprep.subr.mxu0 0.0
        %674 = vmatpush2.msra.mxu0 0.0
        %675 = vmatprep.subr.mxu0 0.0
        %676 = vmatpush2.msra.mxu0 0.0
        %677 = vmatprep.subr.mxu0 0.0
        %678 = vmatpush2.msra.mxu0 0.0
        %679 = vmatprep.subr.mxu0 0.0
        %680 = vmatpush2.msra.mxu0 0.0
        %681 = vmatprep.subr.mxu0 0.0
        %682 = vmatpush2.msra.mxu0 0.0
        %683 = vmatprep.subr.mxu0 0.0
        %684 = vmatpush2.msra.mxu0 0.0
        %685 = vmatprep.subr.mxu0 0.0
        %686 = vmatpush2.msra.mxu0 0.0
        %687 = vmatprep.subr.mxu0 0.0
        %688 = vmatpush2.msra.mxu0 0.0
        %689 = vmatprep.subr.mxu0 0.0
        %690 = vmatpush2.msra.mxu0 0.0
        %691 = vmatprep.subr.mxu0 0.0
        %692 = vmatpush2.msra.mxu0 0.0
        %693 = vmatprep.mubr.f32.mxu0 0.0
        %694 = vmatmul.mubr.f32.gmra.mxu0 %v624
        %v695 = vpop.f32.mrf.mxu0
        %v696 = vadd.f32 %v620, %v695
        %v697 = vpop.f32.mrf.mxu0
        %698 = vdwg.mxu0
        %s699 = scalar_lea.vmem %s1, 512
        %v700 = vld [vmem:[%s699] sm:$0xff]
        %v701 = vld [vmem:[%s699 + $0x8] sm:$0xff]
        %v702 = vld [vmem:[%s699 + $0x10] sm:$0xff]
        %v703 = vld [vmem:[%s699 + $0x18] sm:$0xff]
        %v704 = vld [vmem:[%s699 + $0x20] sm:$0xff]
        %v705 = vld [vmem:[%s699 + $0x28] sm:$0xff]
        %v706 = vld [vmem:[%s699 + $0x30] sm:$0xff]
        %v707 = vld [vmem:[%s699 + $0x38] sm:$0xff]
        %v708 = vld [vmem:[%s699 + $0x40] sm:$0xff]
        %v709 = vld [vmem:[%s699 + $0x48] sm:$0xff]
        %v710 = vld [vmem:[%s699 + $0x50] sm:$0xff]
        %v711 = vld [vmem:[%s699 + $0x58] sm:$0xff]
        %v712 = vld [vmem:[%s699 + $0x60] sm:$0xff]
        %v713 = vld [vmem:[%s699 + $0x68] sm:$0xff]
        %v714 = vld [vmem:[%s699 + $0x70] sm:$0xff]
        %v715 = vld [vmem:[%s699 + $0x78] sm:$0xff]
        %v716 = vld [vmem:[%s699 + $0x80] sm:$0xff]
        %v717 = vld [vmem:[%s699 + $0x88] sm:$0xff]
        %v718 = vld [vmem:[%s699 + $0x90] sm:$0xff]
        %v719 = vld [vmem:[%s699 + $0x98] sm:$0xff]
        %v720 = vld [vmem:[%s699 + $0xa0] sm:$0xff]
        %v721 = vld [vmem:[%s699 + $0xa8] sm:$0xff]
        %v722 = vld [vmem:[%s699 + $0xb0] sm:$0xff]
        %v723 = vld [vmem:[%s699 + $0xb8] sm:$0xff]
        %v724 = vld [vmem:[%s699 + $0xc0] sm:$0xff]
        %v725 = vld [vmem:[%s699 + $0xc8] sm:$0xff]
        %v726 = vld [vmem:[%s699 + $0xd0] sm:$0xff]
        %v727 = vld [vmem:[%s699 + $0xd8] sm:$0xff]
        %v728 = vld [vmem:[%s699 + $0xe0] sm:$0xff]
        %v729 = vld [vmem:[%s699 + $0xe8] sm:$0xff]
        %v730 = vld [vmem:[%s699 + $0xf0] sm:$0xff]
        %v731 = vld [vmem:[%s699 + $0xf8] sm:$0xff]
        %732 = vmatprep.subr.mxu0 0.0
        %733 = vmatpush1.msra.mxu0 %v715
        %734 = vmatprep.subr.mxu0 0.0
        %735 = vmatpush1.msra.mxu0 %v714
        %736 = vmatprep.subr.mxu0 0.0
        %737 = vmatpush1.msra.mxu0 %v713
        %738 = vmatprep.subr.mxu0 0.0
        %739 = vmatpush1.msra.mxu0 %v712
        %740 = vmatprep.subr.mxu0 0.0
        %741 = vmatpush1.msra.mxu0 %v711
        %742 = vmatprep.subr.mxu0 0.0
        %743 = vmatpush1.msra.mxu0 %v710
        %744 = vmatprep.subr.mxu0 0.0
        %745 = vmatpush1.msra.mxu0 %v709
        %746 = vmatprep.subr.mxu0 0.0
        %747 = vmatpush1.msra.mxu0 %v708
        %748 = vmatprep.subr.mxu0 0.0
        %749 = vmatpush1.msra.mxu0 %v707
        %750 = vmatprep.subr.mxu0 0.0
        %751 = vmatpush1.msra.mxu0 %v706
        %752 = vmatprep.subr.mxu0 0.0
        %753 = vmatpush1.msra.mxu0 %v705
        %754 = vmatprep.subr.mxu0 0.0
        %755 = vmatpush1.msra.mxu0 %v704
        %756 = vmatprep.subr.mxu0 0.0
        %757 = vmatpush1.msra.mxu0 %v703
        %758 = vmatprep.subr.mxu0 0.0
        %759 = vmatpush1.msra.mxu0 %v702
        %760 = vmatprep.subr.mxu0 0.0
        %761 = vmatpush1.msra.mxu0 %v701
        %762 = vmatprep.subr.mxu0 0.0
        %763 = vmatpush1.msra.mxu0 %v700
        %764 = vmatprep.subr.mxu0 0.0
        %765 = vmatpush2.msra.mxu0 %v731
        %766 = vmatprep.subr.mxu0 0.0
        %767 = vmatpush2.msra.mxu0 %v730
        %768 = vmatprep.subr.mxu0 0.0
        %769 = vmatpush2.msra.mxu0 %v729
        %770 = vmatprep.subr.mxu0 0.0
        %771 = vmatpush2.msra.mxu0 %v728
        %772 = vmatprep.subr.mxu0 0.0
        %773 = vmatpush2.msra.mxu0 %v727
        %774 = vmatprep.subr.mxu0 0.0
        %775 = vmatpush2.msra.mxu0 %v726
        %776 = vmatprep.subr.mxu0 0.0
        %777 = vmatpush2.msra.mxu0 %v725
        %778 = vmatprep.subr.mxu0 0.0
        %779 = vmatpush2.msra.mxu0 %v724
        %780 = vmatprep.subr.mxu0 0.0
        %781 = vmatpush2.msra.mxu0 %v723
        %782 = vmatprep.subr.mxu0 0.0
        %783 = vmatpush2.msra.mxu0 %v722
        %784 = vmatprep.subr.mxu0 0.0
        %785 = vmatpush2.msra.mxu0 %v721
        %786 = vmatprep.subr.mxu0 0.0
        %787 = vmatpush2.msra.mxu0 %v720
        %788 = vmatprep.subr.mxu0 0.0
        %789 = vmatpush2.msra.mxu0 %v719
        %790 = vmatprep.subr.mxu0 0.0
        %791 = vmatpush2.msra.mxu0 %v718
        %792 = vmatprep.subr.mxu0 0.0
        %793 = vmatpush2.msra.mxu0 %v717
        %794 = vmatprep.subr.mxu0 0.0
        %795 = vmatpush2.msra.mxu0 %v716
        %796 = vmatprep.mubr.f32.mxu0 %v367
        %797 = vmatmul.mubr.f32.gmra.mxu0 %v333
        %v798 = vpop.f32.mrf.mxu0
        %v799 = vadd.f32 0.0, %v798
        %v800 = vpop.f32.mrf.mxu0
        %801 = vdwg.mxu0
        %s802 = scalar_lea.vmem %s2, 16
        %v803 = vld [vmem:[%s802] sm:$0xff]
        %v805 = vsel %vm545, %v803, 0
        %v808 = vsel %vm549, %v799, 0
        %810 = vmatprep.subr.mxu0 0.0
        %811 = vmatpush1.msra.mxu0 0.0
        %812 = vmatprep.subr.mxu0 0.0
        %813 = vmatpush1.msra.mxu0 0.0
        %814 = vmatprep.subr.mxu0 0.0
        %815 = vmatpush1.msra.mxu0 0.0
        %816 = vmatprep.subr.mxu0 0.0
        %817 = vmatpush1.msra.mxu0 0.0
        %818 = vmatprep.subr.mxu0 0.0
        %819 = vmatpush1.msra.mxu0 0.0
        %820 = vmatprep.subr.mxu0 0.0
        %821 = vmatpush1.msra.mxu0 0.0
        %822 = vmatprep.subr.mxu0 0.0
        %823 = vmatpush1.msra.mxu0 0.0
        %824 = vmatprep.subr.mxu0 0.0
        %825 = vmatpush1.msra.mxu0 0.0
        %826 = vmatprep.subr.mxu0 0.0
        %827 = vmatpush1.msra.mxu0 0.0
        %828 = vmatprep.subr.mxu0 0.0
        %829 = vmatpush1.msra.mxu0 0.0
        %830 = vmatprep.subr.mxu0 0.0
        %831 = vmatpush1.msra.mxu0 0.0
        %832 = vmatprep.subr.mxu0 0.0
        %833 = vmatpush1.msra.mxu0 0.0
        %834 = vmatprep.subr.mxu0 0.0
        %835 = vmatpush1.msra.mxu0 0.0
        %836 = vmatprep.subr.mxu0 0.0
        %837 = vmatpush1.msra.mxu0 0.0
        %838 = vmatprep.subr.mxu0 0.0
        %839 = vmatpush1.msra.mxu0 0.0
        %840 = vmatprep.subr.mxu0 0.0
        %841 = vmatpush1.msra.mxu0 %v808
        %842 = vmatprep.subr.mxu0 0.0
        %843 = vmatpush2.msra.mxu0 0.0
        %844 = vmatprep.subr.mxu0 0.0
        %845 = vmatpush2.msra.mxu0 0.0
        %846 = vmatprep.subr.mxu0 0.0
        %847 = vmatpush2.msra.mxu0 0.0
        %848 = vmatprep.subr.mxu0 0.0
        %849 = vmatpush2.msra.mxu0 0.0
        %850 = vmatprep.subr.mxu0 0.0
        %851 = vmatpush2.msra.mxu0 0.0
        %852 = vmatprep.subr.mxu0 0.0
        %853 = vmatpush2.msra.mxu0 0.0
        %854 = vmatprep.subr.mxu0 0.0
        %855 = vmatpush2.msra.mxu0 0.0
        %856 = vmatprep.subr.mxu0 0.0
        %857 = vmatpush2.msra.mxu0 0.0
        %858 = vmatprep.subr.mxu0 0.0
        %859 = vmatpush2.msra.mxu0 0.0
        %860 = vmatprep.subr.mxu0 0.0
        %861 = vmatpush2.msra.mxu0 0.0
        %862 = vmatprep.subr.mxu0 0.0
        %863 = vmatpush2.msra.mxu0 0.0
        %864 = vmatprep.subr.mxu0 0.0
        %865 = vmatpush2.msra.mxu0 0.0
        %866 = vmatprep.subr.mxu0 0.0
        %867 = vmatpush2.msra.mxu0 0.0
        %868 = vmatprep.subr.mxu0 0.0
        %869 = vmatpush2.msra.mxu0 0.0
        %870 = vmatprep.subr.mxu0 0.0
        %871 = vmatpush2.msra.mxu0 0.0
        %872 = vmatprep.subr.mxu0 0.0
        %873 = vmatpush2.msra.mxu0 0.0
        %874 = vmatprep.mubr.f32.mxu0 0.0
        %875 = vmatmul.mubr.f32.gmra.mxu0 %v805
        %v876 = vpop.f32.mrf.mxu0
        %v877 = vadd.f32 0.0, %v876
        %v878 = vpop.f32.mrf.mxu0
        %879 = vdwg.mxu0
        %v880 = vadd.f32 %v696, %v877
        %s881 = scalar_lea.vmem %s1, 768
        %v882 = vld [vmem:[%s881] sm:$0xff]
        %v883 = vld [vmem:[%s881 + $0x8] sm:$0xff]
        %v884 = vld [vmem:[%s881 + $0x10] sm:$0xff]
        %v885 = vld [vmem:[%s881 + $0x18] sm:$0xff]
        %v886 = vld [vmem:[%s881 + $0x20] sm:$0xff]
        %v887 = vld [vmem:[%s881 + $0x28] sm:$0xff]
        %v888 = vld [vmem:[%s881 + $0x30] sm:$0xff]
        %v889 = vld [vmem:[%s881 + $0x38] sm:$0xff]
        %v890 = vld [vmem:[%s881 + $0x40] sm:$0xff]
        %v891 = vld [vmem:[%s881 + $0x48] sm:$0xff]
        %v892 = vld [vmem:[%s881 + $0x50] sm:$0xff]
        %v893 = vld [vmem:[%s881 + $0x58] sm:$0xff]
        %v894 = vld [vmem:[%s881 + $0x60] sm:$0xff]
        %v895 = vld [vmem:[%s881 + $0x68] sm:$0xff]
        %v896 = vld [vmem:[%s881 + $0x70] sm:$0xff]
        %v897 = vld [vmem:[%s881 + $0x78] sm:$0xff]
        %v898 = vld [vmem:[%s881 + $0x80] sm:$0xff]
        %v899 = vld [vmem:[%s881 + $0x88] sm:$0xff]
        %v900 = vld [vmem:[%s881 + $0x90] sm:$0xff]
        %v901 = vld [vmem:[%s881 + $0x98] sm:$0xff]
        %v902 = vld [vmem:[%s881 + $0xa0] sm:$0xff]
        %v903 = vld [vmem:[%s881 + $0xa8] sm:$0xff]
        %v904 = vld [vmem:[%s881 + $0xb0] sm:$0xff]
        %v905 = vld [vmem:[%s881 + $0xb8] sm:$0xff]
        %v906 = vld [vmem:[%s881 + $0xc0] sm:$0xff]
        %v907 = vld [vmem:[%s881 + $0xc8] sm:$0xff]
        %v908 = vld [vmem:[%s881 + $0xd0] sm:$0xff]
        %v909 = vld [vmem:[%s881 + $0xd8] sm:$0xff]
        %v910 = vld [vmem:[%s881 + $0xe0] sm:$0xff]
        %v911 = vld [vmem:[%s881 + $0xe8] sm:$0xff]
        %v912 = vld [vmem:[%s881 + $0xf0] sm:$0xff]
        %v913 = vld [vmem:[%s881 + $0xf8] sm:$0xff]
        %914 = vmatprep.subr.mxu0 0.0
        %915 = vmatpush1.msra.mxu0 %v897
        %916 = vmatprep.subr.mxu0 0.0
        %917 = vmatpush1.msra.mxu0 %v896
        %918 = vmatprep.subr.mxu0 0.0
        %919 = vmatpush1.msra.mxu0 %v895
        %920 = vmatprep.subr.mxu0 0.0
        %921 = vmatpush1.msra.mxu0 %v894
        %922 = vmatprep.subr.mxu0 0.0
        %923 = vmatpush1.msra.mxu0 %v893
        %924 = vmatprep.subr.mxu0 0.0
        %925 = vmatpush1.msra.mxu0 %v892
        %926 = vmatprep.subr.mxu0 0.0
        %927 = vmatpush1.msra.mxu0 %v891
        %928 = vmatprep.subr.mxu0 0.0
        %929 = vmatpush1.msra.mxu0 %v890
        %930 = vmatprep.subr.mxu0 0.0
        %931 = vmatpush1.msra.mxu0 %v889
        %932 = vmatprep.subr.mxu0 0.0
        %933 = vmatpush1.msra.mxu0 %v888
        %934 = vmatprep.subr.mxu0 0.0
        %935 = vmatpush1.msra.mxu0 %v887
        %936 = vmatprep.subr.mxu0 0.0
        %937 = vmatpush1.msra.mxu0 %v886
        %938 = vmatprep.subr.mxu0 0.0
        %939 = vmatpush1.msra.mxu0 %v885
        %940 = vmatprep.subr.mxu0 0.0
        %941 = vmatpush1.msra.mxu0 %v884
        %942 = vmatprep.subr.mxu0 0.0
        %943 = vmatpush1.msra.mxu0 %v883
        %944 = vmatprep.subr.mxu0 0.0
        %945 = vmatpush1.msra.mxu0 %v882
        %946 = vmatprep.subr.mxu0 0.0
        %947 = vmatpush2.msra.mxu0 %v913
        %948 = vmatprep.subr.mxu0 0.0
        %949 = vmatpush2.msra.mxu0 %v912
        %950 = vmatprep.subr.mxu0 0.0
        %951 = vmatpush2.msra.mxu0 %v911
        %952 = vmatprep.subr.mxu0 0.0
        %953 = vmatpush2.msra.mxu0 %v910
        %954 = vmatprep.subr.mxu0 0.0
        %955 = vmatpush2.msra.mxu0 %v909
        %956 = vmatprep.subr.mxu0 0.0
        %957 = vmatpush2.msra.mxu0 %v908
        %958 = vmatprep.subr.mxu0 0.0
        %959 = vmatpush2.msra.mxu0 %v907
        %960 = vmatprep.subr.mxu0 0.0
        %961 = vmatpush2.msra.mxu0 %v906
        %962 = vmatprep.subr.mxu0 0.0
        %963 = vmatpush2.msra.mxu0 %v905
        %964 = vmatprep.subr.mxu0 0.0
        %965 = vmatpush2.msra.mxu0 %v904
        %966 = vmatprep.subr.mxu0 0.0
        %967 = vmatpush2.msra.mxu0 %v903
        %968 = vmatprep.subr.mxu0 0.0
        %969 = vmatpush2.msra.mxu0 %v902
        %970 = vmatprep.subr.mxu0 0.0
        %971 = vmatpush2.msra.mxu0 %v901
        %972 = vmatprep.subr.mxu0 0.0
        %973 = vmatpush2.msra.mxu0 %v900
        %974 = vmatprep.subr.mxu0 0.0
        %975 = vmatpush2.msra.mxu0 %v899
        %976 = vmatprep.subr.mxu0 0.0
        %977 = vmatpush2.msra.mxu0 %v898
        %978 = vmatprep.mubr.f32.mxu0 %v367
        %979 = vmatmul.mubr.f32.gmra.mxu0 %v333
        %v980 = vpop.f32.mrf.mxu0
        %v981 = vadd.f32 0.0, %v980
        %v982 = vpop.f32.mrf.mxu0
        %983 = vdwg.mxu0
        %s984 = scalar_lea.vmem %s2, 24
        %v985 = vld [vmem:[%s984] sm:$0xff]
        %v987 = vsel %vm545, %v985, 0
        %v990 = vsel %vm549, %v981, 0
        %992 = vmatprep.subr.mxu0 0.0
        %993 = vmatpush1.msra.mxu0 0.0
        %994 = vmatprep.subr.mxu0 0.0
        %995 = vmatpush1.msra.mxu0 0.0
        %996 = vmatprep.subr.mxu0 0.0
        %997 = vmatpush1.msra.mxu0 0.0
        %998 = vmatprep.subr.mxu0 0.0
        %999 = vmatpush1.msra.mxu0 0.0
        %1000 = vmatprep.subr.mxu0 0.0
        %1001 = vmatpush1.msra.mxu0 0.0
        %1002 = vmatprep.subr.mxu0 0.0
        %1003 = vmatpush1.msra.mxu0 0.0
        %1004 = vmatprep.subr.mxu0 0.0
        %1005 = vmatpush1.msra.mxu0 0.0
        %1006 = vmatprep.subr.mxu0 0.0
        %1007 = vmatpush1.msra.mxu0 0.0
        %1008 = vmatprep.subr.mxu0 0.0
        %1009 = vmatpush1.msra.mxu0 0.0
        %1010 = vmatprep.subr.mxu0 0.0
        %1011 = vmatpush1.msra.mxu0 0.0
        %1012 = vmatprep.subr.mxu0 0.0
        %1013 = vmatpush1.msra.mxu0 0.0
        %1014 = vmatprep.subr.mxu0 0.0
        %1015 = vmatpush1.msra.mxu0 0.0
        %1016 = vmatprep.subr.mxu0 0.0
        %1017 = vmatpush1.msra.mxu0 0.0
        %1018 = vmatprep.subr.mxu0 0.0
        %1019 = vmatpush1.msra.mxu0 0.0
        %1020 = vmatprep.subr.mxu0 0.0
        %1021 = vmatpush1.msra.mxu0 0.0
        %1022 = vmatprep.subr.mxu0 0.0
        %1023 = vmatpush1.msra.mxu0 %v990
        %1024 = vmatprep.subr.mxu0 0.0
        %1025 = vmatpush2.msra.mxu0 0.0
        %1026 = vmatprep.subr.mxu0 0.0
        %1027 = vmatpush2.msra.mxu0 0.0
        %1028 = vmatprep.subr.mxu0 0.0
        %1029 = vmatpush2.msra.mxu0 0.0
        %1030 = vmatprep.subr.mxu0 0.0
        %1031 = vmatpush2.msra.mxu0 0.0
        %1032 = vmatprep.subr.mxu0 0.0
        %1033 = vmatpush2.msra.mxu0 0.0
        %1034 = vmatprep.subr.mxu0 0.0
        %1035 = vmatpush2.msra.mxu0 0.0
        %1036 = vmatprep.subr.mxu0 0.0
        %1037 = vmatpush2.msra.mxu0 0.0
        %1038 = vmatprep.subr.mxu0 0.0
        %1039 = vmatpush2.msra.mxu0 0.0
        %1040 = vmatprep.subr.mxu0 0.0
        %1041 = vmatpush2.msra.mxu0 0.0
        %1042 = vmatprep.subr.mxu0 0.0
        %1043 = vmatpush2.msra.mxu0 0.0
        %1044 = vmatprep.subr.mxu0 0.0
        %1045 = vmatpush2.msra.mxu0 0.0
        %1046 = vmatprep.subr.mxu0 0.0
        %1047 = vmatpush2.msra.mxu0 0.0
        %1048 = vmatprep.subr.mxu0 0.0
        %1049 = vmatpush2.msra.mxu0 0.0
        %1050 = vmatprep.subr.mxu0 0.0
        %1051 = vmatpush2.msra.mxu0 0.0
        %1052 = vmatprep.subr.mxu0 0.0
        %1053 = vmatpush2.msra.mxu0 0.0
        %1054 = vmatprep.subr.mxu0 0.0
        %1055 = vmatpush2.msra.mxu0 0.0
        %1056 = vmatprep.mubr.f32.mxu0 0.0
        %1057 = vmatmul.mubr.f32.gmra.mxu0 %v987
        %v1058 = vpop.f32.mrf.mxu0
        %v1059 = vadd.f32 0.0, %v1058
        %v1060 = vpop.f32.mrf.mxu0
        %1061 = vdwg.mxu0
        %v1062 = vadd.f32 %v880, %v1059
        %s1063 = scalar_lea.vmem %s1, 1024
        %v1064 = vld [vmem:[%s1063] sm:$0xff]
        %v1065 = vld [vmem:[%s1063 + $0x8] sm:$0xff]
        %v1066 = vld [vmem:[%s1063 + $0x10] sm:$0xff]
        %v1067 = vld [vmem:[%s1063 + $0x18] sm:$0xff]
        %v1068 = vld [vmem:[%s1063 + $0x20] sm:$0xff]
        %v1069 = vld [vmem:[%s1063 + $0x28] sm:$0xff]
        %v1070 = vld [vmem:[%s1063 + $0x30] sm:$0xff]
        %v1071 = vld [vmem:[%s1063 + $0x38] sm:$0xff]
        %v1072 = vld [vmem:[%s1063 + $0x40] sm:$0xff]
        %v1073 = vld [vmem:[%s1063 + $0x48] sm:$0xff]
        %v1074 = vld [vmem:[%s1063 + $0x50] sm:$0xff]
        %v1075 = vld [vmem:[%s1063 + $0x58] sm:$0xff]
        %v1076 = vld [vmem:[%s1063 + $0x60] sm:$0xff]
        %v1077 = vld [vmem:[%s1063 + $0x68] sm:$0xff]
        %v1078 = vld [vmem:[%s1063 + $0x70] sm:$0xff]
        %v1079 = vld [vmem:[%s1063 + $0x78] sm:$0xff]
        %v1080 = vld [vmem:[%s1063 + $0x80] sm:$0xff]
        %v1081 = vld [vmem:[%s1063 + $0x88] sm:$0xff]
        %v1082 = vld [vmem:[%s1063 + $0x90] sm:$0xff]
        %v1083 = vld [vmem:[%s1063 + $0x98] sm:$0xff]
        %v1084 = vld [vmem:[%s1063 + $0xa0] sm:$0xff]
        %v1085 = vld [vmem:[%s1063 + $0xa8] sm:$0xff]
        %v1086 = vld [vmem:[%s1063 + $0xb0] sm:$0xff]
        %v1087 = vld [vmem:[%s1063 + $0xb8] sm:$0xff]
        %v1088 = vld [vmem:[%s1063 + $0xc0] sm:$0xff]
        %v1089 = vld [vmem:[%s1063 + $0xc8] sm:$0xff]
        %v1090 = vld [vmem:[%s1063 + $0xd0] sm:$0xff]
        %v1091 = vld [vmem:[%s1063 + $0xd8] sm:$0xff]
        %v1092 = vld [vmem:[%s1063 + $0xe0] sm:$0xff]
        %v1093 = vld [vmem:[%s1063 + $0xe8] sm:$0xff]
        %v1094 = vld [vmem:[%s1063 + $0xf0] sm:$0xff]
        %v1095 = vld [vmem:[%s1063 + $0xf8] sm:$0xff]
        %1096 = vmatprep.subr.mxu0 0.0
        %1097 = vmatpush1.msra.mxu0 %v1079
        %1098 = vmatprep.subr.mxu0 0.0
        %1099 = vmatpush1.msra.mxu0 %v1078
        %1100 = vmatprep.subr.mxu0 0.0
        %1101 = vmatpush1.msra.mxu0 %v1077
        %1102 = vmatprep.subr.mxu0 0.0
        %1103 = vmatpush1.msra.mxu0 %v1076
        %1104 = vmatprep.subr.mxu0 0.0
        %1105 = vmatpush1.msra.mxu0 %v1075
        %1106 = vmatprep.subr.mxu0 0.0
        %1107 = vmatpush1.msra.mxu0 %v1074
        %1108 = vmatprep.subr.mxu0 0.0
        %1109 = vmatpush1.msra.mxu0 %v1073
        %1110 = vmatprep.subr.mxu0 0.0
        %1111 = vmatpush1.msra.mxu0 %v1072
        %1112 = vmatprep.subr.mxu0 0.0
        %1113 = vmatpush1.msra.mxu0 %v1071
        %1114 = vmatprep.subr.mxu0 0.0
        %1115 = vmatpush1.msra.mxu0 %v1070
        %1116 = vmatprep.subr.mxu0 0.0
        %1117 = vmatpush1.msra.mxu0 %v1069
        %1118 = vmatprep.subr.mxu0 0.0
        %1119 = vmatpush1.msra.mxu0 %v1068
        %1120 = vmatprep.subr.mxu0 0.0
        %1121 = vmatpush1.msra.mxu0 %v1067
        %1122 = vmatprep.subr.mxu0 0.0
        %1123 = vmatpush1.msra.mxu0 %v1066
        %1124 = vmatprep.subr.mxu0 0.0
        %1125 = vmatpush1.msra.mxu0 %v1065
        %1126 = vmatprep.subr.mxu0 0.0
        %1127 = vmatpush1.msra.mxu0 %v1064
        %1128 = vmatprep.subr.mxu0 0.0
        %1129 = vmatpush2.msra.mxu0 %v1095
        %1130 = vmatprep.subr.mxu0 0.0
        %1131 = vmatpush2.msra.mxu0 %v1094
        %1132 = vmatprep.subr.mxu0 0.0
        %1133 = vmatpush2.msra.mxu0 %v1093
        %1134 = vmatprep.subr.mxu0 0.0
        %1135 = vmatpush2.msra.mxu0 %v1092
        %1136 = vmatprep.subr.mxu0 0.0
        %1137 = vmatpush2.msra.mxu0 %v1091
        %1138 = vmatprep.subr.mxu0 0.0
        %1139 = vmatpush2.msra.mxu0 %v1090
        %1140 = vmatprep.subr.mxu0 0.0
        %1141 = vmatpush2.msra.mxu0 %v1089
        %1142 = vmatprep.subr.mxu0 0.0
        %1143 = vmatpush2.msra.mxu0 %v1088
        %1144 = vmatprep.subr.mxu0 0.0
        %1145 = vmatpush2.msra.mxu0 %v1087
        %1146 = vmatprep.subr.mxu0 0.0
        %1147 = vmatpush2.msra.mxu0 %v1086
        %1148 = vmatprep.subr.mxu0 0.0
        %1149 = vmatpush2.msra.mxu0 %v1085
        %1150 = vmatprep.subr.mxu0 0.0
        %1151 = vmatpush2.msra.mxu0 %v1084
        %1152 = vmatprep.subr.mxu0 0.0
        %1153 = vmatpush2.msra.mxu0 %v1083
        %1154 = vmatprep.subr.mxu0 0.0
        %1155 = vmatpush2.msra.mxu0 %v1082
        %1156 = vmatprep.subr.mxu0 0.0
        %1157 = vmatpush2.msra.mxu0 %v1081
        %1158 = vmatprep.subr.mxu0 0.0
        %1159 = vmatpush2.msra.mxu0 %v1080
        %1160 = vmatprep.mubr.f32.mxu0 %v367
        %1161 = vmatmul.mubr.f32.gmra.mxu0 %v333
        %v1162 = vpop.f32.mrf.mxu0
        %v1163 = vadd.f32 0.0, %v1162
        %v1164 = vpop.f32.mrf.mxu0
        %1165 = vdwg.mxu0
        %s1166 = scalar_lea.vmem %s2, 32
        %v1167 = vld [vmem:[%s1166] sm:$0xff]
        %v1169 = vsel %vm545, %v1167, 0
        %v1172 = vsel %vm549, %v1163, 0
        %1174 = vmatprep.subr.mxu0 0.0
        %1175 = vmatpush1.msra.mxu0 0.0
        %1176 = vmatprep.subr.mxu0 0.0
        %1177 = vmatpush1.msra.mxu0 0.0
        %1178 = vmatprep.subr.mxu0 0.0
        %1179 = vmatpush1.msra.mxu0 0.0
        %1180 = vmatprep.subr.mxu0 0.0
        %1181 = vmatpush1.msra.mxu0 0.0
        %1182 = vmatprep.subr.mxu0 0.0
        %1183 = vmatpush1.msra.mxu0 0.0
        %1184 = vmatprep.subr.mxu0 0.0
        %1185 = vmatpush1.msra.mxu0 0.0
        %1186 = vmatprep.subr.mxu0 0.0
        %1187 = vmatpush1.msra.mxu0 0.0
        %1188 = vmatprep.subr.mxu0 0.0
        %1189 = vmatpush1.msra.mxu0 0.0
        %1190 = vmatprep.subr.mxu0 0.0
        %1191 = vmatpush1.msra.mxu0 0.0
        %1192 = vmatprep.subr.mxu0 0.0
        %1193 = vmatpush1.msra.mxu0 0.0
        %1194 = vmatprep.subr.mxu0 0.0
        %1195 = vmatpush1.msra.mxu0 0.0
        %1196 = vmatprep.subr.mxu0 0.0
        %1197 = vmatpush1.msra.mxu0 0.0
        %1198 = vmatprep.subr.mxu0 0.0
        %1199 = vmatpush1.msra.mxu0 0.0
        %1200 = vmatprep.subr.mxu0 0.0
        %1201 = vmatpush1.msra.mxu0 0.0
        %1202 = vmatprep.subr.mxu0 0.0
        %1203 = vmatpush1.msra.mxu0 0.0
        %1204 = vmatprep.subr.mxu0 0.0
        %1205 = vmatpush1.msra.mxu0 %v1172
        %1206 = vmatprep.subr.mxu0 0.0
        %1207 = vmatpush2.msra.mxu0 0.0
        %1208 = vmatprep.subr.mxu0 0.0
        %1209 = vmatpush2.msra.mxu0 0.0
        %1210 = vmatprep.subr.mxu0 0.0
        %1211 = vmatpush2.msra.mxu0 0.0
        %1212 = vmatprep.subr.mxu0 0.0
        %1213 = vmatpush2.msra.mxu0 0.0
        %1214 = vmatprep.subr.mxu0 0.0
        %1215 = vmatpush2.msra.mxu0 0.0
        %1216 = vmatprep.subr.mxu0 0.0
        %1217 = vmatpush2.msra.mxu0 0.0
        %1218 = vmatprep.subr.mxu0 0.0
        %1219 = vmatpush2.msra.mxu0 0.0
        %1220 = vmatprep.subr.mxu0 0.0
        %1221 = vmatpush2.msra.mxu0 0.0
        %1222 = vmatprep.subr.mxu0 0.0
        %1223 = vmatpush2.msra.mxu0 0.0
        %1224 = vmatprep.subr.mxu0 0.0
        %1225 = vmatpush2.msra.mxu0 0.0
        %1226 = vmatprep.subr.mxu0 0.0
        %1227 = vmatpush2.msra.mxu0 0.0
        %1228 = vmatprep.subr.mxu0 0.0
        %1229 = vmatpush2.msra.mxu0 0.0
        %1230 = vmatprep.subr.mxu0 0.0
        %1231 = vmatpush2.msra.mxu0 0.0
        %1232 = vmatprep.subr.mxu0 0.0
        %1233 = vmatpush2.msra.mxu0 0.0
        %1234 = vmatprep.subr.mxu0 0.0
        %1235 = vmatpush2.msra.mxu0 0.0
        %1236 = vmatprep.subr.mxu0 0.0
        %1237 = vmatpush2.msra.mxu0 0.0
        %1238 = vmatprep.mubr.f32.mxu0 0.0
        %1239 = vmatmul.mubr.f32.gmra.mxu0 %v1169
        %v1240 = vpop.f32.mrf.mxu0
        %v1241 = vadd.f32 0.0, %v1240
        %v1242 = vpop.f32.mrf.mxu0
        %1243 = vdwg.mxu0
        %v1244 = vadd.f32 %v1062, %v1241
        %s1245 = scalar_lea.vmem %s1, 1280
        %v1246 = vld [vmem:[%s1245] sm:$0xff]
        %v1247 = vld [vmem:[%s1245 + $0x8] sm:$0xff]
        %v1248 = vld [vmem:[%s1245 + $0x10] sm:$0xff]
        %v1249 = vld [vmem:[%s1245 + $0x18] sm:$0xff]
        %v1250 = vld [vmem:[%s1245 + $0x20] sm:$0xff]
        %v1251 = vld [vmem:[%s1245 + $0x28] sm:$0xff]
        %v1252 = vld [vmem:[%s1245 + $0x30] sm:$0xff]
        %v1253 = vld [vmem:[%s1245 + $0x38] sm:$0xff]
        %v1254 = vld [vmem:[%s1245 + $0x40] sm:$0xff]
        %v1255 = vld [vmem:[%s1245 + $0x48] sm:$0xff]
        %v1256 = vld [vmem:[%s1245 + $0x50] sm:$0xff]
        %v1257 = vld [vmem:[%s1245 + $0x58] sm:$0xff]
        %v1258 = vld [vmem:[%s1245 + $0x60] sm:$0xff]
        %v1259 = vld [vmem:[%s1245 + $0x68] sm:$0xff]
        %v1260 = vld [vmem:[%s1245 + $0x70] sm:$0xff]
        %v1261 = vld [vmem:[%s1245 + $0x78] sm:$0xff]
        %v1262 = vld [vmem:[%s1245 + $0x80] sm:$0xff]
        %v1263 = vld [vmem:[%s1245 + $0x88] sm:$0xff]
        %v1264 = vld [vmem:[%s1245 + $0x90] sm:$0xff]
        %v1265 = vld [vmem:[%s1245 + $0x98] sm:$0xff]
        %v1266 = vld [vmem:[%s1245 + $0xa0] sm:$0xff]
        %v1267 = vld [vmem:[%s1245 + $0xa8] sm:$0xff]
        %v1268 = vld [vmem:[%s1245 + $0xb0] sm:$0xff]
        %v1269 = vld [vmem:[%s1245 + $0xb8] sm:$0xff]
        %v1270 = vld [vmem:[%s1245 + $0xc0] sm:$0xff]
        %v1271 = vld [vmem:[%s1245 + $0xc8] sm:$0xff]
        %v1272 = vld [vmem:[%s1245 + $0xd0] sm:$0xff]
        %v1273 = vld [vmem:[%s1245 + $0xd8] sm:$0xff]
        %v1274 = vld [vmem:[%s1245 + $0xe0] sm:$0xff]
        %v1275 = vld [vmem:[%s1245 + $0xe8] sm:$0xff]
        %v1276 = vld [vmem:[%s1245 + $0xf0] sm:$0xff]
        %v1277 = vld [vmem:[%s1245 + $0xf8] sm:$0xff]
        %1278 = vmatprep.subr.mxu0 0.0
        %1279 = vmatpush1.msra.mxu0 %v1261
        %1280 = vmatprep.subr.mxu0 0.0
        %1281 = vmatpush1.msra.mxu0 %v1260
        %1282 = vmatprep.subr.mxu0 0.0
        %1283 = vmatpush1.msra.mxu0 %v1259
        %1284 = vmatprep.subr.mxu0 0.0
        %1285 = vmatpush1.msra.mxu0 %v1258
        %1286 = vmatprep.subr.mxu0 0.0
        %1287 = vmatpush1.msra.mxu0 %v1257
        %1288 = vmatprep.subr.mxu0 0.0
        %1289 = vmatpush1.msra.mxu0 %v1256
        %1290 = vmatprep.subr.mxu0 0.0
        %1291 = vmatpush1.msra.mxu0 %v1255
        %1292 = vmatprep.subr.mxu0 0.0
        %1293 = vmatpush1.msra.mxu0 %v1254
        %1294 = vmatprep.subr.mxu0 0.0
        %1295 = vmatpush1.msra.mxu0 %v1253
        %1296 = vmatprep.subr.mxu0 0.0
        %1297 = vmatpush1.msra.mxu0 %v1252
        %1298 = vmatprep.subr.mxu0 0.0
        %1299 = vmatpush1.msra.mxu0 %v1251
        %1300 = vmatprep.subr.mxu0 0.0
        %1301 = vmatpush1.msra.mxu0 %v1250
        %1302 = vmatprep.subr.mxu0 0.0
        %1303 = vmatpush1.msra.mxu0 %v1249
        %1304 = vmatprep.subr.mxu0 0.0
        %1305 = vmatpush1.msra.mxu0 %v1248
        %1306 = vmatprep.subr.mxu0 0.0
        %1307 = vmatpush1.msra.mxu0 %v1247
        %1308 = vmatprep.subr.mxu0 0.0
        %1309 = vmatpush1.msra.mxu0 %v1246
        %1310 = vmatprep.subr.mxu0 0.0
        %1311 = vmatpush2.msra.mxu0 %v1277
        %1312 = vmatprep.subr.mxu0 0.0
        %1313 = vmatpush2.msra.mxu0 %v1276
        %1314 = vmatprep.subr.mxu0 0.0
        %1315 = vmatpush2.msra.mxu0 %v1275
        %1316 = vmatprep.subr.mxu0 0.0
        %1317 = vmatpush2.msra.mxu0 %v1274
        %1318 = vmatprep.subr.mxu0 0.0
        %1319 = vmatpush2.msra.mxu0 %v1273
        %1320 = vmatprep.subr.mxu0 0.0
        %1321 = vmatpush2.msra.mxu0 %v1272
        %1322 = vmatprep.subr.mxu0 0.0
        %1323 = vmatpush2.msra.mxu0 %v1271
        %1324 = vmatprep.subr.mxu0 0.0
        %1325 = vmatpush2.msra.mxu0 %v1270
        %1326 = vmatprep.subr.mxu0 0.0
        %1327 = vmatpush2.msra.mxu0 %v1269
        %1328 = vmatprep.subr.mxu0 0.0
        %1329 = vmatpush2.msra.mxu0 %v1268
        %1330 = vmatprep.subr.mxu0 0.0
        %1331 = vmatpush2.msra.mxu0 %v1267
        %1332 = vmatprep.subr.mxu0 0.0
        %1333 = vmatpush2.msra.mxu0 %v1266
        %1334 = vmatprep.subr.mxu0 0.0
        %1335 = vmatpush2.msra.mxu0 %v1265
        %1336 = vmatprep.subr.mxu0 0.0
        %1337 = vmatpush2.msra.mxu0 %v1264
        %1338 = vmatprep.subr.mxu0 0.0
        %1339 = vmatpush2.msra.mxu0 %v1263
        %1340 = vmatprep.subr.mxu0 0.0
        %1341 = vmatpush2.msra.mxu0 %v1262
        %1342 = vmatprep.mubr.f32.mxu0 %v367
        %1343 = vmatmul.mubr.f32.gmra.mxu0 %v333
        %v1344 = vpop.f32.mrf.mxu0
        %v1345 = vadd.f32 0.0, %v1344
        %v1346 = vpop.f32.mrf.mxu0
        %1347 = vdwg.mxu0
        %s1348 = scalar_lea.vmem %s2, 40
        %v1349 = vld [vmem:[%s1348] sm:$0xff]
        %v1351 = vsel %vm545, %v1349, 0
        %v1354 = vsel %vm549, %v1345, 0
        %1356 = vmatprep.subr.mxu0 0.0
        %1357 = vmatpush1.msra.mxu0 0.0
        %1358 = vmatprep.subr.mxu0 0.0
        %1359 = vmatpush1.msra.mxu0 0.0
        %1360 = vmatprep.subr.mxu0 0.0
        %1361 = vmatpush1.msra.mxu0 0.0
        %1362 = vmatprep.subr.mxu0 0.0
        %1363 = vmatpush1.msra.mxu0 0.0
        %1364 = vmatprep.subr.mxu0 0.0
        %1365 = vmatpush1.msra.mxu0 0.0
        %1366 = vmatprep.subr.mxu0 0.0
        %1367 = vmatpush1.msra.mxu0 0.0
        %1368 = vmatprep.subr.mxu0 0.0
        %1369 = vmatpush1.msra.mxu0 0.0
        %1370 = vmatprep.subr.mxu0 0.0
        %1371 = vmatpush1.msra.mxu0 0.0
        %1372 = vmatprep.subr.mxu0 0.0
        %1373 = vmatpush1.msra.mxu0 0.0
        %1374 = vmatprep.subr.mxu0 0.0
        %1375 = vmatpush1.msra.mxu0 0.0
        %1376 = vmatprep.subr.mxu0 0.0
        %1377 = vmatpush1.msra.mxu0 0.0
        %1378 = vmatprep.subr.mxu0 0.0
        %1379 = vmatpush1.msra.mxu0 0.0
        %1380 = vmatprep.subr.mxu0 0.0
        %1381 = vmatpush1.msra.mxu0 0.0
        %1382 = vmatprep.subr.mxu0 0.0
        %1383 = vmatpush1.msra.mxu0 0.0
        %1384 = vmatprep.subr.mxu0 0.0
        %1385 = vmatpush1.msra.mxu0 0.0
        %1386 = vmatprep.subr.mxu0 0.0
        %1387 = vmatpush1.msra.mxu0 %v1354
        %1388 = vmatprep.subr.mxu0 0.0
        %1389 = vmatpush2.msra.mxu0 0.0
        %1390 = vmatprep.subr.mxu0 0.0
        %1391 = vmatpush2.msra.mxu0 0.0
        %1392 = vmatprep.subr.mxu0 0.0
        %1393 = vmatpush2.msra.mxu0 0.0
        %1394 = vmatprep.subr.mxu0 0.0
        %1395 = vmatpush2.msra.mxu0 0.0
        %1396 = vmatprep.subr.mxu0 0.0
        %1397 = vmatpush2.msra.mxu0 0.0
        %1398 = vmatprep.subr.mxu0 0.0
        %1399 = vmatpush2.msra.mxu0 0.0
        %1400 = vmatprep.subr.mxu0 0.0
        %1401 = vmatpush2.msra.mxu0 0.0
        %1402 = vmatprep.subr.mxu0 0.0
        %1403 = vmatpush2.msra.mxu0 0.0
        %1404 = vmatprep.subr.mxu0 0.0
        %1405 = vmatpush2.msra.mxu0 0.0
        %1406 = vmatprep.subr.mxu0 0.0
        %1407 = vmatpush2.msra.mxu0 0.0
        %1408 = vmatprep.subr.mxu0 0.0
        %1409 = vmatpush2.msra.mxu0 0.0
        %1410 = vmatprep.subr.mxu0 0.0
        %1411 = vmatpush2.msra.mxu0 0.0
        %1412 = vmatprep.subr.mxu0 0.0
        %1413 = vmatpush2.msra.mxu0 0.0
        %1414 = vmatprep.subr.mxu0 0.0
        %1415 = vmatpush2.msra.mxu0 0.0
        %1416 = vmatprep.subr.mxu0 0.0
        %1417 = vmatpush2.msra.mxu0 0.0
        %1418 = vmatprep.subr.mxu0 0.0
        %1419 = vmatpush2.msra.mxu0 0.0
        %1420 = vmatprep.mubr.f32.mxu0 0.0
        %1421 = vmatmul.mubr.f32.gmra.mxu0 %v1351
        %v1422 = vpop.f32.mrf.mxu0
        %v1423 = vadd.f32 0.0, %v1422
        %v1424 = vpop.f32.mrf.mxu0
        %1425 = vdwg.mxu0
        %v1426 = vadd.f32 %v1244, %v1423
        %s1427 = scalar_lea.vmem %s1, 1536
        %v1428 = vld [vmem:[%s1427] sm:$0xff]
        %v1429 = vld [vmem:[%s1427 + $0x8] sm:$0xff]
        %v1430 = vld [vmem:[%s1427 + $0x10] sm:$0xff]
        %v1431 = vld [vmem:[%s1427 + $0x18] sm:$0xff]
        %v1432 = vld [vmem:[%s1427 + $0x20] sm:$0xff]
        %v1433 = vld [vmem:[%s1427 + $0x28] sm:$0xff]
        %v1434 = vld [vmem:[%s1427 + $0x30] sm:$0xff]
        %v1435 = vld [vmem:[%s1427 + $0x38] sm:$0xff]
        %v1436 = vld [vmem:[%s1427 + $0x40] sm:$0xff]
        %v1437 = vld [vmem:[%s1427 + $0x48] sm:$0xff]
        %v1438 = vld [vmem:[%s1427 + $0x50] sm:$0xff]
        %v1439 = vld [vmem:[%s1427 + $0x58] sm:$0xff]
        %v1440 = vld [vmem:[%s1427 + $0x60] sm:$0xff]
        %v1441 = vld [vmem:[%s1427 + $0x68] sm:$0xff]
        %v1442 = vld [vmem:[%s1427 + $0x70] sm:$0xff]
        %v1443 = vld [vmem:[%s1427 + $0x78] sm:$0xff]
        %v1444 = vld [vmem:[%s1427 + $0x80] sm:$0xff]
        %v1445 = vld [vmem:[%s1427 + $0x88] sm:$0xff]
        %v1446 = vld [vmem:[%s1427 + $0x90] sm:$0xff]
        %v1447 = vld [vmem:[%s1427 + $0x98] sm:$0xff]
        %v1448 = vld [vmem:[%s1427 + $0xa0] sm:$0xff]
        %v1449 = vld [vmem:[%s1427 + $0xa8] sm:$0xff]
        %v1450 = vld [vmem:[%s1427 + $0xb0] sm:$0xff]
        %v1451 = vld [vmem:[%s1427 + $0xb8] sm:$0xff]
        %v1452 = vld [vmem:[%s1427 + $0xc0] sm:$0xff]
        %v1453 = vld [vmem:[%s1427 + $0xc8] sm:$0xff]
        %v1454 = vld [vmem:[%s1427 + $0xd0] sm:$0xff]
        %v1455 = vld [vmem:[%s1427 + $0xd8] sm:$0xff]
        %v1456 = vld [vmem:[%s1427 + $0xe0] sm:$0xff]
        %v1457 = vld [vmem:[%s1427 + $0xe8] sm:$0xff]
        %v1458 = vld [vmem:[%s1427 + $0xf0] sm:$0xff]
        %v1459 = vld [vmem:[%s1427 + $0xf8] sm:$0xff]
        %1460 = vmatprep.subr.mxu0 0.0
        %1461 = vmatpush1.msra.mxu0 %v1443
        %1462 = vmatprep.subr.mxu0 0.0
        %1463 = vmatpush1.msra.mxu0 %v1442
        %1464 = vmatprep.subr.mxu0 0.0
        %1465 = vmatpush1.msra.mxu0 %v1441
        %1466 = vmatprep.subr.mxu0 0.0
        %1467 = vmatpush1.msra.mxu0 %v1440
        %1468 = vmatprep.subr.mxu0 0.0
        %1469 = vmatpush1.msra.mxu0 %v1439
        %1470 = vmatprep.subr.mxu0 0.0
        %1471 = vmatpush1.msra.mxu0 %v1438
        %1472 = vmatprep.subr.mxu0 0.0
        %1473 = vmatpush1.msra.mxu0 %v1437
        %1474 = vmatprep.subr.mxu0 0.0
        %1475 = vmatpush1.msra.mxu0 %v1436
        %1476 = vmatprep.subr.mxu0 0.0
        %1477 = vmatpush1.msra.mxu0 %v1435
        %1478 = vmatprep.subr.mxu0 0.0
        %1479 = vmatpush1.msra.mxu0 %v1434
        %1480 = vmatprep.subr.mxu0 0.0
        %1481 = vmatpush1.msra.mxu0 %v1433
        %1482 = vmatprep.subr.mxu0 0.0
        %1483 = vmatpush1.msra.mxu0 %v1432
        %1484 = vmatprep.subr.mxu0 0.0
        %1485 = vmatpush1.msra.mxu0 %v1431
        %1486 = vmatprep.subr.mxu0 0.0
        %1487 = vmatpush1.msra.mxu0 %v1430
        %1488 = vmatprep.subr.mxu0 0.0
        %1489 = vmatpush1.msra.mxu0 %v1429
        %1490 = vmatprep.subr.mxu0 0.0
        %1491 = vmatpush1.msra.mxu0 %v1428
        %1492 = vmatprep.subr.mxu0 0.0
        %1493 = vmatpush2.msra.mxu0 %v1459
        %1494 = vmatprep.subr.mxu0 0.0
        %1495 = vmatpush2.msra.mxu0 %v1458
        %1496 = vmatprep.subr.mxu0 0.0
        %1497 = vmatpush2.msra.mxu0 %v1457
        %1498 = vmatprep.subr.mxu0 0.0
        %1499 = vmatpush2.msra.mxu0 %v1456
        %1500 = vmatprep.subr.mxu0 0.0
        %1501 = vmatpush2.msra.mxu0 %v1455
        %1502 = vmatprep.subr.mxu0 0.0
        %1503 = vmatpush2.msra.mxu0 %v1454
        %1504 = vmatprep.subr.mxu0 0.0
        %1505 = vmatpush2.msra.mxu0 %v1453
        %1506 = vmatprep.subr.mxu0 0.0
        %1507 = vmatpush2.msra.mxu0 %v1452
        %1508 = vmatprep.subr.mxu0 0.0
        %1509 = vmatpush2.msra.mxu0 %v1451
        %1510 = vmatprep.subr.mxu0 0.0
        %1511 = vmatpush2.msra.mxu0 %v1450
        %1512 = vmatprep.subr.mxu0 0.0
        %1513 = vmatpush2.msra.mxu0 %v1449
        %1514 = vmatprep.subr.mxu0 0.0
        %1515 = vmatpush2.msra.mxu0 %v1448
        %1516 = vmatprep.subr.mxu0 0.0
        %1517 = vmatpush2.msra.mxu0 %v1447
        %1518 = vmatprep.subr.mxu0 0.0
        %1519 = vmatpush2.msra.mxu0 %v1446
        %1520 = vmatprep.subr.mxu0 0.0
        %1521 = vmatpush2.msra.mxu0 %v1445
        %1522 = vmatprep.subr.mxu0 0.0
        %1523 = vmatpush2.msra.mxu0 %v1444
        %1524 = vmatprep.mubr.f32.mxu0 %v367
        %1525 = vmatmul.mubr.f32.gmra.mxu0 %v333
        %v1526 = vpop.f32.mrf.mxu0
        %v1527 = vadd.f32 0.0, %v1526
        %v1528 = vpop.f32.mrf.mxu0
        %1529 = vdwg.mxu0
        %s1530 = scalar_lea.vmem %s2, 48
        %v1531 = vld [vmem:[%s1530] sm:$0xff]
        %v1533 = vsel %vm545, %v1531, 0
        %v1536 = vsel %vm549, %v1527, 0
        %1538 = vmatprep.subr.mxu0 0.0
        %1539 = vmatpush1.msra.mxu0 0.0
        %1540 = vmatprep.subr.mxu0 0.0
        %1541 = vmatpush1.msra.mxu0 0.0
        %1542 = vmatprep.subr.mxu0 0.0
        %1543 = vmatpush1.msra.mxu0 0.0
        %1544 = vmatprep.subr.mxu0 0.0
        %1545 = vmatpush1.msra.mxu0 0.0
        %1546 = vmatprep.subr.mxu0 0.0
        %1547 = vmatpush1.msra.mxu0 0.0
        %1548 = vmatprep.subr.mxu0 0.0
        %1549 = vmatpush1.msra.mxu0 0.0
        %1550 = vmatprep.subr.mxu0 0.0
        %1551 = vmatpush1.msra.mxu0 0.0
        %1552 = vmatprep.subr.mxu0 0.0
        %1553 = vmatpush1.msra.mxu0 0.0
        %1554 = vmatprep.subr.mxu0 0.0
        %1555 = vmatpush1.msra.mxu0 0.0
        %1556 = vmatprep.subr.mxu0 0.0
        %1557 = vmatpush1.msra.mxu0 0.0
        %1558 = vmatprep.subr.mxu0 0.0
        %1559 = vmatpush1.msra.mxu0 0.0
        %1560 = vmatprep.subr.mxu0 0.0
        %1561 = vmatpush1.msra.mxu0 0.0
        %1562 = vmatprep.subr.mxu0 0.0
        %1563 = vmatpush1.msra.mxu0 0.0
        %1564 = vmatprep.subr.mxu0 0.0
        %1565 = vmatpush1.msra.mxu0 0.0
        %1566 = vmatprep.subr.mxu0 0.0
        %1567 = vmatpush1.msra.mxu0 0.0
        %1568 = vmatprep.subr.mxu0 0.0
        %1569 = vmatpush1.msra.mxu0 %v1536
        %1570 = vmatprep.subr.mxu0 0.0
        %1571 = vmatpush2.msra.mxu0 0.0
        %1572 = vmatprep.subr.mxu0 0.0
        %1573 = vmatpush2.msra.mxu0 0.0
        %1574 = vmatprep.subr.mxu0 0.0
        %1575 = vmatpush2.msra.mxu0 0.0
        %1576 = vmatprep.subr.mxu0 0.0
        %1577 = vmatpush2.msra.mxu0 0.0
        %1578 = vmatprep.subr.mxu0 0.0
        %1579 = vmatpush2.msra.mxu0 0.0
        %1580 = vmatprep.subr.mxu0 0.0
        %1581 = vmatpush2.msra.mxu0 0.0
        %1582 = vmatprep.subr.mxu0 0.0
        %1583 = vmatpush2.msra.mxu0 0.0
        %1584 = vmatprep.subr.mxu0 0.0
        %1585 = vmatpush2.msra.mxu0 0.0
        %1586 = vmatprep.subr.mxu0 0.0
        %1587 = vmatpush2.msra.mxu0 0.0
        %1588 = vmatprep.subr.mxu0 0.0
        %1589 = vmatpush2.msra.mxu0 0.0
        %1590 = vmatprep.subr.mxu0 0.0
        %1591 = vmatpush2.msra.mxu0 0.0
        %1592 = vmatprep.subr.mxu0 0.0
        %1593 = vmatpush2.msra.mxu0 0.0
        %1594 = vmatprep.subr.mxu0 0.0
        %1595 = vmatpush2.msra.mxu0 0.0
        %1596 = vmatprep.subr.mxu0 0.0
        %1597 = vmatpush2.msra.mxu0 0.0
        %1598 = vmatprep.subr.mxu0 0.0
        %1599 = vmatpush2.msra.mxu0 0.0
        %1600 = vmatprep.subr.mxu0 0.0
        %1601 = vmatpush2.msra.mxu0 0.0
        %1602 = vmatprep.mubr.f32.mxu0 0.0
        %1603 = vmatmul.mubr.f32.gmra.mxu0 %v1533
        %v1604 = vpop.f32.mrf.mxu0
        %v1605 = vadd.f32 0.0, %v1604
        %v1606 = vpop.f32.mrf.mxu0
        %1607 = vdwg.mxu0
        %v1608 = vadd.f32 %v1426, %v1605
        %s1609 = scalar_lea.vmem %s1, 1792
        %v1610 = vld [vmem:[%s1609] sm:$0xff]
        %v1611 = vld [vmem:[%s1609 + $0x8] sm:$0xff]
        %v1612 = vld [vmem:[%s1609 + $0x10] sm:$0xff]
        %v1613 = vld [vmem:[%s1609 + $0x18] sm:$0xff]
        %v1614 = vld [vmem:[%s1609 + $0x20] sm:$0xff]
        %v1615 = vld [vmem:[%s1609 + $0x28] sm:$0xff]
        %v1616 = vld [vmem:[%s1609 + $0x30] sm:$0xff]
        %v1617 = vld [vmem:[%s1609 + $0x38] sm:$0xff]
        %v1618 = vld [vmem:[%s1609 + $0x40] sm:$0xff]
        %v1619 = vld [vmem:[%s1609 + $0x48] sm:$0xff]
        %v1620 = vld [vmem:[%s1609 + $0x50] sm:$0xff]
        %v1621 = vld [vmem:[%s1609 + $0x58] sm:$0xff]
        %v1622 = vld [vmem:[%s1609 + $0x60] sm:$0xff]
        %v1623 = vld [vmem:[%s1609 + $0x68] sm:$0xff]
        %v1624 = vld [vmem:[%s1609 + $0x70] sm:$0xff]
        %v1625 = vld [vmem:[%s1609 + $0x78] sm:$0xff]
        %v1626 = vld [vmem:[%s1609 + $0x80] sm:$0xff]
        %v1627 = vld [vmem:[%s1609 + $0x88] sm:$0xff]
        %v1628 = vld [vmem:[%s1609 + $0x90] sm:$0xff]
        %v1629 = vld [vmem:[%s1609 + $0x98] sm:$0xff]
        %v1630 = vld [vmem:[%s1609 + $0xa0] sm:$0xff]
        %v1631 = vld [vmem:[%s1609 + $0xa8] sm:$0xff]
        %v1632 = vld [vmem:[%s1609 + $0xb0] sm:$0xff]
        %v1633 = vld [vmem:[%s1609 + $0xb8] sm:$0xff]
        %v1634 = vld [vmem:[%s1609 + $0xc0] sm:$0xff]
        %v1635 = vld [vmem:[%s1609 + $0xc8] sm:$0xff]
        %v1636 = vld [vmem:[%s1609 + $0xd0] sm:$0xff]
        %v1637 = vld [vmem:[%s1609 + $0xd8] sm:$0xff]
        %v1638 = vld [vmem:[%s1609 + $0xe0] sm:$0xff]
        %v1639 = vld [vmem:[%s1609 + $0xe8] sm:$0xff]
        %v1640 = vld [vmem:[%s1609 + $0xf0] sm:$0xff]
        %v1641 = vld [vmem:[%s1609 + $0xf8] sm:$0xff]
        %1642 = vmatprep.subr.mxu0 0.0
        %1643 = vmatpush1.msra.mxu0 %v1625
        %1644 = vmatprep.subr.mxu0 0.0
        %1645 = vmatpush1.msra.mxu0 %v1624
        %1646 = vmatprep.subr.mxu0 0.0
        %1647 = vmatpush1.msra.mxu0 %v1623
        %1648 = vmatprep.subr.mxu0 0.0
        %1649 = vmatpush1.msra.mxu0 %v1622
        %1650 = vmatprep.subr.mxu0 0.0
        %1651 = vmatpush1.msra.mxu0 %v1621
        %1652 = vmatprep.subr.mxu0 0.0
        %1653 = vmatpush1.msra.mxu0 %v1620
        %1654 = vmatprep.subr.mxu0 0.0
        %1655 = vmatpush1.msra.mxu0 %v1619
        %1656 = vmatprep.subr.mxu0 0.0
        %1657 = vmatpush1.msra.mxu0 %v1618
        %1658 = vmatprep.subr.mxu0 0.0
        %1659 = vmatpush1.msra.mxu0 %v1617
        %1660 = vmatprep.subr.mxu0 0.0
        %1661 = vmatpush1.msra.mxu0 %v1616
        %1662 = vmatprep.subr.mxu0 0.0
        %1663 = vmatpush1.msra.mxu0 %v1615
        %1664 = vmatprep.subr.mxu0 0.0
        %1665 = vmatpush1.msra.mxu0 %v1614
        %1666 = vmatprep.subr.mxu0 0.0
        %1667 = vmatpush1.msra.mxu0 %v1613
        %1668 = vmatprep.subr.mxu0 0.0
        %1669 = vmatpush1.msra.mxu0 %v1612
        %1670 = vmatprep.subr.mxu0 0.0
        %1671 = vmatpush1.msra.mxu0 %v1611
        %1672 = vmatprep.subr.mxu0 0.0
        %1673 = vmatpush1.msra.mxu0 %v1610
        %1674 = vmatprep.subr.mxu0 0.0
        %1675 = vmatpush2.msra.mxu0 %v1641
        %1676 = vmatprep.subr.mxu0 0.0
        %1677 = vmatpush2.msra.mxu0 %v1640
        %1678 = vmatprep.subr.mxu0 0.0
        %1679 = vmatpush2.msra.mxu0 %v1639
        %1680 = vmatprep.subr.mxu0 0.0
        %1681 = vmatpush2.msra.mxu0 %v1638
        %1682 = vmatprep.subr.mxu0 0.0
        %1683 = vmatpush2.msra.mxu0 %v1637
        %1684 = vmatprep.subr.mxu0 0.0
        %1685 = vmatpush2.msra.mxu0 %v1636
        %1686 = vmatprep.subr.mxu0 0.0
        %1687 = vmatpush2.msra.mxu0 %v1635
        %1688 = vmatprep.subr.mxu0 0.0
        %1689 = vmatpush2.msra.mxu0 %v1634
        %1690 = vmatprep.subr.mxu0 0.0
        %1691 = vmatpush2.msra.mxu0 %v1633
        %1692 = vmatprep.subr.mxu0 0.0
        %1693 = vmatpush2.msra.mxu0 %v1632
        %1694 = vmatprep.subr.mxu0 0.0
        %1695 = vmatpush2.msra.mxu0 %v1631
        %1696 = vmatprep.subr.mxu0 0.0
        %1697 = vmatpush2.msra.mxu0 %v1630
        %1698 = vmatprep.subr.mxu0 0.0
        %1699 = vmatpush2.msra.mxu0 %v1629
        %1700 = vmatprep.subr.mxu0 0.0
        %1701 = vmatpush2.msra.mxu0 %v1628
        %1702 = vmatprep.subr.mxu0 0.0
        %1703 = vmatpush2.msra.mxu0 %v1627
        %1704 = vmatprep.subr.mxu0 0.0
        %1705 = vmatpush2.msra.mxu0 %v1626
        %1706 = vmatprep.mubr.f32.mxu0 %v367
        %1707 = vmatmul.mubr.f32.gmra.mxu0 %v333
        %v1708 = vpop.f32.mrf.mxu0
        %v1709 = vadd.f32 0.0, %v1708
        %v1710 = vpop.f32.mrf.mxu0
        %1711 = vdwg.mxu0
        %s1712 = scalar_lea.vmem %s2, 56
        %v1713 = vld [vmem:[%s1712] sm:$0xff]
        %v1715 = vsel %vm545, %v1713, 0
        %v1718 = vsel %vm549, %v1709, 0
        %1720 = vmatprep.subr.mxu0 0.0
        %1721 = vmatpush1.msra.mxu0 0.0
        %1722 = vmatprep.subr.mxu0 0.0
        %1723 = vmatpush1.msra.mxu0 0.0
        %1724 = vmatprep.subr.mxu0 0.0
        %1725 = vmatpush1.msra.mxu0 0.0
        %1726 = vmatprep.subr.mxu0 0.0
        %1727 = vmatpush1.msra.mxu0 0.0
        %1728 = vmatprep.subr.mxu0 0.0
        %1729 = vmatpush1.msra.mxu0 0.0
        %1730 = vmatprep.subr.mxu0 0.0
        %1731 = vmatpush1.msra.mxu0 0.0
        %1732 = vmatprep.subr.mxu0 0.0
        %1733 = vmatpush1.msra.mxu0 0.0
        %1734 = vmatprep.subr.mxu0 0.0
        %1735 = vmatpush1.msra.mxu0 0.0
        %1736 = vmatprep.subr.mxu0 0.0
        %1737 = vmatpush1.msra.mxu0 0.0
        %1738 = vmatprep.subr.mxu0 0.0
        %1739 = vmatpush1.msra.mxu0 0.0
        %1740 = vmatprep.subr.mxu0 0.0
        %1741 = vmatpush1.msra.mxu0 0.0
        %1742 = vmatprep.subr.mxu0 0.0
        %1743 = vmatpush1.msra.mxu0 0.0
        %1744 = vmatprep.subr.mxu0 0.0
        %1745 = vmatpush1.msra.mxu0 0.0
        %1746 = vmatprep.subr.mxu0 0.0
        %1747 = vmatpush1.msra.mxu0 0.0
        %1748 = vmatprep.subr.mxu0 0.0
        %1749 = vmatpush1.msra.mxu0 0.0
        %1750 = vmatprep.subr.mxu0 0.0
        %1751 = vmatpush1.msra.mxu0 %v1718
        %1752 = vmatprep.subr.mxu0 0.0
        %1753 = vmatpush2.msra.mxu0 0.0
        %1754 = vmatprep.subr.mxu0 0.0
        %1755 = vmatpush2.msra.mxu0 0.0
        %1756 = vmatprep.subr.mxu0 0.0
        %1757 = vmatpush2.msra.mxu0 0.0
        %1758 = vmatprep.subr.mxu0 0.0
        %1759 = vmatpush2.msra.mxu0 0.0
        %1760 = vmatprep.subr.mxu0 0.0
        %1761 = vmatpush2.msra.mxu0 0.0
        %1762 = vmatprep.subr.mxu0 0.0
        %1763 = vmatpush2.msra.mxu0 0.0
        %1764 = vmatprep.subr.mxu0 0.0
        %1765 = vmatpush2.msra.mxu0 0.0
        %1766 = vmatprep.subr.mxu0 0.0
        %1767 = vmatpush2.msra.mxu0 0.0
        %1768 = vmatprep.subr.mxu0 0.0
        %1769 = vmatpush2.msra.mxu0 0.0
        %1770 = vmatprep.subr.mxu0 0.0
        %1771 = vmatpush2.msra.mxu0 0.0
        %1772 = vmatprep.subr.mxu0 0.0
        %1773 = vmatpush2.msra.mxu0 0.0
        %1774 = vmatprep.subr.mxu0 0.0
        %1775 = vmatpush2.msra.mxu0 0.0
        %1776 = vmatprep.subr.mxu0 0.0
        %1777 = vmatpush2.msra.mxu0 0.0
        %1778 = vmatprep.subr.mxu0 0.0
        %1779 = vmatpush2.msra.mxu0 0.0
        %1780 = vmatprep.subr.mxu0 0.0
        %1781 = vmatpush2.msra.mxu0 0.0
        %1782 = vmatprep.subr.mxu0 0.0
        %1783 = vmatpush2.msra.mxu0 0.0
        %1784 = vmatprep.mubr.f32.mxu0 0.0
        %1785 = vmatmul.mubr.f32.gmra.mxu0 %v1715
        %v1786 = vpop.f32.mrf.mxu0
        %v1787 = vadd.f32 0.0, %v1786
        %v1788 = vpop.f32.mrf.mxu0
        %1789 = vdwg.mxu0
        %v1790 = vadd.f32 %v1608, %v1787
        %s1791 = scalar_lea.vmem %s1, 2048
        %v1792 = vld [vmem:[%s1791] sm:$0xff]
        %v1793 = vld [vmem:[%s1791 + $0x8] sm:$0xff]
        %v1794 = vld [vmem:[%s1791 + $0x10] sm:$0xff]
        %v1795 = vld [vmem:[%s1791 + $0x18] sm:$0xff]
        %v1796 = vld [vmem:[%s1791 + $0x20] sm:$0xff]
        %v1797 = vld [vmem:[%s1791 + $0x28] sm:$0xff]
        %v1798 = vld [vmem:[%s1791 + $0x30] sm:$0xff]
        %v1799 = vld [vmem:[%s1791 + $0x38] sm:$0xff]
        %v1800 = vld [vmem:[%s1791 + $0x40] sm:$0xff]
        %v1801 = vld [vmem:[%s1791 + $0x48] sm:$0xff]
        %v1802 = vld [vmem:[%s1791 + $0x50] sm:$0xff]
        %v1803 = vld [vmem:[%s1791 + $0x58] sm:$0xff]
        %v1804 = vld [vmem:[%s1791 + $0x60] sm:$0xff]
        %v1805 = vld [vmem:[%s1791 + $0x68] sm:$0xff]
        %v1806 = vld [vmem:[%s1791 + $0x70] sm:$0xff]
        %v1807 = vld [vmem:[%s1791 + $0x78] sm:$0xff]
        %v1808 = vld [vmem:[%s1791 + $0x80] sm:$0xff]
        %v1809 = vld [vmem:[%s1791 + $0x88] sm:$0xff]
        %v1810 = vld [vmem:[%s1791 + $0x90] sm:$0xff]
        %v1811 = vld [vmem:[%s1791 + $0x98] sm:$0xff]
        %v1812 = vld [vmem:[%s1791 + $0xa0] sm:$0xff]
        %v1813 = vld [vmem:[%s1791 + $0xa8] sm:$0xff]
        %v1814 = vld [vmem:[%s1791 + $0xb0] sm:$0xff]
        %v1815 = vld [vmem:[%s1791 + $0xb8] sm:$0xff]
        %v1816 = vld [vmem:[%s1791 + $0xc0] sm:$0xff]
        %v1817 = vld [vmem:[%s1791 + $0xc8] sm:$0xff]
        %v1818 = vld [vmem:[%s1791 + $0xd0] sm:$0xff]
        %v1819 = vld [vmem:[%s1791 + $0xd8] sm:$0xff]
        %v1820 = vld [vmem:[%s1791 + $0xe0] sm:$0xff]
        %v1821 = vld [vmem:[%s1791 + $0xe8] sm:$0xff]
        %v1822 = vld [vmem:[%s1791 + $0xf0] sm:$0xff]
        %v1823 = vld [vmem:[%s1791 + $0xf8] sm:$0xff]
        %1824 = vmatprep.subr.mxu0 0.0
        %1825 = vmatpush1.msra.mxu0 %v1807
        %1826 = vmatprep.subr.mxu0 0.0
        %1827 = vmatpush1.msra.mxu0 %v1806
        %1828 = vmatprep.subr.mxu0 0.0
        %1829 = vmatpush1.msra.mxu0 %v1805
        %1830 = vmatprep.subr.mxu0 0.0
        %1831 = vmatpush1.msra.mxu0 %v1804
        %1832 = vmatprep.subr.mxu0 0.0
        %1833 = vmatpush1.msra.mxu0 %v1803
        %1834 = vmatprep.subr.mxu0 0.0
        %1835 = vmatpush1.msra.mxu0 %v1802
        %1836 = vmatprep.subr.mxu0 0.0
        %1837 = vmatpush1.msra.mxu0 %v1801
        %1838 = vmatprep.subr.mxu0 0.0
        %1839 = vmatpush1.msra.mxu0 %v1800
        %1840 = vmatprep.subr.mxu0 0.0
        %1841 = vmatpush1.msra.mxu0 %v1799
        %1842 = vmatprep.subr.mxu0 0.0
        %1843 = vmatpush1.msra.mxu0 %v1798
        %1844 = vmatprep.subr.mxu0 0.0
        %1845 = vmatpush1.msra.mxu0 %v1797
        %1846 = vmatprep.subr.mxu0 0.0
        %1847 = vmatpush1.msra.mxu0 %v1796
        %1848 = vmatprep.subr.mxu0 0.0
        %1849 = vmatpush1.msra.mxu0 %v1795
        %1850 = vmatprep.subr.mxu0 0.0
        %1851 = vmatpush1.msra.mxu0 %v1794
        %1852 = vmatprep.subr.mxu0 0.0
        %1853 = vmatpush1.msra.mxu0 %v1793
        %1854 = vmatprep.subr.mxu0 0.0
        %1855 = vmatpush1.msra.mxu0 %v1792
        %1856 = vmatprep.subr.mxu0 0.0
        %1857 = vmatpush2.msra.mxu0 %v1823
        %1858 = vmatprep.subr.mxu0 0.0
        %1859 = vmatpush2.msra.mxu0 %v1822
        %1860 = vmatprep.subr.mxu0 0.0
        %1861 = vmatpush2.msra.mxu0 %v1821
        %1862 = vmatprep.subr.mxu0 0.0
        %1863 = vmatpush2.msra.mxu0 %v1820
        %1864 = vmatprep.subr.mxu0 0.0
        %1865 = vmatpush2.msra.mxu0 %v1819
        %1866 = vmatprep.subr.mxu0 0.0
        %1867 = vmatpush2.msra.mxu0 %v1818
        %1868 = vmatprep.subr.mxu0 0.0
        %1869 = vmatpush2.msra.mxu0 %v1817
        %1870 = vmatprep.subr.mxu0 0.0
        %1871 = vmatpush2.msra.mxu0 %v1816
        %1872 = vmatprep.subr.mxu0 0.0
        %1873 = vmatpush2.msra.mxu0 %v1815
        %1874 = vmatprep.subr.mxu0 0.0
        %1875 = vmatpush2.msra.mxu0 %v1814
        %1876 = vmatprep.subr.mxu0 0.0
        %1877 = vmatpush2.msra.mxu0 %v1813
        %1878 = vmatprep.subr.mxu0 0.0
        %1879 = vmatpush2.msra.mxu0 %v1812
        %1880 = vmatprep.subr.mxu0 0.0
        %1881 = vmatpush2.msra.mxu0 %v1811
        %1882 = vmatprep.subr.mxu0 0.0
        %1883 = vmatpush2.msra.mxu0 %v1810
        %1884 = vmatprep.subr.mxu0 0.0
        %1885 = vmatpush2.msra.mxu0 %v1809
        %1886 = vmatprep.subr.mxu0 0.0
        %1887 = vmatpush2.msra.mxu0 %v1808
        %1888 = vmatprep.mubr.f32.mxu0 %v367
        %1889 = vmatmul.mubr.f32.gmra.mxu0 %v333
        %v1890 = vpop.f32.mrf.mxu0
        %v1891 = vadd.f32 0.0, %v1890
        %v1892 = vpop.f32.mrf.mxu0
        %1893 = vdwg.mxu0
        %s1894 = scalar_lea.vmem %s2, 64
        %v1895 = vld [vmem:[%s1894] sm:$0xff]
        %v1897 = vsel %vm545, %v1895, 0
        %v1900 = vsel %vm549, %v1891, 0
        %1902 = vmatprep.subr.mxu0 0.0
        %1903 = vmatpush1.msra.mxu0 0.0
        %1904 = vmatprep.subr.mxu0 0.0
        %1905 = vmatpush1.msra.mxu0 0.0
        %1906 = vmatprep.subr.mxu0 0.0
        %1907 = vmatpush1.msra.mxu0 0.0
        %1908 = vmatprep.subr.mxu0 0.0
        %1909 = vmatpush1.msra.mxu0 0.0
        %1910 = vmatprep.subr.mxu0 0.0
        %1911 = vmatpush1.msra.mxu0 0.0
        %1912 = vmatprep.subr.mxu0 0.0
        %1913 = vmatpush1.msra.mxu0 0.0
        %1914 = vmatprep.subr.mxu0 0.0
        %1915 = vmatpush1.msra.mxu0 0.0
        %1916 = vmatprep.subr.mxu0 0.0
        %1917 = vmatpush1.msra.mxu0 0.0
        %1918 = vmatprep.subr.mxu0 0.0
        %1919 = vmatpush1.msra.mxu0 0.0
        %1920 = vmatprep.subr.mxu0 0.0
        %1921 = vmatpush1.msra.mxu0 0.0
        %1922 = vmatprep.subr.mxu0 0.0
        %1923 = vmatpush1.msra.mxu0 0.0
        %1924 = vmatprep.subr.mxu0 0.0
        %1925 = vmatpush1.msra.mxu0 0.0
        %1926 = vmatprep.subr.mxu0 0.0
        %1927 = vmatpush1.msra.mxu0 0.0
        %1928 = vmatprep.subr.mxu0 0.0
        %1929 = vmatpush1.msra.mxu0 0.0
        %1930 = vmatprep.subr.mxu0 0.0
        %1931 = vmatpush1.msra.mxu0 0.0
        %1932 = vmatprep.subr.mxu0 0.0
        %1933 = vmatpush1.msra.mxu0 %v1900
        %1934 = vmatprep.subr.mxu0 0.0
        %1935 = vmatpush2.msra.mxu0 0.0
        %1936 = vmatprep.subr.mxu0 0.0
        %1937 = vmatpush2.msra.mxu0 0.0
        %1938 = vmatprep.subr.mxu0 0.0
        %1939 = vmatpush2.msra.mxu0 0.0
        %1940 = vmatprep.subr.mxu0 0.0
        %1941 = vmatpush2.msra.mxu0 0.0
        %1942 = vmatprep.subr.mxu0 0.0
        %1943 = vmatpush2.msra.mxu0 0.0
        %1944 = vmatprep.subr.mxu0 0.0
        %1945 = vmatpush2.msra.mxu0 0.0
        %1946 = vmatprep.subr.mxu0 0.0
        %1947 = vmatpush2.msra.mxu0 0.0
        %1948 = vmatprep.subr.mxu0 0.0
        %1949 = vmatpush2.msra.mxu0 0.0
        %1950 = vmatprep.subr.mxu0 0.0
        %1951 = vmatpush2.msra.mxu0 0.0
        %1952 = vmatprep.subr.mxu0 0.0
        %1953 = vmatpush2.msra.mxu0 0.0
        %1954 = vmatprep.subr.mxu0 0.0
        %1955 = vmatpush2.msra.mxu0 0.0
        %1956 = vmatprep.subr.mxu0 0.0
        %1957 = vmatpush2.msra.mxu0 0.0
        %1958 = vmatprep.subr.mxu0 0.0
        %1959 = vmatpush2.msra.mxu0 0.0
        %1960 = vmatprep.subr.mxu0 0.0
        %1961 = vmatpush2.msra.mxu0 0.0
        %1962 = vmatprep.subr.mxu0 0.0
        %1963 = vmatpush2.msra.mxu0 0.0
        %1964 = vmatprep.subr.mxu0 0.0
        %1965 = vmatpush2.msra.mxu0 0.0
        %1966 = vmatprep.mubr.f32.mxu0 0.0
        %1967 = vmatmul.mubr.f32.gmra.mxu0 %v1897
        %v1968 = vpop.f32.mrf.mxu0
        %v1969 = vadd.f32 0.0, %v1968
        %v1970 = vpop.f32.mrf.mxu0
        %1971 = vdwg.mxu0
        %v1972 = vadd.f32 %v1790, %v1969
        %s1973 = scalar_lea.vmem %s1, 2304
        %v1974 = vld [vmem:[%s1973] sm:$0xff]
        %v1975 = vld [vmem:[%s1973 + $0x8] sm:$0xff]
        %v1976 = vld [vmem:[%s1973 + $0x10] sm:$0xff]
        %v1977 = vld [vmem:[%s1973 + $0x18] sm:$0xff]
        %v1978 = vld [vmem:[%s1973 + $0x20] sm:$0xff]
        %v1979 = vld [vmem:[%s1973 + $0x28] sm:$0xff]
        %v1980 = vld [vmem:[%s1973 + $0x30] sm:$0xff]
        %v1981 = vld [vmem:[%s1973 + $0x38] sm:$0xff]
        %v1982 = vld [vmem:[%s1973 + $0x40] sm:$0xff]
        %v1983 = vld [vmem:[%s1973 + $0x48] sm:$0xff]
        %v1984 = vld [vmem:[%s1973 + $0x50] sm:$0xff]
        %v1985 = vld [vmem:[%s1973 + $0x58] sm:$0xff]
        %v1986 = vld [vmem:[%s1973 + $0x60] sm:$0xff]
        %v1987 = vld [vmem:[%s1973 + $0x68] sm:$0xff]
        %v1988 = vld [vmem:[%s1973 + $0x70] sm:$0xff]
        %v1989 = vld [vmem:[%s1973 + $0x78] sm:$0xff]
        %v1990 = vld [vmem:[%s1973 + $0x80] sm:$0xff]
        %v1991 = vld [vmem:[%s1973 + $0x88] sm:$0xff]
        %v1992 = vld [vmem:[%s1973 + $0x90] sm:$0xff]
        %v1993 = vld [vmem:[%s1973 + $0x98] sm:$0xff]
        %v1994 = vld [vmem:[%s1973 + $0xa0] sm:$0xff]
        %v1995 = vld [vmem:[%s1973 + $0xa8] sm:$0xff]
        %v1996 = vld [vmem:[%s1973 + $0xb0] sm:$0xff]
        %v1997 = vld [vmem:[%s1973 + $0xb8] sm:$0xff]
        %v1998 = vld [vmem:[%s1973 + $0xc0] sm:$0xff]
        %v1999 = vld [vmem:[%s1973 + $0xc8] sm:$0xff]
        %v2000 = vld [vmem:[%s1973 + $0xd0] sm:$0xff]
        %v2001 = vld [vmem:[%s1973 + $0xd8] sm:$0xff]
        %v2002 = vld [vmem:[%s1973 + $0xe0] sm:$0xff]
        %v2003 = vld [vmem:[%s1973 + $0xe8] sm:$0xff]
        %v2004 = vld [vmem:[%s1973 + $0xf0] sm:$0xff]
        %v2005 = vld [vmem:[%s1973 + $0xf8] sm:$0xff]
        %2006 = vmatprep.subr.mxu0 0.0
        %2007 = vmatpush1.msra.mxu0 %v1989
        %2008 = vmatprep.subr.mxu0 0.0
        %2009 = vmatpush1.msra.mxu0 %v1988
        %2010 = vmatprep.subr.mxu0 0.0
        %2011 = vmatpush1.msra.mxu0 %v1987
        %2012 = vmatprep.subr.mxu0 0.0
        %2013 = vmatpush1.msra.mxu0 %v1986
        %2014 = vmatprep.subr.mxu0 0.0
        %2015 = vmatpush1.msra.mxu0 %v1985
        %2016 = vmatprep.subr.mxu0 0.0
        %2017 = vmatpush1.msra.mxu0 %v1984
        %2018 = vmatprep.subr.mxu0 0.0
        %2019 = vmatpush1.msra.mxu0 %v1983
        %2020 = vmatprep.subr.mxu0 0.0
        %2021 = vmatpush1.msra.mxu0 %v1982
        %2022 = vmatprep.subr.mxu0 0.0
        %2023 = vmatpush1.msra.mxu0 %v1981
        %2024 = vmatprep.subr.mxu0 0.0
        %2025 = vmatpush1.msra.mxu0 %v1980
        %2026 = vmatprep.subr.mxu0 0.0
        %2027 = vmatpush1.msra.mxu0 %v1979
        %2028 = vmatprep.subr.mxu0 0.0
        %2029 = vmatpush1.msra.mxu0 %v1978
        %2030 = vmatprep.subr.mxu0 0.0
        %2031 = vmatpush1.msra.mxu0 %v1977
        %2032 = vmatprep.subr.mxu0 0.0
        %2033 = vmatpush1.msra.mxu0 %v1976
        %2034 = vmatprep.subr.mxu0 0.0
        %2035 = vmatpush1.msra.mxu0 %v1975
        %2036 = vmatprep.subr.mxu0 0.0
        %2037 = vmatpush1.msra.mxu0 %v1974
        %2038 = vmatprep.subr.mxu0 0.0
        %2039 = vmatpush2.msra.mxu0 %v2005
        %2040 = vmatprep.subr.mxu0 0.0
        %2041 = vmatpush2.msra.mxu0 %v2004
        %2042 = vmatprep.subr.mxu0 0.0
        %2043 = vmatpush2.msra.mxu0 %v2003
        %2044 = vmatprep.subr.mxu0 0.0
        %2045 = vmatpush2.msra.mxu0 %v2002
        %2046 = vmatprep.subr.mxu0 0.0
        %2047 = vmatpush2.msra.mxu0 %v2001
        %2048 = vmatprep.subr.mxu0 0.0
        %2049 = vmatpush2.msra.mxu0 %v2000
        %2050 = vmatprep.subr.mxu0 0.0
        %2051 = vmatpush2.msra.mxu0 %v1999
        %2052 = vmatprep.subr.mxu0 0.0
        %2053 = vmatpush2.msra.mxu0 %v1998
        %2054 = vmatprep.subr.mxu0 0.0
        %2055 = vmatpush2.msra.mxu0 %v1997
        %2056 = vmatprep.subr.mxu0 0.0
        %2057 = vmatpush2.msra.mxu0 %v1996
        %2058 = vmatprep.subr.mxu0 0.0
        %2059 = vmatpush2.msra.mxu0 %v1995
        %2060 = vmatprep.subr.mxu0 0.0
        %2061 = vmatpush2.msra.mxu0 %v1994
        %2062 = vmatprep.subr.mxu0 0.0
        %2063 = vmatpush2.msra.mxu0 %v1993
        %2064 = vmatprep.subr.mxu0 0.0
        %2065 = vmatpush2.msra.mxu0 %v1992
        %2066 = vmatprep.subr.mxu0 0.0
        %2067 = vmatpush2.msra.mxu0 %v1991
        %2068 = vmatprep.subr.mxu0 0.0
        %2069 = vmatpush2.msra.mxu0 %v1990
        %2070 = vmatprep.mubr.f32.mxu0 %v367
        %2071 = vmatmul.mubr.f32.gmra.mxu0 %v333
        %v2072 = vpop.f32.mrf.mxu0
        %v2073 = vadd.f32 0.0, %v2072
        %v2074 = vpop.f32.mrf.mxu0
        %2075 = vdwg.mxu0
        %s2076 = scalar_lea.vmem %s2, 72
        %v2077 = vld [vmem:[%s2076] sm:$0xff]
        %v2079 = vsel %vm545, %v2077, 0
        %v2082 = vsel %vm549, %v2073, 0
        %2084 = vmatprep.subr.mxu0 0.0
        %2085 = vmatpush1.msra.mxu0 0.0
        %2086 = vmatprep.subr.mxu0 0.0
        %2087 = vmatpush1.msra.mxu0 0.0
        %2088 = vmatprep.subr.mxu0 0.0
        %2089 = vmatpush1.msra.mxu0 0.0
        %2090 = vmatprep.subr.mxu0 0.0
        %2091 = vmatpush1.msra.mxu0 0.0
        %2092 = vmatprep.subr.mxu0 0.0
        %2093 = vmatpush1.msra.mxu0 0.0
        %2094 = vmatprep.subr.mxu0 0.0
        %2095 = vmatpush1.msra.mxu0 0.0
        %2096 = vmatprep.subr.mxu0 0.0
        %2097 = vmatpush1.msra.mxu0 0.0
        %2098 = vmatprep.subr.mxu0 0.0
        %2099 = vmatpush1.msra.mxu0 0.0
        %2100 = vmatprep.subr.mxu0 0.0
        %2101 = vmatpush1.msra.mxu0 0.0
        %2102 = vmatprep.subr.mxu0 0.0
        %2103 = vmatpush1.msra.mxu0 0.0
        %2104 = vmatprep.subr.mxu0 0.0
        %2105 = vmatpush1.msra.mxu0 0.0
        %2106 = vmatprep.subr.mxu0 0.0
        %2107 = vmatpush1.msra.mxu0 0.0
        %2108 = vmatprep.subr.mxu0 0.0
        %2109 = vmatpush1.msra.mxu0 0.0
        %2110 = vmatprep.subr.mxu0 0.0
        %2111 = vmatpush1.msra.mxu0 0.0
        %2112 = vmatprep.subr.mxu0 0.0
        %2113 = vmatpush1.msra.mxu0 0.0
        %2114 = vmatprep.subr.mxu0 0.0
        %2115 = vmatpush1.msra.mxu0 %v2082
        %2116 = vmatprep.subr.mxu0 0.0
        %2117 = vmatpush2.msra.mxu0 0.0
        %2118 = vmatprep.subr.mxu0 0.0
        %2119 = vmatpush2.msra.mxu0 0.0
        %2120 = vmatprep.subr.mxu0 0.0
        %2121 = vmatpush2.msra.mxu0 0.0
        %2122 = vmatprep.subr.mxu0 0.0
        %2123 = vmatpush2.msra.mxu0 0.0
        %2124 = vmatprep.subr.mxu0 0.0
        %2125 = vmatpush2.msra.mxu0 0.0
        %2126 = vmatprep.subr.mxu0 0.0
        %2127 = vmatpush2.msra.mxu0 0.0
        %2128 = vmatprep.subr.mxu0 0.0
        %2129 = vmatpush2.msra.mxu0 0.0
        %2130 = vmatprep.subr.mxu0 0.0
        %2131 = vmatpush2.msra.mxu0 0.0
        %2132 = vmatprep.subr.mxu0 0.0
        %2133 = vmatpush2.msra.mxu0 0.0
        %2134 = vmatprep.subr.mxu0 0.0
        %2135 = vmatpush2.msra.mxu0 0.0
        %2136 = vmatprep.subr.mxu0 0.0
        %2137 = vmatpush2.msra.mxu0 0.0
        %2138 = vmatprep.subr.mxu0 0.0
        %2139 = vmatpush2.msra.mxu0 0.0
        %2140 = vmatprep.subr.mxu0 0.0
        %2141 = vmatpush2.msra.mxu0 0.0
        %2142 = vmatprep.subr.mxu0 0.0
        %2143 = vmatpush2.msra.mxu0 0.0
        %2144 = vmatprep.subr.mxu0 0.0
        %2145 = vmatpush2.msra.mxu0 0.0
        %2146 = vmatprep.subr.mxu0 0.0
        %2147 = vmatpush2.msra.mxu0 0.0
        %2148 = vmatprep.mubr.f32.mxu0 0.0
        %2149 = vmatmul.mubr.f32.gmra.mxu0 %v2079
        %v2150 = vpop.f32.mrf.mxu0
        %v2151 = vadd.f32 0.0, %v2150
        %v2152 = vpop.f32.mrf.mxu0
        %2153 = vdwg.mxu0
        %v2154 = vadd.f32 %v1972, %v2151
        %s2155 = scalar_lea.vmem %s1, 2560
        %v2156 = vld [vmem:[%s2155] sm:$0xff]
        %v2157 = vld [vmem:[%s2155 + $0x8] sm:$0xff]
        %v2158 = vld [vmem:[%s2155 + $0x10] sm:$0xff]
        %v2159 = vld [vmem:[%s2155 + $0x18] sm:$0xff]
        %v2160 = vld [vmem:[%s2155 + $0x20] sm:$0xff]
        %v2161 = vld [vmem:[%s2155 + $0x28] sm:$0xff]
        %v2162 = vld [vmem:[%s2155 + $0x30] sm:$0xff]
        %v2163 = vld [vmem:[%s2155 + $0x38] sm:$0xff]
        %v2164 = vld [vmem:[%s2155 + $0x40] sm:$0xff]
        %v2165 = vld [vmem:[%s2155 + $0x48] sm:$0xff]
        %v2166 = vld [vmem:[%s2155 + $0x50] sm:$0xff]
        %v2167 = vld [vmem:[%s2155 + $0x58] sm:$0xff]
        %v2168 = vld [vmem:[%s2155 + $0x60] sm:$0xff]
        %v2169 = vld [vmem:[%s2155 + $0x68] sm:$0xff]
        %v2170 = vld [vmem:[%s2155 + $0x70] sm:$0xff]
        %v2171 = vld [vmem:[%s2155 + $0x78] sm:$0xff]
        %v2172 = vld [vmem:[%s2155 + $0x80] sm:$0xff]
        %v2173 = vld [vmem:[%s2155 + $0x88] sm:$0xff]
        %v2174 = vld [vmem:[%s2155 + $0x90] sm:$0xff]
        %v2175 = vld [vmem:[%s2155 + $0x98] sm:$0xff]
        %v2176 = vld [vmem:[%s2155 + $0xa0] sm:$0xff]
        %v2177 = vld [vmem:[%s2155 + $0xa8] sm:$0xff]
        %v2178 = vld [vmem:[%s2155 + $0xb0] sm:$0xff]
        %v2179 = vld [vmem:[%s2155 + $0xb8] sm:$0xff]
        %v2180 = vld [vmem:[%s2155 + $0xc0] sm:$0xff]
        %v2181 = vld [vmem:[%s2155 + $0xc8] sm:$0xff]
        %v2182 = vld [vmem:[%s2155 + $0xd0] sm:$0xff]
        %v2183 = vld [vmem:[%s2155 + $0xd8] sm:$0xff]
        %v2184 = vld [vmem:[%s2155 + $0xe0] sm:$0xff]
        %v2185 = vld [vmem:[%s2155 + $0xe8] sm:$0xff]
        %v2186 = vld [vmem:[%s2155 + $0xf0] sm:$0xff]
        %v2187 = vld [vmem:[%s2155 + $0xf8] sm:$0xff]
        %2188 = vmatprep.subr.mxu0 0.0
        %2189 = vmatpush1.msra.mxu0 %v2171
        %2190 = vmatprep.subr.mxu0 0.0
        %2191 = vmatpush1.msra.mxu0 %v2170
        %2192 = vmatprep.subr.mxu0 0.0
        %2193 = vmatpush1.msra.mxu0 %v2169
        %2194 = vmatprep.subr.mxu0 0.0
        %2195 = vmatpush1.msra.mxu0 %v2168
        %2196 = vmatprep.subr.mxu0 0.0
        %2197 = vmatpush1.msra.mxu0 %v2167
        %2198 = vmatprep.subr.mxu0 0.0
        %2199 = vmatpush1.msra.mxu0 %v2166
        %2200 = vmatprep.subr.mxu0 0.0
        %2201 = vmatpush1.msra.mxu0 %v2165
        %2202 = vmatprep.subr.mxu0 0.0
        %2203 = vmatpush1.msra.mxu0 %v2164
        %2204 = vmatprep.subr.mxu0 0.0
        %2205 = vmatpush1.msra.mxu0 %v2163
        %2206 = vmatprep.subr.mxu0 0.0
        %2207 = vmatpush1.msra.mxu0 %v2162
        %2208 = vmatprep.subr.mxu0 0.0
        %2209 = vmatpush1.msra.mxu0 %v2161
        %2210 = vmatprep.subr.mxu0 0.0
        %2211 = vmatpush1.msra.mxu0 %v2160
        %2212 = vmatprep.subr.mxu0 0.0
        %2213 = vmatpush1.msra.mxu0 %v2159
        %2214 = vmatprep.subr.mxu0 0.0
        %2215 = vmatpush1.msra.mxu0 %v2158
        %2216 = vmatprep.subr.mxu0 0.0
        %2217 = vmatpush1.msra.mxu0 %v2157
        %2218 = vmatprep.subr.mxu0 0.0
        %2219 = vmatpush1.msra.mxu0 %v2156
        %2220 = vmatprep.subr.mxu0 0.0
        %2221 = vmatpush2.msra.mxu0 %v2187
        %2222 = vmatprep.subr.mxu0 0.0
        %2223 = vmatpush2.msra.mxu0 %v2186
        %2224 = vmatprep.subr.mxu0 0.0
        %2225 = vmatpush2.msra.mxu0 %v2185
        %2226 = vmatprep.subr.mxu0 0.0
        %2227 = vmatpush2.msra.mxu0 %v2184
        %2228 = vmatprep.subr.mxu0 0.0
        %2229 = vmatpush2.msra.mxu0 %v2183
        %2230 = vmatprep.subr.mxu0 0.0
        %2231 = vmatpush2.msra.mxu0 %v2182
        %2232 = vmatprep.subr.mxu0 0.0
        %2233 = vmatpush2.msra.mxu0 %v2181
        %2234 = vmatprep.subr.mxu0 0.0
        %2235 = vmatpush2.msra.mxu0 %v2180
        %2236 = vmatprep.subr.mxu0 0.0
        %2237 = vmatpush2.msra.mxu0 %v2179
        %2238 = vmatprep.subr.mxu0 0.0
        %2239 = vmatpush2.msra.mxu0 %v2178
        %2240 = vmatprep.subr.mxu0 0.0
        %2241 = vmatpush2.msra.mxu0 %v2177
        %2242 = vmatprep.subr.mxu0 0.0
        %2243 = vmatpush2.msra.mxu0 %v2176
        %2244 = vmatprep.subr.mxu0 0.0
        %2245 = vmatpush2.msra.mxu0 %v2175
        %2246 = vmatprep.subr.mxu0 0.0
        %2247 = vmatpush2.msra.mxu0 %v2174
        %2248 = vmatprep.subr.mxu0 0.0
        %2249 = vmatpush2.msra.mxu0 %v2173
        %2250 = vmatprep.subr.mxu0 0.0
        %2251 = vmatpush2.msra.mxu0 %v2172
        %2252 = vmatprep.mubr.f32.mxu0 %v367
        %2253 = vmatmul.mubr.f32.gmra.mxu0 %v333
        %v2254 = vpop.f32.mrf.mxu0
        %v2255 = vadd.f32 0.0, %v2254
        %v2256 = vpop.f32.mrf.mxu0
        %2257 = vdwg.mxu0
        %s2258 = scalar_lea.vmem %s2, 80
        %v2259 = vld [vmem:[%s2258] sm:$0xff]
        %v2261 = vsel %vm545, %v2259, 0
        %v2264 = vsel %vm549, %v2255, 0
        %2266 = vmatprep.subr.mxu0 0.0
        %2267 = vmatpush1.msra.mxu0 0.0
        %2268 = vmatprep.subr.mxu0 0.0
        %2269 = vmatpush1.msra.mxu0 0.0
        %2270 = vmatprep.subr.mxu0 0.0
        %2271 = vmatpush1.msra.mxu0 0.0
        %2272 = vmatprep.subr.mxu0 0.0
        %2273 = vmatpush1.msra.mxu0 0.0
        %2274 = vmatprep.subr.mxu0 0.0
        %2275 = vmatpush1.msra.mxu0 0.0
        %2276 = vmatprep.subr.mxu0 0.0
        %2277 = vmatpush1.msra.mxu0 0.0
        %2278 = vmatprep.subr.mxu0 0.0
        %2279 = vmatpush1.msra.mxu0 0.0
        %2280 = vmatprep.subr.mxu0 0.0
        %2281 = vmatpush1.msra.mxu0 0.0
        %2282 = vmatprep.subr.mxu0 0.0
        %2283 = vmatpush1.msra.mxu0 0.0
        %2284 = vmatprep.subr.mxu0 0.0
        %2285 = vmatpush1.msra.mxu0 0.0
        %2286 = vmatprep.subr.mxu0 0.0
        %2287 = vmatpush1.msra.mxu0 0.0
        %2288 = vmatprep.subr.mxu0 0.0
        %2289 = vmatpush1.msra.mxu0 0.0
        %2290 = vmatprep.subr.mxu0 0.0
        %2291 = vmatpush1.msra.mxu0 0.0
        %2292 = vmatprep.subr.mxu0 0.0
        %2293 = vmatpush1.msra.mxu0 0.0
        %2294 = vmatprep.subr.mxu0 0.0
        %2295 = vmatpush1.msra.mxu0 0.0
        %2296 = vmatprep.subr.mxu0 0.0
        %2297 = vmatpush1.msra.mxu0 %v2264
        %2298 = vmatprep.subr.mxu0 0.0
        %2299 = vmatpush2.msra.mxu0 0.0
        %2300 = vmatprep.subr.mxu0 0.0
        %2301 = vmatpush2.msra.mxu0 0.0
        %2302 = vmatprep.subr.mxu0 0.0
        %2303 = vmatpush2.msra.mxu0 0.0
        %2304 = vmatprep.subr.mxu0 0.0
        %2305 = vmatpush2.msra.mxu0 0.0
        %2306 = vmatprep.subr.mxu0 0.0
        %2307 = vmatpush2.msra.mxu0 0.0
        %2308 = vmatprep.subr.mxu0 0.0
        %2309 = vmatpush2.msra.mxu0 0.0
        %2310 = vmatprep.subr.mxu0 0.0
        %2311 = vmatpush2.msra.mxu0 0.0
        %2312 = vmatprep.subr.mxu0 0.0
        %2313 = vmatpush2.msra.mxu0 0.0
        %2314 = vmatprep.subr.mxu0 0.0
        %2315 = vmatpush2.msra.mxu0 0.0
        %2316 = vmatprep.subr.mxu0 0.0
        %2317 = vmatpush2.msra.mxu0 0.0
        %2318 = vmatprep.subr.mxu0 0.0
        %2319 = vmatpush2.msra.mxu0 0.0
        %2320 = vmatprep.subr.mxu0 0.0
        %2321 = vmatpush2.msra.mxu0 0.0
        %2322 = vmatprep.subr.mxu0 0.0
        %2323 = vmatpush2.msra.mxu0 0.0
        %2324 = vmatprep.subr.mxu0 0.0
        %2325 = vmatpush2.msra.mxu0 0.0
        %2326 = vmatprep.subr.mxu0 0.0
        %2327 = vmatpush2.msra.mxu0 0.0
        %2328 = vmatprep.subr.mxu0 0.0
        %2329 = vmatpush2.msra.mxu0 0.0
        %2330 = vmatprep.mubr.f32.mxu0 0.0
        %2331 = vmatmul.mubr.f32.gmra.mxu0 %v2261
        %v2332 = vpop.f32.mrf.mxu0
        %v2333 = vadd.f32 0.0, %v2332
        %v2334 = vpop.f32.mrf.mxu0
        %2335 = vdwg.mxu0
        %v2336 = vadd.f32 %v2154, %v2333
        %s2337 = scalar_lea.vmem %s1, 2816
        %v2338 = vld [vmem:[%s2337] sm:$0xff]
        %v2339 = vld [vmem:[%s2337 + $0x8] sm:$0xff]
        %v2340 = vld [vmem:[%s2337 + $0x10] sm:$0xff]
        %v2341 = vld [vmem:[%s2337 + $0x18] sm:$0xff]
        %v2342 = vld [vmem:[%s2337 + $0x20] sm:$0xff]
        %v2343 = vld [vmem:[%s2337 + $0x28] sm:$0xff]
        %v2344 = vld [vmem:[%s2337 + $0x30] sm:$0xff]
        %v2345 = vld [vmem:[%s2337 + $0x38] sm:$0xff]
        %v2346 = vld [vmem:[%s2337 + $0x40] sm:$0xff]
        %v2347 = vld [vmem:[%s2337 + $0x48] sm:$0xff]
        %v2348 = vld [vmem:[%s2337 + $0x50] sm:$0xff]
        %v2349 = vld [vmem:[%s2337 + $0x58] sm:$0xff]
        %v2350 = vld [vmem:[%s2337 + $0x60] sm:$0xff]
        %v2351 = vld [vmem:[%s2337 + $0x68] sm:$0xff]
        %v2352 = vld [vmem:[%s2337 + $0x70] sm:$0xff]
        %v2353 = vld [vmem:[%s2337 + $0x78] sm:$0xff]
        %v2354 = vld [vmem:[%s2337 + $0x80] sm:$0xff]
        %v2355 = vld [vmem:[%s2337 + $0x88] sm:$0xff]
        %v2356 = vld [vmem:[%s2337 + $0x90] sm:$0xff]
        %v2357 = vld [vmem:[%s2337 + $0x98] sm:$0xff]
        %v2358 = vld [vmem:[%s2337 + $0xa0] sm:$0xff]
        %v2359 = vld [vmem:[%s2337 + $0xa8] sm:$0xff]
        %v2360 = vld [vmem:[%s2337 + $0xb0] sm:$0xff]
        %v2361 = vld [vmem:[%s2337 + $0xb8] sm:$0xff]
        %v2362 = vld [vmem:[%s2337 + $0xc0] sm:$0xff]
        %v2363 = vld [vmem:[%s2337 + $0xc8] sm:$0xff]
        %v2364 = vld [vmem:[%s2337 + $0xd0] sm:$0xff]
        %v2365 = vld [vmem:[%s2337 + $0xd8] sm:$0xff]
        %v2366 = vld [vmem:[%s2337 + $0xe0] sm:$0xff]
        %v2367 = vld [vmem:[%s2337 + $0xe8] sm:$0xff]
        %v2368 = vld [vmem:[%s2337 + $0xf0] sm:$0xff]
        %v2369 = vld [vmem:[%s2337 + $0xf8] sm:$0xff]
        %2370 = vmatprep.subr.mxu0 0.0
        %2371 = vmatpush1.msra.mxu0 %v2353
        %2372 = vmatprep.subr.mxu0 0.0
        %2373 = vmatpush1.msra.mxu0 %v2352
        %2374 = vmatprep.subr.mxu0 0.0
        %2375 = vmatpush1.msra.mxu0 %v2351
        %2376 = vmatprep.subr.mxu0 0.0
        %2377 = vmatpush1.msra.mxu0 %v2350
        %2378 = vmatprep.subr.mxu0 0.0
        %2379 = vmatpush1.msra.mxu0 %v2349
        %2380 = vmatprep.subr.mxu0 0.0
        %2381 = vmatpush1.msra.mxu0 %v2348
        %2382 = vmatprep.subr.mxu0 0.0
        %2383 = vmatpush1.msra.mxu0 %v2347
        %2384 = vmatprep.subr.mxu0 0.0
        %2385 = vmatpush1.msra.mxu0 %v2346
        %2386 = vmatprep.subr.mxu0 0.0
        %2387 = vmatpush1.msra.mxu0 %v2345
        %2388 = vmatprep.subr.mxu0 0.0
        %2389 = vmatpush1.msra.mxu0 %v2344
        %2390 = vmatprep.subr.mxu0 0.0
        %2391 = vmatpush1.msra.mxu0 %v2343
        %2392 = vmatprep.subr.mxu0 0.0
        %2393 = vmatpush1.msra.mxu0 %v2342
        %2394 = vmatprep.subr.mxu0 0.0
        %2395 = vmatpush1.msra.mxu0 %v2341
        %2396 = vmatprep.subr.mxu0 0.0
        %2397 = vmatpush1.msra.mxu0 %v2340
        %2398 = vmatprep.subr.mxu0 0.0
        %2399 = vmatpush1.msra.mxu0 %v2339
        %2400 = vmatprep.subr.mxu0 0.0
        %2401 = vmatpush1.msra.mxu0 %v2338
        %2402 = vmatprep.subr.mxu0 0.0
        %2403 = vmatpush2.msra.mxu0 %v2369
        %2404 = vmatprep.subr.mxu0 0.0
        %2405 = vmatpush2.msra.mxu0 %v2368
        %2406 = vmatprep.subr.mxu0 0.0
        %2407 = vmatpush2.msra.mxu0 %v2367
        %2408 = vmatprep.subr.mxu0 0.0
        %2409 = vmatpush2.msra.mxu0 %v2366
        %2410 = vmatprep.subr.mxu0 0.0
        %2411 = vmatpush2.msra.mxu0 %v2365
        %2412 = vmatprep.subr.mxu0 0.0
        %2413 = vmatpush2.msra.mxu0 %v2364
        %2414 = vmatprep.subr.mxu0 0.0
        %2415 = vmatpush2.msra.mxu0 %v2363
        %2416 = vmatprep.subr.mxu0 0.0
        %2417 = vmatpush2.msra.mxu0 %v2362
        %2418 = vmatprep.subr.mxu0 0.0
        %2419 = vmatpush2.msra.mxu0 %v2361
        %2420 = vmatprep.subr.mxu0 0.0
        %2421 = vmatpush2.msra.mxu0 %v2360
        %2422 = vmatprep.subr.mxu0 0.0
        %2423 = vmatpush2.msra.mxu0 %v2359
        %2424 = vmatprep.subr.mxu0 0.0
        %2425 = vmatpush2.msra.mxu0 %v2358
        %2426 = vmatprep.subr.mxu0 0.0
        %2427 = vmatpush2.msra.mxu0 %v2357
        %2428 = vmatprep.subr.mxu0 0.0
        %2429 = vmatpush2.msra.mxu0 %v2356
        %2430 = vmatprep.subr.mxu0 0.0
        %2431 = vmatpush2.msra.mxu0 %v2355
        %2432 = vmatprep.subr.mxu0 0.0
        %2433 = vmatpush2.msra.mxu0 %v2354
        %2434 = vmatprep.mubr.f32.mxu0 %v367
        %2435 = vmatmul.mubr.f32.gmra.mxu0 %v333
        %v2436 = vpop.f32.mrf.mxu0
        %v2437 = vadd.f32 0.0, %v2436
        %v2438 = vpop.f32.mrf.mxu0
        %2439 = vdwg.mxu0
        %s2440 = scalar_lea.vmem %s2, 88
        %v2441 = vld [vmem:[%s2440] sm:$0xff]
        %v2443 = vsel %vm545, %v2441, 0
        %v2446 = vsel %vm549, %v2437, 0
        %2448 = vmatprep.subr.mxu0 0.0
        %2449 = vmatpush1.msra.mxu0 0.0
        %2450 = vmatprep.subr.mxu0 0.0
        %2451 = vmatpush1.msra.mxu0 0.0
        %2452 = vmatprep.subr.mxu0 0.0
        %2453 = vmatpush1.msra.mxu0 0.0
        %2454 = vmatprep.subr.mxu0 0.0
        %2455 = vmatpush1.msra.mxu0 0.0
        %2456 = vmatprep.subr.mxu0 0.0
        %2457 = vmatpush1.msra.mxu0 0.0
        %2458 = vmatprep.subr.mxu0 0.0
        %2459 = vmatpush1.msra.mxu0 0.0
        %2460 = vmatprep.subr.mxu0 0.0
        %2461 = vmatpush1.msra.mxu0 0.0
        %2462 = vmatprep.subr.mxu0 0.0
        %2463 = vmatpush1.msra.mxu0 0.0
        %2464 = vmatprep.subr.mxu0 0.0
        %2465 = vmatpush1.msra.mxu0 0.0
        %2466 = vmatprep.subr.mxu0 0.0
        %2467 = vmatpush1.msra.mxu0 0.0
        %2468 = vmatprep.subr.mxu0 0.0
        %2469 = vmatpush1.msra.mxu0 0.0
        %2470 = vmatprep.subr.mxu0 0.0
        %2471 = vmatpush1.msra.mxu0 0.0
        %2472 = vmatprep.subr.mxu0 0.0
        %2473 = vmatpush1.msra.mxu0 0.0
        %2474 = vmatprep.subr.mxu0 0.0
        %2475 = vmatpush1.msra.mxu0 0.0
        %2476 = vmatprep.subr.mxu0 0.0
        %2477 = vmatpush1.msra.mxu0 0.0
        %2478 = vmatprep.subr.mxu0 0.0
        %2479 = vmatpush1.msra.mxu0 %v2446
        %2480 = vmatprep.subr.mxu0 0.0
        %2481 = vmatpush2.msra.mxu0 0.0
        %2482 = vmatprep.subr.mxu0 0.0
        %2483 = vmatpush2.msra.mxu0 0.0
        %2484 = vmatprep.subr.mxu0 0.0
        %2485 = vmatpush2.msra.mxu0 0.0
        %2486 = vmatprep.subr.mxu0 0.0
        %2487 = vmatpush2.msra.mxu0 0.0
        %2488 = vmatprep.subr.mxu0 0.0
        %2489 = vmatpush2.msra.mxu0 0.0
        %2490 = vmatprep.subr.mxu0 0.0
        %2491 = vmatpush2.msra.mxu0 0.0
        %2492 = vmatprep.subr.mxu0 0.0
        %2493 = vmatpush2.msra.mxu0 0.0
        %2494 = vmatprep.subr.mxu0 0.0
        %2495 = vmatpush2.msra.mxu0 0.0
        %2496 = vmatprep.subr.mxu0 0.0
        %2497 = vmatpush2.msra.mxu0 0.0
        %2498 = vmatprep.subr.mxu0 0.0
        %2499 = vmatpush2.msra.mxu0 0.0
        %2500 = vmatprep.subr.mxu0 0.0
        %2501 = vmatpush2.msra.mxu0 0.0
        %2502 = vmatprep.subr.mxu0 0.0
        %2503 = vmatpush2.msra.mxu0 0.0
        %2504 = vmatprep.subr.mxu0 0.0
        %2505 = vmatpush2.msra.mxu0 0.0
        %2506 = vmatprep.subr.mxu0 0.0
        %2507 = vmatpush2.msra.mxu0 0.0
        %2508 = vmatprep.subr.mxu0 0.0
        %2509 = vmatpush2.msra.mxu0 0.0
        %2510 = vmatprep.subr.mxu0 0.0
        %2511 = vmatpush2.msra.mxu0 0.0
        %2512 = vmatprep.mubr.f32.mxu0 0.0
        %2513 = vmatmul.mubr.f32.gmra.mxu0 %v2443
        %v2514 = vpop.f32.mrf.mxu0
        %v2515 = vadd.f32 0.0, %v2514
        %v2516 = vpop.f32.mrf.mxu0
        %2517 = vdwg.mxu0
        %v2518 = vadd.f32 %v2336, %v2515
        %s2519 = scalar_lea.vmem %s1, 3072
        %v2520 = vld [vmem:[%s2519] sm:$0xff]
        %v2521 = vld [vmem:[%s2519 + $0x8] sm:$0xff]
        %v2522 = vld [vmem:[%s2519 + $0x10] sm:$0xff]
        %v2523 = vld [vmem:[%s2519 + $0x18] sm:$0xff]
        %v2524 = vld [vmem:[%s2519 + $0x20] sm:$0xff]
        %v2525 = vld [vmem:[%s2519 + $0x28] sm:$0xff]
        %v2526 = vld [vmem:[%s2519 + $0x30] sm:$0xff]
        %v2527 = vld [vmem:[%s2519 + $0x38] sm:$0xff]
        %v2528 = vld [vmem:[%s2519 + $0x40] sm:$0xff]
        %v2529 = vld [vmem:[%s2519 + $0x48] sm:$0xff]
        %v2530 = vld [vmem:[%s2519 + $0x50] sm:$0xff]
        %v2531 = vld [vmem:[%s2519 + $0x58] sm:$0xff]
        %v2532 = vld [vmem:[%s2519 + $0x60] sm:$0xff]
        %v2533 = vld [vmem:[%s2519 + $0x68] sm:$0xff]
        %v2534 = vld [vmem:[%s2519 + $0x70] sm:$0xff]
        %v2535 = vld [vmem:[%s2519 + $0x78] sm:$0xff]
        %v2536 = vld [vmem:[%s2519 + $0x80] sm:$0xff]
        %v2537 = vld [vmem:[%s2519 + $0x88] sm:$0xff]
        %v2538 = vld [vmem:[%s2519 + $0x90] sm:$0xff]
        %v2539 = vld [vmem:[%s2519 + $0x98] sm:$0xff]
        %v2540 = vld [vmem:[%s2519 + $0xa0] sm:$0xff]
        %v2541 = vld [vmem:[%s2519 + $0xa8] sm:$0xff]
        %v2542 = vld [vmem:[%s2519 + $0xb0] sm:$0xff]
        %v2543 = vld [vmem:[%s2519 + $0xb8] sm:$0xff]
        %v2544 = vld [vmem:[%s2519 + $0xc0] sm:$0xff]
        %v2545 = vld [vmem:[%s2519 + $0xc8] sm:$0xff]
        %v2546 = vld [vmem:[%s2519 + $0xd0] sm:$0xff]
        %v2547 = vld [vmem:[%s2519 + $0xd8] sm:$0xff]
        %v2548 = vld [vmem:[%s2519 + $0xe0] sm:$0xff]
        %v2549 = vld [vmem:[%s2519 + $0xe8] sm:$0xff]
        %v2550 = vld [vmem:[%s2519 + $0xf0] sm:$0xff]
        %v2551 = vld [vmem:[%s2519 + $0xf8] sm:$0xff]
        %2552 = vmatprep.subr.mxu0 0.0
        %2553 = vmatpush1.msra.mxu0 %v2535
        %2554 = vmatprep.subr.mxu0 0.0
        %2555 = vmatpush1.msra.mxu0 %v2534
        %2556 = vmatprep.subr.mxu0 0.0
        %2557 = vmatpush1.msra.mxu0 %v2533
        %2558 = vmatprep.subr.mxu0 0.0
        %2559 = vmatpush1.msra.mxu0 %v2532
        %2560 = vmatprep.subr.mxu0 0.0
        %2561 = vmatpush1.msra.mxu0 %v2531
        %2562 = vmatprep.subr.mxu0 0.0
        %2563 = vmatpush1.msra.mxu0 %v2530
        %2564 = vmatprep.subr.mxu0 0.0
        %2565 = vmatpush1.msra.mxu0 %v2529
        %2566 = vmatprep.subr.mxu0 0.0
        %2567 = vmatpush1.msra.mxu0 %v2528
        %2568 = vmatprep.subr.mxu0 0.0
        %2569 = vmatpush1.msra.mxu0 %v2527
        %2570 = vmatprep.subr.mxu0 0.0
        %2571 = vmatpush1.msra.mxu0 %v2526
        %2572 = vmatprep.subr.mxu0 0.0
        %2573 = vmatpush1.msra.mxu0 %v2525
        %2574 = vmatprep.subr.mxu0 0.0
        %2575 = vmatpush1.msra.mxu0 %v2524
        %2576 = vmatprep.subr.mxu0 0.0
        %2577 = vmatpush1.msra.mxu0 %v2523
        %2578 = vmatprep.subr.mxu0 0.0
        %2579 = vmatpush1.msra.mxu0 %v2522
        %2580 = vmatprep.subr.mxu0 0.0
        %2581 = vmatpush1.msra.mxu0 %v2521
        %2582 = vmatprep.subr.mxu0 0.0
        %2583 = vmatpush1.msra.mxu0 %v2520
        %2584 = vmatprep.subr.mxu0 0.0
        %2585 = vmatpush2.msra.mxu0 %v2551
        %2586 = vmatprep.subr.mxu0 0.0
        %2587 = vmatpush2.msra.mxu0 %v2550
        %2588 = vmatprep.subr.mxu0 0.0
        %2589 = vmatpush2.msra.mxu0 %v2549
        %2590 = vmatprep.subr.mxu0 0.0
        %2591 = vmatpush2.msra.mxu0 %v2548
        %2592 = vmatprep.subr.mxu0 0.0
        %2593 = vmatpush2.msra.mxu0 %v2547
        %2594 = vmatprep.subr.mxu0 0.0
        %2595 = vmatpush2.msra.mxu0 %v2546
        %2596 = vmatprep.subr.mxu0 0.0
        %2597 = vmatpush2.msra.mxu0 %v2545
        %2598 = vmatprep.subr.mxu0 0.0
        %2599 = vmatpush2.msra.mxu0 %v2544
        %2600 = vmatprep.subr.mxu0 0.0
        %2601 = vmatpush2.msra.mxu0 %v2543
        %2602 = vmatprep.subr.mxu0 0.0
        %2603 = vmatpush2.msra.mxu0 %v2542
        %2604 = vmatprep.subr.mxu0 0.0
        %2605 = vmatpush2.msra.mxu0 %v2541
        %2606 = vmatprep.subr.mxu0 0.0
        %2607 = vmatpush2.msra.mxu0 %v2540
        %2608 = vmatprep.subr.mxu0 0.0
        %2609 = vmatpush2.msra.mxu0 %v2539
        %2610 = vmatprep.subr.mxu0 0.0
        %2611 = vmatpush2.msra.mxu0 %v2538
        %2612 = vmatprep.subr.mxu0 0.0
        %2613 = vmatpush2.msra.mxu0 %v2537
        %2614 = vmatprep.subr.mxu0 0.0
        %2615 = vmatpush2.msra.mxu0 %v2536
        %2616 = vmatprep.mubr.f32.mxu0 %v367
        %2617 = vmatmul.mubr.f32.gmra.mxu0 %v333
        %v2618 = vpop.f32.mrf.mxu0
        %v2619 = vadd.f32 0.0, %v2618
        %v2620 = vpop.f32.mrf.mxu0
        %2621 = vdwg.mxu0
        %s2622 = scalar_lea.vmem %s2, 96
        %v2623 = vld [vmem:[%s2622] sm:$0xff]
        %v2625 = vsel %vm545, %v2623, 0
        %v2628 = vsel %vm549, %v2619, 0
        %2630 = vmatprep.subr.mxu0 0.0
        %2631 = vmatpush1.msra.mxu0 0.0
        %2632 = vmatprep.subr.mxu0 0.0
        %2633 = vmatpush1.msra.mxu0 0.0
        %2634 = vmatprep.subr.mxu0 0.0
        %2635 = vmatpush1.msra.mxu0 0.0
        %2636 = vmatprep.subr.mxu0 0.0
        %2637 = vmatpush1.msra.mxu0 0.0
        %2638 = vmatprep.subr.mxu0 0.0
        %2639 = vmatpush1.msra.mxu0 0.0
        %2640 = vmatprep.subr.mxu0 0.0
        %2641 = vmatpush1.msra.mxu0 0.0
        %2642 = vmatprep.subr.mxu0 0.0
        %2643 = vmatpush1.msra.mxu0 0.0
        %2644 = vmatprep.subr.mxu0 0.0
        %2645 = vmatpush1.msra.mxu0 0.0
        %2646 = vmatprep.subr.mxu0 0.0
        %2647 = vmatpush1.msra.mxu0 0.0
        %2648 = vmatprep.subr.mxu0 0.0
        %2649 = vmatpush1.msra.mxu0 0.0
        %2650 = vmatprep.subr.mxu0 0.0
        %2651 = vmatpush1.msra.mxu0 0.0
        %2652 = vmatprep.subr.mxu0 0.0
        %2653 = vmatpush1.msra.mxu0 0.0
        %2654 = vmatprep.subr.mxu0 0.0
        %2655 = vmatpush1.msra.mxu0 0.0
        %2656 = vmatprep.subr.mxu0 0.0
        %2657 = vmatpush1.msra.mxu0 0.0
        %2658 = vmatprep.subr.mxu0 0.0
        %2659 = vmatpush1.msra.mxu0 0.0
        %2660 = vmatprep.subr.mxu0 0.0
        %2661 = vmatpush1.msra.mxu0 %v2628
        %2662 = vmatprep.subr.mxu0 0.0
        %2663 = vmatpush2.msra.mxu0 0.0
        %2664 = vmatprep.subr.mxu0 0.0
        %2665 = vmatpush2.msra.mxu0 0.0
        %2666 = vmatprep.subr.mxu0 0.0
        %2667 = vmatpush2.msra.mxu0 0.0
        %2668 = vmatprep.subr.mxu0 0.0
        %2669 = vmatpush2.msra.mxu0 0.0
        %2670 = vmatprep.subr.mxu0 0.0
        %2671 = vmatpush2.msra.mxu0 0.0
        %2672 = vmatprep.subr.mxu0 0.0
        %2673 = vmatpush2.msra.mxu0 0.0
        %2674 = vmatprep.subr.mxu0 0.0
        %2675 = vmatpush2.msra.mxu0 0.0
        %2676 = vmatprep.subr.mxu0 0.0
        %2677 = vmatpush2.msra.mxu0 0.0
        %2678 = vmatprep.subr.mxu0 0.0
        %2679 = vmatpush2.msra.mxu0 0.0
        %2680 = vmatprep.subr.mxu0 0.0
        %2681 = vmatpush2.msra.mxu0 0.0
        %2682 = vmatprep.subr.mxu0 0.0
        %2683 = vmatpush2.msra.mxu0 0.0
        %2684 = vmatprep.subr.mxu0 0.0
        %2685 = vmatpush2.msra.mxu0 0.0
        %2686 = vmatprep.subr.mxu0 0.0
        %2687 = vmatpush2.msra.mxu0 0.0
        %2688 = vmatprep.subr.mxu0 0.0
        %2689 = vmatpush2.msra.mxu0 0.0
        %2690 = vmatprep.subr.mxu0 0.0
        %2691 = vmatpush2.msra.mxu0 0.0
        %2692 = vmatprep.subr.mxu0 0.0
        %2693 = vmatpush2.msra.mxu0 0.0
        %2694 = vmatprep.mubr.f32.mxu0 0.0
        %2695 = vmatmul.mubr.f32.gmra.mxu0 %v2625
        %v2696 = vpop.f32.mrf.mxu0
        %v2697 = vadd.f32 0.0, %v2696
        %v2698 = vpop.f32.mrf.mxu0
        %2699 = vdwg.mxu0
        %v2700 = vadd.f32 %v2518, %v2697
        %s2701 = scalar_lea.vmem %s1, 3328
        %v2702 = vld [vmem:[%s2701] sm:$0xff]
        %v2703 = vld [vmem:[%s2701 + $0x8] sm:$0xff]
        %v2704 = vld [vmem:[%s2701 + $0x10] sm:$0xff]
        %v2705 = vld [vmem:[%s2701 + $0x18] sm:$0xff]
        %v2706 = vld [vmem:[%s2701 + $0x20] sm:$0xff]
        %v2707 = vld [vmem:[%s2701 + $0x28] sm:$0xff]
        %v2708 = vld [vmem:[%s2701 + $0x30] sm:$0xff]
        %v2709 = vld [vmem:[%s2701 + $0x38] sm:$0xff]
        %v2710 = vld [vmem:[%s2701 + $0x40] sm:$0xff]
        %v2711 = vld [vmem:[%s2701 + $0x48] sm:$0xff]
        %v2712 = vld [vmem:[%s2701 + $0x50] sm:$0xff]
        %v2713 = vld [vmem:[%s2701 + $0x58] sm:$0xff]
        %v2714 = vld [vmem:[%s2701 + $0x60] sm:$0xff]
        %v2715 = vld [vmem:[%s2701 + $0x68] sm:$0xff]
        %v2716 = vld [vmem:[%s2701 + $0x70] sm:$0xff]
        %v2717 = vld [vmem:[%s2701 + $0x78] sm:$0xff]
        %v2718 = vld [vmem:[%s2701 + $0x80] sm:$0xff]
        %v2719 = vld [vmem:[%s2701 + $0x88] sm:$0xff]
        %v2720 = vld [vmem:[%s2701 + $0x90] sm:$0xff]
        %v2721 = vld [vmem:[%s2701 + $0x98] sm:$0xff]
        %v2722 = vld [vmem:[%s2701 + $0xa0] sm:$0xff]
        %v2723 = vld [vmem:[%s2701 + $0xa8] sm:$0xff]
        %v2724 = vld [vmem:[%s2701 + $0xb0] sm:$0xff]
        %v2725 = vld [vmem:[%s2701 + $0xb8] sm:$0xff]
        %v2726 = vld [vmem:[%s2701 + $0xc0] sm:$0xff]
        %v2727 = vld [vmem:[%s2701 + $0xc8] sm:$0xff]
        %v2728 = vld [vmem:[%s2701 + $0xd0] sm:$0xff]
        %v2729 = vld [vmem:[%s2701 + $0xd8] sm:$0xff]
        %v2730 = vld [vmem:[%s2701 + $0xe0] sm:$0xff]
        %v2731 = vld [vmem:[%s2701 + $0xe8] sm:$0xff]
        %v2732 = vld [vmem:[%s2701 + $0xf0] sm:$0xff]
        %v2733 = vld [vmem:[%s2701 + $0xf8] sm:$0xff]
        %2734 = vmatprep.subr.mxu0 0.0
        %2735 = vmatpush1.msra.mxu0 %v2717
        %2736 = vmatprep.subr.mxu0 0.0
        %2737 = vmatpush1.msra.mxu0 %v2716
        %2738 = vmatprep.subr.mxu0 0.0
        %2739 = vmatpush1.msra.mxu0 %v2715
        %2740 = vmatprep.subr.mxu0 0.0
        %2741 = vmatpush1.msra.mxu0 %v2714
        %2742 = vmatprep.subr.mxu0 0.0
        %2743 = vmatpush1.msra.mxu0 %v2713
        %2744 = vmatprep.subr.mxu0 0.0
        %2745 = vmatpush1.msra.mxu0 %v2712
        %2746 = vmatprep.subr.mxu0 0.0
        %2747 = vmatpush1.msra.mxu0 %v2711
        %2748 = vmatprep.subr.mxu0 0.0
        %2749 = vmatpush1.msra.mxu0 %v2710
        %2750 = vmatprep.subr.mxu0 0.0
        %2751 = vmatpush1.msra.mxu0 %v2709
        %2752 = vmatprep.subr.mxu0 0.0
        %2753 = vmatpush1.msra.mxu0 %v2708
        %2754 = vmatprep.subr.mxu0 0.0
        %2755 = vmatpush1.msra.mxu0 %v2707
        %2756 = vmatprep.subr.mxu0 0.0
        %2757 = vmatpush1.msra.mxu0 %v2706
        %2758 = vmatprep.subr.mxu0 0.0
        %2759 = vmatpush1.msra.mxu0 %v2705
        %2760 = vmatprep.subr.mxu0 0.0
        %2761 = vmatpush1.msra.mxu0 %v2704
        %2762 = vmatprep.subr.mxu0 0.0
        %2763 = vmatpush1.msra.mxu0 %v2703
        %2764 = vmatprep.subr.mxu0 0.0
        %2765 = vmatpush1.msra.mxu0 %v2702
        %2766 = vmatprep.subr.mxu0 0.0
        %2767 = vmatpush2.msra.mxu0 %v2733
        %2768 = vmatprep.subr.mxu0 0.0
        %2769 = vmatpush2.msra.mxu0 %v2732
        %2770 = vmatprep.subr.mxu0 0.0
        %2771 = vmatpush2.msra.mxu0 %v2731
        %2772 = vmatprep.subr.mxu0 0.0
        %2773 = vmatpush2.msra.mxu0 %v2730
        %2774 = vmatprep.subr.mxu0 0.0
        %2775 = vmatpush2.msra.mxu0 %v2729
        %2776 = vmatprep.subr.mxu0 0.0
        %2777 = vmatpush2.msra.mxu0 %v2728
        %2778 = vmatprep.subr.mxu0 0.0
        %2779 = vmatpush2.msra.mxu0 %v2727
        %2780 = vmatprep.subr.mxu0 0.0
        %2781 = vmatpush2.msra.mxu0 %v2726
        %2782 = vmatprep.subr.mxu0 0.0
        %2783 = vmatpush2.msra.mxu0 %v2725
        %2784 = vmatprep.subr.mxu0 0.0
        %2785 = vmatpush2.msra.mxu0 %v2724
        %2786 = vmatprep.subr.mxu0 0.0
        %2787 = vmatpush2.msra.mxu0 %v2723
        %2788 = vmatprep.subr.mxu0 0.0
        %2789 = vmatpush2.msra.mxu0 %v2722
        %2790 = vmatprep.subr.mxu0 0.0
        %2791 = vmatpush2.msra.mxu0 %v2721
        %2792 = vmatprep.subr.mxu0 0.0
        %2793 = vmatpush2.msra.mxu0 %v2720
        %2794 = vmatprep.subr.mxu0 0.0
        %2795 = vmatpush2.msra.mxu0 %v2719
        %2796 = vmatprep.subr.mxu0 0.0
        %2797 = vmatpush2.msra.mxu0 %v2718
        %2798 = vmatprep.mubr.f32.mxu0 %v367
        %2799 = vmatmul.mubr.f32.gmra.mxu0 %v333
        %v2800 = vpop.f32.mrf.mxu0
        %v2801 = vadd.f32 0.0, %v2800
        %v2802 = vpop.f32.mrf.mxu0
        %2803 = vdwg.mxu0
        %s2804 = scalar_lea.vmem %s2, 104
        %v2805 = vld [vmem:[%s2804] sm:$0xff]
        %v2807 = vsel %vm545, %v2805, 0
        %v2810 = vsel %vm549, %v2801, 0
        %2812 = vmatprep.subr.mxu0 0.0
        %2813 = vmatpush1.msra.mxu0 0.0
        %2814 = vmatprep.subr.mxu0 0.0
        %2815 = vmatpush1.msra.mxu0 0.0
        %2816 = vmatprep.subr.mxu0 0.0
        %2817 = vmatpush1.msra.mxu0 0.0
        %2818 = vmatprep.subr.mxu0 0.0
        %2819 = vmatpush1.msra.mxu0 0.0
        %2820 = vmatprep.subr.mxu0 0.0
        %2821 = vmatpush1.msra.mxu0 0.0
        %2822 = vmatprep.subr.mxu0 0.0
        %2823 = vmatpush1.msra.mxu0 0.0
        %2824 = vmatprep.subr.mxu0 0.0
        %2825 = vmatpush1.msra.mxu0 0.0
        %2826 = vmatprep.subr.mxu0 0.0
        %2827 = vmatpush1.msra.mxu0 0.0
        %2828 = vmatprep.subr.mxu0 0.0
        %2829 = vmatpush1.msra.mxu0 0.0
        %2830 = vmatprep.subr.mxu0 0.0
        %2831 = vmatpush1.msra.mxu0 0.0
        %2832 = vmatprep.subr.mxu0 0.0
        %2833 = vmatpush1.msra.mxu0 0.0
        %2834 = vmatprep.subr.mxu0 0.0
        %2835 = vmatpush1.msra.mxu0 0.0
        %2836 = vmatprep.subr.mxu0 0.0
        %2837 = vmatpush1.msra.mxu0 0.0
        %2838 = vmatprep.subr.mxu0 0.0
        %2839 = vmatpush1.msra.mxu0 0.0
        %2840 = vmatprep.subr.mxu0 0.0
        %2841 = vmatpush1.msra.mxu0 0.0
        %2842 = vmatprep.subr.mxu0 0.0
        %2843 = vmatpush1.msra.mxu0 %v2810
        %2844 = vmatprep.subr.mxu0 0.0
        %2845 = vmatpush2.msra.mxu0 0.0
        %2846 = vmatprep.subr.mxu0 0.0
        %2847 = vmatpush2.msra.mxu0 0.0
        %2848 = vmatprep.subr.mxu0 0.0
        %2849 = vmatpush2.msra.mxu0 0.0
        %2850 = vmatprep.subr.mxu0 0.0
        %2851 = vmatpush2.msra.mxu0 0.0
        %2852 = vmatprep.subr.mxu0 0.0
        %2853 = vmatpush2.msra.mxu0 0.0
        %2854 = vmatprep.subr.mxu0 0.0
        %2855 = vmatpush2.msra.mxu0 0.0
        %2856 = vmatprep.subr.mxu0 0.0
        %2857 = vmatpush2.msra.mxu0 0.0
        %2858 = vmatprep.subr.mxu0 0.0
        %2859 = vmatpush2.msra.mxu0 0.0
        %2860 = vmatprep.subr.mxu0 0.0
        %2861 = vmatpush2.msra.mxu0 0.0
        %2862 = vmatprep.subr.mxu0 0.0
        %2863 = vmatpush2.msra.mxu0 0.0
        %2864 = vmatprep.subr.mxu0 0.0
        %2865 = vmatpush2.msra.mxu0 0.0
        %2866 = vmatprep.subr.mxu0 0.0
        %2867 = vmatpush2.msra.mxu0 0.0
        %2868 = vmatprep.subr.mxu0 0.0
        %2869 = vmatpush2.msra.mxu0 0.0
        %2870 = vmatprep.subr.mxu0 0.0
        %2871 = vmatpush2.msra.mxu0 0.0
        %2872 = vmatprep.subr.mxu0 0.0
        %2873 = vmatpush2.msra.mxu0 0.0
        %2874 = vmatprep.subr.mxu0 0.0
        %2875 = vmatpush2.msra.mxu0 0.0
        %2876 = vmatprep.mubr.f32.mxu0 0.0
        %2877 = vmatmul.mubr.f32.gmra.mxu0 %v2807
        %v2878 = vpop.f32.mrf.mxu0
        %v2879 = vadd.f32 0.0, %v2878
        %v2880 = vpop.f32.mrf.mxu0
        %2881 = vdwg.mxu0
        %v2882 = vadd.f32 %v2700, %v2879
        %s2883 = scalar_lea.vmem %s1, 3584
        %v2884 = vld [vmem:[%s2883] sm:$0xff]
        %v2885 = vld [vmem:[%s2883 + $0x8] sm:$0xff]
        %v2886 = vld [vmem:[%s2883 + $0x10] sm:$0xff]
        %v2887 = vld [vmem:[%s2883 + $0x18] sm:$0xff]
        %v2888 = vld [vmem:[%s2883 + $0x20] sm:$0xff]
        %v2889 = vld [vmem:[%s2883 + $0x28] sm:$0xff]
        %v2890 = vld [vmem:[%s2883 + $0x30] sm:$0xff]
        %v2891 = vld [vmem:[%s2883 + $0x38] sm:$0xff]
        %v2892 = vld [vmem:[%s2883 + $0x40] sm:$0xff]
        %v2893 = vld [vmem:[%s2883 + $0x48] sm:$0xff]
        %v2894 = vld [vmem:[%s2883 + $0x50] sm:$0xff]
        %v2895 = vld [vmem:[%s2883 + $0x58] sm:$0xff]
        %v2896 = vld [vmem:[%s2883 + $0x60] sm:$0xff]
        %v2897 = vld [vmem:[%s2883 + $0x68] sm:$0xff]
        %v2898 = vld [vmem:[%s2883 + $0x70] sm:$0xff]
        %v2899 = vld [vmem:[%s2883 + $0x78] sm:$0xff]
        %v2900 = vld [vmem:[%s2883 + $0x80] sm:$0xff]
        %v2901 = vld [vmem:[%s2883 + $0x88] sm:$0xff]
        %v2902 = vld [vmem:[%s2883 + $0x90] sm:$0xff]
        %v2903 = vld [vmem:[%s2883 + $0x98] sm:$0xff]
        %v2904 = vld [vmem:[%s2883 + $0xa0] sm:$0xff]
        %v2905 = vld [vmem:[%s2883 + $0xa8] sm:$0xff]
        %v2906 = vld [vmem:[%s2883 + $0xb0] sm:$0xff]
        %v2907 = vld [vmem:[%s2883 + $0xb8] sm:$0xff]
        %v2908 = vld [vmem:[%s2883 + $0xc0] sm:$0xff]
        %v2909 = vld [vmem:[%s2883 + $0xc8] sm:$0xff]
        %v2910 = vld [vmem:[%s2883 + $0xd0] sm:$0xff]
        %v2911 = vld [vmem:[%s2883 + $0xd8] sm:$0xff]
        %v2912 = vld [vmem:[%s2883 + $0xe0] sm:$0xff]
        %v2913 = vld [vmem:[%s2883 + $0xe8] sm:$0xff]
        %v2914 = vld [vmem:[%s2883 + $0xf0] sm:$0xff]
        %v2915 = vld [vmem:[%s2883 + $0xf8] sm:$0xff]
        %2916 = vmatprep.subr.mxu0 0.0
        %2917 = vmatpush1.msra.mxu0 %v2899
        %2918 = vmatprep.subr.mxu0 0.0
        %2919 = vmatpush1.msra.mxu0 %v2898
        %2920 = vmatprep.subr.mxu0 0.0
        %2921 = vmatpush1.msra.mxu0 %v2897
        %2922 = vmatprep.subr.mxu0 0.0
        %2923 = vmatpush1.msra.mxu0 %v2896
        %2924 = vmatprep.subr.mxu0 0.0
        %2925 = vmatpush1.msra.mxu0 %v2895
        %2926 = vmatprep.subr.mxu0 0.0
        %2927 = vmatpush1.msra.mxu0 %v2894
        %2928 = vmatprep.subr.mxu0 0.0
        %2929 = vmatpush1.msra.mxu0 %v2893
        %2930 = vmatprep.subr.mxu0 0.0
        %2931 = vmatpush1.msra.mxu0 %v2892
        %2932 = vmatprep.subr.mxu0 0.0
        %2933 = vmatpush1.msra.mxu0 %v2891
        %2934 = vmatprep.subr.mxu0 0.0
        %2935 = vmatpush1.msra.mxu0 %v2890
        %2936 = vmatprep.subr.mxu0 0.0
        %2937 = vmatpush1.msra.mxu0 %v2889
        %2938 = vmatprep.subr.mxu0 0.0
        %2939 = vmatpush1.msra.mxu0 %v2888
        %2940 = vmatprep.subr.mxu0 0.0
        %2941 = vmatpush1.msra.mxu0 %v2887
        %2942 = vmatprep.subr.mxu0 0.0
        %2943 = vmatpush1.msra.mxu0 %v2886
        %2944 = vmatprep.subr.mxu0 0.0
        %2945 = vmatpush1.msra.mxu0 %v2885
        %2946 = vmatprep.subr.mxu0 0.0
        %2947 = vmatpush1.msra.mxu0 %v2884
        %2948 = vmatprep.subr.mxu0 0.0
        %2949 = vmatpush2.msra.mxu0 %v2915
        %2950 = vmatprep.subr.mxu0 0.0
        %2951 = vmatpush2.msra.mxu0 %v2914
        %2952 = vmatprep.subr.mxu0 0.0
        %2953 = vmatpush2.msra.mxu0 %v2913
        %2954 = vmatprep.subr.mxu0 0.0
        %2955 = vmatpush2.msra.mxu0 %v2912
        %2956 = vmatprep.subr.mxu0 0.0
        %2957 = vmatpush2.msra.mxu0 %v2911
        %2958 = vmatprep.subr.mxu0 0.0
        %2959 = vmatpush2.msra.mxu0 %v2910
        %2960 = vmatprep.subr.mxu0 0.0
        %2961 = vmatpush2.msra.mxu0 %v2909
        %2962 = vmatprep.subr.mxu0 0.0
        %2963 = vmatpush2.msra.mxu0 %v2908
        %2964 = vmatprep.subr.mxu0 0.0
        %2965 = vmatpush2.msra.mxu0 %v2907
        %2966 = vmatprep.subr.mxu0 0.0
        %2967 = vmatpush2.msra.mxu0 %v2906
        %2968 = vmatprep.subr.mxu0 0.0
        %2969 = vmatpush2.msra.mxu0 %v2905
        %2970 = vmatprep.subr.mxu0 0.0
        %2971 = vmatpush2.msra.mxu0 %v2904
        %2972 = vmatprep.subr.mxu0 0.0
        %2973 = vmatpush2.msra.mxu0 %v2903
        %2974 = vmatprep.subr.mxu0 0.0
        %2975 = vmatpush2.msra.mxu0 %v2902
        %2976 = vmatprep.subr.mxu0 0.0
        %2977 = vmatpush2.msra.mxu0 %v2901
        %2978 = vmatprep.subr.mxu0 0.0
        %2979 = vmatpush2.msra.mxu0 %v2900
        %2980 = vmatprep.mubr.f32.mxu0 %v367
        %2981 = vmatmul.mubr.f32.gmra.mxu0 %v333
        %v2982 = vpop.f32.mrf.mxu0
        %v2983 = vadd.f32 0.0, %v2982
        %v2984 = vpop.f32.mrf.mxu0
        %2985 = vdwg.mxu0
        %s2986 = scalar_lea.vmem %s2, 112
        %v2987 = vld [vmem:[%s2986] sm:$0xff]
        %v2989 = vsel %vm545, %v2987, 0
        %v2992 = vsel %vm549, %v2983, 0
        %2994 = vmatprep.subr.mxu0 0.0
        %2995 = vmatpush1.msra.mxu0 0.0
        %2996 = vmatprep.subr.mxu0 0.0
        %2997 = vmatpush1.msra.mxu0 0.0
        %2998 = vmatprep.subr.mxu0 0.0
        %2999 = vmatpush1.msra.mxu0 0.0
        %3000 = vmatprep.subr.mxu0 0.0
        %3001 = vmatpush1.msra.mxu0 0.0
        %3002 = vmatprep.subr.mxu0 0.0
        %3003 = vmatpush1.msra.mxu0 0.0
        %3004 = vmatprep.subr.mxu0 0.0
        %3005 = vmatpush1.msra.mxu0 0.0
        %3006 = vmatprep.subr.mxu0 0.0
        %3007 = vmatpush1.msra.mxu0 0.0
        %3008 = vmatprep.subr.mxu0 0.0
        %3009 = vmatpush1.msra.mxu0 0.0
        %3010 = vmatprep.subr.mxu0 0.0
        %3011 = vmatpush1.msra.mxu0 0.0
        %3012 = vmatprep.subr.mxu0 0.0
        %3013 = vmatpush1.msra.mxu0 0.0
        %3014 = vmatprep.subr.mxu0 0.0
        %3015 = vmatpush1.msra.mxu0 0.0
        %3016 = vmatprep.subr.mxu0 0.0
        %3017 = vmatpush1.msra.mxu0 0.0
        %3018 = vmatprep.subr.mxu0 0.0
        %3019 = vmatpush1.msra.mxu0 0.0
        %3020 = vmatprep.subr.mxu0 0.0
        %3021 = vmatpush1.msra.mxu0 0.0
        %3022 = vmatprep.subr.mxu0 0.0
        %3023 = vmatpush1.msra.mxu0 0.0
        %3024 = vmatprep.subr.mxu0 0.0
        %3025 = vmatpush1.msra.mxu0 %v2992
        %3026 = vmatprep.subr.mxu0 0.0
        %3027 = vmatpush2.msra.mxu0 0.0
        %3028 = vmatprep.subr.mxu0 0.0
        %3029 = vmatpush2.msra.mxu0 0.0
        %3030 = vmatprep.subr.mxu0 0.0
        %3031 = vmatpush2.msra.mxu0 0.0
        %3032 = vmatprep.subr.mxu0 0.0
        %3033 = vmatpush2.msra.mxu0 0.0
        %3034 = vmatprep.subr.mxu0 0.0
        %3035 = vmatpush2.msra.mxu0 0.0
        %3036 = vmatprep.subr.mxu0 0.0
        %3037 = vmatpush2.msra.mxu0 0.0
        %3038 = vmatprep.subr.mxu0 0.0
        %3039 = vmatpush2.msra.mxu0 0.0
        %3040 = vmatprep.subr.mxu0 0.0
        %3041 = vmatpush2.msra.mxu0 0.0
        %3042 = vmatprep.subr.mxu0 0.0
        %3043 = vmatpush2.msra.mxu0 0.0
        %3044 = vmatprep.subr.mxu0 0.0
        %3045 = vmatpush2.msra.mxu0 0.0
        %3046 = vmatprep.subr.mxu0 0.0
        %3047 = vmatpush2.msra.mxu0 0.0
        %3048 = vmatprep.subr.mxu0 0.0
        %3049 = vmatpush2.msra.mxu0 0.0
        %3050 = vmatprep.subr.mxu0 0.0
        %3051 = vmatpush2.msra.mxu0 0.0
        %3052 = vmatprep.subr.mxu0 0.0
        %3053 = vmatpush2.msra.mxu0 0.0
        %3054 = vmatprep.subr.mxu0 0.0
        %3055 = vmatpush2.msra.mxu0 0.0
        %3056 = vmatprep.subr.mxu0 0.0
        %3057 = vmatpush2.msra.mxu0 0.0
        %3058 = vmatprep.mubr.f32.mxu0 0.0
        %3059 = vmatmul.mubr.f32.gmra.mxu0 %v2989
        %v3060 = vpop.f32.mrf.mxu0
        %v3061 = vadd.f32 0.0, %v3060
        %v3062 = vpop.f32.mrf.mxu0
        %3063 = vdwg.mxu0
        %v3064 = vadd.f32 %v2882, %v3061
        %s3065 = scalar_lea.vmem %s1, 3840
        %v3066 = vld [vmem:[%s3065] sm:$0xff]
        %v3067 = vld [vmem:[%s3065 + $0x8] sm:$0xff]
        %v3068 = vld [vmem:[%s3065 + $0x10] sm:$0xff]
        %v3069 = vld [vmem:[%s3065 + $0x18] sm:$0xff]
        %v3070 = vld [vmem:[%s3065 + $0x20] sm:$0xff]
        %v3071 = vld [vmem:[%s3065 + $0x28] sm:$0xff]
        %v3072 = vld [vmem:[%s3065 + $0x30] sm:$0xff]
        %v3073 = vld [vmem:[%s3065 + $0x38] sm:$0xff]
        %v3074 = vld [vmem:[%s3065 + $0x40] sm:$0xff]
        %v3075 = vld [vmem:[%s3065 + $0x48] sm:$0xff]
        %v3076 = vld [vmem:[%s3065 + $0x50] sm:$0xff]
        %v3077 = vld [vmem:[%s3065 + $0x58] sm:$0xff]
        %v3078 = vld [vmem:[%s3065 + $0x60] sm:$0xff]
        %v3079 = vld [vmem:[%s3065 + $0x68] sm:$0xff]
        %v3080 = vld [vmem:[%s3065 + $0x70] sm:$0xff]
        %v3081 = vld [vmem:[%s3065 + $0x78] sm:$0xff]
        %v3082 = vld [vmem:[%s3065 + $0x80] sm:$0xff]
        %v3083 = vld [vmem:[%s3065 + $0x88] sm:$0xff]
        %v3084 = vld [vmem:[%s3065 + $0x90] sm:$0xff]
        %v3085 = vld [vmem:[%s3065 + $0x98] sm:$0xff]
        %v3086 = vld [vmem:[%s3065 + $0xa0] sm:$0xff]
        %v3087 = vld [vmem:[%s3065 + $0xa8] sm:$0xff]
        %v3088 = vld [vmem:[%s3065 + $0xb0] sm:$0xff]
        %v3089 = vld [vmem:[%s3065 + $0xb8] sm:$0xff]
        %v3090 = vld [vmem:[%s3065 + $0xc0] sm:$0xff]
        %v3091 = vld [vmem:[%s3065 + $0xc8] sm:$0xff]
        %v3092 = vld [vmem:[%s3065 + $0xd0] sm:$0xff]
        %v3093 = vld [vmem:[%s3065 + $0xd8] sm:$0xff]
        %v3094 = vld [vmem:[%s3065 + $0xe0] sm:$0xff]
        %v3095 = vld [vmem:[%s3065 + $0xe8] sm:$0xff]
        %v3096 = vld [vmem:[%s3065 + $0xf0] sm:$0xff]
        %v3097 = vld [vmem:[%s3065 + $0xf8] sm:$0xff]
        %3098 = vmatprep.subr.mxu0 0.0
        %3099 = vmatpush1.msra.mxu0 %v3081
        %3100 = vmatprep.subr.mxu0 0.0
        %3101 = vmatpush1.msra.mxu0 %v3080
        %3102 = vmatprep.subr.mxu0 0.0
        %3103 = vmatpush1.msra.mxu0 %v3079
        %3104 = vmatprep.subr.mxu0 0.0
        %3105 = vmatpush1.msra.mxu0 %v3078
        %3106 = vmatprep.subr.mxu0 0.0
        %3107 = vmatpush1.msra.mxu0 %v3077
        %3108 = vmatprep.subr.mxu0 0.0
        %3109 = vmatpush1.msra.mxu0 %v3076
        %3110 = vmatprep.subr.mxu0 0.0
        %3111 = vmatpush1.msra.mxu0 %v3075
        %3112 = vmatprep.subr.mxu0 0.0
        %3113 = vmatpush1.msra.mxu0 %v3074
        %3114 = vmatprep.subr.mxu0 0.0
        %3115 = vmatpush1.msra.mxu0 %v3073
        %3116 = vmatprep.subr.mxu0 0.0
        %3117 = vmatpush1.msra.mxu0 %v3072
        %3118 = vmatprep.subr.mxu0 0.0
        %3119 = vmatpush1.msra.mxu0 %v3071
        %3120 = vmatprep.subr.mxu0 0.0
        %3121 = vmatpush1.msra.mxu0 %v3070
        %3122 = vmatprep.subr.mxu0 0.0
        %3123 = vmatpush1.msra.mxu0 %v3069
        %3124 = vmatprep.subr.mxu0 0.0
        %3125 = vmatpush1.msra.mxu0 %v3068
        %3126 = vmatprep.subr.mxu0 0.0
        %3127 = vmatpush1.msra.mxu0 %v3067
        %3128 = vmatprep.subr.mxu0 0.0
        %3129 = vmatpush1.msra.mxu0 %v3066
        %3130 = vmatprep.subr.mxu0 0.0
        %3131 = vmatpush2.msra.mxu0 %v3097
        %3132 = vmatprep.subr.mxu0 0.0
        %3133 = vmatpush2.msra.mxu0 %v3096
        %3134 = vmatprep.subr.mxu0 0.0
        %3135 = vmatpush2.msra.mxu0 %v3095
        %3136 = vmatprep.subr.mxu0 0.0
        %3137 = vmatpush2.msra.mxu0 %v3094
        %3138 = vmatprep.subr.mxu0 0.0
        %3139 = vmatpush2.msra.mxu0 %v3093
        %3140 = vmatprep.subr.mxu0 0.0
        %3141 = vmatpush2.msra.mxu0 %v3092
        %3142 = vmatprep.subr.mxu0 0.0
        %3143 = vmatpush2.msra.mxu0 %v3091
        %3144 = vmatprep.subr.mxu0 0.0
        %3145 = vmatpush2.msra.mxu0 %v3090
        %3146 = vmatprep.subr.mxu0 0.0
        %3147 = vmatpush2.msra.mxu0 %v3089
        %3148 = vmatprep.subr.mxu0 0.0
        %3149 = vmatpush2.msra.mxu0 %v3088
        %3150 = vmatprep.subr.mxu0 0.0
        %3151 = vmatpush2.msra.mxu0 %v3087
        %3152 = vmatprep.subr.mxu0 0.0
        %3153 = vmatpush2.msra.mxu0 %v3086
        %3154 = vmatprep.subr.mxu0 0.0
        %3155 = vmatpush2.msra.mxu0 %v3085
        %3156 = vmatprep.subr.mxu0 0.0
        %3157 = vmatpush2.msra.mxu0 %v3084
        %3158 = vmatprep.subr.mxu0 0.0
        %3159 = vmatpush2.msra.mxu0 %v3083
        %3160 = vmatprep.subr.mxu0 0.0
        %3161 = vmatpush2.msra.mxu0 %v3082
        %3162 = vmatprep.mubr.f32.mxu0 %v367
        %3163 = vmatmul.mubr.f32.gmra.mxu0 %v333
        %v3164 = vpop.f32.mrf.mxu0
        %v3165 = vadd.f32 0.0, %v3164
        %v3166 = vpop.f32.mrf.mxu0
        %3167 = vdwg.mxu0
        %s3168 = scalar_lea.vmem %s2, 120
        %v3169 = vld [vmem:[%s3168] sm:$0xff]
        %v3171 = vsel %vm545, %v3169, 0
        %v3174 = vsel %vm549, %v3165, 0
        %3176 = vmatprep.subr.mxu0 0.0
        %3177 = vmatpush1.msra.mxu0 0.0
        %3178 = vmatprep.subr.mxu0 0.0
        %3179 = vmatpush1.msra.mxu0 0.0
        %3180 = vmatprep.subr.mxu0 0.0
        %3181 = vmatpush1.msra.mxu0 0.0
        %3182 = vmatprep.subr.mxu0 0.0
        %3183 = vmatpush1.msra.mxu0 0.0
        %3184 = vmatprep.subr.mxu0 0.0
        %3185 = vmatpush1.msra.mxu0 0.0
        %3186 = vmatprep.subr.mxu0 0.0
        %3187 = vmatpush1.msra.mxu0 0.0
        %3188 = vmatprep.subr.mxu0 0.0
        %3189 = vmatpush1.msra.mxu0 0.0
        %3190 = vmatprep.subr.mxu0 0.0
        %3191 = vmatpush1.msra.mxu0 0.0
        %3192 = vmatprep.subr.mxu0 0.0
        %3193 = vmatpush1.msra.mxu0 0.0
        %3194 = vmatprep.subr.mxu0 0.0
        %3195 = vmatpush1.msra.mxu0 0.0
        %3196 = vmatprep.subr.mxu0 0.0
        %3197 = vmatpush1.msra.mxu0 0.0
        %3198 = vmatprep.subr.mxu0 0.0
        %3199 = vmatpush1.msra.mxu0 0.0
        %3200 = vmatprep.subr.mxu0 0.0
        %3201 = vmatpush1.msra.mxu0 0.0
        %3202 = vmatprep.subr.mxu0 0.0
        %3203 = vmatpush1.msra.mxu0 0.0
        %3204 = vmatprep.subr.mxu0 0.0
        %3205 = vmatpush1.msra.mxu0 0.0
        %3206 = vmatprep.subr.mxu0 0.0
        %3207 = vmatpush1.msra.mxu0 %v3174
        %3208 = vmatprep.subr.mxu0 0.0
        %3209 = vmatpush2.msra.mxu0 0.0
        %3210 = vmatprep.subr.mxu0 0.0
        %3211 = vmatpush2.msra.mxu0 0.0
        %3212 = vmatprep.subr.mxu0 0.0
        %3213 = vmatpush2.msra.mxu0 0.0
        %3214 = vmatprep.subr.mxu0 0.0
        %3215 = vmatpush2.msra.mxu0 0.0
        %3216 = vmatprep.subr.mxu0 0.0
        %3217 = vmatpush2.msra.mxu0 0.0
        %3218 = vmatprep.subr.mxu0 0.0
        %3219 = vmatpush2.msra.mxu0 0.0
        %3220 = vmatprep.subr.mxu0 0.0
        %3221 = vmatpush2.msra.mxu0 0.0
        %3222 = vmatprep.subr.mxu0 0.0
        %3223 = vmatpush2.msra.mxu0 0.0
        %3224 = vmatprep.subr.mxu0 0.0
        %3225 = vmatpush2.msra.mxu0 0.0
        %3226 = vmatprep.subr.mxu0 0.0
        %3227 = vmatpush2.msra.mxu0 0.0
        %3228 = vmatprep.subr.mxu0 0.0
        %3229 = vmatpush2.msra.mxu0 0.0
        %3230 = vmatprep.subr.mxu0 0.0
        %3231 = vmatpush2.msra.mxu0 0.0
        %3232 = vmatprep.subr.mxu0 0.0
        %3233 = vmatpush2.msra.mxu0 0.0
        %3234 = vmatprep.subr.mxu0 0.0
        %3235 = vmatpush2.msra.mxu0 0.0
        %3236 = vmatprep.subr.mxu0 0.0
        %3237 = vmatpush2.msra.mxu0 0.0
        %3238 = vmatprep.subr.mxu0 0.0
        %3239 = vmatpush2.msra.mxu0 0.0
        %3240 = vmatprep.mubr.f32.mxu0 0.0
        %3241 = vmatmul.mubr.f32.gmra.mxu0 %v3171
        %v3242 = vpop.f32.mrf.mxu0
        %v3243 = vadd.f32 0.0, %v3242
        %v3244 = vpop.f32.mrf.mxu0
        %3245 = vdwg.mxu0
        %v3246 = vadd.f32 %v3064, %v3243
        %v3247 = vld [vmem:[%s3] sm:$0xff]
        %3249 = vset.pattern.permute.xlu0 0
        %3250 = vperm.xlu0 %3249, %v3247
        %v3251 = vpop.permute.xlu0 %3250
        %v3253 = vadd.f32 %v3246, %v3251
        %vm3254 = vcmp.ge.f32.partialorder %v3253, 0.0
        %v3255 = vmul.f32 %v3253, 0.2
        %v3256 = vsel %vm3254, %v3253, %v3255
        %v3257 = vld [vmem:[%s4] sm:$0xff]
        %v3258 = vld [vmem:[%s4 + $0x8] sm:$0xff]
        %v3259 = vld [vmem:[%s4 + $0x10] sm:$0xff]
        %v3260 = vld [vmem:[%s4 + $0x18] sm:$0xff]
        %v3261 = vld [vmem:[%s4 + $0x20] sm:$0xff]
        %v3262 = vld [vmem:[%s4 + $0x28] sm:$0xff]
        %v3263 = vld [vmem:[%s4 + $0x30] sm:$0xff]
        %v3264 = vld [vmem:[%s4 + $0x38] sm:$0xff]
        %vm3265 = vcmask 523264
        %v3267 = vsel %vm3265, %v3256, 0
        %3269 = vmatprep.subr.mxu0 0.0
        %3270 = vmatpush1.msra.mxu0 0.0
        %3271 = vmatprep.subr.mxu0 0.0
        %3272 = vmatpush1.msra.mxu0 0.0
        %3273 = vmatprep.subr.mxu0 0.0
        %3274 = vmatpush1.msra.mxu0 0.0
        %3275 = vmatprep.subr.mxu0 0.0
        %3276 = vmatpush1.msra.mxu0 0.0
        %3277 = vmatprep.subr.mxu0 0.0
        %3278 = vmatpush1.msra.mxu0 0.0
        %3279 = vmatprep.subr.mxu0 0.0
        %3280 = vmatpush1.msra.mxu0 0.0
        %3281 = vmatprep.subr.mxu0 0.0
        %3282 = vmatpush1.msra.mxu0 0.0
        %3283 = vmatprep.subr.mxu0 0.0
        %3284 = vmatpush1.msra.mxu0 0.0
        %3285 = vmatprep.subr.mxu0 0.0
        %3286 = vmatpush1.msra.mxu0 %v3264
        %3287 = vmatprep.subr.mxu0 0.0
        %3288 = vmatpush1.msra.mxu0 %v3263
        %3289 = vmatprep.subr.mxu0 0.0
        %3290 = vmatpush1.msra.mxu0 %v3262
        %3291 = vmatprep.subr.mxu0 0.0
        %3292 = vmatpush1.msra.mxu0 %v3261
        %3293 = vmatprep.subr.mxu0 0.0
        %3294 = vmatpush1.msra.mxu0 %v3260
        %3295 = vmatprep.subr.mxu0 0.0
        %3296 = vmatpush1.msra.mxu0 %v3259
        %3297 = vmatprep.subr.mxu0 0.0
        %3298 = vmatpush1.msra.mxu0 %v3258
        %3299 = vmatprep.subr.mxu0 0.0
        %3300 = vmatpush1.msra.mxu0 %v3257
        %3301 = vmatprep.subr.mxu0 0.0
        %3302 = vmatpush2.msra.mxu0 0.0
        %3303 = vmatprep.subr.mxu0 0.0
        %3304 = vmatpush2.msra.mxu0 0.0
        %3305 = vmatprep.subr.mxu0 0.0
        %3306 = vmatpush2.msra.mxu0 0.0
        %3307 = vmatprep.subr.mxu0 0.0
        %3308 = vmatpush2.msra.mxu0 0.0
        %3309 = vmatprep.subr.mxu0 0.0
        %3310 = vmatpush2.msra.mxu0 0.0
        %3311 = vmatprep.subr.mxu0 0.0
        %3312 = vmatpush2.msra.mxu0 0.0
        %3313 = vmatprep.subr.mxu0 0.0
        %3314 = vmatpush2.msra.mxu0 0.0
        %3315 = vmatprep.subr.mxu0 0.0
        %3316 = vmatpush2.msra.mxu0 0.0
        %3317 = vmatprep.subr.mxu0 0.0
        %3318 = vmatpush2.msra.mxu0 0.0
        %3319 = vmatprep.subr.mxu0 0.0
        %3320 = vmatpush2.msra.mxu0 0.0
        %3321 = vmatprep.subr.mxu0 0.0
        %3322 = vmatpush2.msra.mxu0 0.0
        %3323 = vmatprep.subr.mxu0 0.0
        %3324 = vmatpush2.msra.mxu0 0.0
        %3325 = vmatprep.subr.mxu0 0.0
        %3326 = vmatpush2.msra.mxu0 0.0
        %3327 = vmatprep.subr.mxu0 0.0
        %3328 = vmatpush2.msra.mxu0 0.0
        %3329 = vmatprep.subr.mxu0 0.0
        %3330 = vmatpush2.msra.mxu0 0.0
        %3331 = vmatprep.subr.mxu0 0.0
        %3332 = vmatpush2.msra.mxu0 0.0
        %3333 = vmatprep.mubr.f32.mxu0 0.0
        %3334 = vmatmul.mubr.f32.gmra.mxu0 %v3267
        %v3335 = vpop.f32.mrf.mxu0
        %v3336 = vadd.f32 0.0, %v3335
        %v3337 = vpop.f32.mrf.mxu0
        %3338 = vdwg.mxu0
        %v3339 = vld [vmem:[%s5] sm:$0xff]
        %v3340 = vld [vmem:[%s5 + $0x8] sm:$0xff]
        %s3341 = scalar_lea.vmem %s4, 64
        %v3342 = vld [vmem:[%s3341] sm:$0xff]
        %v3343 = vld [vmem:[%s3341 + $0x8] sm:$0xff]
        %v3344 = vld [vmem:[%s3341 + $0x10] sm:$0xff]
        %v3345 = vld [vmem:[%s3341 + $0x18] sm:$0xff]
        %v3346 = vld [vmem:[%s3341 + $0x20] sm:$0xff]
        %v3347 = vld [vmem:[%s3341 + $0x28] sm:$0xff]
        %v3348 = vld [vmem:[%s3341 + $0x30] sm:$0xff]
        %v3349 = vld [vmem:[%s3341 + $0x38] sm:$0xff]
        %3350 = vmatprep.subr.mxu0 0.0
        %3351 = vmatpush1.msra.mxu0 0.0
        %3352 = vmatprep.subr.mxu0 0.0
        %3353 = vmatpush1.msra.mxu0 0.0
        %3354 = vmatprep.subr.mxu0 0.0
        %3355 = vmatpush1.msra.mxu0 0.0
        %3356 = vmatprep.subr.mxu0 0.0
        %3357 = vmatpush1.msra.mxu0 0.0
        %3358 = vmatprep.subr.mxu0 0.0
        %3359 = vmatpush1.msra.mxu0 0.0
        %3360 = vmatprep.subr.mxu0 0.0
        %3361 = vmatpush1.msra.mxu0 0.0
        %3362 = vmatprep.subr.mxu0 0.0
        %3363 = vmatpush1.msra.mxu0 0.0
        %3364 = vmatprep.subr.mxu0 0.0
        %3365 = vmatpush1.msra.mxu0 0.0
        %3366 = vmatprep.subr.mxu0 0.0
        %3367 = vmatpush1.msra.mxu0 %v3349
        %3368 = vmatprep.subr.mxu0 0.0
        %3369 = vmatpush1.msra.mxu0 %v3348
        %3370 = vmatprep.subr.mxu0 0.0
        %3371 = vmatpush1.msra.mxu0 %v3347
        %3372 = vmatprep.subr.mxu0 0.0
        %3373 = vmatpush1.msra.mxu0 %v3346
        %3374 = vmatprep.subr.mxu0 0.0
        %3375 = vmatpush1.msra.mxu0 %v3345
        %3376 = vmatprep.subr.mxu0 0.0
        %3377 = vmatpush1.msra.mxu0 %v3344
        %3378 = vmatprep.subr.mxu0 0.0
        %3379 = vmatpush1.msra.mxu0 %v3343
        %3380 = vmatprep.subr.mxu0 0.0
        %3381 = vmatpush1.msra.mxu0 %v3342
        %3382 = vmatprep.subr.mxu0 0.0
        %3383 = vmatpush2.msra.mxu0 0.0
        %3384 = vmatprep.subr.mxu0 0.0
        %3385 = vmatpush2.msra.mxu0 0.0
        %3386 = vmatprep.subr.mxu0 0.0
        %3387 = vmatpush2.msra.mxu0 0.0
        %3388 = vmatprep.subr.mxu0 0.0
        %3389 = vmatpush2.msra.mxu0 0.0
        %3390 = vmatprep.subr.mxu0 0.0
        %3391 = vmatpush2.msra.mxu0 0.0
        %3392 = vmatprep.subr.mxu0 0.0
        %3393 = vmatpush2.msra.mxu0 0.0
        %3394 = vmatprep.subr.mxu0 0.0
        %3395 = vmatpush2.msra.mxu0 0.0
        %3396 = vmatprep.subr.mxu0 0.0
        %3397 = vmatpush2.msra.mxu0 0.0
        %3398 = vmatprep.subr.mxu0 0.0
        %3399 = vmatpush2.msra.mxu0 0.0
        %3400 = vmatprep.subr.mxu0 0.0
        %3401 = vmatpush2.msra.mxu0 0.0
        %3402 = vmatprep.subr.mxu0 0.0
        %3403 = vmatpush2.msra.mxu0 0.0
        %3404 = vmatprep.subr.mxu0 0.0
        %3405 = vmatpush2.msra.mxu0 0.0
        %3406 = vmatprep.subr.mxu0 0.0
        %3407 = vmatpush2.msra.mxu0 0.0
        %3408 = vmatprep.subr.mxu0 0.0
        %3409 = vmatpush2.msra.mxu0 0.0
        %3410 = vmatprep.subr.mxu0 0.0
        %3411 = vmatpush2.msra.mxu0 0.0
        %3412 = vmatprep.subr.mxu0 0.0
        %3413 = vmatpush2.msra.mxu0 0.0
        %3414 = vmatprep.mubr.f32.mxu0 0.0
        %3415 = vmatmul.mubr.f32.gmra.mxu0 %v3267
        %v3416 = vpop.f32.mrf.mxu0
        %v3417 = vadd.f32 0.0, %v3416
        %v3418 = vpop.f32.mrf.mxu0
        %3419 = vdwg.mxu0
        %s3420 = scalar_lea.vmem %s5, 16
        %v3421 = vld [vmem:[%s3420] sm:$0xff]
        %v3422 = vld [vmem:[%s3420 + $0x8] sm:$0xff]
        %vm3423 = vcmask 64512
        %v3425 = vsel %vm3423, %v3421, 0
        %v3428 = vsel %vm3423, %v3422, 0
        %3430 = vmatprep.subr.mxu0 0.0
        %3431 = vmatpush1.msra.mxu0 0.0
        %3432 = vmatprep.subr.mxu0 0.0
        %3433 = vmatpush1.msra.mxu0 0.0
        %3434 = vmatprep.subr.mxu0 0.0
        %3435 = vmatpush1.msra.mxu0 0.0
        %3436 = vmatprep.subr.mxu0 0.0
        %3437 = vmatpush1.msra.mxu0 0.0
        %3438 = vmatprep.subr.mxu0 0.0
        %3439 = vmatpush1.msra.mxu0 0.0
        %3440 = vmatprep.subr.mxu0 0.0
        %3441 = vmatpush1.msra.mxu0 0.0
        %3442 = vmatprep.subr.mxu0 0.0
        %3443 = vmatpush1.msra.mxu0 0.0
        %3444 = vmatprep.subr.mxu0 0.0
        %3445 = vmatpush1.msra.mxu0 0.0
        %3446 = vmatprep.subr.mxu0 0.0
        %3447 = vmatpush1.msra.mxu0 0.0
        %3448 = vmatprep.subr.mxu0 0.0
        %3449 = vmatpush1.msra.mxu0 0.0
        %3450 = vmatprep.subr.mxu0 0.0
        %3451 = vmatpush1.msra.mxu0 0.0
        %3452 = vmatprep.subr.mxu0 0.0
        %3453 = vmatpush1.msra.mxu0 0.0
        %3454 = vmatprep.subr.mxu0 0.0
        %3455 = vmatpush1.msra.mxu0 0.0
        %3456 = vmatprep.subr.mxu0 0.0
        %3457 = vmatpush1.msra.mxu0 0.0
        %3458 = vmatprep.subr.mxu0 0.0
        %3459 = vmatpush1.msra.mxu0 0.0
        %3460 = vmatprep.subr.mxu0 0.0
        %3461 = vmatpush1.msra.mxu0 %v3417
        %3462 = vmatprep.subr.mxu0 0.0
        %3463 = vmatpush2.msra.mxu0 0.0
        %3464 = vmatprep.subr.mxu0 0.0
        %3465 = vmatpush2.msra.mxu0 0.0
        %3466 = vmatprep.subr.mxu0 0.0
        %3467 = vmatpush2.msra.mxu0 0.0
        %3468 = vmatprep.subr.mxu0 0.0
        %3469 = vmatpush2.msra.mxu0 0.0
        %3470 = vmatprep.subr.mxu0 0.0
        %3471 = vmatpush2.msra.mxu0 0.0
        %3472 = vmatprep.subr.mxu0 0.0
        %3473 = vmatpush2.msra.mxu0 0.0
        %3474 = vmatprep.subr.mxu0 0.0
        %3475 = vmatpush2.msra.mxu0 0.0
        %3476 = vmatprep.subr.mxu0 0.0
        %3477 = vmatpush2.msra.mxu0 0.0
        %3478 = vmatprep.subr.mxu0 0.0
        %3479 = vmatpush2.msra.mxu0 0.0
        %3480 = vmatprep.subr.mxu0 0.0
        %3481 = vmatpush2.msra.mxu0 0.0
        %3482 = vmatprep.subr.mxu0 0.0
        %3483 = vmatpush2.msra.mxu0 0.0
        %3484 = vmatprep.subr.mxu0 0.0
        %3485 = vmatpush2.msra.mxu0 0.0
        %3486 = vmatprep.subr.mxu0 0.0
        %3487 = vmatpush2.msra.mxu0 0.0
        %3488 = vmatprep.subr.mxu0 0.0
        %3489 = vmatpush2.msra.mxu0 0.0
        %3490 = vmatprep.subr.mxu0 0.0
        %3491 = vmatpush2.msra.mxu0 0.0
        %3492 = vmatprep.subr.mxu0 0.0
        %3493 = vmatpush2.msra.mxu0 0.0
        %3494 = vmatprep.mubr.f32.mxu0 0.0
        %3495 = vmatmul.mubr.f32.gmra.mxu0 %v3425
        %v3496 = vpop.f32.mrf.mxu0
        %v3497 = vadd.f32 0.0, %v3496
        %v3498 = vpop.f32.mrf.mxu0
        %3499 = vmatprep.mubr.f32.mxu0 0.0
        %3500 = vmatmul.mubr.f32.gmra.mxu0 %v3428
        %v3501 = vpop.f32.mrf.mxu0
        %v3502 = vadd.f32 0.0, %v3501
        %v3503 = vpop.f32.mrf.mxu0
        %3504 = vdwg.mxu0
        %v3506 = vsel %vm3423, %v3339, 0
        %v3509 = vsel %vm3423, %v3340, 0
        %3511 = vmatprep.subr.mxu0 0.0
        %3512 = vmatpush1.msra.mxu0 0.0
        %3513 = vmatprep.subr.mxu0 0.0
        %3514 = vmatpush1.msra.mxu0 0.0
        %3515 = vmatprep.subr.mxu0 0.0
        %3516 = vmatpush1.msra.mxu0 0.0
        %3517 = vmatprep.subr.mxu0 0.0
        %3518 = vmatpush1.msra.mxu0 0.0
        %3519 = vmatprep.subr.mxu0 0.0
        %3520 = vmatpush1.msra.mxu0 0.0
        %3521 = vmatprep.subr.mxu0 0.0
        %3522 = vmatpush1.msra.mxu0 0.0
        %3523 = vmatprep.subr.mxu0 0.0
        %3524 = vmatpush1.msra.mxu0 0.0
        %3525 = vmatprep.subr.mxu0 0.0
        %3526 = vmatpush1.msra.mxu0 0.0
        %3527 = vmatprep.subr.mxu0 0.0
        %3528 = vmatpush1.msra.mxu0 0.0
        %3529 = vmatprep.subr.mxu0 0.0
        %3530 = vmatpush1.msra.mxu0 0.0
        %3531 = vmatprep.subr.mxu0 0.0
        %3532 = vmatpush1.msra.mxu0 0.0
        %3533 = vmatprep.subr.mxu0 0.0
        %3534 = vmatpush1.msra.mxu0 0.0
        %3535 = vmatprep.subr.mxu0 0.0
        %3536 = vmatpush1.msra.mxu0 0.0
        %3537 = vmatprep.subr.mxu0 0.0
        %3538 = vmatpush1.msra.mxu0 0.0
        %3539 = vmatprep.subr.mxu0 0.0
        %3540 = vmatpush1.msra.mxu0 0.0
        %3541 = vmatprep.subr.mxu0 0.0
        %3542 = vmatpush1.msra.mxu0 %v3336
        %3543 = vmatprep.subr.mxu0 0.0
        %3544 = vmatpush2.msra.mxu0 0.0
        %3545 = vmatprep.subr.mxu0 0.0
        %3546 = vmatpush2.msra.mxu0 0.0
        %3547 = vmatprep.subr.mxu0 0.0
        %3548 = vmatpush2.msra.mxu0 0.0
        %3549 = vmatprep.subr.mxu0 0.0
        %3550 = vmatpush2.msra.mxu0 0.0
        %3551 = vmatprep.subr.mxu0 0.0
        %3552 = vmatpush2.msra.mxu0 0.0
        %3553 = vmatprep.subr.mxu0 0.0
        %3554 = vmatpush2.msra.mxu0 0.0
        %3555 = vmatprep.subr.mxu0 0.0
        %3556 = vmatpush2.msra.mxu0 0.0
        %3557 = vmatprep.subr.mxu0 0.0
        %3558 = vmatpush2.msra.mxu0 0.0
        %3559 = vmatprep.subr.mxu0 0.0
        %3560 = vmatpush2.msra.mxu0 0.0
        %3561 = vmatprep.subr.mxu0 0.0
        %3562 = vmatpush2.msra.mxu0 0.0
        %3563 = vmatprep.subr.mxu0 0.0
        %3564 = vmatpush2.msra.mxu0 0.0
        %3565 = vmatprep.subr.mxu0 0.0
        %3566 = vmatpush2.msra.mxu0 0.0
        %3567 = vmatprep.subr.mxu0 0.0
        %3568 = vmatpush2.msra.mxu0 0.0
        %3569 = vmatprep.subr.mxu0 0.0
        %3570 = vmatpush2.msra.mxu0 0.0
        %3571 = vmatprep.subr.mxu0 0.0
        %3572 = vmatpush2.msra.mxu0 0.0
        %3573 = vmatprep.subr.mxu0 0.0
        %3574 = vmatpush2.msra.mxu0 0.0
        %3575 = vmatprep.mubr.f32.mxu0 0.0
        %3576 = vmatmul.mubr.f32.gmra.mxu0 %v3506
        %v3577 = vpop.f32.mrf.mxu0
        %v3578 = vadd.f32 %v3497, %v3577
        %v3579 = vpop.f32.mrf.mxu0
        %3580 = vmatprep.mubr.f32.mxu0 0.0
        %3581 = vmatmul.mubr.f32.gmra.mxu0 %v3509
        %v3582 = vpop.f32.mrf.mxu0
        %v3583 = vadd.f32 %v3502, %v3582
        %v3584 = vpop.f32.mrf.mxu0
        %3585 = vdwg.mxu0
        %s3586 = scalar_lea.vmem %s4, 128
        %v3587 = vld [vmem:[%s3586] sm:$0xff]
        %v3588 = vld [vmem:[%s3586 + $0x8] sm:$0xff]
        %v3589 = vld [vmem:[%s3586 + $0x10] sm:$0xff]
        %v3590 = vld [vmem:[%s3586 + $0x18] sm:$0xff]
        %v3591 = vld [vmem:[%s3586 + $0x20] sm:$0xff]
        %v3592 = vld [vmem:[%s3586 + $0x28] sm:$0xff]
        %v3593 = vld [vmem:[%s3586 + $0x30] sm:$0xff]
        %v3594 = vld [vmem:[%s3586 + $0x38] sm:$0xff]
        %3595 = vmatprep.subr.mxu0 0.0
        %3596 = vmatpush1.msra.mxu0 0.0
        %3597 = vmatprep.subr.mxu0 0.0
        %3598 = vmatpush1.msra.mxu0 0.0
        %3599 = vmatprep.subr.mxu0 0.0
        %3600 = vmatpush1.msra.mxu0 0.0
        %3601 = vmatprep.subr.mxu0 0.0
        %3602 = vmatpush1.msra.mxu0 0.0
        %3603 = vmatprep.subr.mxu0 0.0
        %3604 = vmatpush1.msra.mxu0 0.0
        %3605 = vmatprep.subr.mxu0 0.0
        %3606 = vmatpush1.msra.mxu0 0.0
        %3607 = vmatprep.subr.mxu0 0.0
        %3608 = vmatpush1.msra.mxu0 0.0
        %3609 = vmatprep.subr.mxu0 0.0
        %3610 = vmatpush1.msra.mxu0 0.0
        %3611 = vmatprep.subr.mxu0 0.0
        %3612 = vmatpush1.msra.mxu0 %v3594
        %3613 = vmatprep.subr.mxu0 0.0
        %3614 = vmatpush1.msra.mxu0 %v3593
        %3615 = vmatprep.subr.mxu0 0.0
        %3616 = vmatpush1.msra.mxu0 %v3592
        %3617 = vmatprep.subr.mxu0 0.0
        %3618 = vmatpush1.msra.mxu0 %v3591
        %3619 = vmatprep.subr.mxu0 0.0
        %3620 = vmatpush1.msra.mxu0 %v3590
        %3621 = vmatprep.subr.mxu0 0.0
        %3622 = vmatpush1.msra.mxu0 %v3589
        %3623 = vmatprep.subr.mxu0 0.0
        %3624 = vmatpush1.msra.mxu0 %v3588
        %3625 = vmatprep.subr.mxu0 0.0
        %3626 = vmatpush1.msra.mxu0 %v3587
        %3627 = vmatprep.subr.mxu0 0.0
        %3628 = vmatpush2.msra.mxu0 0.0
        %3629 = vmatprep.subr.mxu0 0.0
        %3630 = vmatpush2.msra.mxu0 0.0
        %3631 = vmatprep.subr.mxu0 0.0
        %3632 = vmatpush2.msra.mxu0 0.0
        %3633 = vmatprep.subr.mxu0 0.0
        %3634 = vmatpush2.msra.mxu0 0.0
        %3635 = vmatprep.subr.mxu0 0.0
        %3636 = vmatpush2.msra.mxu0 0.0
        %3637 = vmatprep.subr.mxu0 0.0
        %3638 = vmatpush2.msra.mxu0 0.0
        %3639 = vmatprep.subr.mxu0 0.0
        %3640 = vmatpush2.msra.mxu0 0.0
        %3641 = vmatprep.subr.mxu0 0.0
        %3642 = vmatpush2.msra.mxu0 0.0
        %3643 = vmatprep.subr.mxu0 0.0
        %3644 = vmatpush2.msra.mxu0 0.0
        %3645 = vmatprep.subr.mxu0 0.0
        %3646 = vmatpush2.msra.mxu0 0.0
        %3647 = vmatprep.subr.mxu0 0.0
        %3648 = vmatpush2.msra.mxu0 0.0
        %3649 = vmatprep.subr.mxu0 0.0
        %3650 = vmatpush2.msra.mxu0 0.0
        %3651 = vmatprep.subr.mxu0 0.0
        %3652 = vmatpush2.msra.mxu0 0.0
        %3653 = vmatprep.subr.mxu0 0.0
        %3654 = vmatpush2.msra.mxu0 0.0
        %3655 = vmatprep.subr.mxu0 0.0
        %3656 = vmatpush2.msra.mxu0 0.0
        %3657 = vmatprep.subr.mxu0 0.0
        %3658 = vmatpush2.msra.mxu0 0.0
        %3659 = vmatprep.mubr.f32.mxu0 0.0
        %3660 = vmatmul.mubr.f32.gmra.mxu0 %v3267
        %v3661 = vpop.f32.mrf.mxu0
        %v3662 = vadd.f32 0.0, %v3661
        %v3663 = vpop.f32.mrf.mxu0
        %3664 = vdwg.mxu0
        %s3665 = scalar_lea.vmem %s5, 32
        %v3666 = vld [vmem:[%s3665] sm:$0xff]
        %v3667 = vld [vmem:[%s3665 + $0x8] sm:$0xff]
        %v3669 = vsel %vm3423, %v3666, 0
        %v3672 = vsel %vm3423, %v3667, 0
        %3674 = vmatprep.subr.mxu0 0.0
        %3675 = vmatpush1.msra.mxu0 0.0
        %3676 = vmatprep.subr.mxu0 0.0
        %3677 = vmatpush1.msra.mxu0 0.0
        %3678 = vmatprep.subr.mxu0 0.0
        %3679 = vmatpush1.msra.mxu0 0.0
        %3680 = vmatprep.subr.mxu0 0.0
        %3681 = vmatpush1.msra.mxu0 0.0
        %3682 = vmatprep.subr.mxu0 0.0
        %3683 = vmatpush1.msra.mxu0 0.0
        %3684 = vmatprep.subr.mxu0 0.0
        %3685 = vmatpush1.msra.mxu0 0.0
        %3686 = vmatprep.subr.mxu0 0.0
        %3687 = vmatpush1.msra.mxu0 0.0
        %3688 = vmatprep.subr.mxu0 0.0
        %3689 = vmatpush1.msra.mxu0 0.0
        %3690 = vmatprep.subr.mxu0 0.0
        %3691 = vmatpush1.msra.mxu0 0.0
        %3692 = vmatprep.subr.mxu0 0.0
        %3693 = vmatpush1.msra.mxu0 0.0
        %3694 = vmatprep.subr.mxu0 0.0
        %3695 = vmatpush1.msra.mxu0 0.0
        %3696 = vmatprep.subr.mxu0 0.0
        %3697 = vmatpush1.msra.mxu0 0.0
        %3698 = vmatprep.subr.mxu0 0.0
        %3699 = vmatpush1.msra.mxu0 0.0
        %3700 = vmatprep.subr.mxu0 0.0
        %3701 = vmatpush1.msra.mxu0 0.0
        %3702 = vmatprep.subr.mxu0 0.0
        %3703 = vmatpush1.msra.mxu0 0.0
        %3704 = vmatprep.subr.mxu0 0.0
        %3705 = vmatpush1.msra.mxu0 %v3662
        %3706 = vmatprep.subr.mxu0 0.0
        %3707 = vmatpush2.msra.mxu0 0.0
        %3708 = vmatprep.subr.mxu0 0.0
        %3709 = vmatpush2.msra.mxu0 0.0
        %3710 = vmatprep.subr.mxu0 0.0
        %3711 = vmatpush2.msra.mxu0 0.0
        %3712 = vmatprep.subr.mxu0 0.0
        %3713 = vmatpush2.msra.mxu0 0.0
        %3714 = vmatprep.subr.mxu0 0.0
        %3715 = vmatpush2.msra.mxu0 0.0
        %3716 = vmatprep.subr.mxu0 0.0
        %3717 = vmatpush2.msra.mxu0 0.0
        %3718 = vmatprep.subr.mxu0 0.0
        %3719 = vmatpush2.msra.mxu0 0.0
        %3720 = vmatprep.subr.mxu0 0.0
        %3721 = vmatpush2.msra.mxu0 0.0
        %3722 = vmatprep.subr.mxu0 0.0
        %3723 = vmatpush2.msra.mxu0 0.0
        %3724 = vmatprep.subr.mxu0 0.0
        %3725 = vmatpush2.msra.mxu0 0.0
        %3726 = vmatprep.subr.mxu0 0.0
        %3727 = vmatpush2.msra.mxu0 0.0
        %3728 = vmatprep.subr.mxu0 0.0
        %3729 = vmatpush2.msra.mxu0 0.0
        %3730 = vmatprep.subr.mxu0 0.0
        %3731 = vmatpush2.msra.mxu0 0.0
        %3732 = vmatprep.subr.mxu0 0.0
        %3733 = vmatpush2.msra.mxu0 0.0
        %3734 = vmatprep.subr.mxu0 0.0
        %3735 = vmatpush2.msra.mxu0 0.0
        %3736 = vmatprep.subr.mxu0 0.0
        %3737 = vmatpush2.msra.mxu0 0.0
        %3738 = vmatprep.mubr.f32.mxu0 0.0
        %3739 = vmatmul.mubr.f32.gmra.mxu0 %v3669
        %v3740 = vpop.f32.mrf.mxu0
        %v3741 = vadd.f32 0.0, %v3740
        %v3742 = vpop.f32.mrf.mxu0
        %3743 = vmatprep.mubr.f32.mxu0 0.0
        %3744 = vmatmul.mubr.f32.gmra.mxu0 %v3672
        %v3745 = vpop.f32.mrf.mxu0
        %v3746 = vadd.f32 0.0, %v3745
        %v3747 = vpop.f32.mrf.mxu0
        %3748 = vdwg.mxu0
        %v3749 = vadd.f32 %v3578, %v3741
        %v3750 = vadd.f32 %v3583, %v3746
        %s3751 = scalar_lea.vmem %s4, 192
        %v3752 = vld [vmem:[%s3751] sm:$0xff]
        %v3753 = vld [vmem:[%s3751 + $0x8] sm:$0xff]
        %v3754 = vld [vmem:[%s3751 + $0x10] sm:$0xff]
        %v3755 = vld [vmem:[%s3751 + $0x18] sm:$0xff]
        %v3756 = vld [vmem:[%s3751 + $0x20] sm:$0xff]
        %v3757 = vld [vmem:[%s3751 + $0x28] sm:$0xff]
        %v3758 = vld [vmem:[%s3751 + $0x30] sm:$0xff]
        %v3759 = vld [vmem:[%s3751 + $0x38] sm:$0xff]
        %3760 = vmatprep.subr.mxu0 0.0
        %3761 = vmatpush1.msra.mxu0 0.0
        %3762 = vmatprep.subr.mxu0 0.0
        %3763 = vmatpush1.msra.mxu0 0.0
        %3764 = vmatprep.subr.mxu0 0.0
        %3765 = vmatpush1.msra.mxu0 0.0
        %3766 = vmatprep.subr.mxu0 0.0
        %3767 = vmatpush1.msra.mxu0 0.0
        %3768 = vmatprep.subr.mxu0 0.0
        %3769 = vmatpush1.msra.mxu0 0.0
        %3770 = vmatprep.subr.mxu0 0.0
        %3771 = vmatpush1.msra.mxu0 0.0
        %3772 = vmatprep.subr.mxu0 0.0
        %3773 = vmatpush1.msra.mxu0 0.0
        %3774 = vmatprep.subr.mxu0 0.0
        %3775 = vmatpush1.msra.mxu0 0.0
        %3776 = vmatprep.subr.mxu0 0.0
        %3777 = vmatpush1.msra.mxu0 %v3759
        %3778 = vmatprep.subr.mxu0 0.0
        %3779 = vmatpush1.msra.mxu0 %v3758
        %3780 = vmatprep.subr.mxu0 0.0
        %3781 = vmatpush1.msra.mxu0 %v3757
        %3782 = vmatprep.subr.mxu0 0.0
        %3783 = vmatpush1.msra.mxu0 %v3756
        %3784 = vmatprep.subr.mxu0 0.0
        %3785 = vmatpush1.msra.mxu0 %v3755
        %3786 = vmatprep.subr.mxu0 0.0
        %3787 = vmatpush1.msra.mxu0 %v3754
        %3788 = vmatprep.subr.mxu0 0.0
        %3789 = vmatpush1.msra.mxu0 %v3753
        %3790 = vmatprep.subr.mxu0 0.0
        %3791 = vmatpush1.msra.mxu0 %v3752
        %3792 = vmatprep.subr.mxu0 0.0
        %3793 = vmatpush2.msra.mxu0 0.0
        %3794 = vmatprep.subr.mxu0 0.0
        %3795 = vmatpush2.msra.mxu0 0.0
        %3796 = vmatprep.subr.mxu0 0.0
        %3797 = vmatpush2.msra.mxu0 0.0
        %3798 = vmatprep.subr.mxu0 0.0
        %3799 = vmatpush2.msra.mxu0 0.0
        %3800 = vmatprep.subr.mxu0 0.0
        %3801 = vmatpush2.msra.mxu0 0.0
        %3802 = vmatprep.subr.mxu0 0.0
        %3803 = vmatpush2.msra.mxu0 0.0
        %3804 = vmatprep.subr.mxu0 0.0
        %3805 = vmatpush2.msra.mxu0 0.0
        %3806 = vmatprep.subr.mxu0 0.0
        %3807 = vmatpush2.msra.mxu0 0.0
        %3808 = vmatprep.subr.mxu0 0.0
        %3809 = vmatpush2.msra.mxu0 0.0
        %3810 = vmatprep.subr.mxu0 0.0
        %3811 = vmatpush2.msra.mxu0 0.0
        %3812 = vmatprep.subr.mxu0 0.0
        %3813 = vmatpush2.msra.mxu0 0.0
        %3814 = vmatprep.subr.mxu0 0.0
        %3815 = vmatpush2.msra.mxu0 0.0
        %3816 = vmatprep.subr.mxu0 0.0
        %3817 = vmatpush2.msra.mxu0 0.0
        %3818 = vmatprep.subr.mxu0 0.0
        %3819 = vmatpush2.msra.mxu0 0.0
        %3820 = vmatprep.subr.mxu0 0.0
        %3821 = vmatpush2.msra.mxu0 0.0
        %3822 = vmatprep.subr.mxu0 0.0
        %3823 = vmatpush2.msra.mxu0 0.0
        %3824 = vmatprep.mubr.f32.mxu0 0.0
        %3825 = vmatmul.mubr.f32.gmra.mxu0 %v3267
        %v3826 = vpop.f32.mrf.mxu0
        %v3827 = vadd.f32 0.0, %v3826
        %v3828 = vpop.f32.mrf.mxu0
        %3829 = vdwg.mxu0
        %s3830 = scalar_lea.vmem %s5, 48
        %v3831 = vld [vmem:[%s3830] sm:$0xff]
        %v3832 = vld [vmem:[%s3830 + $0x8] sm:$0xff]
        %v3834 = vsel %vm3423, %v3831, 0
        %v3837 = vsel %vm3423, %v3832, 0
        %3839 = vmatprep.subr.mxu0 0.0
        %3840 = vmatpush1.msra.mxu0 0.0
        %3841 = vmatprep.subr.mxu0 0.0
        %3842 = vmatpush1.msra.mxu0 0.0
        %3843 = vmatprep.subr.mxu0 0.0
        %3844 = vmatpush1.msra.mxu0 0.0
        %3845 = vmatprep.subr.mxu0 0.0
        %3846 = vmatpush1.msra.mxu0 0.0
        %3847 = vmatprep.subr.mxu0 0.0
        %3848 = vmatpush1.msra.mxu0 0.0
        %3849 = vmatprep.subr.mxu0 0.0
        %3850 = vmatpush1.msra.mxu0 0.0
        %3851 = vmatprep.subr.mxu0 0.0
        %3852 = vmatpush1.msra.mxu0 0.0
        %3853 = vmatprep.subr.mxu0 0.0
        %3854 = vmatpush1.msra.mxu0 0.0
        %3855 = vmatprep.subr.mxu0 0.0
        %3856 = vmatpush1.msra.mxu0 0.0
        %3857 = vmatprep.subr.mxu0 0.0
        %3858 = vmatpush1.msra.mxu0 0.0
        %3859 = vmatprep.subr.mxu0 0.0
        %3860 = vmatpush1.msra.mxu0 0.0
        %3861 = vmatprep.subr.mxu0 0.0
        %3862 = vmatpush1.msra.mxu0 0.0
        %3863 = vmatprep.subr.mxu0 0.0
        %3864 = vmatpush1.msra.mxu0 0.0
        %3865 = vmatprep.subr.mxu0 0.0
        %3866 = vmatpush1.msra.mxu0 0.0
        %3867 = vmatprep.subr.mxu0 0.0
        %3868 = vmatpush1.msra.mxu0 0.0
        %3869 = vmatprep.subr.mxu0 0.0
        %3870 = vmatpush1.msra.mxu0 %v3827
        %3871 = vmatprep.subr.mxu0 0.0
        %3872 = vmatpush2.msra.mxu0 0.0
        %3873 = vmatprep.subr.mxu0 0.0
        %3874 = vmatpush2.msra.mxu0 0.0
        %3875 = vmatprep.subr.mxu0 0.0
        %3876 = vmatpush2.msra.mxu0 0.0
        %3877 = vmatprep.subr.mxu0 0.0
        %3878 = vmatpush2.msra.mxu0 0.0
        %3879 = vmatprep.subr.mxu0 0.0
        %3880 = vmatpush2.msra.mxu0 0.0
        %3881 = vmatprep.subr.mxu0 0.0
        %3882 = vmatpush2.msra.mxu0 0.0
        %3883 = vmatprep.subr.mxu0 0.0
        %3884 = vmatpush2.msra.mxu0 0.0
        %3885 = vmatprep.subr.mxu0 0.0
        %3886 = vmatpush2.msra.mxu0 0.0
        %3887 = vmatprep.subr.mxu0 0.0
        %3888 = vmatpush2.msra.mxu0 0.0
        %3889 = vmatprep.subr.mxu0 0.0
        %3890 = vmatpush2.msra.mxu0 0.0
        %3891 = vmatprep.subr.mxu0 0.0
        %3892 = vmatpush2.msra.mxu0 0.0
        %3893 = vmatprep.subr.mxu0 0.0
        %3894 = vmatpush2.msra.mxu0 0.0
        %3895 = vmatprep.subr.mxu0 0.0
        %3896 = vmatpush2.msra.mxu0 0.0
        %3897 = vmatprep.subr.mxu0 0.0
        %3898 = vmatpush2.msra.mxu0 0.0
        %3899 = vmatprep.subr.mxu0 0.0
        %3900 = vmatpush2.msra.mxu0 0.0
        %3901 = vmatprep.subr.mxu0 0.0
        %3902 = vmatpush2.msra.mxu0 0.0
        %3903 = vmatprep.mubr.f32.mxu0 0.0
        %3904 = vmatmul.mubr.f32.gmra.mxu0 %v3834
        %v3905 = vpop.f32.mrf.mxu0
        %v3906 = vadd.f32 0.0, %v3905
        %v3907 = vpop.f32.mrf.mxu0
        %3908 = vmatprep.mubr.f32.mxu0 0.0
        %3909 = vmatmul.mubr.f32.gmra.mxu0 %v3837
        %v3910 = vpop.f32.mrf.mxu0
        %v3911 = vadd.f32 0.0, %v3910
        %v3912 = vpop.f32.mrf.mxu0
        %3913 = vdwg.mxu0
        %v3914 = vadd.f32 %v3749, %v3906
        %v3915 = vadd.f32 %v3750, %v3911
        %s3916 = scalar_lea.vmem %s4, 256
        %v3917 = vld [vmem:[%s3916] sm:$0xff]
        %v3918 = vld [vmem:[%s3916 + $0x8] sm:$0xff]
        %v3919 = vld [vmem:[%s3916 + $0x10] sm:$0xff]
        %v3920 = vld [vmem:[%s3916 + $0x18] sm:$0xff]
        %v3921 = vld [vmem:[%s3916 + $0x20] sm:$0xff]
        %v3922 = vld [vmem:[%s3916 + $0x28] sm:$0xff]
        %v3923 = vld [vmem:[%s3916 + $0x30] sm:$0xff]
        %v3924 = vld [vmem:[%s3916 + $0x38] sm:$0xff]
        %3925 = vmatprep.subr.mxu0 0.0
        %3926 = vmatpush1.msra.mxu0 0.0
        %3927 = vmatprep.subr.mxu0 0.0
        %3928 = vmatpush1.msra.mxu0 0.0
        %3929 = vmatprep.subr.mxu0 0.0
        %3930 = vmatpush1.msra.mxu0 0.0
        %3931 = vmatprep.subr.mxu0 0.0
        %3932 = vmatpush1.msra.mxu0 0.0
        %3933 = vmatprep.subr.mxu0 0.0
        %3934 = vmatpush1.msra.mxu0 0.0
        %3935 = vmatprep.subr.mxu0 0.0
        %3936 = vmatpush1.msra.mxu0 0.0
        %3937 = vmatprep.subr.mxu0 0.0
        %3938 = vmatpush1.msra.mxu0 0.0
        %3939 = vmatprep.subr.mxu0 0.0
        %3940 = vmatpush1.msra.mxu0 0.0
        %3941 = vmatprep.subr.mxu0 0.0
        %3942 = vmatpush1.msra.mxu0 %v3924
        %3943 = vmatprep.subr.mxu0 0.0
        %3944 = vmatpush1.msra.mxu0 %v3923
        %3945 = vmatprep.subr.mxu0 0.0
        %3946 = vmatpush1.msra.mxu0 %v3922
        %3947 = vmatprep.subr.mxu0 0.0
        %3948 = vmatpush1.msra.mxu0 %v3921
        %3949 = vmatprep.subr.mxu0 0.0
        %3950 = vmatpush1.msra.mxu0 %v3920
        %3951 = vmatprep.subr.mxu0 0.0
        %3952 = vmatpush1.msra.mxu0 %v3919
        %3953 = vmatprep.subr.mxu0 0.0
        %3954 = vmatpush1.msra.mxu0 %v3918
        %3955 = vmatprep.subr.mxu0 0.0
        %3956 = vmatpush1.msra.mxu0 %v3917
        %3957 = vmatprep.subr.mxu0 0.0
        %3958 = vmatpush2.msra.mxu0 0.0
        %3959 = vmatprep.subr.mxu0 0.0
        %3960 = vmatpush2.msra.mxu0 0.0
        %3961 = vmatprep.subr.mxu0 0.0
        %3962 = vmatpush2.msra.mxu0 0.0
        %3963 = vmatprep.subr.mxu0 0.0
        %3964 = vmatpush2.msra.mxu0 0.0
        %3965 = vmatprep.subr.mxu0 0.0
        %3966 = vmatpush2.msra.mxu0 0.0
        %3967 = vmatprep.subr.mxu0 0.0
        %3968 = vmatpush2.msra.mxu0 0.0
        %3969 = vmatprep.subr.mxu0 0.0
        %3970 = vmatpush2.msra.mxu0 0.0
        %3971 = vmatprep.subr.mxu0 0.0
        %3972 = vmatpush2.msra.mxu0 0.0
        %3973 = vmatprep.subr.mxu0 0.0
        %3974 = vmatpush2.msra.mxu0 0.0
        %3975 = vmatprep.subr.mxu0 0.0
        %3976 = vmatpush2.msra.mxu0 0.0
        %3977 = vmatprep.subr.mxu0 0.0
        %3978 = vmatpush2.msra.mxu0 0.0
        %3979 = vmatprep.subr.mxu0 0.0
        %3980 = vmatpush2.msra.mxu0 0.0
        %3981 = vmatprep.subr.mxu0 0.0
        %3982 = vmatpush2.msra.mxu0 0.0
        %3983 = vmatprep.subr.mxu0 0.0
        %3984 = vmatpush2.msra.mxu0 0.0
        %3985 = vmatprep.subr.mxu0 0.0
        %3986 = vmatpush2.msra.mxu0 0.0
        %3987 = vmatprep.subr.mxu0 0.0
        %3988 = vmatpush2.msra.mxu0 0.0
        %3989 = vmatprep.mubr.f32.mxu0 0.0
        %3990 = vmatmul.mubr.f32.gmra.mxu0 %v3267
        %v3991 = vpop.f32.mrf.mxu0
        %v3992 = vadd.f32 0.0, %v3991
        %v3993 = vpop.f32.mrf.mxu0
        %3994 = vdwg.mxu0
        %s3995 = scalar_lea.vmem %s5, 64
        %v3996 = vld [vmem:[%s3995] sm:$0xff]
        %v3997 = vld [vmem:[%s3995 + $0x8] sm:$0xff]
        %v3999 = vsel %vm3423, %v3996, 0
        %v4002 = vsel %vm3423, %v3997, 0
        %4004 = vmatprep.subr.mxu0 0.0
        %4005 = vmatpush1.msra.mxu0 0.0
        %4006 = vmatprep.subr.mxu0 0.0
        %4007 = vmatpush1.msra.mxu0 0.0
        %4008 = vmatprep.subr.mxu0 0.0
        %4009 = vmatpush1.msra.mxu0 0.0
        %4010 = vmatprep.subr.mxu0 0.0
        %4011 = vmatpush1.msra.mxu0 0.0
        %4012 = vmatprep.subr.mxu0 0.0
        %4013 = vmatpush1.msra.mxu0 0.0
        %4014 = vmatprep.subr.mxu0 0.0
        %4015 = vmatpush1.msra.mxu0 0.0
        %4016 = vmatprep.subr.mxu0 0.0
        %4017 = vmatpush1.msra.mxu0 0.0
        %4018 = vmatprep.subr.mxu0 0.0
        %4019 = vmatpush1.msra.mxu0 0.0
        %4020 = vmatprep.subr.mxu0 0.0
        %4021 = vmatpush1.msra.mxu0 0.0
        %4022 = vmatprep.subr.mxu0 0.0
        %4023 = vmatpush1.msra.mxu0 0.0
        %4024 = vmatprep.subr.mxu0 0.0
        %4025 = vmatpush1.msra.mxu0 0.0
        %4026 = vmatprep.subr.mxu0 0.0
        %4027 = vmatpush1.msra.mxu0 0.0
        %4028 = vmatprep.subr.mxu0 0.0
        %4029 = vmatpush1.msra.mxu0 0.0
        %4030 = vmatprep.subr.mxu0 0.0
        %4031 = vmatpush1.msra.mxu0 0.0
        %4032 = vmatprep.subr.mxu0 0.0
        %4033 = vmatpush1.msra.mxu0 0.0
        %4034 = vmatprep.subr.mxu0 0.0
        %4035 = vmatpush1.msra.mxu0 %v3992
        %4036 = vmatprep.subr.mxu0 0.0
        %4037 = vmatpush2.msra.mxu0 0.0
        %4038 = vmatprep.subr.mxu0 0.0
        %4039 = vmatpush2.msra.mxu0 0.0
        %4040 = vmatprep.subr.mxu0 0.0
        %4041 = vmatpush2.msra.mxu0 0.0
        %4042 = vmatprep.subr.mxu0 0.0
        %4043 = vmatpush2.msra.mxu0 0.0
        %4044 = vmatprep.subr.mxu0 0.0
        %4045 = vmatpush2.msra.mxu0 0.0
        %4046 = vmatprep.subr.mxu0 0.0
        %4047 = vmatpush2.msra.mxu0 0.0
        %4048 = vmatprep.subr.mxu0 0.0
        %4049 = vmatpush2.msra.mxu0 0.0
        %4050 = vmatprep.subr.mxu0 0.0
        %4051 = vmatpush2.msra.mxu0 0.0
        %4052 = vmatprep.subr.mxu0 0.0
        %4053 = vmatpush2.msra.mxu0 0.0
        %4054 = vmatprep.subr.mxu0 0.0
        %4055 = vmatpush2.msra.mxu0 0.0
        %4056 = vmatprep.subr.mxu0 0.0
        %4057 = vmatpush2.msra.mxu0 0.0
        %4058 = vmatprep.subr.mxu0 0.0
        %4059 = vmatpush2.msra.mxu0 0.0
        %4060 = vmatprep.subr.mxu0 0.0
        %4061 = vmatpush2.msra.mxu0 0.0
        %4062 = vmatprep.subr.mxu0 0.0
        %4063 = vmatpush2.msra.mxu0 0.0
        %4064 = vmatprep.subr.mxu0 0.0
        %4065 = vmatpush2.msra.mxu0 0.0
        %4066 = vmatprep.subr.mxu0 0.0
        %4067 = vmatpush2.msra.mxu0 0.0
        %4068 = vmatprep.mubr.f32.mxu0 0.0
        %4069 = vmatmul.mubr.f32.gmra.mxu0 %v3999
        %v4070 = vpop.f32.mrf.mxu0
        %v4071 = vadd.f32 0.0, %v4070
        %v4072 = vpop.f32.mrf.mxu0
        %4073 = vmatprep.mubr.f32.mxu0 0.0
        %4074 = vmatmul.mubr.f32.gmra.mxu0 %v4002
        %v4075 = vpop.f32.mrf.mxu0
        %v4076 = vadd.f32 0.0, %v4075
        %v4077 = vpop.f32.mrf.mxu0
        %4078 = vdwg.mxu0
        %v4079 = vadd.f32 %v3914, %v4071
        %v4080 = vadd.f32 %v3915, %v4076
        %s4081 = scalar_lea.vmem %s4, 320
        %v4082 = vld [vmem:[%s4081] sm:$0xff]
        %v4083 = vld [vmem:[%s4081 + $0x8] sm:$0xff]
        %v4084 = vld [vmem:[%s4081 + $0x10] sm:$0xff]
        %v4085 = vld [vmem:[%s4081 + $0x18] sm:$0xff]
        %v4086 = vld [vmem:[%s4081 + $0x20] sm:$0xff]
        %v4087 = vld [vmem:[%s4081 + $0x28] sm:$0xff]
        %v4088 = vld [vmem:[%s4081 + $0x30] sm:$0xff]
        %v4089 = vld [vmem:[%s4081 + $0x38] sm:$0xff]
        %4090 = vmatprep.subr.mxu0 0.0
        %4091 = vmatpush1.msra.mxu0 0.0
        %4092 = vmatprep.subr.mxu0 0.0
        %4093 = vmatpush1.msra.mxu0 0.0
        %4094 = vmatprep.subr.mxu0 0.0
        %4095 = vmatpush1.msra.mxu0 0.0
        %4096 = vmatprep.subr.mxu0 0.0
        %4097 = vmatpush1.msra.mxu0 0.0
        %4098 = vmatprep.subr.mxu0 0.0
        %4099 = vmatpush1.msra.mxu0 0.0
        %4100 = vmatprep.subr.mxu0 0.0
        %4101 = vmatpush1.msra.mxu0 0.0
        %4102 = vmatprep.subr.mxu0 0.0
        %4103 = vmatpush1.msra.mxu0 0.0
        %4104 = vmatprep.subr.mxu0 0.0
        %4105 = vmatpush1.msra.mxu0 0.0
        %4106 = vmatprep.subr.mxu0 0.0
        %4107 = vmatpush1.msra.mxu0 %v4089
        %4108 = vmatprep.subr.mxu0 0.0
        %4109 = vmatpush1.msra.mxu0 %v4088
        %4110 = vmatprep.subr.mxu0 0.0
        %4111 = vmatpush1.msra.mxu0 %v4087
        %4112 = vmatprep.subr.mxu0 0.0
        %4113 = vmatpush1.msra.mxu0 %v4086
        %4114 = vmatprep.subr.mxu0 0.0
        %4115 = vmatpush1.msra.mxu0 %v4085
        %4116 = vmatprep.subr.mxu0 0.0
        %4117 = vmatpush1.msra.mxu0 %v4084
        %4118 = vmatprep.subr.mxu0 0.0
        %4119 = vmatpush1.msra.mxu0 %v4083
        %4120 = vmatprep.subr.mxu0 0.0
        %4121 = vmatpush1.msra.mxu0 %v4082
        %4122 = vmatprep.subr.mxu0 0.0
        %4123 = vmatpush2.msra.mxu0 0.0
        %4124 = vmatprep.subr.mxu0 0.0
        %4125 = vmatpush2.msra.mxu0 0.0
        %4126 = vmatprep.subr.mxu0 0.0
        %4127 = vmatpush2.msra.mxu0 0.0
        %4128 = vmatprep.subr.mxu0 0.0
        %4129 = vmatpush2.msra.mxu0 0.0
        %4130 = vmatprep.subr.mxu0 0.0
        %4131 = vmatpush2.msra.mxu0 0.0
        %4132 = vmatprep.subr.mxu0 0.0
        %4133 = vmatpush2.msra.mxu0 0.0
        %4134 = vmatprep.subr.mxu0 0.0
        %4135 = vmatpush2.msra.mxu0 0.0
        %4136 = vmatprep.subr.mxu0 0.0
        %4137 = vmatpush2.msra.mxu0 0.0
        %4138 = vmatprep.subr.mxu0 0.0
        %4139 = vmatpush2.msra.mxu0 0.0
        %4140 = vmatprep.subr.mxu0 0.0
        %4141 = vmatpush2.msra.mxu0 0.0
        %4142 = vmatprep.subr.mxu0 0.0
        %4143 = vmatpush2.msra.mxu0 0.0
        %4144 = vmatprep.subr.mxu0 0.0
        %4145 = vmatpush2.msra.mxu0 0.0
        %4146 = vmatprep.subr.mxu0 0.0
        %4147 = vmatpush2.msra.mxu0 0.0
        %4148 = vmatprep.subr.mxu0 0.0
        %4149 = vmatpush2.msra.mxu0 0.0
        %4150 = vmatprep.subr.mxu0 0.0
        %4151 = vmatpush2.msra.mxu0 0.0
        %4152 = vmatprep.subr.mxu0 0.0
        %4153 = vmatpush2.msra.mxu0 0.0
        %4154 = vmatprep.mubr.f32.mxu0 0.0
        %4155 = vmatmul.mubr.f32.gmra.mxu0 %v3267
        %v4156 = vpop.f32.mrf.mxu0
        %v4157 = vadd.f32 0.0, %v4156
        %v4158 = vpop.f32.mrf.mxu0
        %4159 = vdwg.mxu0
        %s4160 = scalar_lea.vmem %s5, 80
        %v4161 = vld [vmem:[%s4160] sm:$0xff]
        %v4162 = vld [vmem:[%s4160 + $0x8] sm:$0xff]
        %v4164 = vsel %vm3423, %v4161, 0
        %v4167 = vsel %vm3423, %v4162, 0
        %4169 = vmatprep.subr.mxu0 0.0
        %4170 = vmatpush1.msra.mxu0 0.0
        %4171 = vmatprep.subr.mxu0 0.0
        %4172 = vmatpush1.msra.mxu0 0.0
        %4173 = vmatprep.subr.mxu0 0.0
        %4174 = vmatpush1.msra.mxu0 0.0
        %4175 = vmatprep.subr.mxu0 0.0
        %4176 = vmatpush1.msra.mxu0 0.0
        %4177 = vmatprep.subr.mxu0 0.0
        %4178 = vmatpush1.msra.mxu0 0.0
        %4179 = vmatprep.subr.mxu0 0.0
        %4180 = vmatpush1.msra.mxu0 0.0
        %4181 = vmatprep.subr.mxu0 0.0
        %4182 = vmatpush1.msra.mxu0 0.0
        %4183 = vmatprep.subr.mxu0 0.0
        %4184 = vmatpush1.msra.mxu0 0.0
        %4185 = vmatprep.subr.mxu0 0.0
        %4186 = vmatpush1.msra.mxu0 0.0
        %4187 = vmatprep.subr.mxu0 0.0
        %4188 = vmatpush1.msra.mxu0 0.0
        %4189 = vmatprep.subr.mxu0 0.0
        %4190 = vmatpush1.msra.mxu0 0.0
        %4191 = vmatprep.subr.mxu0 0.0
        %4192 = vmatpush1.msra.mxu0 0.0
        %4193 = vmatprep.subr.mxu0 0.0
        %4194 = vmatpush1.msra.mxu0 0.0
        %4195 = vmatprep.subr.mxu0 0.0
        %4196 = vmatpush1.msra.mxu0 0.0
        %4197 = vmatprep.subr.mxu0 0.0
        %4198 = vmatpush1.msra.mxu0 0.0
        %4199 = vmatprep.subr.mxu0 0.0
        %4200 = vmatpush1.msra.mxu0 %v4157
        %4201 = vmatprep.subr.mxu0 0.0
        %4202 = vmatpush2.msra.mxu0 0.0
        %4203 = vmatprep.subr.mxu0 0.0
        %4204 = vmatpush2.msra.mxu0 0.0
        %4205 = vmatprep.subr.mxu0 0.0
        %4206 = vmatpush2.msra.mxu0 0.0
        %4207 = vmatprep.subr.mxu0 0.0
        %4208 = vmatpush2.msra.mxu0 0.0
        %4209 = vmatprep.subr.mxu0 0.0
        %4210 = vmatpush2.msra.mxu0 0.0
        %4211 = vmatprep.subr.mxu0 0.0
        %4212 = vmatpush2.msra.mxu0 0.0
        %4213 = vmatprep.subr.mxu0 0.0
        %4214 = vmatpush2.msra.mxu0 0.0
        %4215 = vmatprep.subr.mxu0 0.0
        %4216 = vmatpush2.msra.mxu0 0.0
        %4217 = vmatprep.subr.mxu0 0.0
        %4218 = vmatpush2.msra.mxu0 0.0
        %4219 = vmatprep.subr.mxu0 0.0
        %4220 = vmatpush2.msra.mxu0 0.0
        %4221 = vmatprep.subr.mxu0 0.0
        %4222 = vmatpush2.msra.mxu0 0.0
        %4223 = vmatprep.subr.mxu0 0.0
        %4224 = vmatpush2.msra.mxu0 0.0
        %4225 = vmatprep.subr.mxu0 0.0
        %4226 = vmatpush2.msra.mxu0 0.0
        %4227 = vmatprep.subr.mxu0 0.0
        %4228 = vmatpush2.msra.mxu0 0.0
        %4229 = vmatprep.subr.mxu0 0.0
        %4230 = vmatpush2.msra.mxu0 0.0
        %4231 = vmatprep.subr.mxu0 0.0
        %4232 = vmatpush2.msra.mxu0 0.0
        %4233 = vmatprep.mubr.f32.mxu0 0.0
        %4234 = vmatmul.mubr.f32.gmra.mxu0 %v4164
        %v4235 = vpop.f32.mrf.mxu0
        %v4236 = vadd.f32 0.0, %v4235
        %v4237 = vpop.f32.mrf.mxu0
        %4238 = vmatprep.mubr.f32.mxu0 0.0
        %4239 = vmatmul.mubr.f32.gmra.mxu0 %v4167
        %v4240 = vpop.f32.mrf.mxu0
        %v4241 = vadd.f32 0.0, %v4240
        %v4242 = vpop.f32.mrf.mxu0
        %4243 = vdwg.mxu0
        %v4244 = vadd.f32 %v4079, %v4236
        %v4245 = vadd.f32 %v4080, %v4241
        %s4246 = scalar_lea.vmem %s4, 384
        %v4247 = vld [vmem:[%s4246] sm:$0xff]
        %v4248 = vld [vmem:[%s4246 + $0x8] sm:$0xff]
        %v4249 = vld [vmem:[%s4246 + $0x10] sm:$0xff]
        %v4250 = vld [vmem:[%s4246 + $0x18] sm:$0xff]
        %v4251 = vld [vmem:[%s4246 + $0x20] sm:$0xff]
        %v4252 = vld [vmem:[%s4246 + $0x28] sm:$0xff]
        %v4253 = vld [vmem:[%s4246 + $0x30] sm:$0xff]
        %v4254 = vld [vmem:[%s4246 + $0x38] sm:$0xff]
        %4255 = vmatprep.subr.mxu0 0.0
        %4256 = vmatpush1.msra.mxu0 0.0
        %4257 = vmatprep.subr.mxu0 0.0
        %4258 = vmatpush1.msra.mxu0 0.0
        %4259 = vmatprep.subr.mxu0 0.0
        %4260 = vmatpush1.msra.mxu0 0.0
        %4261 = vmatprep.subr.mxu0 0.0
        %4262 = vmatpush1.msra.mxu0 0.0
        %4263 = vmatprep.subr.mxu0 0.0
        %4264 = vmatpush1.msra.mxu0 0.0
        %4265 = vmatprep.subr.mxu0 0.0
        %4266 = vmatpush1.msra.mxu0 0.0
        %4267 = vmatprep.subr.mxu0 0.0
        %4268 = vmatpush1.msra.mxu0 0.0
        %4269 = vmatprep.subr.mxu0 0.0
        %4270 = vmatpush1.msra.mxu0 0.0
        %4271 = vmatprep.subr.mxu0 0.0
        %4272 = vmatpush1.msra.mxu0 %v4254
        %4273 = vmatprep.subr.mxu0 0.0
        %4274 = vmatpush1.msra.mxu0 %v4253
        %4275 = vmatprep.subr.mxu0 0.0
        %4276 = vmatpush1.msra.mxu0 %v4252
        %4277 = vmatprep.subr.mxu0 0.0
        %4278 = vmatpush1.msra.mxu0 %v4251
        %4279 = vmatprep.subr.mxu0 0.0
        %4280 = vmatpush1.msra.mxu0 %v4250
        %4281 = vmatprep.subr.mxu0 0.0
        %4282 = vmatpush1.msra.mxu0 %v4249
        %4283 = vmatprep.subr.mxu0 0.0
        %4284 = vmatpush1.msra.mxu0 %v4248
        %4285 = vmatprep.subr.mxu0 0.0
        %4286 = vmatpush1.msra.mxu0 %v4247
        %4287 = vmatprep.subr.mxu0 0.0
        %4288 = vmatpush2.msra.mxu0 0.0
        %4289 = vmatprep.subr.mxu0 0.0
        %4290 = vmatpush2.msra.mxu0 0.0
        %4291 = vmatprep.subr.mxu0 0.0
        %4292 = vmatpush2.msra.mxu0 0.0
        %4293 = vmatprep.subr.mxu0 0.0
        %4294 = vmatpush2.msra.mxu0 0.0
        %4295 = vmatprep.subr.mxu0 0.0
        %4296 = vmatpush2.msra.mxu0 0.0
        %4297 = vmatprep.subr.mxu0 0.0
        %4298 = vmatpush2.msra.mxu0 0.0
        %4299 = vmatprep.subr.mxu0 0.0
        %4300 = vmatpush2.msra.mxu0 0.0
        %4301 = vmatprep.subr.mxu0 0.0
        %4302 = vmatpush2.msra.mxu0 0.0
        %4303 = vmatprep.subr.mxu0 0.0
        %4304 = vmatpush2.msra.mxu0 0.0
        %4305 = vmatprep.subr.mxu0 0.0
        %4306 = vmatpush2.msra.mxu0 0.0
        %4307 = vmatprep.subr.mxu0 0.0
        %4308 = vmatpush2.msra.mxu0 0.0
        %4309 = vmatprep.subr.mxu0 0.0
        %4310 = vmatpush2.msra.mxu0 0.0
        %4311 = vmatprep.subr.mxu0 0.0
        %4312 = vmatpush2.msra.mxu0 0.0
        %4313 = vmatprep.subr.mxu0 0.0
        %4314 = vmatpush2.msra.mxu0 0.0
        %4315 = vmatprep.subr.mxu0 0.0
        %4316 = vmatpush2.msra.mxu0 0.0
        %4317 = vmatprep.subr.mxu0 0.0
        %4318 = vmatpush2.msra.mxu0 0.0
        %4319 = vmatprep.mubr.f32.mxu0 0.0
        %4320 = vmatmul.mubr.f32.gmra.mxu0 %v3267
        %v4321 = vpop.f32.mrf.mxu0
        %v4322 = vadd.f32 0.0, %v4321
        %v4323 = vpop.f32.mrf.mxu0
        %4324 = vdwg.mxu0
        %s4325 = scalar_lea.vmem %s5, 96
        %v4326 = vld [vmem:[%s4325] sm:$0xff]
        %v4327 = vld [vmem:[%s4325 + $0x8] sm:$0xff]
        %v4329 = vsel %vm3423, %v4326, 0
        %v4332 = vsel %vm3423, %v4327, 0
        %4334 = vmatprep.subr.mxu0 0.0
        %4335 = vmatpush1.msra.mxu0 0.0
        %4336 = vmatprep.subr.mxu0 0.0
        %4337 = vmatpush1.msra.mxu0 0.0
        %4338 = vmatprep.subr.mxu0 0.0
        %4339 = vmatpush1.msra.mxu0 0.0
        %4340 = vmatprep.subr.mxu0 0.0
        %4341 = vmatpush1.msra.mxu0 0.0
        %4342 = vmatprep.subr.mxu0 0.0
        %4343 = vmatpush1.msra.mxu0 0.0
        %4344 = vmatprep.subr.mxu0 0.0
        %4345 = vmatpush1.msra.mxu0 0.0
        %4346 = vmatprep.subr.mxu0 0.0
        %4347 = vmatpush1.msra.mxu0 0.0
        %4348 = vmatprep.subr.mxu0 0.0
        %4349 = vmatpush1.msra.mxu0 0.0
        %4350 = vmatprep.subr.mxu0 0.0
        %4351 = vmatpush1.msra.mxu0 0.0
        %4352 = vmatprep.subr.mxu0 0.0
        %4353 = vmatpush1.msra.mxu0 0.0
        %4354 = vmatprep.subr.mxu0 0.0
        %4355 = vmatpush1.msra.mxu0 0.0
        %4356 = vmatprep.subr.mxu0 0.0
        %4357 = vmatpush1.msra.mxu0 0.0
        %4358 = vmatprep.subr.mxu0 0.0
        %4359 = vmatpush1.msra.mxu0 0.0
        %4360 = vmatprep.subr.mxu0 0.0
        %4361 = vmatpush1.msra.mxu0 0.0
        %4362 = vmatprep.subr.mxu0 0.0
        %4363 = vmatpush1.msra.mxu0 0.0
        %4364 = vmatprep.subr.mxu0 0.0
        %4365 = vmatpush1.msra.mxu0 %v4322
        %4366 = vmatprep.subr.mxu0 0.0
        %4367 = vmatpush2.msra.mxu0 0.0
        %4368 = vmatprep.subr.mxu0 0.0
        %4369 = vmatpush2.msra.mxu0 0.0
        %4370 = vmatprep.subr.mxu0 0.0
        %4371 = vmatpush2.msra.mxu0 0.0
        %4372 = vmatprep.subr.mxu0 0.0
        %4373 = vmatpush2.msra.mxu0 0.0
        %4374 = vmatprep.subr.mxu0 0.0
        %4375 = vmatpush2.msra.mxu0 0.0
        %4376 = vmatprep.subr.mxu0 0.0
        %4377 = vmatpush2.msra.mxu0 0.0
        %4378 = vmatprep.subr.mxu0 0.0
        %4379 = vmatpush2.msra.mxu0 0.0
        %4380 = vmatprep.subr.mxu0 0.0
        %4381 = vmatpush2.msra.mxu0 0.0
        %4382 = vmatprep.subr.mxu0 0.0
        %4383 = vmatpush2.msra.mxu0 0.0
        %4384 = vmatprep.subr.mxu0 0.0
        %4385 = vmatpush2.msra.mxu0 0.0
        %4386 = vmatprep.subr.mxu0 0.0
        %4387 = vmatpush2.msra.mxu0 0.0
        %4388 = vmatprep.subr.mxu0 0.0
        %4389 = vmatpush2.msra.mxu0 0.0
        %4390 = vmatprep.subr.mxu0 0.0
        %4391 = vmatpush2.msra.mxu0 0.0
        %4392 = vmatprep.subr.mxu0 0.0
        %4393 = vmatpush2.msra.mxu0 0.0
        %4394 = vmatprep.subr.mxu0 0.0
        %4395 = vmatpush2.msra.mxu0 0.0
        %4396 = vmatprep.subr.mxu0 0.0
        %4397 = vmatpush2.msra.mxu0 0.0
        %4398 = vmatprep.mubr.f32.mxu0 0.0
        %4399 = vmatmul.mubr.f32.gmra.mxu0 %v4329
        %v4400 = vpop.f32.mrf.mxu0
        %v4401 = vadd.f32 0.0, %v4400
        %v4402 = vpop.f32.mrf.mxu0
        %4403 = vmatprep.mubr.f32.mxu0 0.0
        %4404 = vmatmul.mubr.f32.gmra.mxu0 %v4332
        %v4405 = vpop.f32.mrf.mxu0
        %v4406 = vadd.f32 0.0, %v4405
        %v4407 = vpop.f32.mrf.mxu0
        %4408 = vdwg.mxu0
        %v4409 = vadd.f32 %v4244, %v4401
        %v4410 = vadd.f32 %v4245, %v4406
        %s4411 = scalar_lea.vmem %s4, 448
        %v4412 = vld [vmem:[%s4411] sm:$0xff]
        %v4413 = vld [vmem:[%s4411 + $0x8] sm:$0xff]
        %v4414 = vld [vmem:[%s4411 + $0x10] sm:$0xff]
        %v4415 = vld [vmem:[%s4411 + $0x18] sm:$0xff]
        %v4416 = vld [vmem:[%s4411 + $0x20] sm:$0xff]
        %v4417 = vld [vmem:[%s4411 + $0x28] sm:$0xff]
        %v4418 = vld [vmem:[%s4411 + $0x30] sm:$0xff]
        %v4419 = vld [vmem:[%s4411 + $0x38] sm:$0xff]
        %4420 = vmatprep.subr.mxu0 0.0
        %4421 = vmatpush1.msra.mxu0 0.0
        %4422 = vmatprep.subr.mxu0 0.0
        %4423 = vmatpush1.msra.mxu0 0.0
        %4424 = vmatprep.subr.mxu0 0.0
        %4425 = vmatpush1.msra.mxu0 0.0
        %4426 = vmatprep.subr.mxu0 0.0
        %4427 = vmatpush1.msra.mxu0 0.0
        %4428 = vmatprep.subr.mxu0 0.0
        %4429 = vmatpush1.msra.mxu0 0.0
        %4430 = vmatprep.subr.mxu0 0.0
        %4431 = vmatpush1.msra.mxu0 0.0
        %4432 = vmatprep.subr.mxu0 0.0
        %4433 = vmatpush1.msra.mxu0 0.0
        %4434 = vmatprep.subr.mxu0 0.0
        %4435 = vmatpush1.msra.mxu0 0.0
        %4436 = vmatprep.subr.mxu0 0.0
        %4437 = vmatpush1.msra.mxu0 %v4419
        %4438 = vmatprep.subr.mxu0 0.0
        %4439 = vmatpush1.msra.mxu0 %v4418
        %4440 = vmatprep.subr.mxu0 0.0
        %4441 = vmatpush1.msra.mxu0 %v4417
        %4442 = vmatprep.subr.mxu0 0.0
        %4443 = vmatpush1.msra.mxu0 %v4416
        %4444 = vmatprep.subr.mxu0 0.0
        %4445 = vmatpush1.msra.mxu0 %v4415
        %4446 = vmatprep.subr.mxu0 0.0
        %4447 = vmatpush1.msra.mxu0 %v4414
        %4448 = vmatprep.subr.mxu0 0.0
        %4449 = vmatpush1.msra.mxu0 %v4413
        %4450 = vmatprep.subr.mxu0 0.0
        %4451 = vmatpush1.msra.mxu0 %v4412
        %4452 = vmatprep.subr.mxu0 0.0
        %4453 = vmatpush2.msra.mxu0 0.0
        %4454 = vmatprep.subr.mxu0 0.0
        %4455 = vmatpush2.msra.mxu0 0.0
        %4456 = vmatprep.subr.mxu0 0.0
        %4457 = vmatpush2.msra.mxu0 0.0
        %4458 = vmatprep.subr.mxu0 0.0
        %4459 = vmatpush2.msra.mxu0 0.0
        %4460 = vmatprep.subr.mxu0 0.0
        %4461 = vmatpush2.msra.mxu0 0.0
        %4462 = vmatprep.subr.mxu0 0.0
        %4463 = vmatpush2.msra.mxu0 0.0
        %4464 = vmatprep.subr.mxu0 0.0
        %4465 = vmatpush2.msra.mxu0 0.0
        %4466 = vmatprep.subr.mxu0 0.0
        %4467 = vmatpush2.msra.mxu0 0.0
        %4468 = vmatprep.subr.mxu0 0.0
        %4469 = vmatpush2.msra.mxu0 0.0
        %4470 = vmatprep.subr.mxu0 0.0
        %4471 = vmatpush2.msra.mxu0 0.0
        %4472 = vmatprep.subr.mxu0 0.0
        %4473 = vmatpush2.msra.mxu0 0.0
        %4474 = vmatprep.subr.mxu0 0.0
        %4475 = vmatpush2.msra.mxu0 0.0
        %4476 = vmatprep.subr.mxu0 0.0
        %4477 = vmatpush2.msra.mxu0 0.0
        %4478 = vmatprep.subr.mxu0 0.0
        %4479 = vmatpush2.msra.mxu0 0.0
        %4480 = vmatprep.subr.mxu0 0.0
        %4481 = vmatpush2.msra.mxu0 0.0
        %4482 = vmatprep.subr.mxu0 0.0
        %4483 = vmatpush2.msra.mxu0 0.0
        %4484 = vmatprep.mubr.f32.mxu0 0.0
        %4485 = vmatmul.mubr.f32.gmra.mxu0 %v3267
        %v4486 = vpop.f32.mrf.mxu0
        %v4487 = vadd.f32 0.0, %v4486
        %v4488 = vpop.f32.mrf.mxu0
        %4489 = vdwg.mxu0
        %s4490 = scalar_lea.vmem %s5, 112
        %v4491 = vld [vmem:[%s4490] sm:$0xff]
        %v4492 = vld [vmem:[%s4490 + $0x8] sm:$0xff]
        %v4494 = vsel %vm3423, %v4491, 0
        %v4497 = vsel %vm3423, %v4492, 0
        %4499 = vmatprep.subr.mxu0 0.0
        %4500 = vmatpush1.msra.mxu0 0.0
        %4501 = vmatprep.subr.mxu0 0.0
        %4502 = vmatpush1.msra.mxu0 0.0
        %4503 = vmatprep.subr.mxu0 0.0
        %4504 = vmatpush1.msra.mxu0 0.0
        %4505 = vmatprep.subr.mxu0 0.0
        %4506 = vmatpush1.msra.mxu0 0.0
        %4507 = vmatprep.subr.mxu0 0.0
        %4508 = vmatpush1.msra.mxu0 0.0
        %4509 = vmatprep.subr.mxu0 0.0
        %4510 = vmatpush1.msra.mxu0 0.0
        %4511 = vmatprep.subr.mxu0 0.0
        %4512 = vmatpush1.msra.mxu0 0.0
        %4513 = vmatprep.subr.mxu0 0.0
        %4514 = vmatpush1.msra.mxu0 0.0
        %4515 = vmatprep.subr.mxu0 0.0
        %4516 = vmatpush1.msra.mxu0 0.0
        %4517 = vmatprep.subr.mxu0 0.0
        %4518 = vmatpush1.msra.mxu0 0.0
        %4519 = vmatprep.subr.mxu0 0.0
        %4520 = vmatpush1.msra.mxu0 0.0
        %4521 = vmatprep.subr.mxu0 0.0
        %4522 = vmatpush1.msra.mxu0 0.0
        %4523 = vmatprep.subr.mxu0 0.0
        %4524 = vmatpush1.msra.mxu0 0.0
        %4525 = vmatprep.subr.mxu0 0.0
        %4526 = vmatpush1.msra.mxu0 0.0
        %4527 = vmatprep.subr.mxu0 0.0
        %4528 = vmatpush1.msra.mxu0 0.0
        %4529 = vmatprep.subr.mxu0 0.0
        %4530 = vmatpush1.msra.mxu0 %v4487
        %4531 = vmatprep.subr.mxu0 0.0
        %4532 = vmatpush2.msra.mxu0 0.0
        %4533 = vmatprep.subr.mxu0 0.0
        %4534 = vmatpush2.msra.mxu0 0.0
        %4535 = vmatprep.subr.mxu0 0.0
        %4536 = vmatpush2.msra.mxu0 0.0
        %4537 = vmatprep.subr.mxu0 0.0
        %4538 = vmatpush2.msra.mxu0 0.0
        %4539 = vmatprep.subr.mxu0 0.0
        %4540 = vmatpush2.msra.mxu0 0.0
        %4541 = vmatprep.subr.mxu0 0.0
        %4542 = vmatpush2.msra.mxu0 0.0
        %4543 = vmatprep.subr.mxu0 0.0
        %4544 = vmatpush2.msra.mxu0 0.0
        %4545 = vmatprep.subr.mxu0 0.0
        %4546 = vmatpush2.msra.mxu0 0.0
        %4547 = vmatprep.subr.mxu0 0.0
        %4548 = vmatpush2.msra.mxu0 0.0
        %4549 = vmatprep.subr.mxu0 0.0
        %4550 = vmatpush2.msra.mxu0 0.0
        %4551 = vmatprep.subr.mxu0 0.0
        %4552 = vmatpush2.msra.mxu0 0.0
        %4553 = vmatprep.subr.mxu0 0.0
        %4554 = vmatpush2.msra.mxu0 0.0
        %4555 = vmatprep.subr.mxu0 0.0
        %4556 = vmatpush2.msra.mxu0 0.0
        %4557 = vmatprep.subr.mxu0 0.0
        %4558 = vmatpush2.msra.mxu0 0.0
        %4559 = vmatprep.subr.mxu0 0.0
        %4560 = vmatpush2.msra.mxu0 0.0
        %4561 = vmatprep.subr.mxu0 0.0
        %4562 = vmatpush2.msra.mxu0 0.0
        %4563 = vmatprep.mubr.f32.mxu0 0.0
        %4564 = vmatmul.mubr.f32.gmra.mxu0 %v4494
        %v4565 = vpop.f32.mrf.mxu0
        %v4566 = vadd.f32 0.0, %v4565
        %v4567 = vpop.f32.mrf.mxu0
        %4568 = vmatprep.mubr.f32.mxu0 0.0
        %4569 = vmatmul.mubr.f32.gmra.mxu0 %v4497
        %v4570 = vpop.f32.mrf.mxu0
        %v4571 = vadd.f32 0.0, %v4570
        %v4572 = vpop.f32.mrf.mxu0
        %4573 = vdwg.mxu0
        %v4574 = vadd.f32 %v4409, %v4566
        %v4575 = vadd.f32 %v4410, %v4571
        %s4576 = scalar_lea.vmem %s4, 512
        %v4577 = vld [vmem:[%s4576] sm:$0xff]
        %v4578 = vld [vmem:[%s4576 + $0x8] sm:$0xff]
        %v4579 = vld [vmem:[%s4576 + $0x10] sm:$0xff]
        %v4580 = vld [vmem:[%s4576 + $0x18] sm:$0xff]
        %v4581 = vld [vmem:[%s4576 + $0x20] sm:$0xff]
        %v4582 = vld [vmem:[%s4576 + $0x28] sm:$0xff]
        %v4583 = vld [vmem:[%s4576 + $0x30] sm:$0xff]
        %v4584 = vld [vmem:[%s4576 + $0x38] sm:$0xff]
        %4585 = vmatprep.subr.mxu0 0.0
        %4586 = vmatpush1.msra.mxu0 0.0
        %4587 = vmatprep.subr.mxu0 0.0
        %4588 = vmatpush1.msra.mxu0 0.0
        %4589 = vmatprep.subr.mxu0 0.0
        %4590 = vmatpush1.msra.mxu0 0.0
        %4591 = vmatprep.subr.mxu0 0.0
        %4592 = vmatpush1.msra.mxu0 0.0
        %4593 = vmatprep.subr.mxu0 0.0
        %4594 = vmatpush1.msra.mxu0 0.0
        %4595 = vmatprep.subr.mxu0 0.0
        %4596 = vmatpush1.msra.mxu0 0.0
        %4597 = vmatprep.subr.mxu0 0.0
        %4598 = vmatpush1.msra.mxu0 0.0
        %4599 = vmatprep.subr.mxu0 0.0
        %4600 = vmatpush1.msra.mxu0 0.0
        %4601 = vmatprep.subr.mxu0 0.0
        %4602 = vmatpush1.msra.mxu0 %v4584
        %4603 = vmatprep.subr.mxu0 0.0
        %4604 = vmatpush1.msra.mxu0 %v4583
        %4605 = vmatprep.subr.mxu0 0.0
        %4606 = vmatpush1.msra.mxu0 %v4582
        %4607 = vmatprep.subr.mxu0 0.0
        %4608 = vmatpush1.msra.mxu0 %v4581
        %4609 = vmatprep.subr.mxu0 0.0
        %4610 = vmatpush1.msra.mxu0 %v4580
        %4611 = vmatprep.subr.mxu0 0.0
        %4612 = vmatpush1.msra.mxu0 %v4579
        %4613 = vmatprep.subr.mxu0 0.0
        %4614 = vmatpush1.msra.mxu0 %v4578
        %4615 = vmatprep.subr.mxu0 0.0
        %4616 = vmatpush1.msra.mxu0 %v4577
        %4617 = vmatprep.subr.mxu0 0.0
        %4618 = vmatpush2.msra.mxu0 0.0
        %4619 = vmatprep.subr.mxu0 0.0
        %4620 = vmatpush2.msra.mxu0 0.0
        %4621 = vmatprep.subr.mxu0 0.0
        %4622 = vmatpush2.msra.mxu0 0.0
        %4623 = vmatprep.subr.mxu0 0.0
        %4624 = vmatpush2.msra.mxu0 0.0
        %4625 = vmatprep.subr.mxu0 0.0
        %4626 = vmatpush2.msra.mxu0 0.0
        %4627 = vmatprep.subr.mxu0 0.0
        %4628 = vmatpush2.msra.mxu0 0.0
        %4629 = vmatprep.subr.mxu0 0.0
        %4630 = vmatpush2.msra.mxu0 0.0
        %4631 = vmatprep.subr.mxu0 0.0
        %4632 = vmatpush2.msra.mxu0 0.0
        %4633 = vmatprep.subr.mxu0 0.0
        %4634 = vmatpush2.msra.mxu0 0.0
        %4635 = vmatprep.subr.mxu0 0.0
        %4636 = vmatpush2.msra.mxu0 0.0
        %4637 = vmatprep.subr.mxu0 0.0
        %4638 = vmatpush2.msra.mxu0 0.0
        %4639 = vmatprep.subr.mxu0 0.0
        %4640 = vmatpush2.msra.mxu0 0.0
        %4641 = vmatprep.subr.mxu0 0.0
        %4642 = vmatpush2.msra.mxu0 0.0
        %4643 = vmatprep.subr.mxu0 0.0
        %4644 = vmatpush2.msra.mxu0 0.0
        %4645 = vmatprep.subr.mxu0 0.0
        %4646 = vmatpush2.msra.mxu0 0.0
        %4647 = vmatprep.subr.mxu0 0.0
        %4648 = vmatpush2.msra.mxu0 0.0
        %4649 = vmatprep.mubr.f32.mxu0 0.0
        %4650 = vmatmul.mubr.f32.gmra.mxu0 %v3267
        %v4651 = vpop.f32.mrf.mxu0
        %v4652 = vadd.f32 0.0, %v4651
        %v4653 = vpop.f32.mrf.mxu0
        %4654 = vdwg.mxu0
        %s4655 = scalar_lea.vmem %s5, 128
        %v4656 = vld [vmem:[%s4655] sm:$0xff]
        %v4657 = vld [vmem:[%s4655 + $0x8] sm:$0xff]
        %v4659 = vsel %vm3423, %v4656, 0
        %v4662 = vsel %vm3423, %v4657, 0
        %4664 = vmatprep.subr.mxu0 0.0
        %4665 = vmatpush1.msra.mxu0 0.0
        %4666 = vmatprep.subr.mxu0 0.0
        %4667 = vmatpush1.msra.mxu0 0.0
        %4668 = vmatprep.subr.mxu0 0.0
        %4669 = vmatpush1.msra.mxu0 0.0
        %4670 = vmatprep.subr.mxu0 0.0
        %4671 = vmatpush1.msra.mxu0 0.0
        %4672 = vmatprep.subr.mxu0 0.0
        %4673 = vmatpush1.msra.mxu0 0.0
        %4674 = vmatprep.subr.mxu0 0.0
        %4675 = vmatpush1.msra.mxu0 0.0
        %4676 = vmatprep.subr.mxu0 0.0
        %4677 = vmatpush1.msra.mxu0 0.0
        %4678 = vmatprep.subr.mxu0 0.0
        %4679 = vmatpush1.msra.mxu0 0.0
        %4680 = vmatprep.subr.mxu0 0.0
        %4681 = vmatpush1.msra.mxu0 0.0
        %4682 = vmatprep.subr.mxu0 0.0
        %4683 = vmatpush1.msra.mxu0 0.0
        %4684 = vmatprep.subr.mxu0 0.0
        %4685 = vmatpush1.msra.mxu0 0.0
        %4686 = vmatprep.subr.mxu0 0.0
        %4687 = vmatpush1.msra.mxu0 0.0
        %4688 = vmatprep.subr.mxu0 0.0
        %4689 = vmatpush1.msra.mxu0 0.0
        %4690 = vmatprep.subr.mxu0 0.0
        %4691 = vmatpush1.msra.mxu0 0.0
        %4692 = vmatprep.subr.mxu0 0.0
        %4693 = vmatpush1.msra.mxu0 0.0
        %4694 = vmatprep.subr.mxu0 0.0
        %4695 = vmatpush1.msra.mxu0 %v4652
        %4696 = vmatprep.subr.mxu0 0.0
        %4697 = vmatpush2.msra.mxu0 0.0
        %4698 = vmatprep.subr.mxu0 0.0
        %4699 = vmatpush2.msra.mxu0 0.0
        %4700 = vmatprep.subr.mxu0 0.0
        %4701 = vmatpush2.msra.mxu0 0.0
        %4702 = vmatprep.subr.mxu0 0.0
        %4703 = vmatpush2.msra.mxu0 0.0
        %4704 = vmatprep.subr.mxu0 0.0
        %4705 = vmatpush2.msra.mxu0 0.0
        %4706 = vmatprep.subr.mxu0 0.0
        %4707 = vmatpush2.msra.mxu0 0.0
        %4708 = vmatprep.subr.mxu0 0.0
        %4709 = vmatpush2.msra.mxu0 0.0
        %4710 = vmatprep.subr.mxu0 0.0
        %4711 = vmatpush2.msra.mxu0 0.0
        %4712 = vmatprep.subr.mxu0 0.0
        %4713 = vmatpush2.msra.mxu0 0.0
        %4714 = vmatprep.subr.mxu0 0.0
        %4715 = vmatpush2.msra.mxu0 0.0
        %4716 = vmatprep.subr.mxu0 0.0
        %4717 = vmatpush2.msra.mxu0 0.0
        %4718 = vmatprep.subr.mxu0 0.0
        %4719 = vmatpush2.msra.mxu0 0.0
        %4720 = vmatprep.subr.mxu0 0.0
        %4721 = vmatpush2.msra.mxu0 0.0
        %4722 = vmatprep.subr.mxu0 0.0
        %4723 = vmatpush2.msra.mxu0 0.0
        %4724 = vmatprep.subr.mxu0 0.0
        %4725 = vmatpush2.msra.mxu0 0.0
        %4726 = vmatprep.subr.mxu0 0.0
        %4727 = vmatpush2.msra.mxu0 0.0
        %4728 = vmatprep.mubr.f32.mxu0 0.0
        %4729 = vmatmul.mubr.f32.gmra.mxu0 %v4659
        %v4730 = vpop.f32.mrf.mxu0
        %v4731 = vadd.f32 0.0, %v4730
        %v4732 = vpop.f32.mrf.mxu0
        %4733 = vmatprep.mubr.f32.mxu0 0.0
        %4734 = vmatmul.mubr.f32.gmra.mxu0 %v4662
        %v4735 = vpop.f32.mrf.mxu0
        %v4736 = vadd.f32 0.0, %v4735
        %v4737 = vpop.f32.mrf.mxu0
        %4738 = vdwg.mxu0
        %v4739 = vadd.f32 %v4574, %v4731
        %v4740 = vadd.f32 %v4575, %v4736
        %s4741 = scalar_lea.vmem %s4, 576
        %v4742 = vld [vmem:[%s4741] sm:$0xff]
        %v4743 = vld [vmem:[%s4741 + $0x8] sm:$0xff]
        %v4744 = vld [vmem:[%s4741 + $0x10] sm:$0xff]
        %v4745 = vld [vmem:[%s4741 + $0x18] sm:$0xff]
        %v4746 = vld [vmem:[%s4741 + $0x20] sm:$0xff]
        %v4747 = vld [vmem:[%s4741 + $0x28] sm:$0xff]
        %v4748 = vld [vmem:[%s4741 + $0x30] sm:$0xff]
        %v4749 = vld [vmem:[%s4741 + $0x38] sm:$0xff]
        %4750 = vmatprep.subr.mxu0 0.0
        %4751 = vmatpush1.msra.mxu0 0.0
        %4752 = vmatprep.subr.mxu0 0.0
        %4753 = vmatpush1.msra.mxu0 0.0
        %4754 = vmatprep.subr.mxu0 0.0
        %4755 = vmatpush1.msra.mxu0 0.0
        %4756 = vmatprep.subr.mxu0 0.0
        %4757 = vmatpush1.msra.mxu0 0.0
        %4758 = vmatprep.subr.mxu0 0.0
        %4759 = vmatpush1.msra.mxu0 0.0
        %4760 = vmatprep.subr.mxu0 0.0
        %4761 = vmatpush1.msra.mxu0 0.0
        %4762 = vmatprep.subr.mxu0 0.0
        %4763 = vmatpush1.msra.mxu0 0.0
        %4764 = vmatprep.subr.mxu0 0.0
        %4765 = vmatpush1.msra.mxu0 0.0
        %4766 = vmatprep.subr.mxu0 0.0
        %4767 = vmatpush1.msra.mxu0 %v4749
        %4768 = vmatprep.subr.mxu0 0.0
        %4769 = vmatpush1.msra.mxu0 %v4748
        %4770 = vmatprep.subr.mxu0 0.0
        %4771 = vmatpush1.msra.mxu0 %v4747
        %4772 = vmatprep.subr.mxu0 0.0
        %4773 = vmatpush1.msra.mxu0 %v4746
        %4774 = vmatprep.subr.mxu0 0.0
        %4775 = vmatpush1.msra.mxu0 %v4745
        %4776 = vmatprep.subr.mxu0 0.0
        %4777 = vmatpush1.msra.mxu0 %v4744
        %4778 = vmatprep.subr.mxu0 0.0
        %4779 = vmatpush1.msra.mxu0 %v4743
        %4780 = vmatprep.subr.mxu0 0.0
        %4781 = vmatpush1.msra.mxu0 %v4742
        %4782 = vmatprep.subr.mxu0 0.0
        %4783 = vmatpush2.msra.mxu0 0.0
        %4784 = vmatprep.subr.mxu0 0.0
        %4785 = vmatpush2.msra.mxu0 0.0
        %4786 = vmatprep.subr.mxu0 0.0
        %4787 = vmatpush2.msra.mxu0 0.0
        %4788 = vmatprep.subr.mxu0 0.0
        %4789 = vmatpush2.msra.mxu0 0.0
        %4790 = vmatprep.subr.mxu0 0.0
        %4791 = vmatpush2.msra.mxu0 0.0
        %4792 = vmatprep.subr.mxu0 0.0
        %4793 = vmatpush2.msra.mxu0 0.0
        %4794 = vmatprep.subr.mxu0 0.0
        %4795 = vmatpush2.msra.mxu0 0.0
        %4796 = vmatprep.subr.mxu0 0.0
        %4797 = vmatpush2.msra.mxu0 0.0
        %4798 = vmatprep.subr.mxu0 0.0
        %4799 = vmatpush2.msra.mxu0 0.0
        %4800 = vmatprep.subr.mxu0 0.0
        %4801 = vmatpush2.msra.mxu0 0.0
        %4802 = vmatprep.subr.mxu0 0.0
        %4803 = vmatpush2.msra.mxu0 0.0
        %4804 = vmatprep.subr.mxu0 0.0
        %4805 = vmatpush2.msra.mxu0 0.0
        %4806 = vmatprep.subr.mxu0 0.0
        %4807 = vmatpush2.msra.mxu0 0.0
        %4808 = vmatprep.subr.mxu0 0.0
        %4809 = vmatpush2.msra.mxu0 0.0
        %4810 = vmatprep.subr.mxu0 0.0
        %4811 = vmatpush2.msra.mxu0 0.0
        %4812 = vmatprep.subr.mxu0 0.0
        %4813 = vmatpush2.msra.mxu0 0.0
        %4814 = vmatprep.mubr.f32.mxu0 0.0
        %4815 = vmatmul.mubr.f32.gmra.mxu0 %v3267
        %v4816 = vpop.f32.mrf.mxu0
        %v4817 = vadd.f32 0.0, %v4816
        %v4818 = vpop.f32.mrf.mxu0
        %4819 = vdwg.mxu0
        %s4820 = scalar_lea.vmem %s5, 144
        %v4821 = vld [vmem:[%s4820] sm:$0xff]
        %v4822 = vld [vmem:[%s4820 + $0x8] sm:$0xff]
        %v4824 = vsel %vm3423, %v4821, 0
        %v4827 = vsel %vm3423, %v4822, 0
        %4829 = vmatprep.subr.mxu0 0.0
        %4830 = vmatpush1.msra.mxu0 0.0
        %4831 = vmatprep.subr.mxu0 0.0
        %4832 = vmatpush1.msra.mxu0 0.0
        %4833 = vmatprep.subr.mxu0 0.0
        %4834 = vmatpush1.msra.mxu0 0.0
        %4835 = vmatprep.subr.mxu0 0.0
        %4836 = vmatpush1.msra.mxu0 0.0
        %4837 = vmatprep.subr.mxu0 0.0
        %4838 = vmatpush1.msra.mxu0 0.0
        %4839 = vmatprep.subr.mxu0 0.0
        %4840 = vmatpush1.msra.mxu0 0.0
        %4841 = vmatprep.subr.mxu0 0.0
        %4842 = vmatpush1.msra.mxu0 0.0
        %4843 = vmatprep.subr.mxu0 0.0
        %4844 = vmatpush1.msra.mxu0 0.0
        %4845 = vmatprep.subr.mxu0 0.0
        %4846 = vmatpush1.msra.mxu0 0.0
        %4847 = vmatprep.subr.mxu0 0.0
        %4848 = vmatpush1.msra.mxu0 0.0
        %4849 = vmatprep.subr.mxu0 0.0
        %4850 = vmatpush1.msra.mxu0 0.0
        %4851 = vmatprep.subr.mxu0 0.0
        %4852 = vmatpush1.msra.mxu0 0.0
        %4853 = vmatprep.subr.mxu0 0.0
        %4854 = vmatpush1.msra.mxu0 0.0
        %4855 = vmatprep.subr.mxu0 0.0
        %4856 = vmatpush1.msra.mxu0 0.0
        %4857 = vmatprep.subr.mxu0 0.0
        %4858 = vmatpush1.msra.mxu0 0.0
        %4859 = vmatprep.subr.mxu0 0.0
        %4860 = vmatpush1.msra.mxu0 %v4817
        %4861 = vmatprep.subr.mxu0 0.0
        %4862 = vmatpush2.msra.mxu0 0.0
        %4863 = vmatprep.subr.mxu0 0.0
        %4864 = vmatpush2.msra.mxu0 0.0
        %4865 = vmatprep.subr.mxu0 0.0
        %4866 = vmatpush2.msra.mxu0 0.0
        %4867 = vmatprep.subr.mxu0 0.0
        %4868 = vmatpush2.msra.mxu0 0.0
        %4869 = vmatprep.subr.mxu0 0.0
        %4870 = vmatpush2.msra.mxu0 0.0
        %4871 = vmatprep.subr.mxu0 0.0
        %4872 = vmatpush2.msra.mxu0 0.0
        %4873 = vmatprep.subr.mxu0 0.0
        %4874 = vmatpush2.msra.mxu0 0.0
        %4875 = vmatprep.subr.mxu0 0.0
        %4876 = vmatpush2.msra.mxu0 0.0
        %4877 = vmatprep.subr.mxu0 0.0
        %4878 = vmatpush2.msra.mxu0 0.0
        %4879 = vmatprep.subr.mxu0 0.0
        %4880 = vmatpush2.msra.mxu0 0.0
        %4881 = vmatprep.subr.mxu0 0.0
        %4882 = vmatpush2.msra.mxu0 0.0
        %4883 = vmatprep.subr.mxu0 0.0
        %4884 = vmatpush2.msra.mxu0 0.0
        %4885 = vmatprep.subr.mxu0 0.0
        %4886 = vmatpush2.msra.mxu0 0.0
        %4887 = vmatprep.subr.mxu0 0.0
        %4888 = vmatpush2.msra.mxu0 0.0
        %4889 = vmatprep.subr.mxu0 0.0
        %4890 = vmatpush2.msra.mxu0 0.0
        %4891 = vmatprep.subr.mxu0 0.0
        %4892 = vmatpush2.msra.mxu0 0.0
        %4893 = vmatprep.mubr.f32.mxu0 0.0
        %4894 = vmatmul.mubr.f32.gmra.mxu0 %v4824
        %v4895 = vpop.f32.mrf.mxu0
        %v4896 = vadd.f32 0.0, %v4895
        %v4897 = vpop.f32.mrf.mxu0
        %4898 = vmatprep.mubr.f32.mxu0 0.0
        %4899 = vmatmul.mubr.f32.gmra.mxu0 %v4827
        %v4900 = vpop.f32.mrf.mxu0
        %v4901 = vadd.f32 0.0, %v4900
        %v4902 = vpop.f32.mrf.mxu0
        %4903 = vdwg.mxu0
        %v4904 = vadd.f32 %v4739, %v4896
        %v4905 = vadd.f32 %v4740, %v4901
        %s4906 = scalar_lea.vmem %s4, 640
        %v4907 = vld [vmem:[%s4906] sm:$0xff]
        %v4908 = vld [vmem:[%s4906 + $0x8] sm:$0xff]
        %v4909 = vld [vmem:[%s4906 + $0x10] sm:$0xff]
        %v4910 = vld [vmem:[%s4906 + $0x18] sm:$0xff]
        %v4911 = vld [vmem:[%s4906 + $0x20] sm:$0xff]
        %v4912 = vld [vmem:[%s4906 + $0x28] sm:$0xff]
        %v4913 = vld [vmem:[%s4906 + $0x30] sm:$0xff]
        %v4914 = vld [vmem:[%s4906 + $0x38] sm:$0xff]
        %4915 = vmatprep.subr.mxu0 0.0
        %4916 = vmatpush1.msra.mxu0 0.0
        %4917 = vmatprep.subr.mxu0 0.0
        %4918 = vmatpush1.msra.mxu0 0.0
        %4919 = vmatprep.subr.mxu0 0.0
        %4920 = vmatpush1.msra.mxu0 0.0
        %4921 = vmatprep.subr.mxu0 0.0
        %4922 = vmatpush1.msra.mxu0 0.0
        %4923 = vmatprep.subr.mxu0 0.0
        %4924 = vmatpush1.msra.mxu0 0.0
        %4925 = vmatprep.subr.mxu0 0.0
        %4926 = vmatpush1.msra.mxu0 0.0
        %4927 = vmatprep.subr.mxu0 0.0
        %4928 = vmatpush1.msra.mxu0 0.0
        %4929 = vmatprep.subr.mxu0 0.0
        %4930 = vmatpush1.msra.mxu0 0.0
        %4931 = vmatprep.subr.mxu0 0.0
        %4932 = vmatpush1.msra.mxu0 %v4914
        %4933 = vmatprep.subr.mxu0 0.0
        %4934 = vmatpush1.msra.mxu0 %v4913
        %4935 = vmatprep.subr.mxu0 0.0
        %4936 = vmatpush1.msra.mxu0 %v4912
        %4937 = vmatprep.subr.mxu0 0.0
        %4938 = vmatpush1.msra.mxu0 %v4911
        %4939 = vmatprep.subr.mxu0 0.0
        %4940 = vmatpush1.msra.mxu0 %v4910
        %4941 = vmatprep.subr.mxu0 0.0
        %4942 = vmatpush1.msra.mxu0 %v4909
        %4943 = vmatprep.subr.mxu0 0.0
        %4944 = vmatpush1.msra.mxu0 %v4908
        %4945 = vmatprep.subr.mxu0 0.0
        %4946 = vmatpush1.msra.mxu0 %v4907
        %4947 = vmatprep.subr.mxu0 0.0
        %4948 = vmatpush2.msra.mxu0 0.0
        %4949 = vmatprep.subr.mxu0 0.0
        %4950 = vmatpush2.msra.mxu0 0.0
        %4951 = vmatprep.subr.mxu0 0.0
        %4952 = vmatpush2.msra.mxu0 0.0
        %4953 = vmatprep.subr.mxu0 0.0
        %4954 = vmatpush2.msra.mxu0 0.0
        %4955 = vmatprep.subr.mxu0 0.0
        %4956 = vmatpush2.msra.mxu0 0.0
        %4957 = vmatprep.subr.mxu0 0.0
        %4958 = vmatpush2.msra.mxu0 0.0
        %4959 = vmatprep.subr.mxu0 0.0
        %4960 = vmatpush2.msra.mxu0 0.0
        %4961 = vmatprep.subr.mxu0 0.0
        %4962 = vmatpush2.msra.mxu0 0.0
        %4963 = vmatprep.subr.mxu0 0.0
        %4964 = vmatpush2.msra.mxu0 0.0
        %4965 = vmatprep.subr.mxu0 0.0
        %4966 = vmatpush2.msra.mxu0 0.0
        %4967 = vmatprep.subr.mxu0 0.0
        %4968 = vmatpush2.msra.mxu0 0.0
        %4969 = vmatprep.subr.mxu0 0.0
        %4970 = vmatpush2.msra.mxu0 0.0
        %4971 = vmatprep.subr.mxu0 0.0
        %4972 = vmatpush2.msra.mxu0 0.0
        %4973 = vmatprep.subr.mxu0 0.0
        %4974 = vmatpush2.msra.mxu0 0.0
        %4975 = vmatprep.subr.mxu0 0.0
        %4976 = vmatpush2.msra.mxu0 0.0
        %4977 = vmatprep.subr.mxu0 0.0
        %4978 = vmatpush2.msra.mxu0 0.0
        %4979 = vmatprep.mubr.f32.mxu0 0.0
        %4980 = vmatmul.mubr.f32.gmra.mxu0 %v3267
        %v4981 = vpop.f32.mrf.mxu0
        %v4982 = vadd.f32 0.0, %v4981
        %v4983 = vpop.f32.mrf.mxu0
        %4984 = vdwg.mxu0
        %s4985 = scalar_lea.vmem %s5, 160
        %v4986 = vld [vmem:[%s4985] sm:$0xff]
        %v4987 = vld [vmem:[%s4985 + $0x8] sm:$0xff]
        %v4989 = vsel %vm3423, %v4986, 0
        %v4992 = vsel %vm3423, %v4987, 0
        %4994 = vmatprep.subr.mxu0 0.0
        %4995 = vmatpush1.msra.mxu0 0.0
        %4996 = vmatprep.subr.mxu0 0.0
        %4997 = vmatpush1.msra.mxu0 0.0
        %4998 = vmatprep.subr.mxu0 0.0
        %4999 = vmatpush1.msra.mxu0 0.0
        %5000 = vmatprep.subr.mxu0 0.0
        %5001 = vmatpush1.msra.mxu0 0.0
        %5002 = vmatprep.subr.mxu0 0.0
        %5003 = vmatpush1.msra.mxu0 0.0
        %5004 = vmatprep.subr.mxu0 0.0
        %5005 = vmatpush1.msra.mxu0 0.0
        %5006 = vmatprep.subr.mxu0 0.0
        %5007 = vmatpush1.msra.mxu0 0.0
        %5008 = vmatprep.subr.mxu0 0.0
        %5009 = vmatpush1.msra.mxu0 0.0
        %5010 = vmatprep.subr.mxu0 0.0
        %5011 = vmatpush1.msra.mxu0 0.0
        %5012 = vmatprep.subr.mxu0 0.0
        %5013 = vmatpush1.msra.mxu0 0.0
        %5014 = vmatprep.subr.mxu0 0.0
        %5015 = vmatpush1.msra.mxu0 0.0
        %5016 = vmatprep.subr.mxu0 0.0
        %5017 = vmatpush1.msra.mxu0 0.0
        %5018 = vmatprep.subr.mxu0 0.0
        %5019 = vmatpush1.msra.mxu0 0.0
        %5020 = vmatprep.subr.mxu0 0.0
        %5021 = vmatpush1.msra.mxu0 0.0
        %5022 = vmatprep.subr.mxu0 0.0
        %5023 = vmatpush1.msra.mxu0 0.0
        %5024 = vmatprep.subr.mxu0 0.0
        %5025 = vmatpush1.msra.mxu0 %v4982
        %5026 = vmatprep.subr.mxu0 0.0
        %5027 = vmatpush2.msra.mxu0 0.0
        %5028 = vmatprep.subr.mxu0 0.0
        %5029 = vmatpush2.msra.mxu0 0.0
        %5030 = vmatprep.subr.mxu0 0.0
        %5031 = vmatpush2.msra.mxu0 0.0
        %5032 = vmatprep.subr.mxu0 0.0
        %5033 = vmatpush2.msra.mxu0 0.0
        %5034 = vmatprep.subr.mxu0 0.0
        %5035 = vmatpush2.msra.mxu0 0.0
        %5036 = vmatprep.subr.mxu0 0.0
        %5037 = vmatpush2.msra.mxu0 0.0
        %5038 = vmatprep.subr.mxu0 0.0
        %5039 = vmatpush2.msra.mxu0 0.0
        %5040 = vmatprep.subr.mxu0 0.0
        %5041 = vmatpush2.msra.mxu0 0.0
        %5042 = vmatprep.subr.mxu0 0.0
        %5043 = vmatpush2.msra.mxu0 0.0
        %5044 = vmatprep.subr.mxu0 0.0
        %5045 = vmatpush2.msra.mxu0 0.0
        %5046 = vmatprep.subr.mxu0 0.0
        %5047 = vmatpush2.msra.mxu0 0.0
        %5048 = vmatprep.subr.mxu0 0.0
        %5049 = vmatpush2.msra.mxu0 0.0
        %5050 = vmatprep.subr.mxu0 0.0
        %5051 = vmatpush2.msra.mxu0 0.0
        %5052 = vmatprep.subr.mxu0 0.0
        %5053 = vmatpush2.msra.mxu0 0.0
        %5054 = vmatprep.subr.mxu0 0.0
        %5055 = vmatpush2.msra.mxu0 0.0
        %5056 = vmatprep.subr.mxu0 0.0
        %5057 = vmatpush2.msra.mxu0 0.0
        %5058 = vmatprep.mubr.f32.mxu0 0.0
        %5059 = vmatmul.mubr.f32.gmra.mxu0 %v4989
        %v5060 = vpop.f32.mrf.mxu0
        %v5061 = vadd.f32 0.0, %v5060
        %v5062 = vpop.f32.mrf.mxu0
        %5063 = vmatprep.mubr.f32.mxu0 0.0
        %5064 = vmatmul.mubr.f32.gmra.mxu0 %v4992
        %v5065 = vpop.f32.mrf.mxu0
        %v5066 = vadd.f32 0.0, %v5065
        %v5067 = vpop.f32.mrf.mxu0
        %5068 = vdwg.mxu0
        %v5069 = vadd.f32 %v4904, %v5061
        %v5070 = vadd.f32 %v4905, %v5066
        %s5071 = scalar_lea.vmem %s4, 704
        %v5072 = vld [vmem:[%s5071] sm:$0xff]
        %v5073 = vld [vmem:[%s5071 + $0x8] sm:$0xff]
        %v5074 = vld [vmem:[%s5071 + $0x10] sm:$0xff]
        %v5075 = vld [vmem:[%s5071 + $0x18] sm:$0xff]
        %v5076 = vld [vmem:[%s5071 + $0x20] sm:$0xff]
        %v5077 = vld [vmem:[%s5071 + $0x28] sm:$0xff]
        %v5078 = vld [vmem:[%s5071 + $0x30] sm:$0xff]
        %v5079 = vld [vmem:[%s5071 + $0x38] sm:$0xff]
        %5080 = vmatprep.subr.mxu0 0.0
        %5081 = vmatpush1.msra.mxu0 0.0
        %5082 = vmatprep.subr.mxu0 0.0
        %5083 = vmatpush1.msra.mxu0 0.0
        %5084 = vmatprep.subr.mxu0 0.0
        %5085 = vmatpush1.msra.mxu0 0.0
        %5086 = vmatprep.subr.mxu0 0.0
        %5087 = vmatpush1.msra.mxu0 0.0
        %5088 = vmatprep.subr.mxu0 0.0
        %5089 = vmatpush1.msra.mxu0 0.0
        %5090 = vmatprep.subr.mxu0 0.0
        %5091 = vmatpush1.msra.mxu0 0.0
        %5092 = vmatprep.subr.mxu0 0.0
        %5093 = vmatpush1.msra.mxu0 0.0
        %5094 = vmatprep.subr.mxu0 0.0
        %5095 = vmatpush1.msra.mxu0 0.0
        %5096 = vmatprep.subr.mxu0 0.0
        %5097 = vmatpush1.msra.mxu0 %v5079
        %5098 = vmatprep.subr.mxu0 0.0
        %5099 = vmatpush1.msra.mxu0 %v5078
        %5100 = vmatprep.subr.mxu0 0.0
        %5101 = vmatpush1.msra.mxu0 %v5077
        %5102 = vmatprep.subr.mxu0 0.0
        %5103 = vmatpush1.msra.mxu0 %v5076
        %5104 = vmatprep.subr.mxu0 0.0
        %5105 = vmatpush1.msra.mxu0 %v5075
        %5106 = vmatprep.subr.mxu0 0.0
        %5107 = vmatpush1.msra.mxu0 %v5074
        %5108 = vmatprep.subr.mxu0 0.0
        %5109 = vmatpush1.msra.mxu0 %v5073
        %5110 = vmatprep.subr.mxu0 0.0
        %5111 = vmatpush1.msra.mxu0 %v5072
        %5112 = vmatprep.subr.mxu0 0.0
        %5113 = vmatpush2.msra.mxu0 0.0
        %5114 = vmatprep.subr.mxu0 0.0
        %5115 = vmatpush2.msra.mxu0 0.0
        %5116 = vmatprep.subr.mxu0 0.0
        %5117 = vmatpush2.msra.mxu0 0.0
        %5118 = vmatprep.subr.mxu0 0.0
        %5119 = vmatpush2.msra.mxu0 0.0
        %5120 = vmatprep.subr.mxu0 0.0
        %5121 = vmatpush2.msra.mxu0 0.0
        %5122 = vmatprep.subr.mxu0 0.0
        %5123 = vmatpush2.msra.mxu0 0.0
        %5124 = vmatprep.subr.mxu0 0.0
        %5125 = vmatpush2.msra.mxu0 0.0
        %5126 = vmatprep.subr.mxu0 0.0
        %5127 = vmatpush2.msra.mxu0 0.0
        %5128 = vmatprep.subr.mxu0 0.0
        %5129 = vmatpush2.msra.mxu0 0.0
        %5130 = vmatprep.subr.mxu0 0.0
        %5131 = vmatpush2.msra.mxu0 0.0
        %5132 = vmatprep.subr.mxu0 0.0
        %5133 = vmatpush2.msra.mxu0 0.0
        %5134 = vmatprep.subr.mxu0 0.0
        %5135 = vmatpush2.msra.mxu0 0.0
        %5136 = vmatprep.subr.mxu0 0.0
        %5137 = vmatpush2.msra.mxu0 0.0
        %5138 = vmatprep.subr.mxu0 0.0
        %5139 = vmatpush2.msra.mxu0 0.0
        %5140 = vmatprep.subr.mxu0 0.0
        %5141 = vmatpush2.msra.mxu0 0.0
        %5142 = vmatprep.subr.mxu0 0.0
        %5143 = vmatpush2.msra.mxu0 0.0
        %5144 = vmatprep.mubr.f32.mxu0 0.0
        %5145 = vmatmul.mubr.f32.gmra.mxu0 %v3267
        %v5146 = vpop.f32.mrf.mxu0
        %v5147 = vadd.f32 0.0, %v5146
        %v5148 = vpop.f32.mrf.mxu0
        %5149 = vdwg.mxu0
        %s5150 = scalar_lea.vmem %s5, 176
        %v5151 = vld [vmem:[%s5150] sm:$0xff]
        %v5152 = vld [vmem:[%s5150 + $0x8] sm:$0xff]
        %v5154 = vsel %vm3423, %v5151, 0
        %v5157 = vsel %vm3423, %v5152, 0
        %5159 = vmatprep.subr.mxu0 0.0
        %5160 = vmatpush1.msra.mxu0 0.0
        %5161 = vmatprep.subr.mxu0 0.0
        %5162 = vmatpush1.msra.mxu0 0.0
        %5163 = vmatprep.subr.mxu0 0.0
        %5164 = vmatpush1.msra.mxu0 0.0
        %5165 = vmatprep.subr.mxu0 0.0
        %5166 = vmatpush1.msra.mxu0 0.0
        %5167 = vmatprep.subr.mxu0 0.0
        %5168 = vmatpush1.msra.mxu0 0.0
        %5169 = vmatprep.subr.mxu0 0.0
        %5170 = vmatpush1.msra.mxu0 0.0
        %5171 = vmatprep.subr.mxu0 0.0
        %5172 = vmatpush1.msra.mxu0 0.0
        %5173 = vmatprep.subr.mxu0 0.0
        %5174 = vmatpush1.msra.mxu0 0.0
        %5175 = vmatprep.subr.mxu0 0.0
        %5176 = vmatpush1.msra.mxu0 0.0
        %5177 = vmatprep.subr.mxu0 0.0
        %5178 = vmatpush1.msra.mxu0 0.0
        %5179 = vmatprep.subr.mxu0 0.0
        %5180 = vmatpush1.msra.mxu0 0.0
        %5181 = vmatprep.subr.mxu0 0.0
        %5182 = vmatpush1.msra.mxu0 0.0
        %5183 = vmatprep.subr.mxu0 0.0
        %5184 = vmatpush1.msra.mxu0 0.0
        %5185 = vmatprep.subr.mxu0 0.0
        %5186 = vmatpush1.msra.mxu0 0.0
        %5187 = vmatprep.subr.mxu0 0.0
        %5188 = vmatpush1.msra.mxu0 0.0
        %5189 = vmatprep.subr.mxu0 0.0
        %5190 = vmatpush1.msra.mxu0 %v5147
        %5191 = vmatprep.subr.mxu0 0.0
        %5192 = vmatpush2.msra.mxu0 0.0
        %5193 = vmatprep.subr.mxu0 0.0
        %5194 = vmatpush2.msra.mxu0 0.0
        %5195 = vmatprep.subr.mxu0 0.0
        %5196 = vmatpush2.msra.mxu0 0.0
        %5197 = vmatprep.subr.mxu0 0.0
        %5198 = vmatpush2.msra.mxu0 0.0
        %5199 = vmatprep.subr.mxu0 0.0
        %5200 = vmatpush2.msra.mxu0 0.0
        %5201 = vmatprep.subr.mxu0 0.0
        %5202 = vmatpush2.msra.mxu0 0.0
        %5203 = vmatprep.subr.mxu0 0.0
        %5204 = vmatpush2.msra.mxu0 0.0
        %5205 = vmatprep.subr.mxu0 0.0
        %5206 = vmatpush2.msra.mxu0 0.0
        %5207 = vmatprep.subr.mxu0 0.0
        %5208 = vmatpush2.msra.mxu0 0.0
        %5209 = vmatprep.subr.mxu0 0.0
        %5210 = vmatpush2.msra.mxu0 0.0
        %5211 = vmatprep.subr.mxu0 0.0
        %5212 = vmatpush2.msra.mxu0 0.0
        %5213 = vmatprep.subr.mxu0 0.0
        %5214 = vmatpush2.msra.mxu0 0.0
        %5215 = vmatprep.subr.mxu0 0.0
        %5216 = vmatpush2.msra.mxu0 0.0
        %5217 = vmatprep.subr.mxu0 0.0
        %5218 = vmatpush2.msra.mxu0 0.0
        %5219 = vmatprep.subr.mxu0 0.0
        %5220 = vmatpush2.msra.mxu0 0.0
        %5221 = vmatprep.subr.mxu0 0.0
        %5222 = vmatpush2.msra.mxu0 0.0
        %5223 = vmatprep.mubr.f32.mxu0 0.0
        %5224 = vmatmul.mubr.f32.gmra.mxu0 %v5154
        %v5225 = vpop.f32.mrf.mxu0
        %v5226 = vadd.f32 0.0, %v5225
        %v5227 = vpop.f32.mrf.mxu0
        %5228 = vmatprep.mubr.f32.mxu0 0.0
        %5229 = vmatmul.mubr.f32.gmra.mxu0 %v5157
        %v5230 = vpop.f32.mrf.mxu0
        %v5231 = vadd.f32 0.0, %v5230
        %v5232 = vpop.f32.mrf.mxu0
        %5233 = vdwg.mxu0
        %v5234 = vadd.f32 %v5069, %v5226
        %v5235 = vadd.f32 %v5070, %v5231
        %s5236 = scalar_lea.vmem %s4, 768
        %v5237 = vld [vmem:[%s5236] sm:$0xff]
        %v5238 = vld [vmem:[%s5236 + $0x8] sm:$0xff]
        %v5239 = vld [vmem:[%s5236 + $0x10] sm:$0xff]
        %v5240 = vld [vmem:[%s5236 + $0x18] sm:$0xff]
        %v5241 = vld [vmem:[%s5236 + $0x20] sm:$0xff]
        %v5242 = vld [vmem:[%s5236 + $0x28] sm:$0xff]
        %v5243 = vld [vmem:[%s5236 + $0x30] sm:$0xff]
        %v5244 = vld [vmem:[%s5236 + $0x38] sm:$0xff]
        %5245 = vmatprep.subr.mxu0 0.0
        %5246 = vmatpush1.msra.mxu0 0.0
        %5247 = vmatprep.subr.mxu0 0.0
        %5248 = vmatpush1.msra.mxu0 0.0
        %5249 = vmatprep.subr.mxu0 0.0
        %5250 = vmatpush1.msra.mxu0 0.0
        %5251 = vmatprep.subr.mxu0 0.0
        %5252 = vmatpush1.msra.mxu0 0.0
        %5253 = vmatprep.subr.mxu0 0.0
        %5254 = vmatpush1.msra.mxu0 0.0
        %5255 = vmatprep.subr.mxu0 0.0
        %5256 = vmatpush1.msra.mxu0 0.0
        %5257 = vmatprep.subr.mxu0 0.0
        %5258 = vmatpush1.msra.mxu0 0.0
        %5259 = vmatprep.subr.mxu0 0.0
        %5260 = vmatpush1.msra.mxu0 0.0
        %5261 = vmatprep.subr.mxu0 0.0
        %5262 = vmatpush1.msra.mxu0 %v5244
        %5263 = vmatprep.subr.mxu0 0.0
        %5264 = vmatpush1.msra.mxu0 %v5243
        %5265 = vmatprep.subr.mxu0 0.0
        %5266 = vmatpush1.msra.mxu0 %v5242
        %5267 = vmatprep.subr.mxu0 0.0
        %5268 = vmatpush1.msra.mxu0 %v5241
        %5269 = vmatprep.subr.mxu0 0.0
        %5270 = vmatpush1.msra.mxu0 %v5240
        %5271 = vmatprep.subr.mxu0 0.0
        %5272 = vmatpush1.msra.mxu0 %v5239
        %5273 = vmatprep.subr.mxu0 0.0
        %5274 = vmatpush1.msra.mxu0 %v5238
        %5275 = vmatprep.subr.mxu0 0.0
        %5276 = vmatpush1.msra.mxu0 %v5237
        %5277 = vmatprep.subr.mxu0 0.0
        %5278 = vmatpush2.msra.mxu0 0.0
        %5279 = vmatprep.subr.mxu0 0.0
        %5280 = vmatpush2.msra.mxu0 0.0
        %5281 = vmatprep.subr.mxu0 0.0
        %5282 = vmatpush2.msra.mxu0 0.0
        %5283 = vmatprep.subr.mxu0 0.0
        %5284 = vmatpush2.msra.mxu0 0.0
        %5285 = vmatprep.subr.mxu0 0.0
        %5286 = vmatpush2.msra.mxu0 0.0
        %5287 = vmatprep.subr.mxu0 0.0
        %5288 = vmatpush2.msra.mxu0 0.0
        %5289 = vmatprep.subr.mxu0 0.0
        %5290 = vmatpush2.msra.mxu0 0.0
        %5291 = vmatprep.subr.mxu0 0.0
        %5292 = vmatpush2.msra.mxu0 0.0
        %5293 = vmatprep.subr.mxu0 0.0
        %5294 = vmatpush2.msra.mxu0 0.0
        %5295 = vmatprep.subr.mxu0 0.0
        %5296 = vmatpush2.msra.mxu0 0.0
        %5297 = vmatprep.subr.mxu0 0.0
        %5298 = vmatpush2.msra.mxu0 0.0
        %5299 = vmatprep.subr.mxu0 0.0
        %5300 = vmatpush2.msra.mxu0 0.0
        %5301 = vmatprep.subr.mxu0 0.0
        %5302 = vmatpush2.msra.mxu0 0.0
        %5303 = vmatprep.subr.mxu0 0.0
        %5304 = vmatpush2.msra.mxu0 0.0
        %5305 = vmatprep.subr.mxu0 0.0
        %5306 = vmatpush2.msra.mxu0 0.0
        %5307 = vmatprep.subr.mxu0 0.0
        %5308 = vmatpush2.msra.mxu0 0.0
        %5309 = vmatprep.mubr.f32.mxu0 0.0
        %5310 = vmatmul.mubr.f32.gmra.mxu0 %v3267
        %v5311 = vpop.f32.mrf.mxu0
        %v5312 = vadd.f32 0.0, %v5311
        %v5313 = vpop.f32.mrf.mxu0
        %5314 = vdwg.mxu0
        %s5315 = scalar_lea.vmem %s5, 192
        %v5316 = vld [vmem:[%s5315] sm:$0xff]
        %v5317 = vld [vmem:[%s5315 + $0x8] sm:$0xff]
        %v5319 = vsel %vm3423, %v5316, 0
        %v5322 = vsel %vm3423, %v5317, 0
        %5324 = vmatprep.subr.mxu0 0.0
        %5325 = vmatpush1.msra.mxu0 0.0
        %5326 = vmatprep.subr.mxu0 0.0
        %5327 = vmatpush1.msra.mxu0 0.0
        %5328 = vmatprep.subr.mxu0 0.0
        %5329 = vmatpush1.msra.mxu0 0.0
        %5330 = vmatprep.subr.mxu0 0.0
        %5331 = vmatpush1.msra.mxu0 0.0
        %5332 = vmatprep.subr.mxu0 0.0
        %5333 = vmatpush1.msra.mxu0 0.0
        %5334 = vmatprep.subr.mxu0 0.0
        %5335 = vmatpush1.msra.mxu0 0.0
        %5336 = vmatprep.subr.mxu0 0.0
        %5337 = vmatpush1.msra.mxu0 0.0
        %5338 = vmatprep.subr.mxu0 0.0
        %5339 = vmatpush1.msra.mxu0 0.0
        %5340 = vmatprep.subr.mxu0 0.0
        %5341 = vmatpush1.msra.mxu0 0.0
        %5342 = vmatprep.subr.mxu0 0.0
        %5343 = vmatpush1.msra.mxu0 0.0
        %5344 = vmatprep.subr.mxu0 0.0
        %5345 = vmatpush1.msra.mxu0 0.0
        %5346 = vmatprep.subr.mxu0 0.0
        %5347 = vmatpush1.msra.mxu0 0.0
        %5348 = vmatprep.subr.mxu0 0.0
        %5349 = vmatpush1.msra.mxu0 0.0
        %5350 = vmatprep.subr.mxu0 0.0
        %5351 = vmatpush1.msra.mxu0 0.0
        %5352 = vmatprep.subr.mxu0 0.0
        %5353 = vmatpush1.msra.mxu0 0.0
        %5354 = vmatprep.subr.mxu0 0.0
        %5355 = vmatpush1.msra.mxu0 %v5312
        %5356 = vmatprep.subr.mxu0 0.0
        %5357 = vmatpush2.msra.mxu0 0.0
        %5358 = vmatprep.subr.mxu0 0.0
        %5359 = vmatpush2.msra.mxu0 0.0
        %5360 = vmatprep.subr.mxu0 0.0
        %5361 = vmatpush2.msra.mxu0 0.0
        %5362 = vmatprep.subr.mxu0 0.0
        %5363 = vmatpush2.msra.mxu0 0.0
        %5364 = vmatprep.subr.mxu0 0.0
        %5365 = vmatpush2.msra.mxu0 0.0
        %5366 = vmatprep.subr.mxu0 0.0
        %5367 = vmatpush2.msra.mxu0 0.0
        %5368 = vmatprep.subr.mxu0 0.0
        %5369 = vmatpush2.msra.mxu0 0.0
        %5370 = vmatprep.subr.mxu0 0.0
        %5371 = vmatpush2.msra.mxu0 0.0
        %5372 = vmatprep.subr.mxu0 0.0
        %5373 = vmatpush2.msra.mxu0 0.0
        %5374 = vmatprep.subr.mxu0 0.0
        %5375 = vmatpush2.msra.mxu0 0.0
        %5376 = vmatprep.subr.mxu0 0.0
        %5377 = vmatpush2.msra.mxu0 0.0
        %5378 = vmatprep.subr.mxu0 0.0
        %5379 = vmatpush2.msra.mxu0 0.0
        %5380 = vmatprep.subr.mxu0 0.0
        %5381 = vmatpush2.msra.mxu0 0.0
        %5382 = vmatprep.subr.mxu0 0.0
        %5383 = vmatpush2.msra.mxu0 0.0
        %5384 = vmatprep.subr.mxu0 0.0
        %5385 = vmatpush2.msra.mxu0 0.0
        %5386 = vmatprep.subr.mxu0 0.0
        %5387 = vmatpush2.msra.mxu0 0.0
        %5388 = vmatprep.mubr.f32.mxu0 0.0
        %5389 = vmatmul.mubr.f32.gmra.mxu0 %v5319
        %v5390 = vpop.f32.mrf.mxu0
        %v5391 = vadd.f32 0.0, %v5390
        %v5392 = vpop.f32.mrf.mxu0
        %5393 = vmatprep.mubr.f32.mxu0 0.0
        %5394 = vmatmul.mubr.f32.gmra.mxu0 %v5322
        %v5395 = vpop.f32.mrf.mxu0
        %v5396 = vadd.f32 0.0, %v5395
        %v5397 = vpop.f32.mrf.mxu0
        %5398 = vdwg.mxu0
        %v5399 = vadd.f32 %v5234, %v5391
        %v5400 = vadd.f32 %v5235, %v5396
        %s5401 = scalar_lea.vmem %s4, 832
        %v5402 = vld [vmem:[%s5401] sm:$0xff]
        %v5403 = vld [vmem:[%s5401 + $0x8] sm:$0xff]
        %v5404 = vld [vmem:[%s5401 + $0x10] sm:$0xff]
        %v5405 = vld [vmem:[%s5401 + $0x18] sm:$0xff]
        %v5406 = vld [vmem:[%s5401 + $0x20] sm:$0xff]
        %v5407 = vld [vmem:[%s5401 + $0x28] sm:$0xff]
        %v5408 = vld [vmem:[%s5401 + $0x30] sm:$0xff]
        %v5409 = vld [vmem:[%s5401 + $0x38] sm:$0xff]
        %5410 = vmatprep.subr.mxu0 0.0
        %5411 = vmatpush1.msra.mxu0 0.0
        %5412 = vmatprep.subr.mxu0 0.0
        %5413 = vmatpush1.msra.mxu0 0.0
        %5414 = vmatprep.subr.mxu0 0.0
        %5415 = vmatpush1.msra.mxu0 0.0
        %5416 = vmatprep.subr.mxu0 0.0
        %5417 = vmatpush1.msra.mxu0 0.0
        %5418 = vmatprep.subr.mxu0 0.0
        %5419 = vmatpush1.msra.mxu0 0.0
        %5420 = vmatprep.subr.mxu0 0.0
        %5421 = vmatpush1.msra.mxu0 0.0
        %5422 = vmatprep.subr.mxu0 0.0
        %5423 = vmatpush1.msra.mxu0 0.0
        %5424 = vmatprep.subr.mxu0 0.0
        %5425 = vmatpush1.msra.mxu0 0.0
        %5426 = vmatprep.subr.mxu0 0.0
        %5427 = vmatpush1.msra.mxu0 %v5409
        %5428 = vmatprep.subr.mxu0 0.0
        %5429 = vmatpush1.msra.mxu0 %v5408
        %5430 = vmatprep.subr.mxu0 0.0
        %5431 = vmatpush1.msra.mxu0 %v5407
        %5432 = vmatprep.subr.mxu0 0.0
        %5433 = vmatpush1.msra.mxu0 %v5406
        %5434 = vmatprep.subr.mxu0 0.0
        %5435 = vmatpush1.msra.mxu0 %v5405
        %5436 = vmatprep.subr.mxu0 0.0
        %5437 = vmatpush1.msra.mxu0 %v5404
        %5438 = vmatprep.subr.mxu0 0.0
        %5439 = vmatpush1.msra.mxu0 %v5403
        %5440 = vmatprep.subr.mxu0 0.0
        %5441 = vmatpush1.msra.mxu0 %v5402
        %5442 = vmatprep.subr.mxu0 0.0
        %5443 = vmatpush2.msra.mxu0 0.0
        %5444 = vmatprep.subr.mxu0 0.0
        %5445 = vmatpush2.msra.mxu0 0.0
        %5446 = vmatprep.subr.mxu0 0.0
        %5447 = vmatpush2.msra.mxu0 0.0
        %5448 = vmatprep.subr.mxu0 0.0
        %5449 = vmatpush2.msra.mxu0 0.0
        %5450 = vmatprep.subr.mxu0 0.0
        %5451 = vmatpush2.msra.mxu0 0.0
        %5452 = vmatprep.subr.mxu0 0.0
        %5453 = vmatpush2.msra.mxu0 0.0
        %5454 = vmatprep.subr.mxu0 0.0
        %5455 = vmatpush2.msra.mxu0 0.0
        %5456 = vmatprep.subr.mxu0 0.0
        %5457 = vmatpush2.msra.mxu0 0.0
        %5458 = vmatprep.subr.mxu0 0.0
        %5459 = vmatpush2.msra.mxu0 0.0
        %5460 = vmatprep.subr.mxu0 0.0
        %5461 = vmatpush2.msra.mxu0 0.0
        %5462 = vmatprep.subr.mxu0 0.0
        %5463 = vmatpush2.msra.mxu0 0.0
        %5464 = vmatprep.subr.mxu0 0.0
        %5465 = vmatpush2.msra.mxu0 0.0
        %5466 = vmatprep.subr.mxu0 0.0
        %5467 = vmatpush2.msra.mxu0 0.0
        %5468 = vmatprep.subr.mxu0 0.0
        %5469 = vmatpush2.msra.mxu0 0.0
        %5470 = vmatprep.subr.mxu0 0.0
        %5471 = vmatpush2.msra.mxu0 0.0
        %5472 = vmatprep.subr.mxu0 0.0
        %5473 = vmatpush2.msra.mxu0 0.0
        %5474 = vmatprep.mubr.f32.mxu0 0.0
        %5475 = vmatmul.mubr.f32.gmra.mxu0 %v3267
        %v5476 = vpop.f32.mrf.mxu0
        %v5477 = vadd.f32 0.0, %v5476
        %v5478 = vpop.f32.mrf.mxu0
        %5479 = vdwg.mxu0
        %s5480 = scalar_lea.vmem %s5, 208
        %v5481 = vld [vmem:[%s5480] sm:$0xff]
        %v5482 = vld [vmem:[%s5480 + $0x8] sm:$0xff]
        %v5484 = vsel %vm3423, %v5481, 0
        %v5487 = vsel %vm3423, %v5482, 0
        %5489 = vmatprep.subr.mxu0 0.0
        %5490 = vmatpush1.msra.mxu0 0.0
        %5491 = vmatprep.subr.mxu0 0.0
        %5492 = vmatpush1.msra.mxu0 0.0
        %5493 = vmatprep.subr.mxu0 0.0
        %5494 = vmatpush1.msra.mxu0 0.0
        %5495 = vmatprep.subr.mxu0 0.0
        %5496 = vmatpush1.msra.mxu0 0.0
        %5497 = vmatprep.subr.mxu0 0.0
        %5498 = vmatpush1.msra.mxu0 0.0
        %5499 = vmatprep.subr.mxu0 0.0
        %5500 = vmatpush1.msra.mxu0 0.0
        %5501 = vmatprep.subr.mxu0 0.0
        %5502 = vmatpush1.msra.mxu0 0.0
        %5503 = vmatprep.subr.mxu0 0.0
        %5504 = vmatpush1.msra.mxu0 0.0
        %5505 = vmatprep.subr.mxu0 0.0
        %5506 = vmatpush1.msra.mxu0 0.0
        %5507 = vmatprep.subr.mxu0 0.0
        %5508 = vmatpush1.msra.mxu0 0.0
        %5509 = vmatprep.subr.mxu0 0.0
        %5510 = vmatpush1.msra.mxu0 0.0
        %5511 = vmatprep.subr.mxu0 0.0
        %5512 = vmatpush1.msra.mxu0 0.0
        %5513 = vmatprep.subr.mxu0 0.0
        %5514 = vmatpush1.msra.mxu0 0.0
        %5515 = vmatprep.subr.mxu0 0.0
        %5516 = vmatpush1.msra.mxu0 0.0
        %5517 = vmatprep.subr.mxu0 0.0
        %5518 = vmatpush1.msra.mxu0 0.0
        %5519 = vmatprep.subr.mxu0 0.0
        %5520 = vmatpush1.msra.mxu0 %v5477
        %5521 = vmatprep.subr.mxu0 0.0
        %5522 = vmatpush2.msra.mxu0 0.0
        %5523 = vmatprep.subr.mxu0 0.0
        %5524 = vmatpush2.msra.mxu0 0.0
        %5525 = vmatprep.subr.mxu0 0.0
        %5526 = vmatpush2.msra.mxu0 0.0
        %5527 = vmatprep.subr.mxu0 0.0
        %5528 = vmatpush2.msra.mxu0 0.0
        %5529 = vmatprep.subr.mxu0 0.0
        %5530 = vmatpush2.msra.mxu0 0.0
        %5531 = vmatprep.subr.mxu0 0.0
        %5532 = vmatpush2.msra.mxu0 0.0
        %5533 = vmatprep.subr.mxu0 0.0
        %5534 = vmatpush2.msra.mxu0 0.0
        %5535 = vmatprep.subr.mxu0 0.0
        %5536 = vmatpush2.msra.mxu0 0.0
        %5537 = vmatprep.subr.mxu0 0.0
        %5538 = vmatpush2.msra.mxu0 0.0
        %5539 = vmatprep.subr.mxu0 0.0
        %5540 = vmatpush2.msra.mxu0 0.0
        %5541 = vmatprep.subr.mxu0 0.0
        %5542 = vmatpush2.msra.mxu0 0.0
        %5543 = vmatprep.subr.mxu0 0.0
        %5544 = vmatpush2.msra.mxu0 0.0
        %5545 = vmatprep.subr.mxu0 0.0
        %5546 = vmatpush2.msra.mxu0 0.0
        %5547 = vmatprep.subr.mxu0 0.0
        %5548 = vmatpush2.msra.mxu0 0.0
        %5549 = vmatprep.subr.mxu0 0.0
        %5550 = vmatpush2.msra.mxu0 0.0
        %5551 = vmatprep.subr.mxu0 0.0
        %5552 = vmatpush2.msra.mxu0 0.0
        %5553 = vmatprep.mubr.f32.mxu0 0.0
        %5554 = vmatmul.mubr.f32.gmra.mxu0 %v5484
        %v5555 = vpop.f32.mrf.mxu0
        %v5556 = vadd.f32 0.0, %v5555
        %v5557 = vpop.f32.mrf.mxu0
        %5558 = vmatprep.mubr.f32.mxu0 0.0
        %5559 = vmatmul.mubr.f32.gmra.mxu0 %v5487
        %v5560 = vpop.f32.mrf.mxu0
        %v5561 = vadd.f32 0.0, %v5560
        %v5562 = vpop.f32.mrf.mxu0
        %5563 = vdwg.mxu0
        %v5564 = vadd.f32 %v5399, %v5556
        %v5565 = vadd.f32 %v5400, %v5561
        %s5566 = scalar_lea.vmem %s4, 896
        %v5567 = vld [vmem:[%s5566] sm:$0xff]
        %v5568 = vld [vmem:[%s5566 + $0x8] sm:$0xff]
        %v5569 = vld [vmem:[%s5566 + $0x10] sm:$0xff]
        %v5570 = vld [vmem:[%s5566 + $0x18] sm:$0xff]
        %v5571 = vld [vmem:[%s5566 + $0x20] sm:$0xff]
        %v5572 = vld [vmem:[%s5566 + $0x28] sm:$0xff]
        %v5573 = vld [vmem:[%s5566 + $0x30] sm:$0xff]
        %v5574 = vld [vmem:[%s5566 + $0x38] sm:$0xff]
        %5575 = vmatprep.subr.mxu0 0.0
        %5576 = vmatpush1.msra.mxu0 0.0
        %5577 = vmatprep.subr.mxu0 0.0
        %5578 = vmatpush1.msra.mxu0 0.0
        %5579 = vmatprep.subr.mxu0 0.0
        %5580 = vmatpush1.msra.mxu0 0.0
        %5581 = vmatprep.subr.mxu0 0.0
        %5582 = vmatpush1.msra.mxu0 0.0
        %5583 = vmatprep.subr.mxu0 0.0
        %5584 = vmatpush1.msra.mxu0 0.0
        %5585 = vmatprep.subr.mxu0 0.0
        %5586 = vmatpush1.msra.mxu0 0.0
        %5587 = vmatprep.subr.mxu0 0.0
        %5588 = vmatpush1.msra.mxu0 0.0
        %5589 = vmatprep.subr.mxu0 0.0
        %5590 = vmatpush1.msra.mxu0 0.0
        %5591 = vmatprep.subr.mxu0 0.0
        %5592 = vmatpush1.msra.mxu0 %v5574
        %5593 = vmatprep.subr.mxu0 0.0
        %5594 = vmatpush1.msra.mxu0 %v5573
        %5595 = vmatprep.subr.mxu0 0.0
        %5596 = vmatpush1.msra.mxu0 %v5572
        %5597 = vmatprep.subr.mxu0 0.0
        %5598 = vmatpush1.msra.mxu0 %v5571
        %5599 = vmatprep.subr.mxu0 0.0
        %5600 = vmatpush1.msra.mxu0 %v5570
        %5601 = vmatprep.subr.mxu0 0.0
        %5602 = vmatpush1.msra.mxu0 %v5569
        %5603 = vmatprep.subr.mxu0 0.0
        %5604 = vmatpush1.msra.mxu0 %v5568
        %5605 = vmatprep.subr.mxu0 0.0
        %5606 = vmatpush1.msra.mxu0 %v5567
        %5607 = vmatprep.subr.mxu0 0.0
        %5608 = vmatpush2.msra.mxu0 0.0
        %5609 = vmatprep.subr.mxu0 0.0
        %5610 = vmatpush2.msra.mxu0 0.0
        %5611 = vmatprep.subr.mxu0 0.0
        %5612 = vmatpush2.msra.mxu0 0.0
        %5613 = vmatprep.subr.mxu0 0.0
        %5614 = vmatpush2.msra.mxu0 0.0
        %5615 = vmatprep.subr.mxu0 0.0
        %5616 = vmatpush2.msra.mxu0 0.0
        %5617 = vmatprep.subr.mxu0 0.0
        %5618 = vmatpush2.msra.mxu0 0.0
        %5619 = vmatprep.subr.mxu0 0.0
        %5620 = vmatpush2.msra.mxu0 0.0
        %5621 = vmatprep.subr.mxu0 0.0
        %5622 = vmatpush2.msra.mxu0 0.0
        %5623 = vmatprep.subr.mxu0 0.0
        %5624 = vmatpush2.msra.mxu0 0.0
        %5625 = vmatprep.subr.mxu0 0.0
        %5626 = vmatpush2.msra.mxu0 0.0
        %5627 = vmatprep.subr.mxu0 0.0
        %5628 = vmatpush2.msra.mxu0 0.0
        %5629 = vmatprep.subr.mxu0 0.0
        %5630 = vmatpush2.msra.mxu0 0.0
        %5631 = vmatprep.subr.mxu0 0.0
        %5632 = vmatpush2.msra.mxu0 0.0
        %5633 = vmatprep.subr.mxu0 0.0
        %5634 = vmatpush2.msra.mxu0 0.0
        %5635 = vmatprep.subr.mxu0 0.0
        %5636 = vmatpush2.msra.mxu0 0.0
        %5637 = vmatprep.subr.mxu0 0.0
        %5638 = vmatpush2.msra.mxu0 0.0
        %5639 = vmatprep.mubr.f32.mxu0 0.0
        %5640 = vmatmul.mubr.f32.gmra.mxu0 %v3267
        %v5641 = vpop.f32.mrf.mxu0
        %v5642 = vadd.f32 0.0, %v5641
        %v5643 = vpop.f32.mrf.mxu0
        %5644 = vdwg.mxu0
        %s5645 = scalar_lea.vmem %s5, 224
        %v5646 = vld [vmem:[%s5645] sm:$0xff]
        %v5647 = vld [vmem:[%s5645 + $0x8] sm:$0xff]
        %v5649 = vsel %vm3423, %v5646, 0
        %v5652 = vsel %vm3423, %v5647, 0
        %5654 = vmatprep.subr.mxu0 0.0
        %5655 = vmatpush1.msra.mxu0 0.0
        %5656 = vmatprep.subr.mxu0 0.0
        %5657 = vmatpush1.msra.mxu0 0.0
        %5658 = vmatprep.subr.mxu0 0.0
        %5659 = vmatpush1.msra.mxu0 0.0
        %5660 = vmatprep.subr.mxu0 0.0
        %5661 = vmatpush1.msra.mxu0 0.0
        %5662 = vmatprep.subr.mxu0 0.0
        %5663 = vmatpush1.msra.mxu0 0.0
        %5664 = vmatprep.subr.mxu0 0.0
        %5665 = vmatpush1.msra.mxu0 0.0
        %5666 = vmatprep.subr.mxu0 0.0
        %5667 = vmatpush1.msra.mxu0 0.0
        %5668 = vmatprep.subr.mxu0 0.0
        %5669 = vmatpush1.msra.mxu0 0.0
        %5670 = vmatprep.subr.mxu0 0.0
        %5671 = vmatpush1.msra.mxu0 0.0
        %5672 = vmatprep.subr.mxu0 0.0
        %5673 = vmatpush1.msra.mxu0 0.0
        %5674 = vmatprep.subr.mxu0 0.0
        %5675 = vmatpush1.msra.mxu0 0.0
        %5676 = vmatprep.subr.mxu0 0.0
        %5677 = vmatpush1.msra.mxu0 0.0
        %5678 = vmatprep.subr.mxu0 0.0
        %5679 = vmatpush1.msra.mxu0 0.0
        %5680 = vmatprep.subr.mxu0 0.0
        %5681 = vmatpush1.msra.mxu0 0.0
        %5682 = vmatprep.subr.mxu0 0.0
        %5683 = vmatpush1.msra.mxu0 0.0
        %5684 = vmatprep.subr.mxu0 0.0
        %5685 = vmatpush1.msra.mxu0 %v5642
        %5686 = vmatprep.subr.mxu0 0.0
        %5687 = vmatpush2.msra.mxu0 0.0
        %5688 = vmatprep.subr.mxu0 0.0
        %5689 = vmatpush2.msra.mxu0 0.0
        %5690 = vmatprep.subr.mxu0 0.0
        %5691 = vmatpush2.msra.mxu0 0.0
        %5692 = vmatprep.subr.mxu0 0.0
        %5693 = vmatpush2.msra.mxu0 0.0
        %5694 = vmatprep.subr.mxu0 0.0
        %5695 = vmatpush2.msra.mxu0 0.0
        %5696 = vmatprep.subr.mxu0 0.0
        %5697 = vmatpush2.msra.mxu0 0.0
        %5698 = vmatprep.subr.mxu0 0.0
        %5699 = vmatpush2.msra.mxu0 0.0
        %5700 = vmatprep.subr.mxu0 0.0
        %5701 = vmatpush2.msra.mxu0 0.0
        %5702 = vmatprep.subr.mxu0 0.0
        %5703 = vmatpush2.msra.mxu0 0.0
        %5704 = vmatprep.subr.mxu0 0.0
        %5705 = vmatpush2.msra.mxu0 0.0
        %5706 = vmatprep.subr.mxu0 0.0
        %5707 = vmatpush2.msra.mxu0 0.0
        %5708 = vmatprep.subr.mxu0 0.0
        %5709 = vmatpush2.msra.mxu0 0.0
        %5710 = vmatprep.subr.mxu0 0.0
        %5711 = vmatpush2.msra.mxu0 0.0
        %5712 = vmatprep.subr.mxu0 0.0
        %5713 = vmatpush2.msra.mxu0 0.0
        %5714 = vmatprep.subr.mxu0 0.0
        %5715 = vmatpush2.msra.mxu0 0.0
        %5716 = vmatprep.subr.mxu0 0.0
        %5717 = vmatpush2.msra.mxu0 0.0
        %5718 = vmatprep.mubr.f32.mxu0 0.0
        %5719 = vmatmul.mubr.f32.gmra.mxu0 %v5649
        %v5720 = vpop.f32.mrf.mxu0
        %v5721 = vadd.f32 0.0, %v5720
        %v5722 = vpop.f32.mrf.mxu0
        %5723 = vmatprep.mubr.f32.mxu0 0.0
        %5724 = vmatmul.mubr.f32.gmra.mxu0 %v5652
        %v5725 = vpop.f32.mrf.mxu0
        %v5726 = vadd.f32 0.0, %v5725
        %v5727 = vpop.f32.mrf.mxu0
        %5728 = vdwg.mxu0
        %v5729 = vadd.f32 %v5564, %v5721
        %v5730 = vadd.f32 %v5565, %v5726
        %s5731 = scalar_lea.vmem %s4, 960
        %v5732 = vld [vmem:[%s5731] sm:$0xff]
        %v5733 = vld [vmem:[%s5731 + $0x8] sm:$0xff]
        %v5734 = vld [vmem:[%s5731 + $0x10] sm:$0xff]
        %v5735 = vld [vmem:[%s5731 + $0x18] sm:$0xff]
        %v5736 = vld [vmem:[%s5731 + $0x20] sm:$0xff]
        %v5737 = vld [vmem:[%s5731 + $0x28] sm:$0xff]
        %v5738 = vld [vmem:[%s5731 + $0x30] sm:$0xff]
        %v5739 = vld [vmem:[%s5731 + $0x38] sm:$0xff]
        %5740 = vmatprep.subr.mxu0 0.0
        %5741 = vmatpush1.msra.mxu0 0.0
        %5742 = vmatprep.subr.mxu0 0.0
        %5743 = vmatpush1.msra.mxu0 0.0
        %5744 = vmatprep.subr.mxu0 0.0
        %5745 = vmatpush1.msra.mxu0 0.0
        %5746 = vmatprep.subr.mxu0 0.0
        %5747 = vmatpush1.msra.mxu0 0.0
        %5748 = vmatprep.subr.mxu0 0.0
        %5749 = vmatpush1.msra.mxu0 0.0
        %5750 = vmatprep.subr.mxu0 0.0
        %5751 = vmatpush1.msra.mxu0 0.0
        %5752 = vmatprep.subr.mxu0 0.0
        %5753 = vmatpush1.msra.mxu0 0.0
        %5754 = vmatprep.subr.mxu0 0.0
        %5755 = vmatpush1.msra.mxu0 0.0
        %5756 = vmatprep.subr.mxu0 0.0
        %5757 = vmatpush1.msra.mxu0 %v5739
        %5758 = vmatprep.subr.mxu0 0.0
        %5759 = vmatpush1.msra.mxu0 %v5738
        %5760 = vmatprep.subr.mxu0 0.0
        %5761 = vmatpush1.msra.mxu0 %v5737
        %5762 = vmatprep.subr.mxu0 0.0
        %5763 = vmatpush1.msra.mxu0 %v5736
        %5764 = vmatprep.subr.mxu0 0.0
        %5765 = vmatpush1.msra.mxu0 %v5735
        %5766 = vmatprep.subr.mxu0 0.0
        %5767 = vmatpush1.msra.mxu0 %v5734
        %5768 = vmatprep.subr.mxu0 0.0
        %5769 = vmatpush1.msra.mxu0 %v5733
        %5770 = vmatprep.subr.mxu0 0.0
        %5771 = vmatpush1.msra.mxu0 %v5732
        %5772 = vmatprep.subr.mxu0 0.0
        %5773 = vmatpush2.msra.mxu0 0.0
        %5774 = vmatprep.subr.mxu0 0.0
        %5775 = vmatpush2.msra.mxu0 0.0
        %5776 = vmatprep.subr.mxu0 0.0
        %5777 = vmatpush2.msra.mxu0 0.0
        %5778 = vmatprep.subr.mxu0 0.0
        %5779 = vmatpush2.msra.mxu0 0.0
        %5780 = vmatprep.subr.mxu0 0.0
        %5781 = vmatpush2.msra.mxu0 0.0
        %5782 = vmatprep.subr.mxu0 0.0
        %5783 = vmatpush2.msra.mxu0 0.0
        %5784 = vmatprep.subr.mxu0 0.0
        %5785 = vmatpush2.msra.mxu0 0.0
        %5786 = vmatprep.subr.mxu0 0.0
        %5787 = vmatpush2.msra.mxu0 0.0
        %5788 = vmatprep.subr.mxu0 0.0
        %5789 = vmatpush2.msra.mxu0 0.0
        %5790 = vmatprep.subr.mxu0 0.0
        %5791 = vmatpush2.msra.mxu0 0.0
        %5792 = vmatprep.subr.mxu0 0.0
        %5793 = vmatpush2.msra.mxu0 0.0
        %5794 = vmatprep.subr.mxu0 0.0
        %5795 = vmatpush2.msra.mxu0 0.0
        %5796 = vmatprep.subr.mxu0 0.0
        %5797 = vmatpush2.msra.mxu0 0.0
        %5798 = vmatprep.subr.mxu0 0.0
        %5799 = vmatpush2.msra.mxu0 0.0
        %5800 = vmatprep.subr.mxu0 0.0
        %5801 = vmatpush2.msra.mxu0 0.0
        %5802 = vmatprep.subr.mxu0 0.0
        %5803 = vmatpush2.msra.mxu0 0.0
        %5804 = vmatprep.mubr.f32.mxu0 0.0
        %5805 = vmatmul.mubr.f32.gmra.mxu0 %v3267
        %v5806 = vpop.f32.mrf.mxu0
        %v5807 = vadd.f32 0.0, %v5806
        %v5808 = vpop.f32.mrf.mxu0
        %5809 = vdwg.mxu0
        %s5810 = scalar_lea.vmem %s5, 240
        %v5811 = vld [vmem:[%s5810] sm:$0xff]
        %v5812 = vld [vmem:[%s5810 + $0x8] sm:$0xff]
        %v5814 = vsel %vm3423, %v5811, 0
        %v5817 = vsel %vm3423, %v5812, 0
        %5819 = vmatprep.subr.mxu0 0.0
        %5820 = vmatpush1.msra.mxu0 0.0
        %5821 = vmatprep.subr.mxu0 0.0
        %5822 = vmatpush1.msra.mxu0 0.0
        %5823 = vmatprep.subr.mxu0 0.0
        %5824 = vmatpush1.msra.mxu0 0.0
        %5825 = vmatprep.subr.mxu0 0.0
        %5826 = vmatpush1.msra.mxu0 0.0
        %5827 = vmatprep.subr.mxu0 0.0
        %5828 = vmatpush1.msra.mxu0 0.0
        %5829 = vmatprep.subr.mxu0 0.0
        %5830 = vmatpush1.msra.mxu0 0.0
        %5831 = vmatprep.subr.mxu0 0.0
        %5832 = vmatpush1.msra.mxu0 0.0
        %5833 = vmatprep.subr.mxu0 0.0
        %5834 = vmatpush1.msra.mxu0 0.0
        %5835 = vmatprep.subr.mxu0 0.0
        %5836 = vmatpush1.msra.mxu0 0.0
        %5837 = vmatprep.subr.mxu0 0.0
        %5838 = vmatpush1.msra.mxu0 0.0
        %5839 = vmatprep.subr.mxu0 0.0
        %5840 = vmatpush1.msra.mxu0 0.0
        %5841 = vmatprep.subr.mxu0 0.0
        %5842 = vmatpush1.msra.mxu0 0.0
        %5843 = vmatprep.subr.mxu0 0.0
        %5844 = vmatpush1.msra.mxu0 0.0
        %5845 = vmatprep.subr.mxu0 0.0
        %5846 = vmatpush1.msra.mxu0 0.0
        %5847 = vmatprep.subr.mxu0 0.0
        %5848 = vmatpush1.msra.mxu0 0.0
        %5849 = vmatprep.subr.mxu0 0.0
        %5850 = vmatpush1.msra.mxu0 %v5807
        %5851 = vmatprep.subr.mxu0 0.0
        %5852 = vmatpush2.msra.mxu0 0.0
        %5853 = vmatprep.subr.mxu0 0.0
        %5854 = vmatpush2.msra.mxu0 0.0
        %5855 = vmatprep.subr.mxu0 0.0
        %5856 = vmatpush2.msra.mxu0 0.0
        %5857 = vmatprep.subr.mxu0 0.0
        %5858 = vmatpush2.msra.mxu0 0.0
        %5859 = vmatprep.subr.mxu0 0.0
        %5860 = vmatpush2.msra.mxu0 0.0
        %5861 = vmatprep.subr.mxu0 0.0
        %5862 = vmatpush2.msra.mxu0 0.0
        %5863 = vmatprep.subr.mxu0 0.0
        %5864 = vmatpush2.msra.mxu0 0.0
        %5865 = vmatprep.subr.mxu0 0.0
        %5866 = vmatpush2.msra.mxu0 0.0
        %5867 = vmatprep.subr.mxu0 0.0
        %5868 = vmatpush2.msra.mxu0 0.0
        %5869 = vmatprep.subr.mxu0 0.0
        %5870 = vmatpush2.msra.mxu0 0.0
        %5871 = vmatprep.subr.mxu0 0.0
        %5872 = vmatpush2.msra.mxu0 0.0
        %5873 = vmatprep.subr.mxu0 0.0
        %5874 = vmatpush2.msra.mxu0 0.0
        %5875 = vmatprep.subr.mxu0 0.0
        %5876 = vmatpush2.msra.mxu0 0.0
        %5877 = vmatprep.subr.mxu0 0.0
        %5878 = vmatpush2.msra.mxu0 0.0
        %5879 = vmatprep.subr.mxu0 0.0
        %5880 = vmatpush2.msra.mxu0 0.0
        %5881 = vmatprep.subr.mxu0 0.0
        %5882 = vmatpush2.msra.mxu0 0.0
        %5883 = vmatprep.mubr.f32.mxu0 0.0
        %5884 = vmatmul.mubr.f32.gmra.mxu0 %v5814
        %v5885 = vpop.f32.mrf.mxu0
        %v5886 = vadd.f32 0.0, %v5885
        %v5887 = vpop.f32.mrf.mxu0
        %5888 = vmatprep.mubr.f32.mxu0 0.0
        %5889 = vmatmul.mubr.f32.gmra.mxu0 %v5817
        %v5890 = vpop.f32.mrf.mxu0
        %v5891 = vadd.f32 0.0, %v5890
        %v5892 = vpop.f32.mrf.mxu0
        %5893 = vdwg.mxu0
        %v5894 = vadd.f32 %v5729, %v5886
        %v5895 = vadd.f32 %v5730, %v5891
        %v5896 = vld [vmem:[%s6] sm:$0xff]
        %v5897 = vld [vmem:[%s6 + $0x8] sm:$0xff]
        %5899 = vset.pattern.permute.xlu0 0
        %5900 = vperm.xlu0 %5899, %v5896
        %v5901 = vpop.permute.xlu0 %5900
        %5904 = vset.pattern.permute.xlu0 0
        %5905 = vperm.xlu0 %5904, %v5897
        %v5906 = vpop.permute.xlu0 %5905
        %v5908 = vadd.f32 %v5894, %v5901
        %v5909 = vadd.f32 %v5895, %v5906
        %vm5910 = vcmp.ge.f32.partialorder %v5908, 0.0
        %vm5911 = vcmp.ge.f32.partialorder %v5909, 0.0
        %v5912 = vmul.f32 %v5908, 0.2
        %v5913 = vmul.f32 %v5909, 0.2
        %v5914 = vsel %vm5910, %v5908, %v5912
        %v5915 = vsel %vm5911, %v5909, %v5913
        %v5916 = vld [vmem:[%s7] sm:$0xff]
        %v5917 = vld [vmem:[%s7 + $0x8] sm:$0xff]
        %v5918 = vmul.f32 %v5914, %v5916
        %v5919 = vmul.f32 %v5915, %v5917
        %vm5920 = vcmask 130048
        %v5921 = vsel %vm5920, %v5918, 0.0
        %v5922 = vsel %vm5920, %v5919, 0.0
        %v5923 = vadd.f32 %v5921, %v5922
        %5924 = vadd.xlane.f32.xlu0 %v5923
        %v5925 = vpop.xlane.xlu0 %5924
        %v5926 = vrot.slane %v5925, 4
        %v5927 = vadd.f32 %v5925, %v5926
        %v5928 = vrot.slane %v5927, 2
        %v5929 = vadd.f32 %v5927, %v5928
        %v5930 = vrot.slane %v5929, 1
        %v5931 = vadd.f32 %v5929, %v5930
        %s5932 = vtos %v5931
        %v5933 = vstv %s5932
        %v5934 = vld [vmem:[#allocation2] sm:$0x1]
        %v5936 = vlaneseq
        %v5937 = vshrl.u32 %v5936, 7
        %v5938 = vsub.s32 0, %v5937
        %v5939 = vrot.slane %v5934, %v5938
        %5940 = vset.pattern.permute.xlu0 0
        %5941 = vperm.xlu0 %5940, %v5939
        %v5942 = vpop.permute.xlu0 %5941
        %v5944 = vadd.f32 %v5933, %v5942
        %5945 = vst [vmem:[%s327] sm:$0xff] %v5944
        %s5946 = sand.u32 %s227, 1
        %s5947 = scalar_lea.sflag [#allocation4], %s5946
        %s5948 = sand.u32 %s227, 1
        %s5949 = smul.addr %s5948, 8
        %s5950 = scalar_lea.vmem [#allocation3], %s5949
        // Predicated region
        $region57: #{tpu_custom_call.1} parent=55 // pred_check
          %p5951 = pneg %p237
        $region58: #{tpu_custom_call.1} parent=55 // pred_check_branch
          %5953 = sbr.rel (%p5951) target = $region60
        $region59: #{tpu_custom_call.1} parent=55 // pred_region
          %s5955 = ssub.s32 128, 128
          %5956 = vsyncadd %s5947, %s5955
          %s5957 = smul.addr %s25, 128
          %s5958 = scalar_lea.hbm %s9, %s5957
          %s5960 = sshll.u32 %s5950, 4
          %s5961 = int_to_ptr.vmem [resolvable:$true] %s5960
          %5963 = dma.vmem_to_hbm [thread:$0]  %s5961, 128, %s5958, %s5947
        $region60: #{tpu_custom_call.1} parent=55 // pred_fallthru
          _
      $region56: #{tpu_custom_call.1} parent=5 // pred_fallthru
        _
      %p5964 = scmp.le.s32.totalorder 2, %s20
      // Predicated region
      $region61: #{tpu_custom_call.1} parent=5 // pred_check
        %p5965 = pneg %p5964
      $region62: #{tpu_custom_call.1} parent=5 // pred_check_branch
        %5967 = sbr.rel (%p5965) target = $region64
      $region63: #{tpu_custom_call.1} parent=5 // pred_region
        %s5968 = ssub.s32 %s20, 2
        // Predicated region
        $region65: #{tpu_custom_call.1} parent=63 // pred_check
          %p5969 = pneg %p243
        $region66: #{tpu_custom_call.1} parent=63 // pred_check_branch
          %5971 = sbr.rel (%p5969) target = $region68
        $region67: #{tpu_custom_call.1} parent=63 // pred_region
          %s5972 = sand.u32 %s228, 1
          %s5973 = scalar_lea.sflag [#allocation4], %s5972
          %s5974 = sand.u32 %s228, 1
          %s5975 = smul.addr %s5974, 8
          %s5976 = scalar_lea.vmem [#allocation3], %s5975
          %5977 = dma.done %s5973, 128
        $region68: #{tpu_custom_call.1} parent=63 // pred_fallthru
          _
      $region64: #{tpu_custom_call.1} parent=5 // pred_fallthru
        _
    $region6: #{tpu_custom_call.1} parent=1 // loop_footer
      %s24 = sadd.s32 1, %s20
    $region7: #{tpu_custom_call.1} parent=1 // loop_footer_branch
      %19 = sbr.rel target = $region3
    $region8: #{tpu_custom_call.1} parent=1 // loop_exit
      _
    %5978 = vsyncpa [#allocation4], 1
    %s5979 = scalar_lea.sflag [#allocation4], 1
    %5980 = vsyncpa %s5979, 1

</llo_original>
